<compile_context>
chip_gen: v6e
topology: v6e:2x2x1
jax: 0.10.0
libtpu: 0.0.40
codegen_flags: <defaults>
</compile_context>

<pallas_src>
import functools
import math

import jax
import jax.numpy as jnp
import numpy as np
from jax import lax
from jax.experimental import pallas as pl
from jax.experimental.pallas import tpu as pltpu


# ----------------------------- kernel helpers ------------------------------

def _relu(v):
    return jnp.maximum(v, 0.0)


def _softplus(v):
    # numerically stable softplus, matches torch.nn.Softplus
    return jnp.maximum(v, 0.0) + jnp.log1p(jnp.exp(-jnp.abs(v)))


def _sigmoid(v):
    # overflow-robust sigmoid via EUP tanh (free slot vs VALU)
    return 0.5 * (jnp.tanh(0.5 * v) + 1.0)


# --------------------------------- kernel ----------------------------------

def vrnn_kernel(T, B, *refs):
    (ab_ref, x_ref, eps_ref,
     pxW0, pxb0, pxW1, pxb1,                       # phi_x MLP
     WxCat, eb0, eW1, eb1, Weh, beh,               # enc path (phi_x half fused into WxCat)
     pzW, pzb, WizT, WhCat,                        # phi_z, GRU-input phi_z half, h_prev slab
     WhPost, prb, Wph, bph, WdzT, db0, dW1, db1, dmW, dmb,   # deferred prior + decoder
     loss_ref, z_ref, h_ref,                       # outputs
     hoist_sc, h_hist, pz_hist, es_hist) = refs    # VMEM scratch

    f32 = jnp.float32
    h_dim = eW1.shape[0]
    z_dim = pzW.shape[0]
    x_dim = x_ref.shape[1]

    alpha = ab_ref[0]
    beta = ab_ref[1]

    def mm(a, w_ref):
        return jnp.dot(a, w_ref[...], preferred_element_type=f32)

    # ---------------- pre-pass: h-independent work, batched over T*B rows ---
    X = x_ref[...]                                           # (T*B, x_dim)
    phi_x_all = _relu(mm(X, pxW0) + pxb0[...])
    phi_x_all = _relu(mm(phi_x_all, pxW1) + pxb1[...])
    hoist_sc[...] = mm(phi_x_all, WxCat)                     # (T*B, 4h): [enc0_x | gi_x(r,z,n)]

    # Loop-invariant bias broadcasts hoisted out of the recurrence
    # (JAX does not CSE broadcast_in_dim; unrolled loop would re-emit them).
    eb0_b = jnp.broadcast_to(eb0[...], (B, h_dim))
    eb1_b = jnp.broadcast_to(eb1[...], (B, h_dim))
    beh_b = jnp.broadcast_to(beh[...], (B, 2 * z_dim))
    pzb_b = jnp.broadcast_to(pzb[...], (B, h_dim))

    # ---------------------------- sequential recurrence ---------------------
    def step(t, carry):
        h_prev, _ = carry
        r0 = pl.multiple_of(t * B, B)
        eps_t = eps_ref[pl.ds(r0, B), :]                     # (B, z_dim)
        hx = hoist_sc[pl.ds(r0, B), :]                       # (B, 4h)
        enc0x = hx[:, :h_dim]
        gi_x = hx[:, h_dim:]

        # stash h_prev for the deferred prior / decoder / loss post-pass
        h_hist[pl.ds(r0, B), :] = h_prev

        # only the h_prev projections that feed h_{t+1}: [enc0_h | GRU hh]
        h_all = mm(h_prev, WhCat)                            # (B, 4h)
        e0h = h_all[:, :h_dim]
        gh = h_all[:, h_dim:]

        # encoder
        e0 = _relu(enc0x + e0h + eb0_b)
        enc_t = _relu(mm(e0, eW1) + eb1_b)
        eh = mm(enc_t, Weh) + beh_b                          # (B, 2z): [mean | std_pre]
        es_hist[pl.ds(r0, B), :] = eh                        # raw head -> KL post-pass

        enc_mean = eh[:, :z_dim]
        enc_std = _softplus(eh[:, z_dim:])
        # reparameterized sample: Normal(mean, std).rsample() == mean + std*eps
        z_t = enc_mean + enc_std * eps_t

        phi_z = _relu(mm(z_t, pzW) + pzb_b)
        pz_hist[pl.ds(r0, B), :] = phi_z                     # for deferred decoder
        gi_z = mm(phi_z, WizT)                               # (B, 3h)

        # single-layer GRU cell, bias=False, PyTorch gate order (r, z, n)
        gi = gi_x + gi_z
        r = _sigmoid(gi[:, :h_dim] + gh[:, :h_dim])
        u = _sigmoid(gi[:, h_dim:2 * h_dim] + gh[:, h_dim:2 * h_dim])
        n = jnp.tanh(gi[:, 2 * h_dim:] + r * gh[:, 2 * h_dim:])
        h_new = (1.0 - u) * n + u * h_prev
        return h_new, z_t

    h0 = jnp.zeros((B, h_dim), f32)
    z0 = jnp.zeros((B, z_dim), f32)
    unroll = T if T <= 16 else 4                             # bounded unroll at large T
    h_last, z_last = lax.fori_loop(0, T, step, (h0, z0), unroll=unroll)

    # write final-state outputs exactly once (separate slabs, no concat)
    z_ref[...] = z_last
    h_ref[...] = h_last

    # ------------- deferred prior / decoder / ELBO, batched over T*B rows ---
    hp = mm(h_hist[...], WhPost)                             # (T*B, 2h): [prior | dec0_h]
    prior_t = _relu(hp[:, :h_dim] + prb[...])
    ph = mm(prior_t, Wph) + bph[...]                         # (T*B, 2z)
    prior_mean = ph[:, :z_dim]
    prior_std = _softplus(ph[:, z_dim:])

    d0 = _relu(mm(pz_hist[...], WdzT) + hp[:, h_dim:] + db0[...])
    dec_t = _relu(mm(d0, dW1) + db1[...])
    dec_mean = _sigmoid(mm(dec_t, dmW) + dmb[...])           # (T*B, x_dim)

    es = es_hist[...]
    enc_mean_a = es[:, :z_dim]
    enc_std_a = _softplus(es[:, z_dim:])

    # sum_t alpha*mean((x_t - dec_mean_t)^2) == alpha * sum / (B*x_dim)
    recon_sum = jnp.sum((X - dec_mean) ** 2)
    kl_sum = jnp.sum(
        jnp.log(prior_std / enc_std_a)
        + (enc_std_a ** 2 + (enc_mean_a - prior_mean) ** 2)
        / (2.0 * prior_std ** 2)
        - 0.5)

    total = alpha * (recon_sum * (1.0 / float(B * x_dim))) + beta * kl_sum
    loss_ref[...] = jnp.reshape(total * (1.0 / float(B * T)), (1, 1))


# --------------------------------- wrapper ---------------------------------

def vrnn_pallas(x, eps, params, n_layers=1, alpha=1.0, beta=1.0):
    # TODO(synk): stacked GRU (n_layers > 1) not implemented; the module's
    # h.squeeze(0) only collapses cleanly when n_layers == 1 anyway.
    assert n_layers == 1

    B, T, x_dim = x.shape
    z_dim = eps.shape[-1]
    h_dim = params["phi_x.0.W"].shape[0]
    f32 = jnp.float32

    tp = lambda w: jnp.asarray(w, f32).T            # torch (out,in) -> (in,out)
    row = lambda b: jnp.asarray(b, f32).reshape(1, -1)

    encW0 = tp(params["enc.0.W"])                   # (2h, h): rows [:h]=phi_x, [h:]=h
    decW0 = tp(params["dec.0.W"])                   # (2h, h): rows [:h]=phi_z, [h:]=h
    WihT = tp(params["gru.weight_ih"])              # (2h, 3h): rows [:h]=phi_x, [h:]=phi_z
    WhhT = tp(params["gru.weight_hh"])              # (h, 3h)

    w_list = [
        # phi_x MLP
        tp(params["phi_x.0.W"]), row(params["phi_x.0.b"]),
        tp(params["phi_x.2.W"]), row(params["phi_x.2.b"]),
        # hoisted phi_x projections: [enc layer-0 phi_x half | GRU input phi_x half]
        jnp.concatenate([encW0[:h_dim], WihT[:h_dim]], axis=1),             # WxCat (h, 4h)
        row(params["enc.0.b"]),
        tp(params["enc.2.W"]), row(params["enc.2.b"]),
        jnp.concatenate([tp(params["enc_mean.W"]), tp(params["enc_std.W"])], axis=1),   # Weh
        jnp.concatenate([row(params["enc_mean.b"]), row(params["enc_std.b"])], axis=1),  # beh
        tp(params["phi_z.0.W"]), row(params["phi_z.0.b"]),
        WihT[h_dim:],                                                        # WizT (h, 3h)
        # per-step h_prev slab: [enc layer-0 h half | GRU hidden]
        jnp.concatenate([encW0[h_dim:], WhhT], axis=1),                      # WhCat (h, 4h)
        # deferred (post-pass) h_prev slab: [prior layer-0 | dec layer-0 h half]
        jnp.concatenate([tp(params["prior.0.W"]), decW0[h_dim:]], axis=1),   # WhPost (h, 2h)
        row(params["prior.0.b"]),
        jnp.concatenate([tp(params["prior_mean.W"]), tp(params["prior_std.W"])], axis=1),  # Wph
        jnp.concatenate([row(params["prior_mean.b"]), row(params["prior_std.b"])], axis=1),  # bph
        decW0[:h_dim],                                                       # WdzT (h, h)
        row(params["dec.0.b"]),
        tp(params["dec.2.W"]), row(params["dec.2.b"]),
        tp(params["dec_mean.W"]), row(params["dec_mean.b"]),
    ]
    # dec_std.* is intentionally not shipped to the kernel (never used downstream).

    # torch: x.reshape(x.size(1), x.size(0), -1) is a raw memory-order reshape;
    # flattening (B,T,x)->(T*B,x) preserves exactly that ordering.
    x_flat = jnp.reshape(jnp.asarray(x, f32), (T * B, x_dim))
    eps_flat = jnp.reshape(jnp.asarray(eps, f32), (T * B, z_dim))
    ab = jnp.array([alpha, beta], f32)

    smem_spec = pl.BlockSpec(memory_space=pltpu.MemorySpace.SMEM)
    vmem_spec = pl.BlockSpec(memory_space=pltpu.MemorySpace.VMEM)
    in_specs = [smem_spec, vmem_spec, vmem_spec] + [vmem_spec] * len(w_list)

    out_shape = (
        jax.ShapeDtypeStruct((1, 1), f32),                 # mean ELBO loss
        jax.ShapeDtypeStruct((B, z_dim), f32),             # z_last
        jax.ShapeDtypeStruct((B, h_dim), f32),             # h_last
    )
    out_specs = (vmem_spec, vmem_spec, vmem_spec)

    scratch_shapes = [
        pltpu.VMEM((T * B, 4 * h_dim), f32),   # hoisted phi_x projections
        pltpu.VMEM((T * B, h_dim), f32),       # h_prev history (deferred prior/dec)
        pltpu.VMEM((T * B, h_dim), f32),       # phi_z history (deferred decoder)
        pltpu.VMEM((T * B, 2 * z_dim), f32),   # enc head [mean | std_pre] history (KL)
    ]

    # Scoped-VMEM limit sized from the real footprint (default 16/32 MiB would
    # cap production shapes long before physical VMEM).
    vmem_bytes = 4 * (
        int(x_flat.size) + int(eps_flat.size)
        + sum(int(w.size) for w in w_list)
        + T * B * (4 * h_dim + 2 * h_dim + 2 * z_dim)
        + 1 + B * (z_dim + h_dim))
    vmem_limit = int(min(128 << 20, max(32 << 20, 2 * vmem_bytes + (8 << 20))))

    loss, z_last, h_last = pl.pallas_call(
        functools.partial(vrnn_kernel, T, B),
        out_shape=out_shape,
        in_specs=in_specs,
        out_specs=out_specs,
        scratch_shapes=scratch_shapes,
        compiler_params=pltpu.CompilerParams(vmem_limit_bytes=vmem_limit),
    )(ab, x_flat, eps_flat, *w_list)

    return loss[0, 0], z_last, h_last


# --------------------------- parameter construction -------------------------

def _linear(key, in_dim, out_dim):
    k1, k2 = jax.random.split(key)
    bound = 1.0 / math.sqrt(in_dim)
    W = jax.random.uniform(k1, (out_dim, in_dim), jnp.float32, -bound, bound)
    b = jax.random.uniform(k2, (out_dim,), jnp.float32, -bound, bound)
    return W, b


def init_params(key, x_dim, h_dim, z_dim):
    ks = jax.random.split(key, 16)
    p = {}
    p["phi_x.0.W"], p["phi_x.0.b"] = _linear(ks[0], x_dim, h_dim)
    p["phi_x.2.W"], p["phi_x.2.b"] = _linear(ks[1], h_dim, h_dim)
    p["phi_z.0.W"], p["phi_z.0.b"] = _linear(ks[2], z_dim, h_dim)
    p["enc.0.W"], p["enc.0.b"] = _linear(ks[3], 2 * h_dim, h_dim)
    p["enc.2.W"], p["enc.2.b"] = _linear(ks[4], h_dim, h_dim)
    p["enc_mean.W"], p["enc_mean.b"] = _linear(ks[5], h_dim, z_dim)
    p["enc_std.W"], p["enc_std.b"] = _linear(ks[6], h_dim, z_dim)
    p["prior.0.W"], p["prior.0.b"] = _linear(ks[7], h_dim, h_dim)
    p["prior_mean.W"], p["prior_mean.b"] = _linear(ks[8], h_dim, z_dim)
    p["prior_std.W"], p["prior_std.b"] = _linear(ks[9], h_dim, z_dim)
    p["dec.0.W"], p["dec.0.b"] = _linear(ks[10], 2 * h_dim, h_dim)
    p["dec.2.W"], p["dec.2.b"] = _linear(ks[11], h_dim, h_dim)
    p["dec_mean.W"], p["dec_mean.b"] = _linear(ks[12], h_dim, x_dim)
    p["dec_std.W"], p["dec_std.b"] = _linear(ks[13], h_dim, x_dim)  # unused downstream
    gb = 1.0 / math.sqrt(h_dim)
    p["gru.weight_ih"] = jax.random.uniform(ks[14], (3 * h_dim, 2 * h_dim),
                                            jnp.float32, -gb, gb)
    p["gru.weight_hh"] = jax.random.uniform(ks[15], (3 * h_dim, h_dim),
                                            jnp.float32, -gb, gb)
    return p


# ----------------------------- pure-JAX reference ---------------------------

def vrnn_reference(x, eps, params, alpha=1.0, beta=1.0):
    B, T, x_dim = x.shape
    h_dim = params["phi_x.0.W"].shape[0]
    z_dim = params["enc_mean.W"].shape[0]
    xr = jnp.reshape(jnp.asarray(x, jnp.float32), (T, B, x_dim))
    epsr = jnp.asarray(eps, jnp.float32)

    hp = lax.Precision.HIGHEST
    lin = lambda a, W, b: jnp.dot(a, W.T, precision=hp) + b   # torch Linear
    relu = lambda v: jnp.maximum(v, 0.0)
    sp = jax.nn.softplus
    sg = jax.nn.sigmoid
    Wih, Whh = params["gru.weight_ih"], params["gru.weight_hh"]

    h = jnp.zeros((B, h_dim), jnp.float32)
    loss = jnp.float32(0.0)
    z_t = jnp.zeros((B, z_dim), jnp.float32)
    for t in range(T):
        x_t, eps_t = xr[t], epsr[t]
        phi_x = relu(lin(x_t, params["phi_x.0.W"], params["phi_x.0.b"]))
        phi_x = relu(lin(phi_x, params["phi_x.2.W"], params["phi_x.2.b"]))
        enc_t = relu(lin(jnp.concatenate([phi_x, h], 1),
                         params["enc.0.W"], params["enc.0.b"]))
        enc_t = relu(lin(enc_t, params["enc.2.W"], params["enc.2.b"]))
        enc_mean = lin(enc_t, params["enc_mean.W"], params["enc_mean.b"])
        enc_std = sp(lin(enc_t, params["enc_std.W"], params["enc_std.b"]))
        prior_t = relu(lin(h, params["prior.0.W"], params["prior.0.b"]))
        prior_mean = lin(prior_t, params["prior_mean.W"], params["prior_mean.b"])
        prior_std = sp(lin(prior_t, params["prior_std.W"], params["prior_std.b"]))
        z_t = enc_mean + enc_std * eps_t
        phi_z = relu(lin(z_t, params["phi_z.0.W"], params["phi_z.0.b"]))
        dec_t = relu(lin(jnp.concatenate([phi_z, h], 1),
                         params["dec.0.W"], params["dec.0.b"]))
        dec_t = relu(lin(dec_t, params["dec.2.W"], params["dec.2.b"]))
        dec_mean = sg(lin(dec_t, params["dec_mean.W"], params["dec_mean.b"]))
        gi = jnp.dot(jnp.concatenate([phi_x, phi_z], 1), Wih.T, precision=hp)
        gh = jnp.dot(h, Whh.T, precision=hp)
        r = sg(gi[:, :h_dim] + gh[:, :h_dim])
        u = sg(gi[:, h_dim:2 * h_dim] + gh[:, h_dim:2 * h_dim])
        n = jnp.tanh(gi[:, 2 * h_dim:] + r * gh[:, 2 * h_dim:])
        h = (1.0 - u) * n + u * h
        recon = alpha * jnp.mean((x_t - dec_mean) ** 2)
        kl = jnp.sum(jnp.log(prior_std / enc_std)
                     + (enc_std ** 2 + (enc_mean - prior_mean) ** 2)
                     / (2.0 * prior_std ** 2) - 0.5)
        loss = loss + recon + beta * kl
    return loss / (B * T), z_t, h


# ----------------------------------- main -----------------------------------

if __name__ == "__main__":
    B, T = 8, 8
    x_dim, h_dim, z_dim, n_layers = 16, 32, 16, 1
    alpha, beta = 1.0, 1.0

    key = jax.random.PRNGKey(0)
    kx, keps, kw = jax.random.split(key, 3)
    x = jax.random.uniform(kx, (B, T, x_dim), jnp.float32)      # caller layout
    eps = jax.random.normal(keps, (T, B, z_dim), jnp.float32)   # reparam noise
    params = init_params(kw, x_dim, h_dim, z_dim)

    loss, z_t, h = vrnn_pallas(x, eps, params, n_layers=n_layers,
                               alpha=alpha, beta=beta)
    jax.block_until_ready((loss, z_t, h))

    loss_ref, z_ref, h_ref = vrnn_reference(x, eps, params, alpha=alpha, beta=beta)
    np.testing.assert_allclose(np.asarray(loss), np.asarray(loss_ref),
                               rtol=5e-3, atol=5e-3)
    np.testing.assert_allclose(np.asarray(z_t), np.asarray(z_ref),
                               rtol=5e-3, atol=5e-3)
    np.testing.assert_allclose(np.asarray(h), np.asarray(h_ref),
                               rtol=5e-3, atol=5e-3)

    print("KERNEL_OK")
</pallas_src>

<mosaic_0001>
module attributes {stable_mosaic.version = 11 : i64} {
  func.func @vrnn_kernel(%arg0: memref<2xf32, #tpu.memory_space<smem>>, %arg1: memref<64x16xf32, #tpu.memory_space<vmem>>, %arg2: memref<64x16xf32, #tpu.memory_space<vmem>>, %arg3: memref<16x32xf32, #tpu.memory_space<vmem>>, %arg4: memref<1x32xf32, #tpu.memory_space<vmem>>, %arg5: memref<32x32xf32, #tpu.memory_space<vmem>>, %arg6: memref<1x32xf32, #tpu.memory_space<vmem>>, %arg7: memref<32x128xf32, #tpu.memory_space<vmem>>, %arg8: memref<1x32xf32, #tpu.memory_space<vmem>>, %arg9: memref<32x32xf32, #tpu.memory_space<vmem>>, %arg10: memref<1x32xf32, #tpu.memory_space<vmem>>, %arg11: memref<32x32xf32, #tpu.memory_space<vmem>>, %arg12: memref<1x32xf32, #tpu.memory_space<vmem>>, %arg13: memref<16x32xf32, #tpu.memory_space<vmem>>, %arg14: memref<1x32xf32, #tpu.memory_space<vmem>>, %arg15: memref<32x96xf32, #tpu.memory_space<vmem>>, %arg16: memref<32x128xf32, #tpu.memory_space<vmem>>, %arg17: memref<32x64xf32, #tpu.memory_space<vmem>>, %arg18: memref<1x32xf32, #tpu.memory_space<vmem>>, %arg19: memref<32x32xf32, #tpu.memory_space<vmem>>, %arg20: memref<1x32xf32, #tpu.memory_space<vmem>>, %arg21: memref<32x32xf32, #tpu.memory_space<vmem>>, %arg22: memref<1x32xf32, #tpu.memory_space<vmem>>, %arg23: memref<32x32xf32, #tpu.memory_space<vmem>>, %arg24: memref<1x32xf32, #tpu.memory_space<vmem>>, %arg25: memref<32x16xf32, #tpu.memory_space<vmem>>, %arg26: memref<1x16xf32, #tpu.memory_space<vmem>>, %arg27: memref<1x1xf32, #tpu.memory_space<vmem>>, %arg28: memref<8x16xf32, #tpu.memory_space<vmem>>, %arg29: memref<8x32xf32, #tpu.memory_space<vmem>>, %arg30: memref<64x128xf32, #tpu.memory_space<vmem>>, %arg31: memref<64x32xf32, #tpu.memory_space<vmem>>, %arg32: memref<64x32xf32, #tpu.memory_space<vmem>>, %arg33: memref<64x32xf32, #tpu.memory_space<vmem>>) attributes {dimension_semantics = [], scalar_prefetch = 0 : i64, scratch_operands = 4 : i64, tpu.core_type = #tpu.core_type<tc>} {
    %c0 = arith.constant 0 : index
    %0 = memref.load %arg0[%c0] : memref<2xf32, #tpu.memory_space<smem>>
    %c1 = arith.constant 1 : index
    %1 = memref.load %arg0[%c1] : memref<2xf32, #tpu.memory_space<smem>>
    %c0_0 = arith.constant 0 : index
    %c0_1 = arith.constant 0 : index
    %2 = vector.load %arg1[%c0_0, %c0_1] : memref<64x16xf32, #tpu.memory_space<vmem>>, vector<64x16xf32>
    %c0_2 = arith.constant 0 : index
    %c0_3 = arith.constant 0 : index
    %3 = vector.load %arg3[%c0_2, %c0_3] : memref<16x32xf32, #tpu.memory_space<vmem>>, vector<16x32xf32>
    %cst = arith.constant dense<0.000000e+00> : vector<64x32xf32>
    %4 = tpu.matmul %2, %3, %cst {dimension_numbers = #tpu.dot_dimension_numbers<[1], [0], [0], [1], [0, 0, 1, 1], [], []>} : vector<64x16xf32>, vector<16x32xf32>, vector<64x32xf32> -> vector<64x32xf32>
    %c0_4 = arith.constant 0 : index
    %c0_5 = arith.constant 0 : index
    %5 = vector.load %arg4[%c0_4, %c0_5] : memref<1x32xf32, #tpu.memory_space<vmem>>, vector<1x32xf32>
    %6 = vector.broadcast %5 : vector<1x32xf32> to vector<64x32xf32>
    %7 = arith.addf %4, %6 : vector<64x32xf32>
    %cst_6 = arith.constant 0.000000e+00 : f32
    %8 = vector.broadcast %cst_6 : f32 to vector<64x32xf32>
    %9 = arith.maximumf %7, %8 : vector<64x32xf32>
    %c0_7 = arith.constant 0 : index
    %c0_8 = arith.constant 0 : index
    %10 = vector.load %arg5[%c0_7, %c0_8] : memref<32x32xf32, #tpu.memory_space<vmem>>, vector<32x32xf32>
    %cst_9 = arith.constant dense<0.000000e+00> : vector<64x32xf32>
    %11 = tpu.matmul %9, %10, %cst_9 {dimension_numbers = #tpu.dot_dimension_numbers<[1], [0], [0], [1], [0, 0, 1, 1], [], []>} : vector<64x32xf32>, vector<32x32xf32>, vector<64x32xf32> -> vector<64x32xf32>
    %c0_10 = arith.constant 0 : index
    %c0_11 = arith.constant 0 : index
    %12 = vector.load %arg6[%c0_10, %c0_11] : memref<1x32xf32, #tpu.memory_space<vmem>>, vector<1x32xf32>
    %13 = vector.broadcast %12 : vector<1x32xf32> to vector<64x32xf32>
    %14 = arith.addf %11, %13 : vector<64x32xf32>
    %cst_12 = arith.constant 0.000000e+00 : f32
    %15 = vector.broadcast %cst_12 : f32 to vector<64x32xf32>
    %16 = arith.maximumf %14, %15 : vector<64x32xf32>
    %c0_13 = arith.constant 0 : index
    %c0_14 = arith.constant 0 : index
    %17 = vector.load %arg7[%c0_13, %c0_14] : memref<32x128xf32, #tpu.memory_space<vmem>>, vector<32x128xf32>
    %cst_15 = arith.constant dense<0.000000e+00> : vector<64x128xf32>
    %18 = tpu.matmul %16, %17, %cst_15 {dimension_numbers = #tpu.dot_dimension_numbers<[1], [0], [0], [1], [0, 0, 1, 1], [], []>} : vector<64x32xf32>, vector<32x128xf32>, vector<64x128xf32> -> vector<64x128xf32>
    %c0_16 = arith.constant 0 : index
    %c0_17 = arith.constant 0 : index
    %19 = vector.load %arg30[%c0_16, %c0_17] : memref<64x128xf32, #tpu.memory_space<vmem>>, vector<64x128xf32>
    tpu.vector_store %arg30[%c0_16, %c0_17], %18 {strides = array<i32>} : memref<64x128xf32, #tpu.memory_space<vmem>>, vector<64x128xf32>,
    %c0_18 = arith.constant 0 : index
    %c0_19 = arith.constant 0 : index
    %20 = vector.load %arg8[%c0_18, %c0_19] : memref<1x32xf32, #tpu.memory_space<vmem>>, vector<1x32xf32>
    %21 = vector.shape_cast %20 : vector<1x32xf32> to vector<1x32xf32>
    %22 = vector.broadcast %21 : vector<1x32xf32> to vector<8x32xf32>
    %c0_20 = arith.constant 0 : index
    %c0_21 = arith.constant 0 : index
    %23 = vector.load %arg10[%c0_20, %c0_21] : memref<1x32xf32, #tpu.memory_space<vmem>>, vector<1x32xf32>
    %24 = vector.shape_cast %23 : vector<1x32xf32> to vector<1x32xf32>
    %25 = vector.broadcast %24 : vector<1x32xf32> to vector<8x32xf32>
    %c0_22 = arith.constant 0 : index
    %c0_23 = arith.constant 0 : index
    %26 = vector.load %arg12[%c0_22, %c0_23] : memref<1x32xf32, #tpu.memory_space<vmem>>, vector<1x32xf32>
    %27 = vector.shape_cast %26 : vector<1x32xf32> to vector<1x32xf32>
    %28 = vector.broadcast %27 : vector<1x32xf32> to vector<8x32xf32>
    %c0_24 = arith.constant 0 : index
    %c0_25 = arith.constant 0 : index
    %29 = vector.load %arg14[%c0_24, %c0_25] : memref<1x32xf32, #tpu.memory_space<vmem>>, vector<1x32xf32>
    %30 = vector.shape_cast %29 : vector<1x32xf32> to vector<1x32xf32>
    %31 = vector.broadcast %30 : vector<1x32xf32> to vector<8x32xf32>
    %cst_26 = arith.constant 0.000000e+00 : f32
    %32 = vector.broadcast %cst_26 : f32 to vector<8x32xf32>
    %cst_27 = arith.constant 0.000000e+00 : f32
    %33 = vector.broadcast %cst_27 : f32 to vector<8x16xf32>
    %c0_i32 = arith.constant 0 : i32
    %c8_i32 = arith.constant 8 : i32
    %34 = arith.muli %c0_i32, %c8_i32 : i32
    %35 = tpu.assume_multiple %34, 8 : i32
    %36 = arith.index_cast %35 : i32 to index
    %c0_28 = arith.constant 0 : index
    %37 = vector.load %arg2[%36, %c0_28] : memref<64x16xf32, #tpu.memory_space<vmem>>, vector<8x16xf32>
    %38 = arith.index_cast %35 : i32 to index
    %c0_29 = arith.constant 0 : index
    %39 = vector.load %arg30[%38, %c0_29] : memref<64x128xf32, #tpu.memory_space<vmem>>, vector<8x128xf32>
    %40 = vector.extract_strided_slice %39 {offsets = [0, 0], sizes = [8, 32], strides = [1, 1]} : vector<8x128xf32> to vector<8x32xf32>
    %41 = vector.extract_strided_slice %39 {offsets = [0, 32], sizes = [8, 96], strides = [1, 1]} : vector<8x128xf32> to vector<8x96xf32>
    %42 = arith.index_cast %35 : i32 to index
    %c0_30 = arith.constant 0 : index
    %43 = vector.load %arg31[%42, %c0_30] : memref<64x32xf32, #tpu.memory_space<vmem>>, vector<8x32xf32>
    tpu.vector_store %arg31[%42, %c0_30], %32 {strides = array<i32>} : memref<64x32xf32, #tpu.memory_space<vmem>>, vector<8x32xf32>,
    %c0_31 = arith.constant 0 : index
    %c0_32 = arith.constant 0 : index
    %44 = vector.load %arg16[%c0_31, %c0_32] : memref<32x128xf32, #tpu.memory_space<vmem>>, vector<32x128xf32>
    %cst_33 = arith.constant dense<0.000000e+00> : vector<8x128xf32>
    %45 = tpu.matmul %32, %44, %cst_33 {dimension_numbers = #tpu.dot_dimension_numbers<[1], [0], [0], [1], [0, 0, 1, 1], [], []>} : vector<8x32xf32>, vector<32x128xf32>, vector<8x128xf32> -> vector<8x128xf32>
    %46 = vector.extract_strided_slice %45 {offsets = [0, 0], sizes = [8, 32], strides = [1, 1]} : vector<8x128xf32> to vector<8x32xf32>
    %47 = vector.extract_strided_slice %45 {offsets = [0, 32], sizes = [8, 96], strides = [1, 1]} : vector<8x128xf32> to vector<8x96xf32>
    %48 = arith.addf %40, %46 : vector<8x32xf32>
    %49 = arith.addf %48, %22 : vector<8x32xf32>
    %cst_34 = arith.constant 0.000000e+00 : f32
    %50 = vector.broadcast %cst_34 : f32 to vector<8x32xf32>
    %51 = arith.maximumf %49, %50 : vector<8x32xf32>
    %c0_35 = arith.constant 0 : index
    %c0_36 = arith.constant 0 : index
    %52 = vector.load %arg9[%c0_35, %c0_36] : memref<32x32xf32, #tpu.memory_space<vmem>>, vector<32x32xf32>
    %cst_37 = arith.constant dense<0.000000e+00> : vector<8x32xf32>
    %53 = tpu.matmul %51, %52, %cst_37 {dimension_numbers = #tpu.dot_dimension_numbers<[1], [0], [0], [1], [0, 0, 1, 1], [], []>} : vector<8x32xf32>, vector<32x32xf32>, vector<8x32xf32> -> vector<8x32xf32>
    %54 = arith.addf %53, %25 : vector<8x32xf32>
    %cst_38 = arith.constant 0.000000e+00 : f32
    %55 = vector.broadcast %cst_38 : f32 to vector<8x32xf32>
    %56 = arith.maximumf %54, %55 : vector<8x32xf32>
    %c0_39 = arith.constant 0 : index
    %c0_40 = arith.constant 0 : index
    %57 = vector.load %arg11[%c0_39, %c0_40] : memref<32x32xf32, #tpu.memory_space<vmem>>, vector<32x32xf32>
    %cst_41 = arith.constant dense<0.000000e+00> : vector<8x32xf32>
    %58 = tpu.matmul %56, %57, %cst_41 {dimension_numbers = #tpu.dot_dimension_numbers<[1], [0], [0], [1], [0, 0, 1, 1], [], []>} : vector<8x32xf32>, vector<32x32xf32>, vector<8x32xf32> -> vector<8x32xf32>
    %59 = arith.addf %58, %28 : vector<8x32xf32>
    %60 = arith.index_cast %35 : i32 to index
    %c0_42 = arith.constant 0 : index
    %61 = vector.load %arg33[%60, %c0_42] : memref<64x32xf32, #tpu.memory_space<vmem>>, vector<8x32xf32>
    tpu.vector_store %arg33[%60, %c0_42], %59 {strides = array<i32>} : memref<64x32xf32, #tpu.memory_space<vmem>>, vector<8x32xf32>,
    %62 = vector.extract_strided_slice %59 {offsets = [0, 0], sizes = [8, 16], strides = [1, 1]} : vector<8x32xf32> to vector<8x16xf32>
    %63 = vector.extract_strided_slice %59 {offsets = [0, 16], sizes = [8, 16], strides = [1, 1]} : vector<8x32xf32> to vector<8x16xf32>
    %cst_43 = arith.constant 0.000000e+00 : f32
    %64 = vector.broadcast %cst_43 : f32 to vector<8x16xf32>
    %65 = arith.maximumf %63, %64 : vector<8x16xf32>
    %66 = math.absf %63 : vector<8x16xf32>
    %cst_44 = arith.constant 0.000000e+00 : f32
    %67 = vector.broadcast %cst_44 : f32 to vector<8x16xf32>
    %68 = arith.subf %67, %66 : vector<8x16xf32>
    %69 = math.exp %68 : vector<8x16xf32>
    %70 = math.log1p %69 : vector<8x16xf32>
    %71 = arith.addf %65, %70 : vector<8x16xf32>
    %72 = arith.mulf %71, %37 : vector<8x16xf32>
    %73 = arith.addf %62, %72 : vector<8x16xf32>
    %c0_45 = arith.constant 0 : index
    %c0_46 = arith.constant 0 : index
    %74 = vector.load %arg13[%c0_45, %c0_46] : memref<16x32xf32, #tpu.memory_space<vmem>>, vector<16x32xf32>
    %cst_47 = arith.constant dense<0.000000e+00> : vector<8x32xf32>
    %75 = tpu.matmul %73, %74, %cst_47 {dimension_numbers = #tpu.dot_dimension_numbers<[1], [0], [0], [1], [0, 0, 1, 1], [], []>} : vector<8x16xf32>, vector<16x32xf32>, vector<8x32xf32> -> vector<8x32xf32>
    %76 = arith.addf %75, %31 : vector<8x32xf32>
    %cst_48 = arith.constant 0.000000e+00 : f32
    %77 = vector.broadcast %cst_48 : f32 to vector<8x32xf32>
    %78 = arith.maximumf %76, %77 : vector<8x32xf32>
    %79 = arith.index_cast %35 : i32 to index
    %c0_49 = arith.constant 0 : index
    %80 = vector.load %arg32[%79, %c0_49] : memref<64x32xf32, #tpu.memory_space<vmem>>, vector<8x32xf32>
    tpu.vector_store %arg32[%79, %c0_49], %78 {strides = array<i32>} : memref<64x32xf32, #tpu.memory_space<vmem>>, vector<8x32xf32>,
    %c0_50 = arith.constant 0 : index
    %c0_51 = arith.constant 0 : index
    %81 = vector.load %arg15[%c0_50, %c0_51] : memref<32x96xf32, #tpu.memory_space<vmem>>, vector<32x96xf32>
    %cst_52 = arith.constant dense<0.000000e+00> : vector<8x96xf32>
    %82 = tpu.matmul %78, %81, %cst_52 {dimension_numbers = #tpu.dot_dimension_numbers<[1], [0], [0], [1], [0, 0, 1, 1], [], []>} : vector<8x32xf32>, vector<32x96xf32>, vector<8x96xf32> -> vector<8x96xf32>
    %83 = arith.addf %41, %82 : vector<8x96xf32>
    %84 = vector.extract_strided_slice %83 {offsets = [0, 0], sizes = [8, 32], strides = [1, 1]} : vector<8x96xf32> to vector<8x32xf32>
    %85 = vector.extract_strided_slice %47 {offsets = [0, 0], sizes = [8, 32], strides = [1, 1]} : vector<8x96xf32> to vector<8x32xf32>
    %86 = arith.addf %84, %85 : vector<8x32xf32>
    %cst_53 = arith.constant 5.000000e-01 : f32
    %87 = vector.broadcast %cst_53 : f32 to vector<8x32xf32>
    %88 = arith.mulf %87, %86 : vector<8x32xf32>
    %89 = math.tanh %88 : vector<8x32xf32>
    %cst_54 = arith.constant 1.000000e+00 : f32
    %90 = vector.broadcast %cst_54 : f32 to vector<8x32xf32>
    %91 = arith.addf %89, %90 : vector<8x32xf32>
    %cst_55 = arith.constant 5.000000e-01 : f32
    %92 = vector.broadcast %cst_55 : f32 to vector<8x32xf32>
    %93 = arith.mulf %92, %91 : vector<8x32xf32>
    %94 = vector.extract_strided_slice %83 {offsets = [0, 32], sizes = [8, 32], strides = [1, 1]} : vector<8x96xf32> to vector<8x32xf32>
    %95 = vector.extract_strided_slice %47 {offsets = [0, 32], sizes = [8, 32], strides = [1, 1]} : vector<8x96xf32> to vector<8x32xf32>
    %96 = arith.addf %94, %95 : vector<8x32xf32>
    %cst_56 = arith.constant 5.000000e-01 : f32
    %97 = vector.broadcast %cst_56 : f32 to vector<8x32xf32>
    %98 = arith.mulf %97, %96 : vector<8x32xf32>
    %99 = math.tanh %98 : vector<8x32xf32>
    %cst_57 = arith.constant 1.000000e+00 : f32
    %100 = vector.broadcast %cst_57 : f32 to vector<8x32xf32>
    %101 = arith.addf %99, %100 : vector<8x32xf32>
    %cst_58 = arith.constant 5.000000e-01 : f32
    %102 = vector.broadcast %cst_58 : f32 to vector<8x32xf32>
    %103 = arith.mulf %102, %101 : vector<8x32xf32>
    %104 = vector.extract_strided_slice %83 {offsets = [0, 64], sizes = [8, 32], strides = [1, 1]} : vector<8x96xf32> to vector<8x32xf32>
    %105 = vector.extract_strided_slice %47 {offsets = [0, 64], sizes = [8, 32], strides = [1, 1]} : vector<8x96xf32> to vector<8x32xf32>
    %106 = arith.mulf %93, %105 : vector<8x32xf32>
    %107 = arith.addf %104, %106 : vector<8x32xf32>
    %108 = math.tanh %107 : vector<8x32xf32>
    %cst_59 = arith.constant 1.000000e+00 : f32
    %109 = vector.broadcast %cst_59 : f32 to vector<8x32xf32>
    %110 = arith.subf %109, %103 : vector<8x32xf32>
    %111 = arith.mulf %110, %108 : vector<8x32xf32>
    %112 = arith.mulf %103, %32 : vector<8x32xf32>
    %113 = arith.addf %111, %112 : vector<8x32xf32>
    %c1_i32 = arith.constant 1 : i32
    %c8_i32_60 = arith.constant 8 : i32
    %114 = arith.muli %c1_i32, %c8_i32_60 : i32
    %115 = tpu.assume_multiple %114, 8 : i32
    %116 = arith.index_cast %115 : i32 to index
    %c0_61 = arith.constant 0 : index
    %117 = vector.load %arg2[%116, %c0_61] : memref<64x16xf32, #tpu.memory_space<vmem>>, vector<8x16xf32>
    %118 = arith.index_cast %115 : i32 to index
    %c0_62 = arith.constant 0 : index
    %119 = vector.load %arg30[%118, %c0_62] : memref<64x128xf32, #tpu.memory_space<vmem>>, vector<8x128xf32>
    %120 = vector.extract_strided_slice %119 {offsets = [0, 0], sizes = [8, 32], strides = [1, 1]} : vector<8x128xf32> to vector<8x32xf32>
    %121 = vector.extract_strided_slice %119 {offsets = [0, 32], sizes = [8, 96], strides = [1, 1]} : vector<8x128xf32> to vector<8x96xf32>
    %122 = arith.index_cast %115 : i32 to index
    %c0_63 = arith.constant 0 : index
    %123 = vector.load %arg31[%122, %c0_63] : memref<64x32xf32, #tpu.memory_space<vmem>>, vector<8x32xf32>
    tpu.vector_store %arg31[%122, %c0_63], %113 {strides = array<i32>} : memref<64x32xf32, #tpu.memory_space<vmem>>, vector<8x32xf32>,
    %c0_64 = arith.constant 0 : index
    %c0_65 = arith.constant 0 : index
    %124 = vector.load %arg16[%c0_64, %c0_65] : memref<32x128xf32, #tpu.memory_space<vmem>>, vector<32x128xf32>
    %cst_66 = arith.constant dense<0.000000e+00> : vector<8x128xf32>
    %125 = tpu.matmul %113, %124, %cst_66 {dimension_numbers = #tpu.dot_dimension_numbers<[1], [0], [0], [1], [0, 0, 1, 1], [], []>} : vector<8x32xf32>, vector<32x128xf32>, vector<8x128xf32> -> vector<8x128xf32>
    %126 = vector.extract_strided_slice %125 {offsets = [0, 0], sizes = [8, 32], strides = [1, 1]} : vector<8x128xf32> to vector<8x32xf32>
    %127 = vector.extract_strided_slice %125 {offsets = [0, 32], sizes = [8, 96], strides = [1, 1]} : vector<8x128xf32> to vector<8x96xf32>
    %128 = arith.addf %120, %126 : vector<8x32xf32>
    %129 = arith.addf %128, %22 : vector<8x32xf32>
    %cst_67 = arith.constant 0.000000e+00 : f32
    %130 = vector.broadcast %cst_67 : f32 to vector<8x32xf32>
    %131 = arith.maximumf %129, %130 : vector<8x32xf32>
    %c0_68 = arith.constant 0 : index
    %c0_69 = arith.constant 0 : index
    %132 = vector.load %arg9[%c0_68, %c0_69] : memref<32x32xf32, #tpu.memory_space<vmem>>, vector<32x32xf32>
    %cst_70 = arith.constant dense<0.000000e+00> : vector<8x32xf32>
    %133 = tpu.matmul %131, %132, %cst_70 {dimension_numbers = #tpu.dot_dimension_numbers<[1], [0], [0], [1], [0, 0, 1, 1], [], []>} : vector<8x32xf32>, vector<32x32xf32>, vector<8x32xf32> -> vector<8x32xf32>
    %134 = arith.addf %133, %25 : vector<8x32xf32>
    %cst_71 = arith.constant 0.000000e+00 : f32
    %135 = vector.broadcast %cst_71 : f32 to vector<8x32xf32>
    %136 = arith.maximumf %134, %135 : vector<8x32xf32>
    %c0_72 = arith.constant 0 : index
    %c0_73 = arith.constant 0 : index
    %137 = vector.load %arg11[%c0_72, %c0_73] : memref<32x32xf32, #tpu.memory_space<vmem>>, vector<32x32xf32>
    %cst_74 = arith.constant dense<0.000000e+00> : vector<8x32xf32>
    %138 = tpu.matmul %136, %137, %cst_74 {dimension_numbers = #tpu.dot_dimension_numbers<[1], [0], [0], [1], [0, 0, 1, 1], [], []>} : vector<8x32xf32>, vector<32x32xf32>, vector<8x32xf32> -> vector<8x32xf32>
    %139 = arith.addf %138, %28 : vector<8x32xf32>
    %140 = arith.index_cast %115 : i32 to index
    %c0_75 = arith.constant 0 : index
    %141 = vector.load %arg33[%140, %c0_75] : memref<64x32xf32, #tpu.memory_space<vmem>>, vector<8x32xf32>
    tpu.vector_store %arg33[%140, %c0_75], %139 {strides = array<i32>} : memref<64x32xf32, #tpu.memory_space<vmem>>, vector<8x32xf32>,
    %142 = vector.extract_strided_slice %139 {offsets = [0, 0], sizes = [8, 16], strides = [1, 1]} : vector<8x32xf32> to vector<8x16xf32>
    %143 = vector.extract_strided_slice %139 {offsets = [0, 16], sizes = [8, 16], strides = [1, 1]} : vector<8x32xf32> to vector<8x16xf32>
    %cst_76 = arith.constant 0.000000e+00 : f32
    %144 = vector.broadcast %cst_76 : f32 to vector<8x16xf32>
    %145 = arith.maximumf %143, %144 : vector<8x16xf32>
    %146 = math.absf %143 : vector<8x16xf32>
    %cst_77 = arith.constant 0.000000e+00 : f32
    %147 = vector.broadcast %cst_77 : f32 to vector<8x16xf32>
    %148 = arith.subf %147, %146 : vector<8x16xf32>
    %149 = math.exp %148 : vector<8x16xf32>
    %150 = math.log1p %149 : vector<8x16xf32>
    %151 = arith.addf %145, %150 : vector<8x16xf32>
    %152 = arith.mulf %151, %117 : vector<8x16xf32>
    %153 = arith.addf %142, %152 : vector<8x16xf32>
    %c0_78 = arith.constant 0 : index
    %c0_79 = arith.constant 0 : index
    %154 = vector.load %arg13[%c0_78, %c0_79] : memref<16x32xf32, #tpu.memory_space<vmem>>, vector<16x32xf32>
    %cst_80 = arith.constant dense<0.000000e+00> : vector<8x32xf32>
    %155 = tpu.matmul %153, %154, %cst_80 {dimension_numbers = #tpu.dot_dimension_numbers<[1], [0], [0], [1], [0, 0, 1, 1], [], []>} : vector<8x16xf32>, vector<16x32xf32>, vector<8x32xf32> -> vector<8x32xf32>
    %156 = arith.addf %155, %31 : vector<8x32xf32>
    %cst_81 = arith.constant 0.000000e+00 : f32
    %157 = vector.broadcast %cst_81 : f32 to vector<8x32xf32>
    %158 = arith.maximumf %156, %157 : vector<8x32xf32>
    %159 = arith.index_cast %115 : i32 to index
    %c0_82 = arith.constant 0 : index
    %160 = vector.load %arg32[%159, %c0_82] : memref<64x32xf32, #tpu.memory_space<vmem>>, vector<8x32xf32>
    tpu.vector_store %arg32[%159, %c0_82], %158 {strides = array<i32>} : memref<64x32xf32, #tpu.memory_space<vmem>>, vector<8x32xf32>,
    %c0_83 = arith.constant 0 : index
    %c0_84 = arith.constant 0 : index
    %161 = vector.load %arg15[%c0_83, %c0_84] : memref<32x96xf32, #tpu.memory_space<vmem>>, vector<32x96xf32>
    %cst_85 = arith.constant dense<0.000000e+00> : vector<8x96xf32>
    %162 = tpu.matmul %158, %161, %cst_85 {dimension_numbers = #tpu.dot_dimension_numbers<[1], [0], [0], [1], [0, 0, 1, 1], [], []>} : vector<8x32xf32>, vector<32x96xf32>, vector<8x96xf32> -> vector<8x96xf32>
    %163 = arith.addf %121, %162 : vector<8x96xf32>
    %164 = vector.extract_strided_slice %163 {offsets = [0, 0], sizes = [8, 32], strides = [1, 1]} : vector<8x96xf32> to vector<8x32xf32>
    %165 = vector.extract_strided_slice %127 {offsets = [0, 0], sizes = [8, 32], strides = [1, 1]} : vector<8x96xf32> to vector<8x32xf32>
    %166 = arith.addf %164, %165 : vector<8x32xf32>
    %cst_86 = arith.constant 5.000000e-01 : f32
    %167 = vector.broadcast %cst_86 : f32 to vector<8x32xf32>
    %168 = arith.mulf %167, %166 : vector<8x32xf32>
    %169 = math.tanh %168 : vector<8x32xf32>
    %cst_87 = arith.constant 1.000000e+00 : f32
    %170 = vector.broadcast %cst_87 : f32 to vector<8x32xf32>
    %171 = arith.addf %169, %170 : vector<8x32xf32>
    %cst_88 = arith.constant 5.000000e-01 : f32
    %172 = vector.broadcast %cst_88 : f32 to vector<8x32xf32>
    %173 = arith.mulf %172, %171 : vector<8x32xf32>
    %174 = vector.extract_strided_slice %163 {offsets = [0, 32], sizes = [8, 32], strides = [1, 1]} : vector<8x96xf32> to vector<8x32xf32>
    %175 = vector.extract_strided_slice %127 {offsets = [0, 32], sizes = [8, 32], strides = [1, 1]} : vector<8x96xf32> to vector<8x32xf32>
    %176 = arith.addf %174, %175 : vector<8x32xf32>
    %cst_89 = arith.constant 5.000000e-01 : f32
    %177 = vector.broadcast %cst_89 : f32 to vector<8x32xf32>
    %178 = arith.mulf %177, %176 : vector<8x32xf32>
    %179 = math.tanh %178 : vector<8x32xf32>
    %cst_90 = arith.constant 1.000000e+00 : f32
    %180 = vector.broadcast %cst_90 : f32 to vector<8x32xf32>
    %181 = arith.addf %179, %180 : vector<8x32xf32>
    %cst_91 = arith.constant 5.000000e-01 : f32
    %182 = vector.broadcast %cst_91 : f32 to vector<8x32xf32>
    %183 = arith.mulf %182, %181 : vector<8x32xf32>
    %184 = vector.extract_strided_slice %163 {offsets = [0, 64], sizes = [8, 32], strides = [1, 1]} : vector<8x96xf32> to vector<8x32xf32>
    %185 = vector.extract_strided_slice %127 {offsets = [0, 64], sizes = [8, 32], strides = [1, 1]} : vector<8x96xf32> to vector<8x32xf32>
    %186 = arith.mulf %173, %185 : vector<8x32xf32>
    %187 = arith.addf %184, %186 : vector<8x32xf32>
    %188 = math.tanh %187 : vector<8x32xf32>
    %cst_92 = arith.constant 1.000000e+00 : f32
    %189 = vector.broadcast %cst_92 : f32 to vector<8x32xf32>
    %190 = arith.subf %189, %183 : vector<8x32xf32>
    %191 = arith.mulf %190, %188 : vector<8x32xf32>
    %192 = arith.mulf %183, %113 : vector<8x32xf32>
    %193 = arith.addf %191, %192 : vector<8x32xf32>
    %c2_i32 = arith.constant 2 : i32
    %c8_i32_93 = arith.constant 8 : i32
    %194 = arith.muli %c2_i32, %c8_i32_93 : i32
    %195 = tpu.assume_multiple %194, 8 : i32
    %196 = arith.index_cast %195 : i32 to index
    %c0_94 = arith.constant 0 : index
    %197 = vector.load %arg2[%196, %c0_94] : memref<64x16xf32, #tpu.memory_space<vmem>>, vector<8x16xf32>
    %198 = arith.index_cast %195 : i32 to index
    %c0_95 = arith.constant 0 : index
    %199 = vector.load %arg30[%198, %c0_95] : memref<64x128xf32, #tpu.memory_space<vmem>>, vector<8x128xf32>
    %200 = vector.extract_strided_slice %199 {offsets = [0, 0], sizes = [8, 32], strides = [1, 1]} : vector<8x128xf32> to vector<8x32xf32>
    %201 = vector.extract_strided_slice %199 {offsets = [0, 32], sizes = [8, 96], strides = [1, 1]} : vector<8x128xf32> to vector<8x96xf32>
    %202 = arith.index_cast %195 : i32 to index
    %c0_96 = arith.constant 0 : index
    %203 = vector.load %arg31[%202, %c0_96] : memref<64x32xf32, #tpu.memory_space<vmem>>, vector<8x32xf32>
    tpu.vector_store %arg31[%202, %c0_96], %193 {strides = array<i32>} : memref<64x32xf32, #tpu.memory_space<vmem>>, vector<8x32xf32>,
    %c0_97 = arith.constant 0 : index
    %c0_98 = arith.constant 0 : index
    %204 = vector.load %arg16[%c0_97, %c0_98] : memref<32x128xf32, #tpu.memory_space<vmem>>, vector<32x128xf32>
    %cst_99 = arith.constant dense<0.000000e+00> : vector<8x128xf32>
    %205 = tpu.matmul %193, %204, %cst_99 {dimension_numbers = #tpu.dot_dimension_numbers<[1], [0], [0], [1], [0, 0, 1, 1], [], []>} : vector<8x32xf32>, vector<32x128xf32>, vector<8x128xf32> -> vector<8x128xf32>
    %206 = vector.extract_strided_slice %205 {offsets = [0, 0], sizes = [8, 32], strides = [1, 1]} : vector<8x128xf32> to vector<8x32xf32>
    %207 = vector.extract_strided_slice %205 {offsets = [0, 32], sizes = [8, 96], strides = [1, 1]} : vector<8x128xf32> to vector<8x96xf32>
    %208 = arith.addf %200, %206 : vector<8x32xf32>
    %209 = arith.addf %208, %22 : vector<8x32xf32>
    %cst_100 = arith.constant 0.000000e+00 : f32
    %210 = vector.broadcast %cst_100 : f32 to vector<8x32xf32>
    %211 = arith.maximumf %209, %210 : vector<8x32xf32>
    %c0_101 = arith.constant 0 : index
    %c0_102 = arith.constant 0 : index
    %212 = vector.load %arg9[%c0_101, %c0_102] : memref<32x32xf32, #tpu.memory_space<vmem>>, vector<32x32xf32>
    %cst_103 = arith.constant dense<0.000000e+00> : vector<8x32xf32>
    %213 = tpu.matmul %211, %212, %cst_103 {dimension_numbers = #tpu.dot_dimension_numbers<[1], [0], [0], [1], [0, 0, 1, 1], [], []>} : vector<8x32xf32>, vector<32x32xf32>, vector<8x32xf32> -> vector<8x32xf32>
    %214 = arith.addf %213, %25 : vector<8x32xf32>
    %cst_104 = arith.constant 0.000000e+00 : f32
    %215 = vector.broadcast %cst_104 : f32 to vector<8x32xf32>
    %216 = arith.maximumf %214, %215 : vector<8x32xf32>
    %c0_105 = arith.constant 0 : index
    %c0_106 = arith.constant 0 : index
    %217 = vector.load %arg11[%c0_105, %c0_106] : memref<32x32xf32, #tpu.memory_space<vmem>>, vector<32x32xf32>
    %cst_107 = arith.constant dense<0.000000e+00> : vector<8x32xf32>
    %218 = tpu.matmul %216, %217, %cst_107 {dimension_numbers = #tpu.dot_dimension_numbers<[1], [0], [0], [1], [0, 0, 1, 1], [], []>} : vector<8x32xf32>, vector<32x32xf32>, vector<8x32xf32> -> vector<8x32xf32>
    %219 = arith.addf %218, %28 : vector<8x32xf32>
    %220 = arith.index_cast %195 : i32 to index
    %c0_108 = arith.constant 0 : index
    %221 = vector.load %arg33[%220, %c0_108] : memref<64x32xf32, #tpu.memory_space<vmem>>, vector<8x32xf32>
    tpu.vector_store %arg33[%220, %c0_108], %219 {strides = array<i32>} : memref<64x32xf32, #tpu.memory_space<vmem>>, vector<8x32xf32>,
    %222 = vector.extract_strided_slice %219 {offsets = [0, 0], sizes = [8, 16], strides = [1, 1]} : vector<8x32xf32> to vector<8x16xf32>
    %223 = vector.extract_strided_slice %219 {offsets = [0, 16], sizes = [8, 16], strides = [1, 1]} : vector<8x32xf32> to vector<8x16xf32>
    %cst_109 = arith.constant 0.000000e+00 : f32
    %224 = vector.broadcast %cst_109 : f32 to vector<8x16xf32>
    %225 = arith.maximumf %223, %224 : vector<8x16xf32>
    %226 = math.absf %223 : vector<8x16xf32>
    %cst_110 = arith.constant 0.000000e+00 : f32
    %227 = vector.broadcast %cst_110 : f32 to vector<8x16xf32>
    %228 = arith.subf %227, %226 : vector<8x16xf32>
    %229 = math.exp %228 : vector<8x16xf32>
    %230 = math.log1p %229 : vector<8x16xf32>
    %231 = arith.addf %225, %230 : vector<8x16xf32>
    %232 = arith.mulf %231, %197 : vector<8x16xf32>
    %233 = arith.addf %222, %232 : vector<8x16xf32>
    %c0_111 = arith.constant 0 : index
    %c0_112 = arith.constant 0 : index
    %234 = vector.load %arg13[%c0_111, %c0_112] : memref<16x32xf32, #tpu.memory_space<vmem>>, vector<16x32xf32>
    %cst_113 = arith.constant dense<0.000000e+00> : vector<8x32xf32>
    %235 = tpu.matmul %233, %234, %cst_113 {dimension_numbers = #tpu.dot_dimension_numbers<[1], [0], [0], [1], [0, 0, 1, 1], [], []>} : vector<8x16xf32>, vector<16x32xf32>, vector<8x32xf32> -> vector<8x32xf32>
    %236 = arith.addf %235, %31 : vector<8x32xf32>
    %cst_114 = arith.constant 0.000000e+00 : f32
    %237 = vector.broadcast %cst_114 : f32 to vector<8x32xf32>
    %238 = arith.maximumf %236, %237 : vector<8x32xf32>
    %239 = arith.index_cast %195 : i32 to index
    %c0_115 = arith.constant 0 : index
    %240 = vector.load %arg32[%239, %c0_115] : memref<64x32xf32, #tpu.memory_space<vmem>>, vector<8x32xf32>
    tpu.vector_store %arg32[%239, %c0_115], %238 {strides = array<i32>} : memref<64x32xf32, #tpu.memory_space<vmem>>, vector<8x32xf32>,
    %c0_116 = arith.constant 0 : index
    %c0_117 = arith.constant 0 : index
    %241 = vector.load %arg15[%c0_116, %c0_117] : memref<32x96xf32, #tpu.memory_space<vmem>>, vector<32x96xf32>
    %cst_118 = arith.constant dense<0.000000e+00> : vector<8x96xf32>
    %242 = tpu.matmul %238, %241, %cst_118 {dimension_numbers = #tpu.dot_dimension_numbers<[1], [0], [0], [1], [0, 0, 1, 1], [], []>} : vector<8x32xf32>, vector<32x96xf32>, vector<8x96xf32> -> vector<8x96xf32>
    %243 = arith.addf %201, %242 : vector<8x96xf32>
    %244 = vector.extract_strided_slice %243 {offsets = [0, 0], sizes = [8, 32], strides = [1, 1]} : vector<8x96xf32> to vector<8x32xf32>
    %245 = vector.extract_strided_slice %207 {offsets = [0, 0], sizes = [8, 32], strides = [1, 1]} : vector<8x96xf32> to vector<8x32xf32>
    %246 = arith.addf %244, %245 : vector<8x32xf32>
    %cst_119 = arith.constant 5.000000e-01 : f32
    %247 = vector.broadcast %cst_119 : f32 to vector<8x32xf32>
    %248 = arith.mulf %247, %246 : vector<8x32xf32>
    %249 = math.tanh %248 : vector<8x32xf32>
    %cst_120 = arith.constant 1.000000e+00 : f32
    %250 = vector.broadcast %cst_120 : f32 to vector<8x32xf32>
    %251 = arith.addf %249, %250 : vector<8x32xf32>
    %cst_121 = arith.constant 5.000000e-01 : f32
    %252 = vector.broadcast %cst_121 : f32 to vector<8x32xf32>
    %253 = arith.mulf %252, %251 : vector<8x32xf32>
    %254 = vector.extract_strided_slice %243 {offsets = [0, 32], sizes = [8, 32], strides = [1, 1]} : vector<8x96xf32> to vector<8x32xf32>
    %255 = vector.extract_strided_slice %207 {offsets = [0, 32], sizes = [8, 32], strides = [1, 1]} : vector<8x96xf32> to vector<8x32xf32>
    %256 = arith.addf %254, %255 : vector<8x32xf32>
    %cst_122 = arith.constant 5.000000e-01 : f32
    %257 = vector.broadcast %cst_122 : f32 to vector<8x32xf32>
    %258 = arith.mulf %257, %256 : vector<8x32xf32>
    %259 = math.tanh %258 : vector<8x32xf32>
    %cst_123 = arith.constant 1.000000e+00 : f32
    %260 = vector.broadcast %cst_123 : f32 to vector<8x32xf32>
    %261 = arith.addf %259, %260 : vector<8x32xf32>
    %cst_124 = arith.constant 5.000000e-01 : f32
    %262 = vector.broadcast %cst_124 : f32 to vector<8x32xf32>
    %263 = arith.mulf %262, %261 : vector<8x32xf32>
    %264 = vector.extract_strided_slice %243 {offsets = [0, 64], sizes = [8, 32], strides = [1, 1]} : vector<8x96xf32> to vector<8x32xf32>
    %265 = vector.extract_strided_slice %207 {offsets = [0, 64], sizes = [8, 32], strides = [1, 1]} : vector<8x96xf32> to vector<8x32xf32>
    %266 = arith.mulf %253, %265 : vector<8x32xf32>
    %267 = arith.addf %264, %266 : vector<8x32xf32>
    %268 = math.tanh %267 : vector<8x32xf32>
    %cst_125 = arith.constant 1.000000e+00 : f32
    %269 = vector.broadcast %cst_125 : f32 to vector<8x32xf32>
    %270 = arith.subf %269, %263 : vector<8x32xf32>
    %271 = arith.mulf %270, %268 : vector<8x32xf32>
    %272 = arith.mulf %263, %193 : vector<8x32xf32>
    %273 = arith.addf %271, %272 : vector<8x32xf32>
    %c3_i32 = arith.constant 3 : i32
    %c8_i32_126 = arith.constant 8 : i32
    %274 = arith.muli %c3_i32, %c8_i32_126 : i32
    %275 = tpu.assume_multiple %274, 8 : i32
    %276 = arith.index_cast %275 : i32 to index
    %c0_127 = arith.constant 0 : index
    %277 = vector.load %arg2[%276, %c0_127] : memref<64x16xf32, #tpu.memory_space<vmem>>, vector<8x16xf32>
    %278 = arith.index_cast %275 : i32 to index
    %c0_128 = arith.constant 0 : index
    %279 = vector.load %arg30[%278, %c0_128] : memref<64x128xf32, #tpu.memory_space<vmem>>, vector<8x128xf32>
    %280 = vector.extract_strided_slice %279 {offsets = [0, 0], sizes = [8, 32], strides = [1, 1]} : vector<8x128xf32> to vector<8x32xf32>
    %281 = vector.extract_strided_slice %279 {offsets = [0, 32], sizes = [8, 96], strides = [1, 1]} : vector<8x128xf32> to vector<8x96xf32>
    %282 = arith.index_cast %275 : i32 to index
    %c0_129 = arith.constant 0 : index
    %283 = vector.load %arg31[%282, %c0_129] : memref<64x32xf32, #tpu.memory_space<vmem>>, vector<8x32xf32>
    tpu.vector_store %arg31[%282, %c0_129], %273 {strides = array<i32>} : memref<64x32xf32, #tpu.memory_space<vmem>>, vector<8x32xf32>,
    %c0_130 = arith.constant 0 : index
    %c0_131 = arith.constant 0 : index
    %284 = vector.load %arg16[%c0_130, %c0_131] : memref<32x128xf32, #tpu.memory_space<vmem>>, vector<32x128xf32>
    %cst_132 = arith.constant dense<0.000000e+00> : vector<8x128xf32>
    %285 = tpu.matmul %273, %284, %cst_132 {dimension_numbers = #tpu.dot_dimension_numbers<[1], [0], [0], [1], [0, 0, 1, 1], [], []>} : vector<8x32xf32>, vector<32x128xf32>, vector<8x128xf32> -> vector<8x128xf32>
    %286 = vector.extract_strided_slice %285 {offsets = [0, 0], sizes = [8, 32], strides = [1, 1]} : vector<8x128xf32> to vector<8x32xf32>
    %287 = vector.extract_strided_slice %285 {offsets = [0, 32], sizes = [8, 96], strides = [1, 1]} : vector<8x128xf32> to vector<8x96xf32>
    %288 = arith.addf %280, %286 : vector<8x32xf32>
    %289 = arith.addf %288, %22 : vector<8x32xf32>
    %cst_133 = arith.constant 0.000000e+00 : f32
    %290 = vector.broadcast %cst_133 : f32 to vector<8x32xf32>
    %291 = arith.maximumf %289, %290 : vector<8x32xf32>
    %c0_134 = arith.constant 0 : index
    %c0_135 = arith.constant 0 : index
    %292 = vector.load %arg9[%c0_134, %c0_135] : memref<32x32xf32, #tpu.memory_space<vmem>>, vector<32x32xf32>
    %cst_136 = arith.constant dense<0.000000e+00> : vector<8x32xf32>
    %293 = tpu.matmul %291, %292, %cst_136 {dimension_numbers = #tpu.dot_dimension_numbers<[1], [0], [0], [1], [0, 0, 1, 1], [], []>} : vector<8x32xf32>, vector<32x32xf32>, vector<8x32xf32> -> vector<8x32xf32>
    %294 = arith.addf %293, %25 : vector<8x32xf32>
    %cst_137 = arith.constant 0.000000e+00 : f32
    %295 = vector.broadcast %cst_137 : f32 to vector<8x32xf32>
    %296 = arith.maximumf %294, %295 : vector<8x32xf32>
    %c0_138 = arith.constant 0 : index
    %c0_139 = arith.constant 0 : index
    %297 = vector.load %arg11[%c0_138, %c0_139] : memref<32x32xf32, #tpu.memory_space<vmem>>, vector<32x32xf32>
    %cst_140 = arith.constant dense<0.000000e+00> : vector<8x32xf32>
    %298 = tpu.matmul %296, %297, %cst_140 {dimension_numbers = #tpu.dot_dimension_numbers<[1], [0], [0], [1], [0, 0, 1, 1], [], []>} : vector<8x32xf32>, vector<32x32xf32>, vector<8x32xf32> -> vector<8x32xf32>
    %299 = arith.addf %298, %28 : vector<8x32xf32>
    %300 = arith.index_cast %275 : i32 to index
    %c0_141 = arith.constant 0 : index
    %301 = vector.load %arg33[%300, %c0_141] : memref<64x32xf32, #tpu.memory_space<vmem>>, vector<8x32xf32>
    tpu.vector_store %arg33[%300, %c0_141], %299 {strides = array<i32>} : memref<64x32xf32, #tpu.memory_space<vmem>>, vector<8x32xf32>,
    %302 = vector.extract_strided_slice %299 {offsets = [0, 0], sizes = [8, 16], strides = [1, 1]} : vector<8x32xf32> to vector<8x16xf32>
    %303 = vector.extract_strided_slice %299 {offsets = [0, 16], sizes = [8, 16], strides = [1, 1]} : vector<8x32xf32> to vector<8x16xf32>
    %cst_142 = arith.constant 0.000000e+00 : f32
    %304 = vector.broadcast %cst_142 : f32 to vector<8x16xf32>
    %305 = arith.maximumf %303, %304 : vector<8x16xf32>
    %306 = math.absf %303 : vector<8x16xf32>
    %cst_143 = arith.constant 0.000000e+00 : f32
    %307 = vector.broadcast %cst_143 : f32 to vector<8x16xf32>
    %308 = arith.subf %307, %306 : vector<8x16xf32>
    %309 = math.exp %308 : vector<8x16xf32>
    %310 = math.log1p %309 : vector<8x16xf32>
    %311 = arith.addf %305, %310 : vector<8x16xf32>
    %312 = arith.mulf %311, %277 : vector<8x16xf32>
    %313 = arith.addf %302, %312 : vector<8x16xf32>
    %c0_144 = arith.constant 0 : index
    %c0_145 = arith.constant 0 : index
    %314 = vector.load %arg13[%c0_144, %c0_145] : memref<16x32xf32, #tpu.memory_space<vmem>>, vector<16x32xf32>
    %cst_146 = arith.constant dense<0.000000e+00> : vector<8x32xf32>
    %315 = tpu.matmul %313, %314, %cst_146 {dimension_numbers = #tpu.dot_dimension_numbers<[1], [0], [0], [1], [0, 0, 1, 1], [], []>} : vector<8x16xf32>, vector<16x32xf32>, vector<8x32xf32> -> vector<8x32xf32>
    %316 = arith.addf %315, %31 : vector<8x32xf32>
    %cst_147 = arith.constant 0.000000e+00 : f32
    %317 = vector.broadcast %cst_147 : f32 to vector<8x32xf32>
    %318 = arith.maximumf %316, %317 : vector<8x32xf32>
    %319 = arith.index_cast %275 : i32 to index
    %c0_148 = arith.constant 0 : index
    %320 = vector.load %arg32[%319, %c0_148] : memref<64x32xf32, #tpu.memory_space<vmem>>, vector<8x32xf32>
    tpu.vector_store %arg32[%319, %c0_148], %318 {strides = array<i32>} : memref<64x32xf32, #tpu.memory_space<vmem>>, vector<8x32xf32>,
    %c0_149 = arith.constant 0 : index
    %c0_150 = arith.constant 0 : index
    %321 = vector.load %arg15[%c0_149, %c0_150] : memref<32x96xf32, #tpu.memory_space<vmem>>, vector<32x96xf32>
    %cst_151 = arith.constant dense<0.000000e+00> : vector<8x96xf32>
    %322 = tpu.matmul %318, %321, %cst_151 {dimension_numbers = #tpu.dot_dimension_numbers<[1], [0], [0], [1], [0, 0, 1, 1], [], []>} : vector<8x32xf32>, vector<32x96xf32>, vector<8x96xf32> -> vector<8x96xf32>
    %323 = arith.addf %281, %322 : vector<8x96xf32>
    %324 = vector.extract_strided_slice %323 {offsets = [0, 0], sizes = [8, 32], strides = [1, 1]} : vector<8x96xf32> to vector<8x32xf32>
    %325 = vector.extract_strided_slice %287 {offsets = [0, 0], sizes = [8, 32], strides = [1, 1]} : vector<8x96xf32> to vector<8x32xf32>
    %326 = arith.addf %324, %325 : vector<8x32xf32>
    %cst_152 = arith.constant 5.000000e-01 : f32
    %327 = vector.broadcast %cst_152 : f32 to vector<8x32xf32>
    %328 = arith.mulf %327, %326 : vector<8x32xf32>
    %329 = math.tanh %328 : vector<8x32xf32>
    %cst_153 = arith.constant 1.000000e+00 : f32
    %330 = vector.broadcast %cst_153 : f32 to vector<8x32xf32>
    %331 = arith.addf %329, %330 : vector<8x32xf32>
    %cst_154 = arith.constant 5.000000e-01 : f32
    %332 = vector.broadcast %cst_154 : f32 to vector<8x32xf32>
    %333 = arith.mulf %332, %331 : vector<8x32xf32>
    %334 = vector.extract_strided_slice %323 {offsets = [0, 32], sizes = [8, 32], strides = [1, 1]} : vector<8x96xf32> to vector<8x32xf32>
    %335 = vector.extract_strided_slice %287 {offsets = [0, 32], sizes = [8, 32], strides = [1, 1]} : vector<8x96xf32> to vector<8x32xf32>
    %336 = arith.addf %334, %335 : vector<8x32xf32>
    %cst_155 = arith.constant 5.000000e-01 : f32
    %337 = vector.broadcast %cst_155 : f32 to vector<8x32xf32>
    %338 = arith.mulf %337, %336 : vector<8x32xf32>
    %339 = math.tanh %338 : vector<8x32xf32>
    %cst_156 = arith.constant 1.000000e+00 : f32
    %340 = vector.broadcast %cst_156 : f32 to vector<8x32xf32>
    %341 = arith.addf %339, %340 : vector<8x32xf32>
    %cst_157 = arith.constant 5.000000e-01 : f32
    %342 = vector.broadcast %cst_157 : f32 to vector<8x32xf32>
    %343 = arith.mulf %342, %341 : vector<8x32xf32>
    %344 = vector.extract_strided_slice %323 {offsets = [0, 64], sizes = [8, 32], strides = [1, 1]} : vector<8x96xf32> to vector<8x32xf32>
    %345 = vector.extract_strided_slice %287 {offsets = [0, 64], sizes = [8, 32], strides = [1, 1]} : vector<8x96xf32> to vector<8x32xf32>
    %346 = arith.mulf %333, %345 : vector<8x32xf32>
    %347 = arith.addf %344, %346 : vector<8x32xf32>
    %348 = math.tanh %347 : vector<8x32xf32>
    %cst_158 = arith.constant 1.000000e+00 : f32
    %349 = vector.broadcast %cst_158 : f32 to vector<8x32xf32>
    %350 = arith.subf %349, %343 : vector<8x32xf32>
    %351 = arith.mulf %350, %348 : vector<8x32xf32>
    %352 = arith.mulf %343, %273 : vector<8x32xf32>
    %353 = arith.addf %351, %352 : vector<8x32xf32>
    %c4_i32 = arith.constant 4 : i32
    %c8_i32_159 = arith.constant 8 : i32
    %354 = arith.muli %c4_i32, %c8_i32_159 : i32
    %355 = tpu.assume_multiple %354, 8 : i32
    %356 = arith.index_cast %355 : i32 to index
    %c0_160 = arith.constant 0 : index
    %357 = vector.load %arg2[%356, %c0_160] : memref<64x16xf32, #tpu.memory_space<vmem>>, vector<8x16xf32>
    %358 = arith.index_cast %355 : i32 to index
    %c0_161 = arith.constant 0 : index
    %359 = vector.load %arg30[%358, %c0_161] : memref<64x128xf32, #tpu.memory_space<vmem>>, vector<8x128xf32>
    %360 = vector.extract_strided_slice %359 {offsets = [0, 0], sizes = [8, 32], strides = [1, 1]} : vector<8x128xf32> to vector<8x32xf32>
    %361 = vector.extract_strided_slice %359 {offsets = [0, 32], sizes = [8, 96], strides = [1, 1]} : vector<8x128xf32> to vector<8x96xf32>
    %362 = arith.index_cast %355 : i32 to index
    %c0_162 = arith.constant 0 : index
    %363 = vector.load %arg31[%362, %c0_162] : memref<64x32xf32, #tpu.memory_space<vmem>>, vector<8x32xf32>
    tpu.vector_store %arg31[%362, %c0_162], %353 {strides = array<i32>} : memref<64x32xf32, #tpu.memory_space<vmem>>, vector<8x32xf32>,
    %c0_163 = arith.constant 0 : index
    %c0_164 = arith.constant 0 : index
    %364 = vector.load %arg16[%c0_163, %c0_164] : memref<32x128xf32, #tpu.memory_space<vmem>>, vector<32x128xf32>
    %cst_165 = arith.constant dense<0.000000e+00> : vector<8x128xf32>
    %365 = tpu.matmul %353, %364, %cst_165 {dimension_numbers = #tpu.dot_dimension_numbers<[1], [0], [0], [1], [0, 0, 1, 1], [], []>} : vector<8x32xf32>, vector<32x128xf32>, vector<8x128xf32> -> vector<8x128xf32>
    %366 = vector.extract_strided_slice %365 {offsets = [0, 0], sizes = [8, 32], strides = [1, 1]} : vector<8x128xf32> to vector<8x32xf32>
    %367 = vector.extract_strided_slice %365 {offsets = [0, 32], sizes = [8, 96], strides = [1, 1]} : vector<8x128xf32> to vector<8x96xf32>
    %368 = arith.addf %360, %366 : vector<8x32xf32>
    %369 = arith.addf %368, %22 : vector<8x32xf32>
    %cst_166 = arith.constant 0.000000e+00 : f32
    %370 = vector.broadcast %cst_166 : f32 to vector<8x32xf32>
    %371 = arith.maximumf %369, %370 : vector<8x32xf32>
    %c0_167 = arith.constant 0 : index
    %c0_168 = arith.constant 0 : index
    %372 = vector.load %arg9[%c0_167, %c0_168] : memref<32x32xf32, #tpu.memory_space<vmem>>, vector<32x32xf32>
    %cst_169 = arith.constant dense<0.000000e+00> : vector<8x32xf32>
    %373 = tpu.matmul %371, %372, %cst_169 {dimension_numbers = #tpu.dot_dimension_numbers<[1], [0], [0], [1], [0, 0, 1, 1], [], []>} : vector<8x32xf32>, vector<32x32xf32>, vector<8x32xf32> -> vector<8x32xf32>
    %374 = arith.addf %373, %25 : vector<8x32xf32>
    %cst_170 = arith.constant 0.000000e+00 : f32
    %375 = vector.broadcast %cst_170 : f32 to vector<8x32xf32>
    %376 = arith.maximumf %374, %375 : vector<8x32xf32>
    %c0_171 = arith.constant 0 : index
    %c0_172 = arith.constant 0 : index
    %377 = vector.load %arg11[%c0_171, %c0_172] : memref<32x32xf32, #tpu.memory_space<vmem>>, vector<32x32xf32>
    %cst_173 = arith.constant dense<0.000000e+00> : vector<8x32xf32>
    %378 = tpu.matmul %376, %377, %cst_173 {dimension_numbers = #tpu.dot_dimension_numbers<[1], [0], [0], [1], [0, 0, 1, 1], [], []>} : vector<8x32xf32>, vector<32x32xf32>, vector<8x32xf32> -> vector<8x32xf32>
    %379 = arith.addf %378, %28 : vector<8x32xf32>
    %380 = arith.index_cast %355 : i32 to index
    %c0_174 = arith.constant 0 : index
    %381 = vector.load %arg33[%380, %c0_174] : memref<64x32xf32, #tpu.memory_space<vmem>>, vector<8x32xf32>
    tpu.vector_store %arg33[%380, %c0_174], %379 {strides = array<i32>} : memref<64x32xf32, #tpu.memory_space<vmem>>, vector<8x32xf32>,
    %382 = vector.extract_strided_slice %379 {offsets = [0, 0], sizes = [8, 16], strides = [1, 1]} : vector<8x32xf32> to vector<8x16xf32>
    %383 = vector.extract_strided_slice %379 {offsets = [0, 16], sizes = [8, 16], strides = [1, 1]} : vector<8x32xf32> to vector<8x16xf32>
    %cst_175 = arith.constant 0.000000e+00 : f32
    %384 = vector.broadcast %cst_175 : f32 to vector<8x16xf32>
    %385 = arith.maximumf %383, %384 : vector<8x16xf32>
    %386 = math.absf %383 : vector<8x16xf32>
    %cst_176 = arith.constant 0.000000e+00 : f32
    %387 = vector.broadcast %cst_176 : f32 to vector<8x16xf32>
    %388 = arith.subf %387, %386 : vector<8x16xf32>
    %389 = math.exp %388 : vector<8x16xf32>
    %390 = math.log1p %389 : vector<8x16xf32>
    %391 = arith.addf %385, %390 : vector<8x16xf32>
    %392 = arith.mulf %391, %357 : vector<8x16xf32>
    %393 = arith.addf %382, %392 : vector<8x16xf32>
    %c0_177 = arith.constant 0 : index
    %c0_178 = arith.constant 0 : index
    %394 = vector.load %arg13[%c0_177, %c0_178] : memref<16x32xf32, #tpu.memory_space<vmem>>, vector<16x32xf32>
    %cst_179 = arith.constant dense<0.000000e+00> : vector<8x32xf32>
    %395 = tpu.matmul %393, %394, %cst_179 {dimension_numbers = #tpu.dot_dimension_numbers<[1], [0], [0], [1], [0, 0, 1, 1], [], []>} : vector<8x16xf32>, vector<16x32xf32>, vector<8x32xf32> -> vector<8x32xf32>
    %396 = arith.addf %395, %31 : vector<8x32xf32>
    %cst_180 = arith.constant 0.000000e+00 : f32
    %397 = vector.broadcast %cst_180 : f32 to vector<8x32xf32>
    %398 = arith.maximumf %396, %397 : vector<8x32xf32>
    %399 = arith.index_cast %355 : i32 to index
    %c0_181 = arith.constant 0 : index
    %400 = vector.load %arg32[%399, %c0_181] : memref<64x32xf32, #tpu.memory_space<vmem>>, vector<8x32xf32>
    tpu.vector_store %arg32[%399, %c0_181], %398 {strides = array<i32>} : memref<64x32xf32, #tpu.memory_space<vmem>>, vector<8x32xf32>,
    %c0_182 = arith.constant 0 : index
    %c0_183 = arith.constant 0 : index
    %401 = vector.load %arg15[%c0_182, %c0_183] : memref<32x96xf32, #tpu.memory_space<vmem>>, vector<32x96xf32>
    %cst_184 = arith.constant dense<0.000000e+00> : vector<8x96xf32>
    %402 = tpu.matmul %398, %401, %cst_184 {dimension_numbers = #tpu.dot_dimension_numbers<[1], [0], [0], [1], [0, 0, 1, 1], [], []>} : vector<8x32xf32>, vector<32x96xf32>, vector<8x96xf32> -> vector<8x96xf32>
    %403 = arith.addf %361, %402 : vector<8x96xf32>
    %404 = vector.extract_strided_slice %403 {offsets = [0, 0], sizes = [8, 32], strides = [1, 1]} : vector<8x96xf32> to vector<8x32xf32>
    %405 = vector.extract_strided_slice %367 {offsets = [0, 0], sizes = [8, 32], strides = [1, 1]} : vector<8x96xf32> to vector<8x32xf32>
    %406 = arith.addf %404, %405 : vector<8x32xf32>
    %cst_185 = arith.constant 5.000000e-01 : f32
    %407 = vector.broadcast %cst_185 : f32 to vector<8x32xf32>
    %408 = arith.mulf %407, %406 : vector<8x32xf32>
    %409 = math.tanh %408 : vector<8x32xf32>
    %cst_186 = arith.constant 1.000000e+00 : f32
    %410 = vector.broadcast %cst_186 : f32 to vector<8x32xf32>
    %411 = arith.addf %409, %410 : vector<8x32xf32>
    %cst_187 = arith.constant 5.000000e-01 : f32
    %412 = vector.broadcast %cst_187 : f32 to vector<8x32xf32>
    %413 = arith.mulf %412, %411 : vector<8x32xf32>
    %414 = vector.extract_strided_slice %403 {offsets = [0, 32], sizes = [8, 32], strides = [1, 1]} : vector<8x96xf32> to vector<8x32xf32>
    %415 = vector.extract_strided_slice %367 {offsets = [0, 32], sizes = [8, 32], strides = [1, 1]} : vector<8x96xf32> to vector<8x32xf32>
    %416 = arith.addf %414, %415 : vector<8x32xf32>
    %cst_188 = arith.constant 5.000000e-01 : f32
    %417 = vector.broadcast %cst_188 : f32 to vector<8x32xf32>
    %418 = arith.mulf %417, %416 : vector<8x32xf32>
    %419 = math.tanh %418 : vector<8x32xf32>
    %cst_189 = arith.constant 1.000000e+00 : f32
    %420 = vector.broadcast %cst_189 : f32 to vector<8x32xf32>
    %421 = arith.addf %419, %420 : vector<8x32xf32>
    %cst_190 = arith.constant 5.000000e-01 : f32
    %422 = vector.broadcast %cst_190 : f32 to vector<8x32xf32>
    %423 = arith.mulf %422, %421 : vector<8x32xf32>
    %424 = vector.extract_strided_slice %403 {offsets = [0, 64], sizes = [8, 32], strides = [1, 1]} : vector<8x96xf32> to vector<8x32xf32>
    %425 = vector.extract_strided_slice %367 {offsets = [0, 64], sizes = [8, 32], strides = [1, 1]} : vector<8x96xf32> to vector<8x32xf32>
    %426 = arith.mulf %413, %425 : vector<8x32xf32>
    %427 = arith.addf %424, %426 : vector<8x32xf32>
    %428 = math.tanh %427 : vector<8x32xf32>
    %cst_191 = arith.constant 1.000000e+00 : f32
    %429 = vector.broadcast %cst_191 : f32 to vector<8x32xf32>
    %430 = arith.subf %429, %423 : vector<8x32xf32>
    %431 = arith.mulf %430, %428 : vector<8x32xf32>
    %432 = arith.mulf %423, %353 : vector<8x32xf32>
    %433 = arith.addf %431, %432 : vector<8x32xf32>
    %c5_i32 = arith.constant 5 : i32
    %c8_i32_192 = arith.constant 8 : i32
    %434 = arith.muli %c5_i32, %c8_i32_192 : i32
    %435 = tpu.assume_multiple %434, 8 : i32
    %436 = arith.index_cast %435 : i32 to index
    %c0_193 = arith.constant 0 : index
    %437 = vector.load %arg2[%436, %c0_193] : memref<64x16xf32, #tpu.memory_space<vmem>>, vector<8x16xf32>
    %438 = arith.index_cast %435 : i32 to index
    %c0_194 = arith.constant 0 : index
    %439 = vector.load %arg30[%438, %c0_194] : memref<64x128xf32, #tpu.memory_space<vmem>>, vector<8x128xf32>
    %440 = vector.extract_strided_slice %439 {offsets = [0, 0], sizes = [8, 32], strides = [1, 1]} : vector<8x128xf32> to vector<8x32xf32>
    %441 = vector.extract_strided_slice %439 {offsets = [0, 32], sizes = [8, 96], strides = [1, 1]} : vector<8x128xf32> to vector<8x96xf32>
    %442 = arith.index_cast %435 : i32 to index
    %c0_195 = arith.constant 0 : index
    %443 = vector.load %arg31[%442, %c0_195] : memref<64x32xf32, #tpu.memory_space<vmem>>, vector<8x32xf32>
    tpu.vector_store %arg31[%442, %c0_195], %433 {strides = array<i32>} : memref<64x32xf32, #tpu.memory_space<vmem>>, vector<8x32xf32>,
    %c0_196 = arith.constant 0 : index
    %c0_197 = arith.constant 0 : index
    %444 = vector.load %arg16[%c0_196, %c0_197] : memref<32x128xf32, #tpu.memory_space<vmem>>, vector<32x128xf32>
    %cst_198 = arith.constant dense<0.000000e+00> : vector<8x128xf32>
    %445 = tpu.matmul %433, %444, %cst_198 {dimension_numbers = #tpu.dot_dimension_numbers<[1], [0], [0], [1], [0, 0, 1, 1], [], []>} : vector<8x32xf32>, vector<32x128xf32>, vector<8x128xf32> -> vector<8x128xf32>
    %446 = vector.extract_strided_slice %445 {offsets = [0, 0], sizes = [8, 32], strides = [1, 1]} : vector<8x128xf32> to vector<8x32xf32>
    %447 = vector.extract_strided_slice %445 {offsets = [0, 32], sizes = [8, 96], strides = [1, 1]} : vector<8x128xf32> to vector<8x96xf32>
    %448 = arith.addf %440, %446 : vector<8x32xf32>
    %449 = arith.addf %448, %22 : vector<8x32xf32>
    %cst_199 = arith.constant 0.000000e+00 : f32
    %450 = vector.broadcast %cst_199 : f32 to vector<8x32xf32>
    %451 = arith.maximumf %449, %450 : vector<8x32xf32>
    %c0_200 = arith.constant 0 : index
    %c0_201 = arith.constant 0 : index
    %452 = vector.load %arg9[%c0_200, %c0_201] : memref<32x32xf32, #tpu.memory_space<vmem>>, vector<32x32xf32>
    %cst_202 = arith.constant dense<0.000000e+00> : vector<8x32xf32>
    %453 = tpu.matmul %451, %452, %cst_202 {dimension_numbers = #tpu.dot_dimension_numbers<[1], [0], [0], [1], [0, 0, 1, 1], [], []>} : vector<8x32xf32>, vector<32x32xf32>, vector<8x32xf32> -> vector<8x32xf32>
    %454 = arith.addf %453, %25 : vector<8x32xf32>
    %cst_203 = arith.constant 0.000000e+00 : f32
    %455 = vector.broadcast %cst_203 : f32 to vector<8x32xf32>
    %456 = arith.maximumf %454, %455 : vector<8x32xf32>
    %c0_204 = arith.constant 0 : index
    %c0_205 = arith.constant 0 : index
    %457 = vector.load %arg11[%c0_204, %c0_205] : memref<32x32xf32, #tpu.memory_space<vmem>>, vector<32x32xf32>
    %cst_206 = arith.constant dense<0.000000e+00> : vector<8x32xf32>
    %458 = tpu.matmul %456, %457, %cst_206 {dimension_numbers = #tpu.dot_dimension_numbers<[1], [0], [0], [1], [0, 0, 1, 1], [], []>} : vector<8x32xf32>, vector<32x32xf32>, vector<8x32xf32> -> vector<8x32xf32>
    %459 = arith.addf %458, %28 : vector<8x32xf32>
    %460 = arith.index_cast %435 : i32 to index
    %c0_207 = arith.constant 0 : index
    %461 = vector.load %arg33[%460, %c0_207] : memref<64x32xf32, #tpu.memory_space<vmem>>, vector<8x32xf32>
    tpu.vector_store %arg33[%460, %c0_207], %459 {strides = array<i32>} : memref<64x32xf32, #tpu.memory_space<vmem>>, vector<8x32xf32>,
    %462 = vector.extract_strided_slice %459 {offsets = [0, 0], sizes = [8, 16], strides = [1, 1]} : vector<8x32xf32> to vector<8x16xf32>
    %463 = vector.extract_strided_slice %459 {offsets = [0, 16], sizes = [8, 16], strides = [1, 1]} : vector<8x32xf32> to vector<8x16xf32>
    %cst_208 = arith.constant 0.000000e+00 : f32
    %464 = vector.broadcast %cst_208 : f32 to vector<8x16xf32>
    %465 = arith.maximumf %463, %464 : vector<8x16xf32>
    %466 = math.absf %463 : vector<8x16xf32>
    %cst_209 = arith.constant 0.000000e+00 : f32
    %467 = vector.broadcast %cst_209 : f32 to vector<8x16xf32>
    %468 = arith.subf %467, %466 : vector<8x16xf32>
    %469 = math.exp %468 : vector<8x16xf32>
    %470 = math.log1p %469 : vector<8x16xf32>
    %471 = arith.addf %465, %470 : vector<8x16xf32>
    %472 = arith.mulf %471, %437 : vector<8x16xf32>
    %473 = arith.addf %462, %472 : vector<8x16xf32>
    %c0_210 = arith.constant 0 : index
    %c0_211 = arith.constant 0 : index
    %474 = vector.load %arg13[%c0_210, %c0_211] : memref<16x32xf32, #tpu.memory_space<vmem>>, vector<16x32xf32>
    %cst_212 = arith.constant dense<0.000000e+00> : vector<8x32xf32>
    %475 = tpu.matmul %473, %474, %cst_212 {dimension_numbers = #tpu.dot_dimension_numbers<[1], [0], [0], [1], [0, 0, 1, 1], [], []>} : vector<8x16xf32>, vector<16x32xf32>, vector<8x32xf32> -> vector<8x32xf32>
    %476 = arith.addf %475, %31 : vector<8x32xf32>
    %cst_213 = arith.constant 0.000000e+00 : f32
    %477 = vector.broadcast %cst_213 : f32 to vector<8x32xf32>
    %478 = arith.maximumf %476, %477 : vector<8x32xf32>
    %479 = arith.index_cast %435 : i32 to index
    %c0_214 = arith.constant 0 : index
    %480 = vector.load %arg32[%479, %c0_214] : memref<64x32xf32, #tpu.memory_space<vmem>>, vector<8x32xf32>
    tpu.vector_store %arg32[%479, %c0_214], %478 {strides = array<i32>} : memref<64x32xf32, #tpu.memory_space<vmem>>, vector<8x32xf32>,
    %c0_215 = arith.constant 0 : index
    %c0_216 = arith.constant 0 : index
    %481 = vector.load %arg15[%c0_215, %c0_216] : memref<32x96xf32, #tpu.memory_space<vmem>>, vector<32x96xf32>
    %cst_217 = arith.constant dense<0.000000e+00> : vector<8x96xf32>
    %482 = tpu.matmul %478, %481, %cst_217 {dimension_numbers = #tpu.dot_dimension_numbers<[1], [0], [0], [1], [0, 0, 1, 1], [], []>} : vector<8x32xf32>, vector<32x96xf32>, vector<8x96xf32> -> vector<8x96xf32>
    %483 = arith.addf %441, %482 : vector<8x96xf32>
    %484 = vector.extract_strided_slice %483 {offsets = [0, 0], sizes = [8, 32], strides = [1, 1]} : vector<8x96xf32> to vector<8x32xf32>
    %485 = vector.extract_strided_slice %447 {offsets = [0, 0], sizes = [8, 32], strides = [1, 1]} : vector<8x96xf32> to vector<8x32xf32>
    %486 = arith.addf %484, %485 : vector<8x32xf32>
    %cst_218 = arith.constant 5.000000e-01 : f32
    %487 = vector.broadcast %cst_218 : f32 to vector<8x32xf32>
    %488 = arith.mulf %487, %486 : vector<8x32xf32>
    %489 = math.tanh %488 : vector<8x32xf32>
    %cst_219 = arith.constant 1.000000e+00 : f32
    %490 = vector.broadcast %cst_219 : f32 to vector<8x32xf32>
    %491 = arith.addf %489, %490 : vector<8x32xf32>
    %cst_220 = arith.constant 5.000000e-01 : f32
    %492 = vector.broadcast %cst_220 : f32 to vector<8x32xf32>
    %493 = arith.mulf %492, %491 : vector<8x32xf32>
    %494 = vector.extract_strided_slice %483 {offsets = [0, 32], sizes = [8, 32], strides = [1, 1]} : vector<8x96xf32> to vector<8x32xf32>
    %495 = vector.extract_strided_slice %447 {offsets = [0, 32], sizes = [8, 32], strides = [1, 1]} : vector<8x96xf32> to vector<8x32xf32>
    %496 = arith.addf %494, %495 : vector<8x32xf32>
    %cst_221 = arith.constant 5.000000e-01 : f32
    %497 = vector.broadcast %cst_221 : f32 to vector<8x32xf32>
    %498 = arith.mulf %497, %496 : vector<8x32xf32>
    %499 = math.tanh %498 : vector<8x32xf32>
    %cst_222 = arith.constant 1.000000e+00 : f32
    %500 = vector.broadcast %cst_222 : f32 to vector<8x32xf32>
    %501 = arith.addf %499, %500 : vector<8x32xf32>
    %cst_223 = arith.constant 5.000000e-01 : f32
    %502 = vector.broadcast %cst_223 : f32 to vector<8x32xf32>
    %503 = arith.mulf %502, %501 : vector<8x32xf32>
    %504 = vector.extract_strided_slice %483 {offsets = [0, 64], sizes = [8, 32], strides = [1, 1]} : vector<8x96xf32> to vector<8x32xf32>
    %505 = vector.extract_strided_slice %447 {offsets = [0, 64], sizes = [8, 32], strides = [1, 1]} : vector<8x96xf32> to vector<8x32xf32>
    %506 = arith.mulf %493, %505 : vector<8x32xf32>
    %507 = arith.addf %504, %506 : vector<8x32xf32>
    %508 = math.tanh %507 : vector<8x32xf32>
    %cst_224 = arith.constant 1.000000e+00 : f32
    %509 = vector.broadcast %cst_224 : f32 to vector<8x32xf32>
    %510 = arith.subf %509, %503 : vector<8x32xf32>
    %511 = arith.mulf %510, %508 : vector<8x32xf32>
    %512 = arith.mulf %503, %433 : vector<8x32xf32>
    %513 = arith.addf %511, %512 : vector<8x32xf32>
    %c6_i32 = arith.constant 6 : i32
    %c8_i32_225 = arith.constant 8 : i32
    %514 = arith.muli %c6_i32, %c8_i32_225 : i32
    %515 = tpu.assume_multiple %514, 8 : i32
    %516 = arith.index_cast %515 : i32 to index
    %c0_226 = arith.constant 0 : index
    %517 = vector.load %arg2[%516, %c0_226] : memref<64x16xf32, #tpu.memory_space<vmem>>, vector<8x16xf32>
    %518 = arith.index_cast %515 : i32 to index
    %c0_227 = arith.constant 0 : index
    %519 = vector.load %arg30[%518, %c0_227] : memref<64x128xf32, #tpu.memory_space<vmem>>, vector<8x128xf32>
    %520 = vector.extract_strided_slice %519 {offsets = [0, 0], sizes = [8, 32], strides = [1, 1]} : vector<8x128xf32> to vector<8x32xf32>
    %521 = vector.extract_strided_slice %519 {offsets = [0, 32], sizes = [8, 96], strides = [1, 1]} : vector<8x128xf32> to vector<8x96xf32>
    %522 = arith.index_cast %515 : i32 to index
    %c0_228 = arith.constant 0 : index
    %523 = vector.load %arg31[%522, %c0_228] : memref<64x32xf32, #tpu.memory_space<vmem>>, vector<8x32xf32>
    tpu.vector_store %arg31[%522, %c0_228], %513 {strides = array<i32>} : memref<64x32xf32, #tpu.memory_space<vmem>>, vector<8x32xf32>,
    %c0_229 = arith.constant 0 : index
    %c0_230 = arith.constant 0 : index
    %524 = vector.load %arg16[%c0_229, %c0_230] : memref<32x128xf32, #tpu.memory_space<vmem>>, vector<32x128xf32>
    %cst_231 = arith.constant dense<0.000000e+00> : vector<8x128xf32>
    %525 = tpu.matmul %513, %524, %cst_231 {dimension_numbers = #tpu.dot_dimension_numbers<[1], [0], [0], [1], [0, 0, 1, 1], [], []>} : vector<8x32xf32>, vector<32x128xf32>, vector<8x128xf32> -> vector<8x128xf32>
    %526 = vector.extract_strided_slice %525 {offsets = [0, 0], sizes = [8, 32], strides = [1, 1]} : vector<8x128xf32> to vector<8x32xf32>
    %527 = vector.extract_strided_slice %525 {offsets = [0, 32], sizes = [8, 96], strides = [1, 1]} : vector<8x128xf32> to vector<8x96xf32>
    %528 = arith.addf %520, %526 : vector<8x32xf32>
    %529 = arith.addf %528, %22 : vector<8x32xf32>
    %cst_232 = arith.constant 0.000000e+00 : f32
    %530 = vector.broadcast %cst_232 : f32 to vector<8x32xf32>
    %531 = arith.maximumf %529, %530 : vector<8x32xf32>
    %c0_233 = arith.constant 0 : index
    %c0_234 = arith.constant 0 : index
    %532 = vector.load %arg9[%c0_233, %c0_234] : memref<32x32xf32, #tpu.memory_space<vmem>>, vector<32x32xf32>
    %cst_235 = arith.constant dense<0.000000e+00> : vector<8x32xf32>
    %533 = tpu.matmul %531, %532, %cst_235 {dimension_numbers = #tpu.dot_dimension_numbers<[1], [0], [0], [1], [0, 0, 1, 1], [], []>} : vector<8x32xf32>, vector<32x32xf32>, vector<8x32xf32> -> vector<8x32xf32>
    %534 = arith.addf %533, %25 : vector<8x32xf32>
    %cst_236 = arith.constant 0.000000e+00 : f32
    %535 = vector.broadcast %cst_236 : f32 to vector<8x32xf32>
    %536 = arith.maximumf %534, %535 : vector<8x32xf32>
    %c0_237 = arith.constant 0 : index
    %c0_238 = arith.constant 0 : index
    %537 = vector.load %arg11[%c0_237, %c0_238] : memref<32x32xf32, #tpu.memory_space<vmem>>, vector<32x32xf32>
    %cst_239 = arith.constant dense<0.000000e+00> : vector<8x32xf32>
    %538 = tpu.matmul %536, %537, %cst_239 {dimension_numbers = #tpu.dot_dimension_numbers<[1], [0], [0], [1], [0, 0, 1, 1], [], []>} : vector<8x32xf32>, vector<32x32xf32>, vector<8x32xf32> -> vector<8x32xf32>
    %539 = arith.addf %538, %28 : vector<8x32xf32>
    %540 = arith.index_cast %515 : i32 to index
    %c0_240 = arith.constant 0 : index
    %541 = vector.load %arg33[%540, %c0_240] : memref<64x32xf32, #tpu.memory_space<vmem>>, vector<8x32xf32>
    tpu.vector_store %arg33[%540, %c0_240], %539 {strides = array<i32>} : memref<64x32xf32, #tpu.memory_space<vmem>>, vector<8x32xf32>,
    %542 = vector.extract_strided_slice %539 {offsets = [0, 0], sizes = [8, 16], strides = [1, 1]} : vector<8x32xf32> to vector<8x16xf32>
    %543 = vector.extract_strided_slice %539 {offsets = [0, 16], sizes = [8, 16], strides = [1, 1]} : vector<8x32xf32> to vector<8x16xf32>
    %cst_241 = arith.constant 0.000000e+00 : f32
    %544 = vector.broadcast %cst_241 : f32 to vector<8x16xf32>
    %545 = arith.maximumf %543, %544 : vector<8x16xf32>
    %546 = math.absf %543 : vector<8x16xf32>
    %cst_242 = arith.constant 0.000000e+00 : f32
    %547 = vector.broadcast %cst_242 : f32 to vector<8x16xf32>
    %548 = arith.subf %547, %546 : vector<8x16xf32>
    %549 = math.exp %548 : vector<8x16xf32>
    %550 = math.log1p %549 : vector<8x16xf32>
    %551 = arith.addf %545, %550 : vector<8x16xf32>
    %552 = arith.mulf %551, %517 : vector<8x16xf32>
    %553 = arith.addf %542, %552 : vector<8x16xf32>
    %c0_243 = arith.constant 0 : index
    %c0_244 = arith.constant 0 : index
    %554 = vector.load %arg13[%c0_243, %c0_244] : memref<16x32xf32, #tpu.memory_space<vmem>>, vector<16x32xf32>
    %cst_245 = arith.constant dense<0.000000e+00> : vector<8x32xf32>
    %555 = tpu.matmul %553, %554, %cst_245 {dimension_numbers = #tpu.dot_dimension_numbers<[1], [0], [0], [1], [0, 0, 1, 1], [], []>} : vector<8x16xf32>, vector<16x32xf32>, vector<8x32xf32> -> vector<8x32xf32>
    %556 = arith.addf %555, %31 : vector<8x32xf32>
    %cst_246 = arith.constant 0.000000e+00 : f32
    %557 = vector.broadcast %cst_246 : f32 to vector<8x32xf32>
    %558 = arith.maximumf %556, %557 : vector<8x32xf32>
    %559 = arith.index_cast %515 : i32 to index
    %c0_247 = arith.constant 0 : index
    %560 = vector.load %arg32[%559, %c0_247] : memref<64x32xf32, #tpu.memory_space<vmem>>, vector<8x32xf32>
    tpu.vector_store %arg32[%559, %c0_247], %558 {strides = array<i32>} : memref<64x32xf32, #tpu.memory_space<vmem>>, vector<8x32xf32>,
    %c0_248 = arith.constant 0 : index
    %c0_249 = arith.constant 0 : index
    %561 = vector.load %arg15[%c0_248, %c0_249] : memref<32x96xf32, #tpu.memory_space<vmem>>, vector<32x96xf32>
    %cst_250 = arith.constant dense<0.000000e+00> : vector<8x96xf32>
    %562 = tpu.matmul %558, %561, %cst_250 {dimension_numbers = #tpu.dot_dimension_numbers<[1], [0], [0], [1], [0, 0, 1, 1], [], []>} : vector<8x32xf32>, vector<32x96xf32>, vector<8x96xf32> -> vector<8x96xf32>
    %563 = arith.addf %521, %562 : vector<8x96xf32>
    %564 = vector.extract_strided_slice %563 {offsets = [0, 0], sizes = [8, 32], strides = [1, 1]} : vector<8x96xf32> to vector<8x32xf32>
    %565 = vector.extract_strided_slice %527 {offsets = [0, 0], sizes = [8, 32], strides = [1, 1]} : vector<8x96xf32> to vector<8x32xf32>
    %566 = arith.addf %564, %565 : vector<8x32xf32>
    %cst_251 = arith.constant 5.000000e-01 : f32
    %567 = vector.broadcast %cst_251 : f32 to vector<8x32xf32>
    %568 = arith.mulf %567, %566 : vector<8x32xf32>
    %569 = math.tanh %568 : vector<8x32xf32>
    %cst_252 = arith.constant 1.000000e+00 : f32
    %570 = vector.broadcast %cst_252 : f32 to vector<8x32xf32>
    %571 = arith.addf %569, %570 : vector<8x32xf32>
    %cst_253 = arith.constant 5.000000e-01 : f32
    %572 = vector.broadcast %cst_253 : f32 to vector<8x32xf32>
    %573 = arith.mulf %572, %571 : vector<8x32xf32>
    %574 = vector.extract_strided_slice %563 {offsets = [0, 32], sizes = [8, 32], strides = [1, 1]} : vector<8x96xf32> to vector<8x32xf32>
    %575 = vector.extract_strided_slice %527 {offsets = [0, 32], sizes = [8, 32], strides = [1, 1]} : vector<8x96xf32> to vector<8x32xf32>
    %576 = arith.addf %574, %575 : vector<8x32xf32>
    %cst_254 = arith.constant 5.000000e-01 : f32
    %577 = vector.broadcast %cst_254 : f32 to vector<8x32xf32>
    %578 = arith.mulf %577, %576 : vector<8x32xf32>
    %579 = math.tanh %578 : vector<8x32xf32>
    %cst_255 = arith.constant 1.000000e+00 : f32
    %580 = vector.broadcast %cst_255 : f32 to vector<8x32xf32>
    %581 = arith.addf %579, %580 : vector<8x32xf32>
    %cst_256 = arith.constant 5.000000e-01 : f32
    %582 = vector.broadcast %cst_256 : f32 to vector<8x32xf32>
    %583 = arith.mulf %582, %581 : vector<8x32xf32>
    %584 = vector.extract_strided_slice %563 {offsets = [0, 64], sizes = [8, 32], strides = [1, 1]} : vector<8x96xf32> to vector<8x32xf32>
    %585 = vector.extract_strided_slice %527 {offsets = [0, 64], sizes = [8, 32], strides = [1, 1]} : vector<8x96xf32> to vector<8x32xf32>
    %586 = arith.mulf %573, %585 : vector<8x32xf32>
    %587 = arith.addf %584, %586 : vector<8x32xf32>
    %588 = math.tanh %587 : vector<8x32xf32>
    %cst_257 = arith.constant 1.000000e+00 : f32
    %589 = vector.broadcast %cst_257 : f32 to vector<8x32xf32>
    %590 = arith.subf %589, %583 : vector<8x32xf32>
    %591 = arith.mulf %590, %588 : vector<8x32xf32>
    %592 = arith.mulf %583, %513 : vector<8x32xf32>
    %593 = arith.addf %591, %592 : vector<8x32xf32>
    %c7_i32 = arith.constant 7 : i32
    %c8_i32_258 = arith.constant 8 : i32
    %594 = arith.muli %c7_i32, %c8_i32_258 : i32
    %595 = tpu.assume_multiple %594, 8 : i32
    %596 = arith.index_cast %595 : i32 to index
    %c0_259 = arith.constant 0 : index
    %597 = vector.load %arg2[%596, %c0_259] : memref<64x16xf32, #tpu.memory_space<vmem>>, vector<8x16xf32>
    %598 = arith.index_cast %595 : i32 to index
    %c0_260 = arith.constant 0 : index
    %599 = vector.load %arg30[%598, %c0_260] : memref<64x128xf32, #tpu.memory_space<vmem>>, vector<8x128xf32>
    %600 = vector.extract_strided_slice %599 {offsets = [0, 0], sizes = [8, 32], strides = [1, 1]} : vector<8x128xf32> to vector<8x32xf32>
    %601 = vector.extract_strided_slice %599 {offsets = [0, 32], sizes = [8, 96], strides = [1, 1]} : vector<8x128xf32> to vector<8x96xf32>
    %602 = arith.index_cast %595 : i32 to index
    %c0_261 = arith.constant 0 : index
    %603 = vector.load %arg31[%602, %c0_261] : memref<64x32xf32, #tpu.memory_space<vmem>>, vector<8x32xf32>
    tpu.vector_store %arg31[%602, %c0_261], %593 {strides = array<i32>} : memref<64x32xf32, #tpu.memory_space<vmem>>, vector<8x32xf32>,
    %c0_262 = arith.constant 0 : index
    %c0_263 = arith.constant 0 : index
    %604 = vector.load %arg16[%c0_262, %c0_263] : memref<32x128xf32, #tpu.memory_space<vmem>>, vector<32x128xf32>
    %cst_264 = arith.constant dense<0.000000e+00> : vector<8x128xf32>
    %605 = tpu.matmul %593, %604, %cst_264 {dimension_numbers = #tpu.dot_dimension_numbers<[1], [0], [0], [1], [0, 0, 1, 1], [], []>} : vector<8x32xf32>, vector<32x128xf32>, vector<8x128xf32> -> vector<8x128xf32>
    %606 = vector.extract_strided_slice %605 {offsets = [0, 0], sizes = [8, 32], strides = [1, 1]} : vector<8x128xf32> to vector<8x32xf32>
    %607 = vector.extract_strided_slice %605 {offsets = [0, 32], sizes = [8, 96], strides = [1, 1]} : vector<8x128xf32> to vector<8x96xf32>
    %608 = arith.addf %600, %606 : vector<8x32xf32>
    %609 = arith.addf %608, %22 : vector<8x32xf32>
    %cst_265 = arith.constant 0.000000e+00 : f32
    %610 = vector.broadcast %cst_265 : f32 to vector<8x32xf32>
    %611 = arith.maximumf %609, %610 : vector<8x32xf32>
    %c0_266 = arith.constant 0 : index
    %c0_267 = arith.constant 0 : index
    %612 = vector.load %arg9[%c0_266, %c0_267] : memref<32x32xf32, #tpu.memory_space<vmem>>, vector<32x32xf32>
    %cst_268 = arith.constant dense<0.000000e+00> : vector<8x32xf32>
    %613 = tpu.matmul %611, %612, %cst_268 {dimension_numbers = #tpu.dot_dimension_numbers<[1], [0], [0], [1], [0, 0, 1, 1], [], []>} : vector<8x32xf32>, vector<32x32xf32>, vector<8x32xf32> -> vector<8x32xf32>
    %614 = arith.addf %613, %25 : vector<8x32xf32>
    %cst_269 = arith.constant 0.000000e+00 : f32
    %615 = vector.broadcast %cst_269 : f32 to vector<8x32xf32>
    %616 = arith.maximumf %614, %615 : vector<8x32xf32>
    %c0_270 = arith.constant 0 : index
    %c0_271 = arith.constant 0 : index
    %617 = vector.load %arg11[%c0_270, %c0_271] : memref<32x32xf32, #tpu.memory_space<vmem>>, vector<32x32xf32>
    %cst_272 = arith.constant dense<0.000000e+00> : vector<8x32xf32>
    %618 = tpu.matmul %616, %617, %cst_272 {dimension_numbers = #tpu.dot_dimension_numbers<[1], [0], [0], [1], [0, 0, 1, 1], [], []>} : vector<8x32xf32>, vector<32x32xf32>, vector<8x32xf32> -> vector<8x32xf32>
    %619 = arith.addf %618, %28 : vector<8x32xf32>
    %620 = arith.index_cast %595 : i32 to index
    %c0_273 = arith.constant 0 : index
    %621 = vector.load %arg33[%620, %c0_273] : memref<64x32xf32, #tpu.memory_space<vmem>>, vector<8x32xf32>
    tpu.vector_store %arg33[%620, %c0_273], %619 {strides = array<i32>} : memref<64x32xf32, #tpu.memory_space<vmem>>, vector<8x32xf32>,
    %622 = vector.extract_strided_slice %619 {offsets = [0, 0], sizes = [8, 16], strides = [1, 1]} : vector<8x32xf32> to vector<8x16xf32>
    %623 = vector.extract_strided_slice %619 {offsets = [0, 16], sizes = [8, 16], strides = [1, 1]} : vector<8x32xf32> to vector<8x16xf32>
    %cst_274 = arith.constant 0.000000e+00 : f32
    %624 = vector.broadcast %cst_274 : f32 to vector<8x16xf32>
    %625 = arith.maximumf %623, %624 : vector<8x16xf32>
    %626 = math.absf %623 : vector<8x16xf32>
    %cst_275 = arith.constant 0.000000e+00 : f32
    %627 = vector.broadcast %cst_275 : f32 to vector<8x16xf32>
    %628 = arith.subf %627, %626 : vector<8x16xf32>
    %629 = math.exp %628 : vector<8x16xf32>
    %630 = math.log1p %629 : vector<8x16xf32>
    %631 = arith.addf %625, %630 : vector<8x16xf32>
    %632 = arith.mulf %631, %597 : vector<8x16xf32>
    %633 = arith.addf %622, %632 : vector<8x16xf32>
    %c0_276 = arith.constant 0 : index
    %c0_277 = arith.constant 0 : index
    %634 = vector.load %arg13[%c0_276, %c0_277] : memref<16x32xf32, #tpu.memory_space<vmem>>, vector<16x32xf32>
    %cst_278 = arith.constant dense<0.000000e+00> : vector<8x32xf32>
    %635 = tpu.matmul %633, %634, %cst_278 {dimension_numbers = #tpu.dot_dimension_numbers<[1], [0], [0], [1], [0, 0, 1, 1], [], []>} : vector<8x16xf32>, vector<16x32xf32>, vector<8x32xf32> -> vector<8x32xf32>
    %636 = arith.addf %635, %31 : vector<8x32xf32>
    %cst_279 = arith.constant 0.000000e+00 : f32
    %637 = vector.broadcast %cst_279 : f32 to vector<8x32xf32>
    %638 = arith.maximumf %636, %637 : vector<8x32xf32>
    %639 = arith.index_cast %595 : i32 to index
    %c0_280 = arith.constant 0 : index
    %640 = vector.load %arg32[%639, %c0_280] : memref<64x32xf32, #tpu.memory_space<vmem>>, vector<8x32xf32>
    tpu.vector_store %arg32[%639, %c0_280], %638 {strides = array<i32>} : memref<64x32xf32, #tpu.memory_space<vmem>>, vector<8x32xf32>,
    %c0_281 = arith.constant 0 : index
    %c0_282 = arith.constant 0 : index
    %641 = vector.load %arg15[%c0_281, %c0_282] : memref<32x96xf32, #tpu.memory_space<vmem>>, vector<32x96xf32>
    %cst_283 = arith.constant dense<0.000000e+00> : vector<8x96xf32>
    %642 = tpu.matmul %638, %641, %cst_283 {dimension_numbers = #tpu.dot_dimension_numbers<[1], [0], [0], [1], [0, 0, 1, 1], [], []>} : vector<8x32xf32>, vector<32x96xf32>, vector<8x96xf32> -> vector<8x96xf32>
    %643 = arith.addf %601, %642 : vector<8x96xf32>
    %644 = vector.extract_strided_slice %643 {offsets = [0, 0], sizes = [8, 32], strides = [1, 1]} : vector<8x96xf32> to vector<8x32xf32>
    %645 = vector.extract_strided_slice %607 {offsets = [0, 0], sizes = [8, 32], strides = [1, 1]} : vector<8x96xf32> to vector<8x32xf32>
    %646 = arith.addf %644, %645 : vector<8x32xf32>
    %cst_284 = arith.constant 5.000000e-01 : f32
    %647 = vector.broadcast %cst_284 : f32 to vector<8x32xf32>
    %648 = arith.mulf %647, %646 : vector<8x32xf32>
    %649 = math.tanh %648 : vector<8x32xf32>
    %cst_285 = arith.constant 1.000000e+00 : f32
    %650 = vector.broadcast %cst_285 : f32 to vector<8x32xf32>
    %651 = arith.addf %649, %650 : vector<8x32xf32>
    %cst_286 = arith.constant 5.000000e-01 : f32
    %652 = vector.broadcast %cst_286 : f32 to vector<8x32xf32>
    %653 = arith.mulf %652, %651 : vector<8x32xf32>
    %654 = vector.extract_strided_slice %643 {offsets = [0, 32], sizes = [8, 32], strides = [1, 1]} : vector<8x96xf32> to vector<8x32xf32>
    %655 = vector.extract_strided_slice %607 {offsets = [0, 32], sizes = [8, 32], strides = [1, 1]} : vector<8x96xf32> to vector<8x32xf32>
    %656 = arith.addf %654, %655 : vector<8x32xf32>
    %cst_287 = arith.constant 5.000000e-01 : f32
    %657 = vector.broadcast %cst_287 : f32 to vector<8x32xf32>
    %658 = arith.mulf %657, %656 : vector<8x32xf32>
    %659 = math.tanh %658 : vector<8x32xf32>
    %cst_288 = arith.constant 1.000000e+00 : f32
    %660 = vector.broadcast %cst_288 : f32 to vector<8x32xf32>
    %661 = arith.addf %659, %660 : vector<8x32xf32>
    %cst_289 = arith.constant 5.000000e-01 : f32
    %662 = vector.broadcast %cst_289 : f32 to vector<8x32xf32>
    %663 = arith.mulf %662, %661 : vector<8x32xf32>
    %664 = vector.extract_strided_slice %643 {offsets = [0, 64], sizes = [8, 32], strides = [1, 1]} : vector<8x96xf32> to vector<8x32xf32>
    %665 = vector.extract_strided_slice %607 {offsets = [0, 64], sizes = [8, 32], strides = [1, 1]} : vector<8x96xf32> to vector<8x32xf32>
    %666 = arith.mulf %653, %665 : vector<8x32xf32>
    %667 = arith.addf %664, %666 : vector<8x32xf32>
    %668 = math.tanh %667 : vector<8x32xf32>
    %cst_290 = arith.constant 1.000000e+00 : f32
    %669 = vector.broadcast %cst_290 : f32 to vector<8x32xf32>
    %670 = arith.subf %669, %663 : vector<8x32xf32>
    %671 = arith.mulf %670, %668 : vector<8x32xf32>
    %672 = arith.mulf %663, %593 : vector<8x32xf32>
    %673 = arith.addf %671, %672 : vector<8x32xf32>
    %c8_i32_291 = arith.constant 8 : i32
    %c0_292 = arith.constant 0 : index
    %c0_293 = arith.constant 0 : index
    %674 = vector.load %arg28[%c0_292, %c0_293] : memref<8x16xf32, #tpu.memory_space<vmem>>, vector<8x16xf32>
    tpu.vector_store %arg28[%c0_292, %c0_293], %633 {strides = array<i32>} : memref<8x16xf32, #tpu.memory_space<vmem>>, vector<8x16xf32>,
    %c0_294 = arith.constant 0 : index
    %c0_295 = arith.constant 0 : index
    %675 = vector.load %arg29[%c0_294, %c0_295] : memref<8x32xf32, #tpu.memory_space<vmem>>, vector<8x32xf32>
    tpu.vector_store %arg29[%c0_294, %c0_295], %673 {strides = array<i32>} : memref<8x32xf32, #tpu.memory_space<vmem>>, vector<8x32xf32>,
    %c0_296 = arith.constant 0 : index
    %c0_297 = arith.constant 0 : index
    %676 = vector.load %arg31[%c0_296, %c0_297] : memref<64x32xf32, #tpu.memory_space<vmem>>, vector<64x32xf32>
    %c0_298 = arith.constant 0 : index
    %c0_299 = arith.constant 0 : index
    %677 = vector.load %arg17[%c0_298, %c0_299] : memref<32x64xf32, #tpu.memory_space<vmem>>, vector<32x64xf32>
    %cst_300 = arith.constant dense<0.000000e+00> : vector<64x64xf32>
    %678 = tpu.matmul %676, %677, %cst_300 {dimension_numbers = #tpu.dot_dimension_numbers<[1], [0], [0], [1], [0, 0, 1, 1], [], []>} : vector<64x32xf32>, vector<32x64xf32>, vector<64x64xf32> -> vector<64x64xf32>
    %679 = vector.extract_strided_slice %678 {offsets = [0, 0], sizes = [64, 32], strides = [1, 1]} : vector<64x64xf32> to vector<64x32xf32>
    %c0_301 = arith.constant 0 : index
    %c0_302 = arith.constant 0 : index
    %680 = vector.load %arg18[%c0_301, %c0_302] : memref<1x32xf32, #tpu.memory_space<vmem>>, vector<1x32xf32>
    %681 = vector.broadcast %680 : vector<1x32xf32> to vector<64x32xf32>
    %682 = arith.addf %679, %681 : vector<64x32xf32>
    %cst_303 = arith.constant 0.000000e+00 : f32
    %683 = vector.broadcast %cst_303 : f32 to vector<64x32xf32>
    %684 = arith.maximumf %682, %683 : vector<64x32xf32>
    %c0_304 = arith.constant 0 : index
    %c0_305 = arith.constant 0 : index
    %685 = vector.load %arg19[%c0_304, %c0_305] : memref<32x32xf32, #tpu.memory_space<vmem>>, vector<32x32xf32>
    %cst_306 = arith.constant dense<0.000000e+00> : vector<64x32xf32>
    %686 = tpu.matmul %684, %685, %cst_306 {dimension_numbers = #tpu.dot_dimension_numbers<[1], [0], [0], [1], [0, 0, 1, 1], [], []>} : vector<64x32xf32>, vector<32x32xf32>, vector<64x32xf32> -> vector<64x32xf32>
    %c0_307 = arith.constant 0 : index
    %c0_308 = arith.constant 0 : index
    %687 = vector.load %arg20[%c0_307, %c0_308] : memref<1x32xf32, #tpu.memory_space<vmem>>, vector<1x32xf32>
    %688 = vector.broadcast %687 : vector<1x32xf32> to vector<64x32xf32>
    %689 = arith.addf %686, %688 : vector<64x32xf32>
    %690 = vector.extract_strided_slice %689 {offsets = [0, 0], sizes = [64, 16], strides = [1, 1]} : vector<64x32xf32> to vector<64x16xf32>
    %691 = vector.extract_strided_slice %689 {offsets = [0, 16], sizes = [64, 16], strides = [1, 1]} : vector<64x32xf32> to vector<64x16xf32>
    %cst_309 = arith.constant 0.000000e+00 : f32
    %692 = vector.broadcast %cst_309 : f32 to vector<64x16xf32>
    %693 = arith.maximumf %691, %692 : vector<64x16xf32>
    %694 = math.absf %691 : vector<64x16xf32>
    %cst_310 = arith.constant 0.000000e+00 : f32
    %695 = vector.broadcast %cst_310 : f32 to vector<64x16xf32>
    %696 = arith.subf %695, %694 : vector<64x16xf32>
    %697 = math.exp %696 : vector<64x16xf32>
    %698 = math.log1p %697 : vector<64x16xf32>
    %699 = arith.addf %693, %698 : vector<64x16xf32>
    %c0_311 = arith.constant 0 : index
    %c0_312 = arith.constant 0 : index
    %700 = vector.load %arg32[%c0_311, %c0_312] : memref<64x32xf32, #tpu.memory_space<vmem>>, vector<64x32xf32>
    %c0_313 = arith.constant 0 : index
    %c0_314 = arith.constant 0 : index
    %701 = vector.load %arg21[%c0_313, %c0_314] : memref<32x32xf32, #tpu.memory_space<vmem>>, vector<32x32xf32>
    %cst_315 = arith.constant dense<0.000000e+00> : vector<64x32xf32>
    %702 = tpu.matmul %700, %701, %cst_315 {dimension_numbers = #tpu.dot_dimension_numbers<[1], [0], [0], [1], [0, 0, 1, 1], [], []>} : vector<64x32xf32>, vector<32x32xf32>, vector<64x32xf32> -> vector<64x32xf32>
    %703 = vector.extract_strided_slice %678 {offsets = [0, 32], sizes = [64, 32], strides = [1, 1]} : vector<64x64xf32> to vector<64x32xf32>
    %704 = arith.addf %702, %703 : vector<64x32xf32>
    %c0_316 = arith.constant 0 : index
    %c0_317 = arith.constant 0 : index
    %705 = vector.load %arg22[%c0_316, %c0_317] : memref<1x32xf32, #tpu.memory_space<vmem>>, vector<1x32xf32>
    %706 = vector.broadcast %705 : vector<1x32xf32> to vector<64x32xf32>
    %707 = arith.addf %704, %706 : vector<64x32xf32>
    %cst_318 = arith.constant 0.000000e+00 : f32
    %708 = vector.broadcast %cst_318 : f32 to vector<64x32xf32>
    %709 = arith.maximumf %707, %708 : vector<64x32xf32>
    %c0_319 = arith.constant 0 : index
    %c0_320 = arith.constant 0 : index
    %710 = vector.load %arg23[%c0_319, %c0_320] : memref<32x32xf32, #tpu.memory_space<vmem>>, vector<32x32xf32>
    %cst_321 = arith.constant dense<0.000000e+00> : vector<64x32xf32>
    %711 = tpu.matmul %709, %710, %cst_321 {dimension_numbers = #tpu.dot_dimension_numbers<[1], [0], [0], [1], [0, 0, 1, 1], [], []>} : vector<64x32xf32>, vector<32x32xf32>, vector<64x32xf32> -> vector<64x32xf32>
    %c0_322 = arith.constant 0 : index
    %c0_323 = arith.constant 0 : index
    %712 = vector.load %arg24[%c0_322, %c0_323] : memref<1x32xf32, #tpu.memory_space<vmem>>, vector<1x32xf32>
    %713 = vector.broadcast %712 : vector<1x32xf32> to vector<64x32xf32>
    %714 = arith.addf %711, %713 : vector<64x32xf32>
    %cst_324 = arith.constant 0.000000e+00 : f32
    %715 = vector.broadcast %cst_324 : f32 to vector<64x32xf32>
    %716 = arith.maximumf %714, %715 : vector<64x32xf32>
    %c0_325 = arith.constant 0 : index
    %c0_326 = arith.constant 0 : index
    %717 = vector.load %arg25[%c0_325, %c0_326] : memref<32x16xf32, #tpu.memory_space<vmem>>, vector<32x16xf32>
    %cst_327 = arith.constant dense<0.000000e+00> : vector<64x16xf32>
    %718 = tpu.matmul %716, %717, %cst_327 {dimension_numbers = #tpu.dot_dimension_numbers<[1], [0], [0], [1], [0, 0, 1, 1], [], []>} : vector<64x32xf32>, vector<32x16xf32>, vector<64x16xf32> -> vector<64x16xf32>
    %c0_328 = arith.constant 0 : index
    %c0_329 = arith.constant 0 : index
    %719 = vector.load %arg26[%c0_328, %c0_329] : memref<1x16xf32, #tpu.memory_space<vmem>>, vector<1x16xf32>
    %720 = vector.broadcast %719 : vector<1x16xf32> to vector<64x16xf32>
    %721 = arith.addf %718, %720 : vector<64x16xf32>
    %cst_330 = arith.constant 5.000000e-01 : f32
    %722 = vector.broadcast %cst_330 : f32 to vector<64x16xf32>
    %723 = arith.mulf %722, %721 : vector<64x16xf32>
    %724 = math.tanh %723 : vector<64x16xf32>
    %cst_331 = arith.constant 1.000000e+00 : f32
    %725 = vector.broadcast %cst_331 : f32 to vector<64x16xf32>
    %726 = arith.addf %724, %725 : vector<64x16xf32>
    %cst_332 = arith.constant 5.000000e-01 : f32
    %727 = vector.broadcast %cst_332 : f32 to vector<64x16xf32>
    %728 = arith.mulf %727, %726 : vector<64x16xf32>
    %c0_333 = arith.constant 0 : index
    %c0_334 = arith.constant 0 : index
    %729 = vector.load %arg33[%c0_333, %c0_334] : memref<64x32xf32, #tpu.memory_space<vmem>>, vector<64x32xf32>
    %730 = vector.extract_strided_slice %729 {offsets = [0, 0], sizes = [64, 16], strides = [1, 1]} : vector<64x32xf32> to vector<64x16xf32>
    %731 = vector.extract_strided_slice %729 {offsets = [0, 16], sizes = [64, 16], strides = [1, 1]} : vector<64x32xf32> to vector<64x16xf32>
    %cst_335 = arith.constant 0.000000e+00 : f32
    %732 = vector.broadcast %cst_335 : f32 to vector<64x16xf32>
    %733 = arith.maximumf %731, %732 : vector<64x16xf32>
    %734 = math.absf %731 : vector<64x16xf32>
    %cst_336 = arith.constant 0.000000e+00 : f32
    %735 = vector.broadcast %cst_336 : f32 to vector<64x16xf32>
    %736 = arith.subf %735, %734 : vector<64x16xf32>
    %737 = math.exp %736 : vector<64x16xf32>
    %738 = math.log1p %737 : vector<64x16xf32>
    %739 = arith.addf %733, %738 : vector<64x16xf32>
    %740 = arith.subf %2, %728 : vector<64x16xf32>
    %741 = arith.mulf %740, %740 : vector<64x16xf32>
    %742 = vector.shape_cast %741 : vector<64x16xf32> to vector<1x64x16xf32>
    %cst_337 = arith.constant dense<0.000000e+00> : vector<1xf32>
    %743 = vector.multi_reduction <add>, %742, %cst_337 [1, 2] : vector<1x64x16xf32> to vector<1xf32>
    %744 = vector.shape_cast %743 : vector<1xf32> to vector<1x1x1xf32>
    %745 = vector.extract %744[0, 0, 0] : f32 from vector<1x1x1xf32>
    %746 = arith.divf %699, %739 : vector<64x16xf32>
    %747 = math.log %746 : vector<64x16xf32>
    %748 = arith.mulf %739, %739 : vector<64x16xf32>
    %749 = arith.subf %730, %690 : vector<64x16xf32>
    %750 = arith.mulf %749, %749 : vector<64x16xf32>
    %751 = arith.addf %748, %750 : vector<64x16xf32>
    %752 = arith.mulf %699, %699 : vector<64x16xf32>
    %cst_338 = arith.constant 2.000000e+00 : f32
    %753 = vector.broadcast %cst_338 : f32 to vector<64x16xf32>
    %754 = arith.mulf %753, %752 : vector<64x16xf32>
    %755 = arith.divf %751, %754 : vector<64x16xf32>
    %756 = arith.addf %747, %755 : vector<64x16xf32>
    %cst_339 = arith.constant 5.000000e-01 : f32
    %757 = vector.broadcast %cst_339 : f32 to vector<64x16xf32>
    %758 = arith.subf %756, %757 : vector<64x16xf32>
    %759 = vector.shape_cast %758 : vector<64x16xf32> to vector<1x64x16xf32>
    %cst_340 = arith.constant dense<0.000000e+00> : vector<1xf32>
    %760 = vector.multi_reduction <add>, %759, %cst_340 [1, 2] : vector<1x64x16xf32> to vector<1xf32>
    %761 = vector.shape_cast %760 : vector<1xf32> to vector<1x1x1xf32>
    %762 = vector.extract %761[0, 0, 0] : f32 from vector<1x1x1xf32>
    %cst_341 = arith.constant 7.812500e-03 : f32
    %763 = arith.mulf %745, %cst_341 : f32
    %764 = arith.mulf %0, %763 : f32
    %765 = arith.mulf %1, %762 : f32
    %766 = arith.addf %764, %765 : f32
    %cst_342 = arith.constant 1.562500e-02 : f32
    %767 = arith.mulf %766, %cst_342 : f32
    %768 = vector.broadcast %767 : f32 to vector<1x1xf32>
    %c0_343 = arith.constant 0 : index
    %c0_344 = arith.constant 0 : index
    %769 = vector.load %arg27[%c0_343, %c0_344] : memref<1x1xf32, #tpu.memory_space<vmem>>, vector<1x1xf32>
    tpu.vector_store %arg27[%c0_343, %c0_344], %768 {strides = array<i32>} : memref<1x1xf32, #tpu.memory_space<vmem>>, vector<1x1xf32>,
    return
  }
}

</mosaic_0001>

<llo_original>
// kernel: tpu_custom_call.1
$region0: #{tpu_custom_call.1}
  #allocation0 [shape = 'u32[]', space=smem, size = 0x4, offset = 0x4, fixed_abs, tag = 'smem constant byte address 0x4 - core index']
  #allocation1 [shape = 'u32[144,128]{1,0:T(1,128)}', space=vmem, size = 0x12000, scoped, tag = 'internal scratch']
  #allocation2 [shape = 'f32[64,128]{1,0:T(8,128)}', space=vmem, size = 0x8000, scoped, tag = 'scratch operand']
  #allocation3 [shape = 'f32[64,32]{1,0:T(8,128)}', space=vmem, size = 0x8000, scoped, tag = 'scratch operand']
  #allocation4 [shape = 'f32[64,32]{1,0:T(8,128)}', space=vmem, size = 0x8000, scoped, tag = 'scratch operand']
  #allocation5 [shape = 'f32[64,32]{1,0:T(8,128)}', space=vmem, size = 0x8000, scoped, tag = 'scratch operand']
  %s0 = inlined_call_operand.smem [shape: u32[30], index: -1, kind: input, shape index: {}]
  %s1 = sld [smem:[%s0]]
  %s2 = scalar_lea.smem %s0, 1
  %s3 = sld [smem:[%s2]]
  %s4 = scalar_lea.smem %s0, 2
  %s5 = sld [smem:[%s4]]
  %s6 = scalar_lea.smem %s0, 3
  %s7 = sld [smem:[%s6]]
  %s8 = scalar_lea.smem %s0, 4
  %s9 = sld [smem:[%s8]]
  %s10 = scalar_lea.smem %s0, 5
  %s11 = sld [smem:[%s10]]
  %s12 = scalar_lea.smem %s0, 6
  %s13 = sld [smem:[%s12]]
  %s14 = scalar_lea.smem %s0, 7
  %s15 = sld [smem:[%s14]]
  %s16 = scalar_lea.smem %s0, 8
  %s17 = sld [smem:[%s16]]
  %s18 = scalar_lea.smem %s0, 9
  %s19 = sld [smem:[%s18]]
  %s20 = scalar_lea.smem %s0, 10
  %s21 = sld [smem:[%s20]]
  %s22 = scalar_lea.smem %s0, 11
  %s23 = sld [smem:[%s22]]
  %s24 = scalar_lea.smem %s0, 12
  %s25 = sld [smem:[%s24]]
  %s26 = scalar_lea.smem %s0, 13
  %s27 = sld [smem:[%s26]]
  %s28 = scalar_lea.smem %s0, 14
  %s29 = sld [smem:[%s28]]
  %s30 = scalar_lea.smem %s0, 15
  %s31 = sld [smem:[%s30]]
  %s32 = scalar_lea.smem %s0, 16
  %s33 = sld [smem:[%s32]]
  %s34 = scalar_lea.smem %s0, 17
  %s35 = sld [smem:[%s34]]
  %s36 = scalar_lea.smem %s0, 18
  %s37 = sld [smem:[%s36]]
  %s38 = scalar_lea.smem %s0, 19
  %s39 = sld [smem:[%s38]]
  %s40 = scalar_lea.smem %s0, 20
  %s41 = sld [smem:[%s40]]
  %s42 = scalar_lea.smem %s0, 21
  %s43 = sld [smem:[%s42]]
  %s44 = scalar_lea.smem %s0, 22
  %s45 = sld [smem:[%s44]]
  %s46 = scalar_lea.smem %s0, 23
  %s47 = sld [smem:[%s46]]
  %s48 = scalar_lea.smem %s0, 24
  %s49 = sld [smem:[%s48]]
  %s50 = scalar_lea.smem %s0, 25
  %s51 = sld [smem:[%s50]]
  %s52 = scalar_lea.smem %s0, 26
  %s53 = sld [smem:[%s52]]
  %s54 = scalar_lea.smem %s0, 27
  %s55 = sld [smem:[%s54]]
  %s56 = scalar_lea.smem %s0, 28
  %s57 = sld [smem:[%s56]]
  %s58 = scalar_lea.smem %s0, 29
  %s59 = sld [smem:[%s58]]
  %60 = xla_tuple %s55, %s57, %s59
  %s61 = sld [smem:[#allocation0]]
  $region186: #{tpu_custom_call.1} parent=0
    _
  %s63 = ssub.s32 1, %s61
  %s64 = scalar_select 0, %s63, %s61
  $region1: #{tpu_custom_call.1} parent=0
    #allocation6 [shape = 'u8[512]{0}', space=smem, size = 0x200, scoped, tag = 'input window, operand 0, single buffered']
    #allocation7 [shape = 's32[1]{0}', space=sflag, size = 0x4, scoped, tag = 'scoped memory for tpu_custom_call.1']
    #allocation8 [shape = 's32[1]{0}', space=sflag, size = 0x4, scoped, tag = 'scoped memory for tpu_custom_call.1']
    #allocation9 [shape = 's32[1]{0}', space=sflag, size = 0x4, scoped, tag = 'scoped memory for tpu_custom_call.1']
    #allocation10 [shape = 'u8[8192]{0}', space=vmem, size = 0x2000, scoped, tag = 'input window, operand 3, single buffered']
    #allocation11 [shape = 'u8[512]{0}', space=vmem, size = 0x400, scoped, tag = 'input window, operand 4, single buffered']
    #allocation12 [shape = 's32[1]{0}', space=sflag, size = 0x4, scoped, tag = 'scoped memory for tpu_custom_call.1']
    #allocation13 [shape = 'u8[512]{0}', space=vmem, size = 0x400, scoped, tag = 'input window, operand 6, single buffered']
    #allocation14 [shape = 'u8[512]{0}', space=vmem, size = 0x400, scoped, tag = 'input window, operand 8, single buffered']
    #allocation15 [shape = 's32[1]{0}', space=sflag, size = 0x4, scoped, tag = 'scoped memory for tpu_custom_call.1']
    #allocation16 [shape = 'u8[512]{0}', space=vmem, size = 0x400, scoped, tag = 'input window, operand 10, single buffered']
    #allocation17 [shape = 'u8[512]{0}', space=vmem, size = 0x400, scoped, tag = 'input window, operand 12, single buffered']
    #allocation18 [shape = 's32[1]{0}', space=sflag, size = 0x4, scoped, tag = 'scoped memory for tpu_custom_call.1']
    #allocation19 [shape = 'u8[8192]{0}', space=vmem, size = 0x2000, scoped, tag = 'input window, operand 13, single buffered']
    #allocation20 [shape = 'u8[512]{0}', space=vmem, size = 0x400, scoped, tag = 'input window, operand 14, single buffered']
    #allocation21 [shape = 's32[1]{0}', space=sflag, size = 0x4, scoped, tag = 'scoped memory for tpu_custom_call.1']
    #allocation22 [shape = 'u8[512]{0}', space=vmem, size = 0x400, scoped, tag = 'input window, operand 18, single buffered']
    #allocation23 [shape = 'u8[16384]{0}', space=vmem, size = 0x4000, scoped, tag = 'input window, operand 19, single buffered']
    #allocation24 [shape = 's32[1]{0}', space=sflag, size = 0x4, scoped, tag = 'scoped memory for tpu_custom_call.1']
    #allocation25 [shape = 'u8[16384]{0}', space=vmem, size = 0x4000, scoped, tag = 'input window, operand 21, single buffered']
    #allocation26 [shape = 'u8[16384]{0}', space=vmem, size = 0x4000, scoped, tag = 'input window, operand 23, single buffered']
    #allocation27 [shape = 's32[1]{0}', space=sflag, size = 0x4, scoped, tag = 'scoped memory for tpu_custom_call.1']
    #allocation28 [shape = 'u8[512]{0}', space=vmem, size = 0x400, scoped, tag = 'output window, operand 0, single buffered']
    #allocation29 [shape = 'u8[4096]{0}', space=vmem, size = 0x1000, scoped, tag = 'output window, operand 1, single buffered']
    #allocation30 [shape = 's32[1]{0}', space=sflag, size = 0x4, scoped, tag = 'scoped memory for tpu_custom_call.1']
    #allocation31 [shape = 'u8[4096]{0}', space=vmem, size = 0x1000, scoped, tag = 'output window, operand 2, single buffered']
    %65 = vsyncpa [#allocation9], 0
    %66 = vsyncpa [#allocation7], 0
    %67 = vsyncpa [#allocation12], 0
    %68 = vsyncpa [#allocation15], 0
    %69 = vsyncpa [#allocation18], 0
    %70 = vsyncpa [#allocation21], 0
    %71 = vsyncpa [#allocation24], 0
    %72 = vsyncpa [#allocation27], 0
    %73 = vsyncpa [#allocation8], 0
    %74 = vsyncpa [#allocation30], 0
    // Predicated region
    $region2: #{tpu_custom_call.1} parent=1 // pred_check
      _
    $region3: #{tpu_custom_call.1} parent=1 // pred_check_branch
      %76 = sbr.rel (0) target = $region5
    $region4: #{tpu_custom_call.1} parent=1 // pred_region
      %s78 = ssub.s32 16, 16
      %79 = vsyncadd [#allocation9], %s78
      %82 = dma.hbm_to_smem %s1, 16, [#allocation6], [#allocation9]
    $region5: #{tpu_custom_call.1} parent=1 // pred_fallthru
      _
    // Predicated region
    $region6: #{tpu_custom_call.1} parent=1 // pred_check
      _
    $region7: #{tpu_custom_call.1} parent=1 // pred_check_branch
      %84 = sbr.rel (0) target = $region9
    $region8: #{tpu_custom_call.1} parent=1 // pred_region
      _
    $region9: #{tpu_custom_call.1} parent=1 // pred_fallthru
      _
    // Predicated region
    $region10: #{tpu_custom_call.1} parent=1 // pred_check
      _
    $region11: #{tpu_custom_call.1} parent=1 // pred_check_branch
      %86 = sbr.rel (0) target = $region13
    $region12: #{tpu_custom_call.1} parent=1 // pred_region
      _
    $region13: #{tpu_custom_call.1} parent=1 // pred_fallthru
      _
    // Predicated region
    $region14: #{tpu_custom_call.1} parent=1 // pred_check
      _
    $region15: #{tpu_custom_call.1} parent=1 // pred_check_branch
      %88 = sbr.rel (0) target = $region17
    $region16: #{tpu_custom_call.1} parent=1 // pred_region
      %s90 = ssub.s32 256, 256
      %91 = vsyncadd [#allocation7], %s90
      %s92 = sshll.u32 [#allocation10], 4
      %s93 = int_to_ptr.vmem [resolvable:$true] %s92
      %98 = dma.hbm_to_vmem [thread:$0]  %s7, 256, %s93, [#allocation7], 128, 128, 8
    $region17: #{tpu_custom_call.1} parent=1 // pred_fallthru
      _
    // Predicated region
    $region18: #{tpu_custom_call.1} parent=1 // pred_check
      _
    $region19: #{tpu_custom_call.1} parent=1 // pred_check_branch
      %100 = sbr.rel (0) target = $region21
    $region20: #{tpu_custom_call.1} parent=1 // pred_region
      %s102 = ssub.s32 16, 16
      %103 = vsyncadd [#allocation12], %s102
      %s105 = sshll.u32 [#allocation11], 4
      %s106 = int_to_ptr.vmem [resolvable:$true] %s105
      %108 = dma.hbm_to_vmem [thread:$0]  %s9, 16, %s106, [#allocation12]
    $region21: #{tpu_custom_call.1} parent=1 // pred_fallthru
      _
    // Predicated region
    $region22: #{tpu_custom_call.1} parent=1 // pred_check
      _
    $region23: #{tpu_custom_call.1} parent=1 // pred_check_branch
      %110 = sbr.rel (0) target = $region25
    $region24: #{tpu_custom_call.1} parent=1 // pred_region
      _
    $region25: #{tpu_custom_call.1} parent=1 // pred_fallthru
      _
    // Predicated region
    $region26: #{tpu_custom_call.1} parent=1 // pred_check
      _
    $region27: #{tpu_custom_call.1} parent=1 // pred_check_branch
      %112 = sbr.rel (0) target = $region29
    $region28: #{tpu_custom_call.1} parent=1 // pred_region
      %s114 = ssub.s32 16, 16
      %115 = vsyncadd [#allocation12], %s114
      %s117 = sshll.u32 [#allocation13], 4
      %s118 = int_to_ptr.vmem [resolvable:$true] %s117
      %120 = dma.hbm_to_vmem [thread:$0]  %s13, 16, %s118, [#allocation12]
    $region29: #{tpu_custom_call.1} parent=1 // pred_fallthru
      _
    // Predicated region
    $region30: #{tpu_custom_call.1} parent=1 // pred_check
      _
    $region31: #{tpu_custom_call.1} parent=1 // pred_check_branch
      %122 = sbr.rel (0) target = $region33
    $region32: #{tpu_custom_call.1} parent=1 // pred_region
      _
    $region33: #{tpu_custom_call.1} parent=1 // pred_fallthru
      _
    // Predicated region
    $region34: #{tpu_custom_call.1} parent=1 // pred_check
      _
    $region35: #{tpu_custom_call.1} parent=1 // pred_check_branch
      %124 = sbr.rel (0) target = $region37
    $region36: #{tpu_custom_call.1} parent=1 // pred_region
      %s126 = ssub.s32 16, 16
      %127 = vsyncadd [#allocation15], %s126
      %s129 = sshll.u32 [#allocation14], 4
      %s130 = int_to_ptr.vmem [resolvable:$true] %s129
      %132 = dma.hbm_to_vmem [thread:$0]  %s17, 16, %s130, [#allocation15]
    $region37: #{tpu_custom_call.1} parent=1 // pred_fallthru
      _
    // Predicated region
    $region38: #{tpu_custom_call.1} parent=1 // pred_check
      _
    $region39: #{tpu_custom_call.1} parent=1 // pred_check_branch
      %134 = sbr.rel (0) target = $region41
    $region40: #{tpu_custom_call.1} parent=1 // pred_region
      _
    $region41: #{tpu_custom_call.1} parent=1 // pred_fallthru
      _
    // Predicated region
    $region42: #{tpu_custom_call.1} parent=1 // pred_check
      _
    $region43: #{tpu_custom_call.1} parent=1 // pred_check_branch
      %136 = sbr.rel (0) target = $region45
    $region44: #{tpu_custom_call.1} parent=1 // pred_region
      %s138 = ssub.s32 16, 16
      %139 = vsyncadd [#allocation15], %s138
      %s141 = sshll.u32 [#allocation16], 4
      %s142 = int_to_ptr.vmem [resolvable:$true] %s141
      %144 = dma.hbm_to_vmem [thread:$0]  %s21, 16, %s142, [#allocation15]
    $region45: #{tpu_custom_call.1} parent=1 // pred_fallthru
      _
    // Predicated region
    $region46: #{tpu_custom_call.1} parent=1 // pred_check
      _
    $region47: #{tpu_custom_call.1} parent=1 // pred_check_branch
      %146 = sbr.rel (0) target = $region49
    $region48: #{tpu_custom_call.1} parent=1 // pred_region
      _
    $region49: #{tpu_custom_call.1} parent=1 // pred_fallthru
      _
    // Predicated region
    $region50: #{tpu_custom_call.1} parent=1 // pred_check
      _
    $region51: #{tpu_custom_call.1} parent=1 // pred_check_branch
      %148 = sbr.rel (0) target = $region53
    $region52: #{tpu_custom_call.1} parent=1 // pred_region
      %s150 = ssub.s32 16, 16
      %151 = vsyncadd [#allocation18], %s150
      %s153 = sshll.u32 [#allocation17], 4
      %s154 = int_to_ptr.vmem [resolvable:$true] %s153
      %156 = dma.hbm_to_vmem [thread:$0]  %s25, 16, %s154, [#allocation18]
    $region53: #{tpu_custom_call.1} parent=1 // pred_fallthru
      _
    // Predicated region
    $region54: #{tpu_custom_call.1} parent=1 // pred_check
      _
    $region55: #{tpu_custom_call.1} parent=1 // pred_check_branch
      %158 = sbr.rel (0) target = $region57
    $region56: #{tpu_custom_call.1} parent=1 // pred_region
      %s160 = ssub.s32 256, 256
      %161 = vsyncadd [#allocation18], %s160
      %s162 = sshll.u32 [#allocation19], 4
      %s163 = int_to_ptr.vmem [resolvable:$true] %s162
      %168 = dma.hbm_to_vmem [thread:$0]  %s27, 256, %s163, [#allocation18], 128, 128, 8
    $region57: #{tpu_custom_call.1} parent=1 // pred_fallthru
      _
    // Predicated region
    $region58: #{tpu_custom_call.1} parent=1 // pred_check
      _
    $region59: #{tpu_custom_call.1} parent=1 // pred_check_branch
      %170 = sbr.rel (0) target = $region61
    $region60: #{tpu_custom_call.1} parent=1 // pred_region
      %s172 = ssub.s32 16, 16
      %173 = vsyncadd [#allocation21], %s172
      %s175 = sshll.u32 [#allocation20], 4
      %s176 = int_to_ptr.vmem [resolvable:$true] %s175
      %178 = dma.hbm_to_vmem [thread:$0]  %s29, 16, %s176, [#allocation21]
    $region61: #{tpu_custom_call.1} parent=1 // pred_fallthru
      _
    // Predicated region
    $region62: #{tpu_custom_call.1} parent=1 // pred_check
      _
    $region63: #{tpu_custom_call.1} parent=1 // pred_check_branch
      %180 = sbr.rel (0) target = $region65
    $region64: #{tpu_custom_call.1} parent=1 // pred_region
      _
    $region65: #{tpu_custom_call.1} parent=1 // pred_fallthru
      _
    // Predicated region
    $region66: #{tpu_custom_call.1} parent=1 // pred_check
      _
    $region67: #{tpu_custom_call.1} parent=1 // pred_check_branch
      %182 = sbr.rel (0) target = $region69
    $region68: #{tpu_custom_call.1} parent=1 // pred_region
      _
    $region69: #{tpu_custom_call.1} parent=1 // pred_fallthru
      _
    // Predicated region
    $region70: #{tpu_custom_call.1} parent=1 // pred_check
      _
    $region71: #{tpu_custom_call.1} parent=1 // pred_check_branch
      %184 = sbr.rel (0) target = $region73
    $region72: #{tpu_custom_call.1} parent=1 // pred_region
      _
    $region73: #{tpu_custom_call.1} parent=1 // pred_fallthru
      _
    // Predicated region
    $region74: #{tpu_custom_call.1} parent=1 // pred_check
      _
    $region75: #{tpu_custom_call.1} parent=1 // pred_check_branch
      %186 = sbr.rel (0) target = $region77
    $region76: #{tpu_custom_call.1} parent=1 // pred_region
      %s188 = ssub.s32 16, 16
      %189 = vsyncadd [#allocation21], %s188
      %s191 = sshll.u32 [#allocation22], 4
      %s192 = int_to_ptr.vmem [resolvable:$true] %s191
      %194 = dma.hbm_to_vmem [thread:$0]  %s37, 16, %s192, [#allocation21]
    $region77: #{tpu_custom_call.1} parent=1 // pred_fallthru
      _
    // Predicated region
    $region78: #{tpu_custom_call.1} parent=1 // pred_check
      _
    $region79: #{tpu_custom_call.1} parent=1 // pred_check_branch
      %196 = sbr.rel (0) target = $region81
    $region80: #{tpu_custom_call.1} parent=1 // pred_region
      %s198 = ssub.s32 512, 512
      %199 = vsyncadd [#allocation24], %s198
      %s200 = sshll.u32 [#allocation23], 4
      %s201 = int_to_ptr.vmem [resolvable:$true] %s200
      %206 = dma.hbm_to_vmem [thread:$0]  %s39, 512, %s201, [#allocation24], 128, 128, 8
    $region81: #{tpu_custom_call.1} parent=1 // pred_fallthru
      _
    // Predicated region
    $region82: #{tpu_custom_call.1} parent=1 // pred_check
      _
    $region83: #{tpu_custom_call.1} parent=1 // pred_check_branch
      %208 = sbr.rel (0) target = $region85
    $region84: #{tpu_custom_call.1} parent=1 // pred_region
      _
    $region85: #{tpu_custom_call.1} parent=1 // pred_fallthru
      _
    // Predicated region
    $region86: #{tpu_custom_call.1} parent=1 // pred_check
      _
    $region87: #{tpu_custom_call.1} parent=1 // pred_check_branch
      %210 = sbr.rel (0) target = $region89
    $region88: #{tpu_custom_call.1} parent=1 // pred_region
      %s212 = ssub.s32 512, 512
      %213 = vsyncadd [#allocation24], %s212
      %s214 = sshll.u32 [#allocation25], 4
      %s215 = int_to_ptr.vmem [resolvable:$true] %s214
      %220 = dma.hbm_to_vmem [thread:$0]  %s43, 512, %s215, [#allocation24], 128, 128, 8
    $region89: #{tpu_custom_call.1} parent=1 // pred_fallthru
      _
    // Predicated region
    $region90: #{tpu_custom_call.1} parent=1 // pred_check
      _
    $region91: #{tpu_custom_call.1} parent=1 // pred_check_branch
      %222 = sbr.rel (0) target = $region93
    $region92: #{tpu_custom_call.1} parent=1 // pred_region
      _
    $region93: #{tpu_custom_call.1} parent=1 // pred_fallthru
      _
    // Predicated region
    $region94: #{tpu_custom_call.1} parent=1 // pred_check
      _
    $region95: #{tpu_custom_call.1} parent=1 // pred_check_branch
      %224 = sbr.rel (0) target = $region97
    $region96: #{tpu_custom_call.1} parent=1 // pred_region
      %s226 = ssub.s32 512, 512
      %227 = vsyncadd [#allocation27], %s226
      %s228 = sshll.u32 [#allocation26], 4
      %s229 = int_to_ptr.vmem [resolvable:$true] %s228
      %234 = dma.hbm_to_vmem [thread:$0]  %s47, 512, %s229, [#allocation27], 128, 128, 8
    $region97: #{tpu_custom_call.1} parent=1 // pred_fallthru
      _
    // Predicated region
    $region98: #{tpu_custom_call.1} parent=1 // pred_check
      _
    $region99: #{tpu_custom_call.1} parent=1 // pred_check_branch
      %236 = sbr.rel (0) target = $region101
    $region100: #{tpu_custom_call.1} parent=1 // pred_region
      _
    $region101: #{tpu_custom_call.1} parent=1 // pred_fallthru
      _
    // Predicated region
    $region102: #{tpu_custom_call.1} parent=1 // pred_check
      _
    $region103: #{tpu_custom_call.1} parent=1 // pred_check_branch
      %238 = sbr.rel (0) target = $region105
    $region104: #{tpu_custom_call.1} parent=1 // pred_region
      _
    $region105: #{tpu_custom_call.1} parent=1 // pred_fallthru
      _
    // Predicated region
    $region106: #{tpu_custom_call.1} parent=1 // pred_check
      _
    $region107: #{tpu_custom_call.1} parent=1 // pred_check_branch
      %240 = sbr.rel (0) target = $region109
    $region108: #{tpu_custom_call.1} parent=1 // pred_region
      _
    $region109: #{tpu_custom_call.1} parent=1 // pred_fallthru
      _
    // Predicated region
    $region110: #{tpu_custom_call.1} parent=1 // pred_check
      _
    $region111: #{tpu_custom_call.1} parent=1 // pred_check_branch
      %242 = sbr.rel (0) target = $region113
    $region112: #{tpu_custom_call.1} parent=1 // pred_region
      %243 = dma.done [#allocation9], 16
    $region113: #{tpu_custom_call.1} parent=1 // pred_fallthru
      _
    // Predicated region
    $region114: #{tpu_custom_call.1} parent=1 // pred_check
      _
    $region115: #{tpu_custom_call.1} parent=1 // pred_check_branch
      %245 = sbr.rel (0) target = $region117
    $region116: #{tpu_custom_call.1} parent=1 // pred_region
      %246 = dma.done [#allocation7], 256
    $region117: #{tpu_custom_call.1} parent=1 // pred_fallthru
      _
    // Predicated region
    $region118: #{tpu_custom_call.1} parent=1 // pred_check
      _
    $region119: #{tpu_custom_call.1} parent=1 // pred_check_branch
      %248 = sbr.rel (0) target = $region121
    $region120: #{tpu_custom_call.1} parent=1 // pred_region
      %249 = dma.done [#allocation12], 16
    $region121: #{tpu_custom_call.1} parent=1 // pred_fallthru
      _
    // Predicated region
    $region122: #{tpu_custom_call.1} parent=1 // pred_check
      _
    $region123: #{tpu_custom_call.1} parent=1 // pred_check_branch
      %251 = sbr.rel (0) target = $region125
    $region124: #{tpu_custom_call.1} parent=1 // pred_region
      %252 = dma.done [#allocation12], 16
    $region125: #{tpu_custom_call.1} parent=1 // pred_fallthru
      _
    // Predicated region
    $region126: #{tpu_custom_call.1} parent=1 // pred_check
      _
    $region127: #{tpu_custom_call.1} parent=1 // pred_check_branch
      %254 = sbr.rel (0) target = $region129
    $region128: #{tpu_custom_call.1} parent=1 // pred_region
      %255 = dma.done [#allocation15], 16
    $region129: #{tpu_custom_call.1} parent=1 // pred_fallthru
      _
    // Predicated region
    $region130: #{tpu_custom_call.1} parent=1 // pred_check
      _
    $region131: #{tpu_custom_call.1} parent=1 // pred_check_branch
      %257 = sbr.rel (0) target = $region133
    $region132: #{tpu_custom_call.1} parent=1 // pred_region
      %258 = dma.done [#allocation15], 16
    $region133: #{tpu_custom_call.1} parent=1 // pred_fallthru
      _
    // Predicated region
    $region134: #{tpu_custom_call.1} parent=1 // pred_check
      _
    $region135: #{tpu_custom_call.1} parent=1 // pred_check_branch
      %260 = sbr.rel (0) target = $region137
    $region136: #{tpu_custom_call.1} parent=1 // pred_region
      %261 = dma.done [#allocation18], 16
    $region137: #{tpu_custom_call.1} parent=1 // pred_fallthru
      _
    // Predicated region
    $region138: #{tpu_custom_call.1} parent=1 // pred_check
      _
    $region139: #{tpu_custom_call.1} parent=1 // pred_check_branch
      %263 = sbr.rel (0) target = $region141
    $region140: #{tpu_custom_call.1} parent=1 // pred_region
      %264 = dma.done [#allocation18], 256
    $region141: #{tpu_custom_call.1} parent=1 // pred_fallthru
      _
    // Predicated region
    $region142: #{tpu_custom_call.1} parent=1 // pred_check
      _
    $region143: #{tpu_custom_call.1} parent=1 // pred_check_branch
      %266 = sbr.rel (0) target = $region145
    $region144: #{tpu_custom_call.1} parent=1 // pred_region
      %267 = dma.done [#allocation21], 16
    $region145: #{tpu_custom_call.1} parent=1 // pred_fallthru
      _
    // Predicated region
    $region146: #{tpu_custom_call.1} parent=1 // pred_check
      _
    $region147: #{tpu_custom_call.1} parent=1 // pred_check_branch
      %269 = sbr.rel (0) target = $region149
    $region148: #{tpu_custom_call.1} parent=1 // pred_region
      %270 = dma.done [#allocation21], 16
    $region149: #{tpu_custom_call.1} parent=1 // pred_fallthru
      _
    // Predicated region
    $region150: #{tpu_custom_call.1} parent=1 // pred_check
      _
    $region151: #{tpu_custom_call.1} parent=1 // pred_check_branch
      %272 = sbr.rel (0) target = $region153
    $region152: #{tpu_custom_call.1} parent=1 // pred_region
      %273 = dma.done [#allocation24], 512
    $region153: #{tpu_custom_call.1} parent=1 // pred_fallthru
      _
    // Predicated region
    $region154: #{tpu_custom_call.1} parent=1 // pred_check
      _
    $region155: #{tpu_custom_call.1} parent=1 // pred_check_branch
      %275 = sbr.rel (0) target = $region157
    $region156: #{tpu_custom_call.1} parent=1 // pred_region
      %276 = dma.done [#allocation24], 512
    $region157: #{tpu_custom_call.1} parent=1 // pred_fallthru
      _
    // Predicated region
    $region158: #{tpu_custom_call.1} parent=1 // pred_check
      _
    $region159: #{tpu_custom_call.1} parent=1 // pred_check_branch
      %278 = sbr.rel (0) target = $region161
    $region160: #{tpu_custom_call.1} parent=1 // pred_region
      %279 = dma.done [#allocation27], 512
    $region161: #{tpu_custom_call.1} parent=1 // pred_fallthru
      _
    %280 = sfence
    %s281 = sld [smem:[#allocation6]]
    %s282 = sld [smem:[#allocation6 + $0x1]]
    %v283 = vld [vmem:[%s3] sm:$0xff]
    %v284 = vld [vmem:[%s3 + $0x8] sm:$0xff]
    %v285 = vld [vmem:[%s3 + $0x10] sm:$0xff]
    %v286 = vld [vmem:[%s3 + $0x18] sm:$0xff]
    %v287 = vld [vmem:[%s3 + $0x20] sm:$0xff]
    %v288 = vld [vmem:[%s3 + $0x28] sm:$0xff]
    %v289 = vld [vmem:[%s3 + $0x30] sm:$0xff]
    %v290 = vld [vmem:[%s3 + $0x38] sm:$0xff]
    %v291 = vld [vmem:[#allocation10] sm:$0xff]
    %v292 = vld [vmem:[#allocation10 + $0x8] sm:$0xff]
    %v293 = vld [vmem:[#allocation11] sm:$0x1]
    %v295 = vlaneseq
    %v296 = vshrl.u32 %v295, 7
    %v297 = vsub.s32 0, %v296
    %v298 = vrot.slane %v293, %v297
    %vm300 = vcmask 130048
    %v302 = vsel %vm300, %v283, 0
    %v305 = vsel %vm300, %v284, 0
    %v308 = vsel %vm300, %v285, 0
    %v311 = vsel %vm300, %v286, 0
    %v314 = vsel %vm300, %v287, 0
    %v317 = vsel %vm300, %v288, 0
    %v320 = vsel %vm300, %v289, 0
    %v323 = vsel %vm300, %v290, 0
    %325 = vmatprep.subr.mxu0 0.0
    %326 = vmatpush1.msra.mxu0 0.0
    %327 = vmatprep.subr.mxu0 0.0
    %328 = vmatpush1.msra.mxu0 0.0
    %329 = vmatprep.subr.mxu0 0.0
    %330 = vmatpush1.msra.mxu0 0.0
    %331 = vmatprep.subr.mxu0 0.0
    %332 = vmatpush1.msra.mxu0 0.0
    %333 = vmatprep.subr.mxu0 0.0
    %334 = vmatpush1.msra.mxu0 0.0
    %335 = vmatprep.subr.mxu0 0.0
    %336 = vmatpush1.msra.mxu0 0.0
    %337 = vmatprep.subr.mxu0 0.0
    %338 = vmatpush1.msra.mxu0 0.0
    %339 = vmatprep.subr.mxu0 0.0
    %340 = vmatpush1.msra.mxu0 0.0
    %341 = vmatprep.subr.mxu0 0.0
    %342 = vmatpush1.msra.mxu0 0.0
    %343 = vmatprep.subr.mxu0 0.0
    %344 = vmatpush1.msra.mxu0 0.0
    %345 = vmatprep.subr.mxu0 0.0
    %346 = vmatpush1.msra.mxu0 0.0
    %347 = vmatprep.subr.mxu0 0.0
    %348 = vmatpush1.msra.mxu0 0.0
    %349 = vmatprep.subr.mxu0 0.0
    %350 = vmatpush1.msra.mxu0 0.0
    %351 = vmatprep.subr.mxu0 0.0
    %352 = vmatpush1.msra.mxu0 0.0
    %353 = vmatprep.subr.mxu0 0.0
    %354 = vmatpush1.msra.mxu0 %v292
    %355 = vmatprep.subr.mxu0 0.0
    %356 = vmatpush1.msra.mxu0 %v291
    %357 = vmatprep.subr.mxu0 0.0
    %358 = vmatpush2.msra.mxu0 0.0
    %359 = vmatprep.subr.mxu0 0.0
    %360 = vmatpush2.msra.mxu0 0.0
    %361 = vmatprep.subr.mxu0 0.0
    %362 = vmatpush2.msra.mxu0 0.0
    %363 = vmatprep.subr.mxu0 0.0
    %364 = vmatpush2.msra.mxu0 0.0
    %365 = vmatprep.subr.mxu0 0.0
    %366 = vmatpush2.msra.mxu0 0.0
    %367 = vmatprep.subr.mxu0 0.0
    %368 = vmatpush2.msra.mxu0 0.0
    %369 = vmatprep.subr.mxu0 0.0
    %370 = vmatpush2.msra.mxu0 0.0
    %371 = vmatprep.subr.mxu0 0.0
    %372 = vmatpush2.msra.mxu0 0.0
    %373 = vmatprep.subr.mxu0 0.0
    %374 = vmatpush2.msra.mxu0 0.0
    %375 = vmatprep.subr.mxu0 0.0
    %376 = vmatpush2.msra.mxu0 0.0
    %377 = vmatprep.subr.mxu0 0.0
    %378 = vmatpush2.msra.mxu0 0.0
    %379 = vmatprep.subr.mxu0 0.0
    %380 = vmatpush2.msra.mxu0 0.0
    %381 = vmatprep.subr.mxu0 0.0
    %382 = vmatpush2.msra.mxu0 0.0
    %383 = vmatprep.subr.mxu0 0.0
    %384 = vmatpush2.msra.mxu0 0.0
    %385 = vmatprep.subr.mxu0 0.0
    %386 = vmatpush2.msra.mxu0 0.0
    %387 = vmatprep.subr.mxu0 0.0
    %388 = vmatpush2.msra.mxu0 0.0
    %389 = vmatprep.mubr.f32.mxu0 0.0
    %390 = vmatmul.mubr.f32.gmra.mxu0 %v302
    %v391 = vpop.f32.mrf.mxu0
    %v392 = vadd.f32 %v298, %v391
    %v393 = vpop.f32.mrf.mxu0
    %394 = vmatprep.mubr.f32.mxu0 0.0
    %395 = vmatmul.mubr.f32.gmra.mxu0 %v305
    %v396 = vpop.f32.mrf.mxu0
    %v397 = vadd.f32 %v298, %v396
    %v398 = vpop.f32.mrf.mxu0
    %399 = vmatprep.mubr.f32.mxu0 0.0
    %400 = vmatmul.mubr.f32.gmra.mxu0 %v308
    %v401 = vpop.f32.mrf.mxu0
    %v402 = vadd.f32 %v298, %v401
    %v403 = vpop.f32.mrf.mxu0
    %404 = vmatprep.mubr.f32.mxu0 0.0
    %405 = vmatmul.mubr.f32.gmra.mxu0 %v311
    %v406 = vpop.f32.mrf.mxu0
    %v407 = vadd.f32 %v298, %v406
    %v408 = vpop.f32.mrf.mxu0
    %409 = vmatprep.mubr.f32.mxu0 0.0
    %410 = vmatmul.mubr.f32.gmra.mxu0 %v314
    %v411 = vpop.f32.mrf.mxu0
    %v412 = vadd.f32 %v298, %v411
    %v413 = vpop.f32.mrf.mxu0
    %414 = vmatprep.mubr.f32.mxu0 0.0
    %415 = vmatmul.mubr.f32.gmra.mxu0 %v317
    %v416 = vpop.f32.mrf.mxu0
    %v417 = vadd.f32 %v298, %v416
    %v418 = vpop.f32.mrf.mxu0
    %419 = vmatprep.mubr.f32.mxu0 0.0
    %420 = vmatmul.mubr.f32.gmra.mxu0 %v320
    %v421 = vpop.f32.mrf.mxu0
    %v422 = vadd.f32 %v298, %v421
    %v423 = vpop.f32.mrf.mxu0
    %424 = vmatprep.mubr.f32.mxu0 0.0
    %425 = vmatmul.mubr.f32.gmra.mxu0 %v323
    %v426 = vpop.f32.mrf.mxu0
    %v427 = vadd.f32 %v298, %v426
    %v428 = vpop.f32.mrf.mxu0
    %429 = vdwg.mxu0
    %v430 = vmax.f32 %v392, 0.0
    %v431 = vmax.f32 %v397, 0.0
    %v432 = vmax.f32 %v402, 0.0
    %v433 = vmax.f32 %v407, 0.0
    %v434 = vmax.f32 %v412, 0.0
    %v435 = vmax.f32 %v417, 0.0
    %v436 = vmax.f32 %v422, 0.0
    %v437 = vmax.f32 %v427, 0.0
    %v438 = vld [vmem:[%s11] sm:$0xff]
    %v439 = vld [vmem:[%s11 + $0x8] sm:$0xff]
    %v440 = vld [vmem:[%s11 + $0x10] sm:$0xff]
    %v441 = vld [vmem:[%s11 + $0x18] sm:$0xff]
    %v442 = vld [vmem:[#allocation13] sm:$0x1]
    %v444 = vlaneseq
    %v445 = vshrl.u32 %v444, 7
    %v446 = vsub.s32 0, %v445
    %v447 = vrot.slane %v442, %v446
    %vm449 = vcmask 261120
    %v451 = vsel %vm449, %v430, 0
    %v454 = vsel %vm449, %v431, 0
    %v457 = vsel %vm449, %v432, 0
    %v460 = vsel %vm449, %v433, 0
    %v463 = vsel %vm449, %v434, 0
    %v466 = vsel %vm449, %v435, 0
    %v469 = vsel %vm449, %v436, 0
    %v472 = vsel %vm449, %v437, 0
    %474 = vmatprep.subr.mxu0 0.0
    %475 = vmatpush1.msra.mxu0 0.0
    %476 = vmatprep.subr.mxu0 0.0
    %477 = vmatpush1.msra.mxu0 0.0
    %478 = vmatprep.subr.mxu0 0.0
    %479 = vmatpush1.msra.mxu0 0.0
    %480 = vmatprep.subr.mxu0 0.0
    %481 = vmatpush1.msra.mxu0 0.0
    %482 = vmatprep.subr.mxu0 0.0
    %483 = vmatpush1.msra.mxu0 0.0
    %484 = vmatprep.subr.mxu0 0.0
    %485 = vmatpush1.msra.mxu0 0.0
    %486 = vmatprep.subr.mxu0 0.0
    %487 = vmatpush1.msra.mxu0 0.0
    %488 = vmatprep.subr.mxu0 0.0
    %489 = vmatpush1.msra.mxu0 0.0
    %490 = vmatprep.subr.mxu0 0.0
    %491 = vmatpush1.msra.mxu0 0.0
    %492 = vmatprep.subr.mxu0 0.0
    %493 = vmatpush1.msra.mxu0 0.0
    %494 = vmatprep.subr.mxu0 0.0
    %495 = vmatpush1.msra.mxu0 0.0
    %496 = vmatprep.subr.mxu0 0.0
    %497 = vmatpush1.msra.mxu0 0.0
    %498 = vmatprep.subr.mxu0 0.0
    %499 = vmatpush1.msra.mxu0 %v441
    %500 = vmatprep.subr.mxu0 0.0
    %501 = vmatpush1.msra.mxu0 %v440
    %502 = vmatprep.subr.mxu0 0.0
    %503 = vmatpush1.msra.mxu0 %v439
    %504 = vmatprep.subr.mxu0 0.0
    %505 = vmatpush1.msra.mxu0 %v438
    %506 = vmatprep.subr.mxu0 0.0
    %507 = vmatpush2.msra.mxu0 0.0
    %508 = vmatprep.subr.mxu0 0.0
    %509 = vmatpush2.msra.mxu0 0.0
    %510 = vmatprep.subr.mxu0 0.0
    %511 = vmatpush2.msra.mxu0 0.0
    %512 = vmatprep.subr.mxu0 0.0
    %513 = vmatpush2.msra.mxu0 0.0
    %514 = vmatprep.subr.mxu0 0.0
    %515 = vmatpush2.msra.mxu0 0.0
    %516 = vmatprep.subr.mxu0 0.0
    %517 = vmatpush2.msra.mxu0 0.0
    %518 = vmatprep.subr.mxu0 0.0
    %519 = vmatpush2.msra.mxu0 0.0
    %520 = vmatprep.subr.mxu0 0.0
    %521 = vmatpush2.msra.mxu0 0.0
    %522 = vmatprep.subr.mxu0 0.0
    %523 = vmatpush2.msra.mxu0 0.0
    %524 = vmatprep.subr.mxu0 0.0
    %525 = vmatpush2.msra.mxu0 0.0
    %526 = vmatprep.subr.mxu0 0.0
    %527 = vmatpush2.msra.mxu0 0.0
    %528 = vmatprep.subr.mxu0 0.0
    %529 = vmatpush2.msra.mxu0 0.0
    %530 = vmatprep.subr.mxu0 0.0
    %531 = vmatpush2.msra.mxu0 0.0
    %532 = vmatprep.subr.mxu0 0.0
    %533 = vmatpush2.msra.mxu0 0.0
    %534 = vmatprep.subr.mxu0 0.0
    %535 = vmatpush2.msra.mxu0 0.0
    %536 = vmatprep.subr.mxu0 0.0
    %537 = vmatpush2.msra.mxu0 0.0
    %538 = vmatprep.mubr.f32.mxu0 0.0
    %539 = vmatmul.mubr.f32.gmra.mxu0 %v451
    %v540 = vpop.f32.mrf.mxu0
    %v541 = vadd.f32 %v447, %v540
    %v542 = vpop.f32.mrf.mxu0
    %543 = vmatprep.mubr.f32.mxu0 0.0
    %544 = vmatmul.mubr.f32.gmra.mxu0 %v454
    %v545 = vpop.f32.mrf.mxu0
    %v546 = vadd.f32 %v447, %v545
    %v547 = vpop.f32.mrf.mxu0
    %548 = vmatprep.mubr.f32.mxu0 0.0
    %549 = vmatmul.mubr.f32.gmra.mxu0 %v457
    %v550 = vpop.f32.mrf.mxu0
    %v551 = vadd.f32 %v447, %v550
    %v552 = vpop.f32.mrf.mxu0
    %553 = vmatprep.mubr.f32.mxu0 0.0
    %554 = vmatmul.mubr.f32.gmra.mxu0 %v460
    %v555 = vpop.f32.mrf.mxu0
    %v556 = vadd.f32 %v447, %v555
    %v557 = vpop.f32.mrf.mxu0
    %558 = vmatprep.mubr.f32.mxu0 0.0
    %559 = vmatmul.mubr.f32.gmra.mxu0 %v463
    %v560 = vpop.f32.mrf.mxu0
    %v561 = vadd.f32 %v447, %v560
    %v562 = vpop.f32.mrf.mxu0
    %563 = vmatprep.mubr.f32.mxu0 0.0
    %564 = vmatmul.mubr.f32.gmra.mxu0 %v466
    %v565 = vpop.f32.mrf.mxu0
    %v566 = vadd.f32 %v447, %v565
    %v567 = vpop.f32.mrf.mxu0
    %568 = vmatprep.mubr.f32.mxu0 0.0
    %569 = vmatmul.mubr.f32.gmra.mxu0 %v469
    %v570 = vpop.f32.mrf.mxu0
    %v571 = vadd.f32 %v447, %v570
    %v572 = vpop.f32.mrf.mxu0
    %573 = vmatprep.mubr.f32.mxu0 0.0
    %574 = vmatmul.mubr.f32.gmra.mxu0 %v472
    %v575 = vpop.f32.mrf.mxu0
    %v576 = vadd.f32 %v447, %v575
    %v577 = vpop.f32.mrf.mxu0
    %578 = vdwg.mxu0
    %v579 = vmax.f32 %v541, 0.0
    %v580 = vmax.f32 %v546, 0.0
    %v581 = vmax.f32 %v551, 0.0
    %v582 = vmax.f32 %v556, 0.0
    %v583 = vmax.f32 %v561, 0.0
    %v584 = vmax.f32 %v566, 0.0
    %v585 = vmax.f32 %v571, 0.0
    %v586 = vmax.f32 %v576, 0.0
    %v587 = vld [vmem:[%s15] sm:$0xff]
    %v588 = vld [vmem:[%s15 + $0x8] sm:$0xff]
    %v589 = vld [vmem:[%s15 + $0x10] sm:$0xff]
    %v590 = vld [vmem:[%s15 + $0x18] sm:$0xff]
    %v592 = vsel %vm449, %v579, 0
    %v595 = vsel %vm449, %v580, 0
    %v598 = vsel %vm449, %v581, 0
    %v601 = vsel %vm449, %v582, 0
    %v604 = vsel %vm449, %v583, 0
    %v607 = vsel %vm449, %v584, 0
    %v610 = vsel %vm449, %v585, 0
    %v613 = vsel %vm449, %v586, 0
    %615 = vmatprep.subr.mxu0 0.0
    %616 = vmatpush1.msra.mxu0 0.0
    %617 = vmatprep.subr.mxu0 0.0
    %618 = vmatpush1.msra.mxu0 0.0
    %619 = vmatprep.subr.mxu0 0.0
    %620 = vmatpush1.msra.mxu0 0.0
    %621 = vmatprep.subr.mxu0 0.0
    %622 = vmatpush1.msra.mxu0 0.0
    %623 = vmatprep.subr.mxu0 0.0
    %624 = vmatpush1.msra.mxu0 0.0
    %625 = vmatprep.subr.mxu0 0.0
    %626 = vmatpush1.msra.mxu0 0.0
    %627 = vmatprep.subr.mxu0 0.0
    %628 = vmatpush1.msra.mxu0 0.0
    %629 = vmatprep.subr.mxu0 0.0
    %630 = vmatpush1.msra.mxu0 0.0
    %631 = vmatprep.subr.mxu0 0.0
    %632 = vmatpush1.msra.mxu0 0.0
    %633 = vmatprep.subr.mxu0 0.0
    %634 = vmatpush1.msra.mxu0 0.0
    %635 = vmatprep.subr.mxu0 0.0
    %636 = vmatpush1.msra.mxu0 0.0
    %637 = vmatprep.subr.mxu0 0.0
    %638 = vmatpush1.msra.mxu0 0.0
    %639 = vmatprep.subr.mxu0 0.0
    %640 = vmatpush1.msra.mxu0 %v590
    %641 = vmatprep.subr.mxu0 0.0
    %642 = vmatpush1.msra.mxu0 %v589
    %643 = vmatprep.subr.mxu0 0.0
    %644 = vmatpush1.msra.mxu0 %v588
    %645 = vmatprep.subr.mxu0 0.0
    %646 = vmatpush1.msra.mxu0 %v587
    %647 = vmatprep.subr.mxu0 0.0
    %648 = vmatpush2.msra.mxu0 0.0
    %649 = vmatprep.subr.mxu0 0.0
    %650 = vmatpush2.msra.mxu0 0.0
    %651 = vmatprep.subr.mxu0 0.0
    %652 = vmatpush2.msra.mxu0 0.0
    %653 = vmatprep.subr.mxu0 0.0
    %654 = vmatpush2.msra.mxu0 0.0
    %655 = vmatprep.subr.mxu0 0.0
    %656 = vmatpush2.msra.mxu0 0.0
    %657 = vmatprep.subr.mxu0 0.0
    %658 = vmatpush2.msra.mxu0 0.0
    %659 = vmatprep.subr.mxu0 0.0
    %660 = vmatpush2.msra.mxu0 0.0
    %661 = vmatprep.subr.mxu0 0.0
    %662 = vmatpush2.msra.mxu0 0.0
    %663 = vmatprep.subr.mxu0 0.0
    %664 = vmatpush2.msra.mxu0 0.0
    %665 = vmatprep.subr.mxu0 0.0
    %666 = vmatpush2.msra.mxu0 0.0
    %667 = vmatprep.subr.mxu0 0.0
    %668 = vmatpush2.msra.mxu0 0.0
    %669 = vmatprep.subr.mxu0 0.0
    %670 = vmatpush2.msra.mxu0 0.0
    %671 = vmatprep.subr.mxu0 0.0
    %672 = vmatpush2.msra.mxu0 0.0
    %673 = vmatprep.subr.mxu0 0.0
    %674 = vmatpush2.msra.mxu0 0.0
    %675 = vmatprep.subr.mxu0 0.0
    %676 = vmatpush2.msra.mxu0 0.0
    %677 = vmatprep.subr.mxu0 0.0
    %678 = vmatpush2.msra.mxu0 0.0
    %679 = vmatprep.mubr.f32.mxu0 0.0
    %680 = vmatmul.mubr.f32.gmra.mxu0 %v592
    %v681 = vpop.f32.mrf.mxu0
    %v682 = vadd.f32 0.0, %v681
    %v683 = vpop.f32.mrf.mxu0
    %684 = vmatprep.mubr.f32.mxu0 0.0
    %685 = vmatmul.mubr.f32.gmra.mxu0 %v595
    %v686 = vpop.f32.mrf.mxu0
    %v687 = vadd.f32 0.0, %v686
    %v688 = vpop.f32.mrf.mxu0
    %689 = vmatprep.mubr.f32.mxu0 0.0
    %690 = vmatmul.mubr.f32.gmra.mxu0 %v598
    %v691 = vpop.f32.mrf.mxu0
    %v692 = vadd.f32 0.0, %v691
    %v693 = vpop.f32.mrf.mxu0
    %694 = vmatprep.mubr.f32.mxu0 0.0
    %695 = vmatmul.mubr.f32.gmra.mxu0 %v601
    %v696 = vpop.f32.mrf.mxu0
    %v697 = vadd.f32 0.0, %v696
    %v698 = vpop.f32.mrf.mxu0
    %699 = vmatprep.mubr.f32.mxu0 0.0
    %700 = vmatmul.mubr.f32.gmra.mxu0 %v604
    %v701 = vpop.f32.mrf.mxu0
    %v702 = vadd.f32 0.0, %v701
    %v703 = vpop.f32.mrf.mxu0
    %704 = vmatprep.mubr.f32.mxu0 0.0
    %705 = vmatmul.mubr.f32.gmra.mxu0 %v607
    %v706 = vpop.f32.mrf.mxu0
    %v707 = vadd.f32 0.0, %v706
    %v708 = vpop.f32.mrf.mxu0
    %709 = vmatprep.mubr.f32.mxu0 0.0
    %710 = vmatmul.mubr.f32.gmra.mxu0 %v610
    %v711 = vpop.f32.mrf.mxu0
    %v712 = vadd.f32 0.0, %v711
    %v713 = vpop.f32.mrf.mxu0
    %714 = vmatprep.mubr.f32.mxu0 0.0
    %715 = vmatmul.mubr.f32.gmra.mxu0 %v613
    %v716 = vpop.f32.mrf.mxu0
    %v717 = vadd.f32 0.0, %v716
    %v718 = vpop.f32.mrf.mxu0
    %719 = vdwg.mxu0
    %720 = vst [vmem:[#allocation2] sm:$0xff] %v682
    %721 = vst [vmem:[#allocation2 + $0x8] sm:$0xff] %v687
    %722 = vst [vmem:[#allocation2 + $0x10] sm:$0xff] %v692
    %723 = vst [vmem:[#allocation2 + $0x18] sm:$0xff] %v697
    %724 = vst [vmem:[#allocation2 + $0x20] sm:$0xff] %v702
    %725 = vst [vmem:[#allocation2 + $0x28] sm:$0xff] %v707
    %726 = vst [vmem:[#allocation2 + $0x30] sm:$0xff] %v712
    %727 = vst [vmem:[#allocation2 + $0x38] sm:$0xff] %v717
    %v728 = vld [vmem:[#allocation14] sm:$0x1]
    %v730 = vlaneseq
    %v731 = vshrl.u32 %v730, 7
    %v732 = vsub.s32 0, %v731
    %v733 = vrot.slane %v728, %v732
    %v735 = vld [vmem:[#allocation16] sm:$0x1]
    %v737 = vlaneseq
    %v738 = vshrl.u32 %v737, 7
    %v739 = vsub.s32 0, %v738
    %v740 = vrot.slane %v735, %v739
    %v742 = vld [vmem:[#allocation17] sm:$0x1]
    %v744 = vlaneseq
    %v745 = vshrl.u32 %v744, 7
    %v746 = vsub.s32 0, %v745
    %v747 = vrot.slane %v742, %v746
    %v749 = vld [vmem:[#allocation20] sm:$0x1]
    %v751 = vlaneseq
    %v752 = vshrl.u32 %v751, 7
    %v753 = vsub.s32 0, %v752
    %v754 = vrot.slane %v749, %v753
    %v756 = vld [vmem:[%s5] sm:$0xff]
    %v757 = vld [vmem:[#allocation2] sm:$0xff]
    %758 = vst.msk [vmem:[#allocation3] sm:$0xff] %vm449, 0.0
    %v759 = vld [vmem:[%s33] sm:$0xff]
    %v760 = vld [vmem:[%s33 + $0x8] sm:$0xff]
    %v761 = vld [vmem:[%s33 + $0x10] sm:$0xff]
    %v762 = vld [vmem:[%s33 + $0x18] sm:$0xff]
    %v764 = vsel %vm449, 0.0, 0
    %766 = vmatprep.subr.mxu0 0.0
    %767 = vmatpush1.msra.mxu0 0.0
    %768 = vmatprep.subr.mxu0 0.0
    %769 = vmatpush1.msra.mxu0 0.0
    %770 = vmatprep.subr.mxu0 0.0
    %771 = vmatpush1.msra.mxu0 0.0
    %772 = vmatprep.subr.mxu0 0.0
    %773 = vmatpush1.msra.mxu0 0.0
    %774 = vmatprep.subr.mxu0 0.0
    %775 = vmatpush1.msra.mxu0 0.0
    %776 = vmatprep.subr.mxu0 0.0
    %777 = vmatpush1.msra.mxu0 0.0
    %778 = vmatprep.subr.mxu0 0.0
    %779 = vmatpush1.msra.mxu0 0.0
    %780 = vmatprep.subr.mxu0 0.0
    %781 = vmatpush1.msra.mxu0 0.0
    %782 = vmatprep.subr.mxu0 0.0
    %783 = vmatpush1.msra.mxu0 0.0
    %784 = vmatprep.subr.mxu0 0.0
    %785 = vmatpush1.msra.mxu0 0.0
    %786 = vmatprep.subr.mxu0 0.0
    %787 = vmatpush1.msra.mxu0 0.0
    %788 = vmatprep.subr.mxu0 0.0
    %789 = vmatpush1.msra.mxu0 0.0
    %790 = vmatprep.subr.mxu0 0.0
    %791 = vmatpush1.msra.mxu0 %v762
    %792 = vmatprep.subr.mxu0 0.0
    %793 = vmatpush1.msra.mxu0 %v761
    %794 = vmatprep.subr.mxu0 0.0
    %795 = vmatpush1.msra.mxu0 %v760
    %796 = vmatprep.subr.mxu0 0.0
    %797 = vmatpush1.msra.mxu0 %v759
    %798 = vmatprep.subr.mxu0 0.0
    %799 = vmatpush2.msra.mxu0 0.0
    %800 = vmatprep.subr.mxu0 0.0
    %801 = vmatpush2.msra.mxu0 0.0
    %802 = vmatprep.subr.mxu0 0.0
    %803 = vmatpush2.msra.mxu0 0.0
    %804 = vmatprep.subr.mxu0 0.0
    %805 = vmatpush2.msra.mxu0 0.0
    %806 = vmatprep.subr.mxu0 0.0
    %807 = vmatpush2.msra.mxu0 0.0
    %808 = vmatprep.subr.mxu0 0.0
    %809 = vmatpush2.msra.mxu0 0.0
    %810 = vmatprep.subr.mxu0 0.0
    %811 = vmatpush2.msra.mxu0 0.0
    %812 = vmatprep.subr.mxu0 0.0
    %813 = vmatpush2.msra.mxu0 0.0
    %814 = vmatprep.subr.mxu0 0.0
    %815 = vmatpush2.msra.mxu0 0.0
    %816 = vmatprep.subr.mxu0 0.0
    %817 = vmatpush2.msra.mxu0 0.0
    %818 = vmatprep.subr.mxu0 0.0
    %819 = vmatpush2.msra.mxu0 0.0
    %820 = vmatprep.subr.mxu0 0.0
    %821 = vmatpush2.msra.mxu0 0.0
    %822 = vmatprep.subr.mxu0 0.0
    %823 = vmatpush2.msra.mxu0 0.0
    %824 = vmatprep.subr.mxu0 0.0
    %825 = vmatpush2.msra.mxu0 0.0
    %826 = vmatprep.subr.mxu0 0.0
    %827 = vmatpush2.msra.mxu0 0.0
    %828 = vmatprep.subr.mxu0 0.0
    %829 = vmatpush2.msra.mxu0 0.0
    %830 = vmatprep.mubr.f32.mxu0 0.0
    %831 = vmatmul.mubr.f32.gmra.mxu0 %v764
    %v832 = vpop.f32.mrf.mxu0
    %v833 = vadd.f32 0.0, %v832
    %v834 = vpop.f32.mrf.mxu0
    %835 = vdwg.mxu0
    %v836 = vadd.f32 %v757, %v833
    %v837 = vadd.f32 %v836, %v733
    %v838 = vmax.f32 %v837, 0.0
    %v839 = vld [vmem:[%s19] sm:$0xff]
    %v840 = vld [vmem:[%s19 + $0x8] sm:$0xff]
    %v841 = vld [vmem:[%s19 + $0x10] sm:$0xff]
    %v842 = vld [vmem:[%s19 + $0x18] sm:$0xff]
    %v844 = vsel %vm449, %v838, 0
    %846 = vmatprep.subr.mxu0 0.0
    %847 = vmatpush1.msra.mxu0 0.0
    %848 = vmatprep.subr.mxu0 0.0
    %849 = vmatpush1.msra.mxu0 0.0
    %850 = vmatprep.subr.mxu0 0.0
    %851 = vmatpush1.msra.mxu0 0.0
    %852 = vmatprep.subr.mxu0 0.0
    %853 = vmatpush1.msra.mxu0 0.0
    %854 = vmatprep.subr.mxu0 0.0
    %855 = vmatpush1.msra.mxu0 0.0
    %856 = vmatprep.subr.mxu0 0.0
    %857 = vmatpush1.msra.mxu0 0.0
    %858 = vmatprep.subr.mxu0 0.0
    %859 = vmatpush1.msra.mxu0 0.0
    %860 = vmatprep.subr.mxu0 0.0
    %861 = vmatpush1.msra.mxu0 0.0
    %862 = vmatprep.subr.mxu0 0.0
    %863 = vmatpush1.msra.mxu0 0.0
    %864 = vmatprep.subr.mxu0 0.0
    %865 = vmatpush1.msra.mxu0 0.0
    %866 = vmatprep.subr.mxu0 0.0
    %867 = vmatpush1.msra.mxu0 0.0
    %868 = vmatprep.subr.mxu0 0.0
    %869 = vmatpush1.msra.mxu0 0.0
    %870 = vmatprep.subr.mxu0 0.0
    %871 = vmatpush1.msra.mxu0 %v842
    %872 = vmatprep.subr.mxu0 0.0
    %873 = vmatpush1.msra.mxu0 %v841
    %874 = vmatprep.subr.mxu0 0.0
    %875 = vmatpush1.msra.mxu0 %v840
    %876 = vmatprep.subr.mxu0 0.0
    %877 = vmatpush1.msra.mxu0 %v839
    %878 = vmatprep.subr.mxu0 0.0
    %879 = vmatpush2.msra.mxu0 0.0
    %880 = vmatprep.subr.mxu0 0.0
    %881 = vmatpush2.msra.mxu0 0.0
    %882 = vmatprep.subr.mxu0 0.0
    %883 = vmatpush2.msra.mxu0 0.0
    %884 = vmatprep.subr.mxu0 0.0
    %885 = vmatpush2.msra.mxu0 0.0
    %886 = vmatprep.subr.mxu0 0.0
    %887 = vmatpush2.msra.mxu0 0.0
    %888 = vmatprep.subr.mxu0 0.0
    %889 = vmatpush2.msra.mxu0 0.0
    %890 = vmatprep.subr.mxu0 0.0
    %891 = vmatpush2.msra.mxu0 0.0
    %892 = vmatprep.subr.mxu0 0.0
    %893 = vmatpush2.msra.mxu0 0.0
    %894 = vmatprep.subr.mxu0 0.0
    %895 = vmatpush2.msra.mxu0 0.0
    %896 = vmatprep.subr.mxu0 0.0
    %897 = vmatpush2.msra.mxu0 0.0
    %898 = vmatprep.subr.mxu0 0.0
    %899 = vmatpush2.msra.mxu0 0.0
    %900 = vmatprep.subr.mxu0 0.0
    %901 = vmatpush2.msra.mxu0 0.0
    %902 = vmatprep.subr.mxu0 0.0
    %903 = vmatpush2.msra.mxu0 0.0
    %904 = vmatprep.subr.mxu0 0.0
    %905 = vmatpush2.msra.mxu0 0.0
    %906 = vmatprep.subr.mxu0 0.0
    %907 = vmatpush2.msra.mxu0 0.0
    %908 = vmatprep.subr.mxu0 0.0
    %909 = vmatpush2.msra.mxu0 0.0
    %910 = vmatprep.mubr.f32.mxu0 0.0
    %911 = vmatmul.mubr.f32.gmra.mxu0 %v844
    %v912 = vpop.f32.mrf.mxu0
    %v913 = vadd.f32 %v740, %v912
    %v914 = vpop.f32.mrf.mxu0
    %915 = vdwg.mxu0
    %v916 = vmax.f32 %v913, 0.0
    %v917 = vld [vmem:[%s23] sm:$0xff]
    %v918 = vld [vmem:[%s23 + $0x8] sm:$0xff]
    %v919 = vld [vmem:[%s23 + $0x10] sm:$0xff]
    %v920 = vld [vmem:[%s23 + $0x18] sm:$0xff]
    %v922 = vsel %vm449, %v916, 0
    %924 = vmatprep.subr.mxu0 0.0
    %925 = vmatpush1.msra.mxu0 0.0
    %926 = vmatprep.subr.mxu0 0.0
    %927 = vmatpush1.msra.mxu0 0.0
    %928 = vmatprep.subr.mxu0 0.0
    %929 = vmatpush1.msra.mxu0 0.0
    %930 = vmatprep.subr.mxu0 0.0
    %931 = vmatpush1.msra.mxu0 0.0
    %932 = vmatprep.subr.mxu0 0.0
    %933 = vmatpush1.msra.mxu0 0.0
    %934 = vmatprep.subr.mxu0 0.0
    %935 = vmatpush1.msra.mxu0 0.0
    %936 = vmatprep.subr.mxu0 0.0
    %937 = vmatpush1.msra.mxu0 0.0
    %938 = vmatprep.subr.mxu0 0.0
    %939 = vmatpush1.msra.mxu0 0.0
    %940 = vmatprep.subr.mxu0 0.0
    %941 = vmatpush1.msra.mxu0 0.0
    %942 = vmatprep.subr.mxu0 0.0
    %943 = vmatpush1.msra.mxu0 0.0
    %944 = vmatprep.subr.mxu0 0.0
    %945 = vmatpush1.msra.mxu0 0.0
    %946 = vmatprep.subr.mxu0 0.0
    %947 = vmatpush1.msra.mxu0 0.0
    %948 = vmatprep.subr.mxu0 0.0
    %949 = vmatpush1.msra.mxu0 %v920
    %950 = vmatprep.subr.mxu0 0.0
    %951 = vmatpush1.msra.mxu0 %v919
    %952 = vmatprep.subr.mxu0 0.0
    %953 = vmatpush1.msra.mxu0 %v918
    %954 = vmatprep.subr.mxu0 0.0
    %955 = vmatpush1.msra.mxu0 %v917
    %956 = vmatprep.subr.mxu0 0.0
    %957 = vmatpush2.msra.mxu0 0.0
    %958 = vmatprep.subr.mxu0 0.0
    %959 = vmatpush2.msra.mxu0 0.0
    %960 = vmatprep.subr.mxu0 0.0
    %961 = vmatpush2.msra.mxu0 0.0
    %962 = vmatprep.subr.mxu0 0.0
    %963 = vmatpush2.msra.mxu0 0.0
    %964 = vmatprep.subr.mxu0 0.0
    %965 = vmatpush2.msra.mxu0 0.0
    %966 = vmatprep.subr.mxu0 0.0
    %967 = vmatpush2.msra.mxu0 0.0
    %968 = vmatprep.subr.mxu0 0.0
    %969 = vmatpush2.msra.mxu0 0.0
    %970 = vmatprep.subr.mxu0 0.0
    %971 = vmatpush2.msra.mxu0 0.0
    %972 = vmatprep.subr.mxu0 0.0
    %973 = vmatpush2.msra.mxu0 0.0
    %974 = vmatprep.subr.mxu0 0.0
    %975 = vmatpush2.msra.mxu0 0.0
    %976 = vmatprep.subr.mxu0 0.0
    %977 = vmatpush2.msra.mxu0 0.0
    %978 = vmatprep.subr.mxu0 0.0
    %979 = vmatpush2.msra.mxu0 0.0
    %980 = vmatprep.subr.mxu0 0.0
    %981 = vmatpush2.msra.mxu0 0.0
    %982 = vmatprep.subr.mxu0 0.0
    %983 = vmatpush2.msra.mxu0 0.0
    %984 = vmatprep.subr.mxu0 0.0
    %985 = vmatpush2.msra.mxu0 0.0
    %986 = vmatprep.subr.mxu0 0.0
    %987 = vmatpush2.msra.mxu0 0.0
    %988 = vmatprep.mubr.f32.mxu0 0.0
    %989 = vmatmul.mubr.f32.gmra.mxu0 %v922
    %v990 = vpop.f32.mrf.mxu0
    %v991 = vadd.f32 %v747, %v990
    %v992 = vpop.f32.mrf.mxu0
    %993 = vdwg.mxu0
    %994 = vst.msk [vmem:[#allocation5] sm:$0xff] %vm449, %v991
    %v995 = vmax.f32 %v991, 0.0
    %v996 = vand.u32 2147483647, %v991
    %v997 = vsub.f32 0.0, %v996
    %v998 = vmul.f32 %v997, 1.442695
    %v999 = vpow.pop %v998
    %v1000 = vadd.f32 %v999, 1.0
    %v1001 = vlog2.pop %v1000
    %v1002 = vmul.f32 %v1001, 0.6931472
    %v1003 = vmul.f32 -0.5, %v999
    %v1004 = vadd.f32 %v1003, 1.0
    %v1005 = vmul.f32 %v1004, %v999
    %v1006 = vand.u32 2147483647, %v999
    %vm1007 = vcmp.lt.f32.partialorder %v1006, 0.0004427343
    %v1008 = vsel %vm1007, %v1005, %v1002
    %v1009 = vadd.f32 %v995, %v1008
    %1011 = vrot.lane.b32.xlu0 %v756, 16
    %v1012 = vpop.permute.xlu0 %1011
    %v1014 = vmul.f32 %v1009, %v1012
    %1016 = vrot.lane.b32.xlu0 %v1014, 112
    %v1017 = vpop.permute.xlu0 %1016
    %v1019 = vadd.f32 %v991, %v1017
    %v1020 = vld [vmem:[#allocation19] sm:$0xff]
    %v1021 = vld [vmem:[#allocation19 + $0x8] sm:$0xff]
    %v1023 = vsel %vm300, %v1019, 0
    %1025 = vmatprep.subr.mxu0 0.0
    %1026 = vmatpush1.msra.mxu0 0.0
    %1027 = vmatprep.subr.mxu0 0.0
    %1028 = vmatpush1.msra.mxu0 0.0
    %1029 = vmatprep.subr.mxu0 0.0
    %1030 = vmatpush1.msra.mxu0 0.0
    %1031 = vmatprep.subr.mxu0 0.0
    %1032 = vmatpush1.msra.mxu0 0.0
    %1033 = vmatprep.subr.mxu0 0.0
    %1034 = vmatpush1.msra.mxu0 0.0
    %1035 = vmatprep.subr.mxu0 0.0
    %1036 = vmatpush1.msra.mxu0 0.0
    %1037 = vmatprep.subr.mxu0 0.0
    %1038 = vmatpush1.msra.mxu0 0.0
    %1039 = vmatprep.subr.mxu0 0.0
    %1040 = vmatpush1.msra.mxu0 0.0
    %1041 = vmatprep.subr.mxu0 0.0
    %1042 = vmatpush1.msra.mxu0 0.0
    %1043 = vmatprep.subr.mxu0 0.0
    %1044 = vmatpush1.msra.mxu0 0.0
    %1045 = vmatprep.subr.mxu0 0.0
    %1046 = vmatpush1.msra.mxu0 0.0
    %1047 = vmatprep.subr.mxu0 0.0
    %1048 = vmatpush1.msra.mxu0 0.0
    %1049 = vmatprep.subr.mxu0 0.0
    %1050 = vmatpush1.msra.mxu0 0.0
    %1051 = vmatprep.subr.mxu0 0.0
    %1052 = vmatpush1.msra.mxu0 0.0
    %1053 = vmatprep.subr.mxu0 0.0
    %1054 = vmatpush1.msra.mxu0 %v1021
    %1055 = vmatprep.subr.mxu0 0.0
    %1056 = vmatpush1.msra.mxu0 %v1020
    %1057 = vmatprep.subr.mxu0 0.0
    %1058 = vmatpush2.msra.mxu0 0.0
    %1059 = vmatprep.subr.mxu0 0.0
    %1060 = vmatpush2.msra.mxu0 0.0
    %1061 = vmatprep.subr.mxu0 0.0
    %1062 = vmatpush2.msra.mxu0 0.0
    %1063 = vmatprep.subr.mxu0 0.0
    %1064 = vmatpush2.msra.mxu0 0.0
    %1065 = vmatprep.subr.mxu0 0.0
    %1066 = vmatpush2.msra.mxu0 0.0
    %1067 = vmatprep.subr.mxu0 0.0
    %1068 = vmatpush2.msra.mxu0 0.0
    %1069 = vmatprep.subr.mxu0 0.0
    %1070 = vmatpush2.msra.mxu0 0.0
    %1071 = vmatprep.subr.mxu0 0.0
    %1072 = vmatpush2.msra.mxu0 0.0
    %1073 = vmatprep.subr.mxu0 0.0
    %1074 = vmatpush2.msra.mxu0 0.0
    %1075 = vmatprep.subr.mxu0 0.0
    %1076 = vmatpush2.msra.mxu0 0.0
    %1077 = vmatprep.subr.mxu0 0.0
    %1078 = vmatpush2.msra.mxu0 0.0
    %1079 = vmatprep.subr.mxu0 0.0
    %1080 = vmatpush2.msra.mxu0 0.0
    %1081 = vmatprep.subr.mxu0 0.0
    %1082 = vmatpush2.msra.mxu0 0.0
    %1083 = vmatprep.subr.mxu0 0.0
    %1084 = vmatpush2.msra.mxu0 0.0
    %1085 = vmatprep.subr.mxu0 0.0
    %1086 = vmatpush2.msra.mxu0 0.0
    %1087 = vmatprep.subr.mxu0 0.0
    %1088 = vmatpush2.msra.mxu0 0.0
    %1089 = vmatprep.mubr.f32.mxu0 0.0
    %1090 = vmatmul.mubr.f32.gmra.mxu0 %v1023
    %v1091 = vpop.f32.mrf.mxu0
    %v1092 = vadd.f32 %v754, %v1091
    %v1093 = vpop.f32.mrf.mxu0
    %1094 = vdwg.mxu0
    %v1095 = vmax.f32 %v1092, 0.0
    %1096 = vst.msk [vmem:[#allocation4] sm:$0xff] %vm449, %v1095
    %v1097 = vld [vmem:[%s31] sm:$0xff]
    %v1098 = vld [vmem:[%s31 + $0x8] sm:$0xff]
    %v1099 = vld [vmem:[%s31 + $0x10] sm:$0xff]
    %v1100 = vld [vmem:[%s31 + $0x18] sm:$0xff]
    %v1102 = vsel %vm449, %v1095, 0
    %1104 = vmatprep.subr.mxu0 0.0
    %1105 = vmatpush1.msra.mxu0 0.0
    %1106 = vmatprep.subr.mxu0 0.0
    %1107 = vmatpush1.msra.mxu0 0.0
    %1108 = vmatprep.subr.mxu0 0.0
    %1109 = vmatpush1.msra.mxu0 0.0
    %1110 = vmatprep.subr.mxu0 0.0
    %1111 = vmatpush1.msra.mxu0 0.0
    %1112 = vmatprep.subr.mxu0 0.0
    %1113 = vmatpush1.msra.mxu0 0.0
    %1114 = vmatprep.subr.mxu0 0.0
    %1115 = vmatpush1.msra.mxu0 0.0
    %1116 = vmatprep.subr.mxu0 0.0
    %1117 = vmatpush1.msra.mxu0 0.0
    %1118 = vmatprep.subr.mxu0 0.0
    %1119 = vmatpush1.msra.mxu0 0.0
    %1120 = vmatprep.subr.mxu0 0.0
    %1121 = vmatpush1.msra.mxu0 0.0
    %1122 = vmatprep.subr.mxu0 0.0
    %1123 = vmatpush1.msra.mxu0 0.0
    %1124 = vmatprep.subr.mxu0 0.0
    %1125 = vmatpush1.msra.mxu0 0.0
    %1126 = vmatprep.subr.mxu0 0.0
    %1127 = vmatpush1.msra.mxu0 0.0
    %1128 = vmatprep.subr.mxu0 0.0
    %1129 = vmatpush1.msra.mxu0 %v1100
    %1130 = vmatprep.subr.mxu0 0.0
    %1131 = vmatpush1.msra.mxu0 %v1099
    %1132 = vmatprep.subr.mxu0 0.0
    %1133 = vmatpush1.msra.mxu0 %v1098
    %1134 = vmatprep.subr.mxu0 0.0
    %1135 = vmatpush1.msra.mxu0 %v1097
    %1136 = vmatprep.subr.mxu0 0.0
    %1137 = vmatpush2.msra.mxu0 0.0
    %1138 = vmatprep.subr.mxu0 0.0
    %1139 = vmatpush2.msra.mxu0 0.0
    %1140 = vmatprep.subr.mxu0 0.0
    %1141 = vmatpush2.msra.mxu0 0.0
    %1142 = vmatprep.subr.mxu0 0.0
    %1143 = vmatpush2.msra.mxu0 0.0
    %1144 = vmatprep.subr.mxu0 0.0
    %1145 = vmatpush2.msra.mxu0 0.0
    %1146 = vmatprep.subr.mxu0 0.0
    %1147 = vmatpush2.msra.mxu0 0.0
    %1148 = vmatprep.subr.mxu0 0.0
    %1149 = vmatpush2.msra.mxu0 0.0
    %1150 = vmatprep.subr.mxu0 0.0
    %1151 = vmatpush2.msra.mxu0 0.0
    %1152 = vmatprep.subr.mxu0 0.0
    %1153 = vmatpush2.msra.mxu0 0.0
    %1154 = vmatprep.subr.mxu0 0.0
    %1155 = vmatpush2.msra.mxu0 0.0
    %1156 = vmatprep.subr.mxu0 0.0
    %1157 = vmatpush2.msra.mxu0 0.0
    %1158 = vmatprep.subr.mxu0 0.0
    %1159 = vmatpush2.msra.mxu0 0.0
    %1160 = vmatprep.subr.mxu0 0.0
    %1161 = vmatpush2.msra.mxu0 0.0
    %1162 = vmatprep.subr.mxu0 0.0
    %1163 = vmatpush2.msra.mxu0 0.0
    %1164 = vmatprep.subr.mxu0 0.0
    %1165 = vmatpush2.msra.mxu0 0.0
    %1166 = vmatprep.subr.mxu0 0.0
    %1167 = vmatpush2.msra.mxu0 0.0
    %1168 = vmatprep.mubr.f32.mxu0 0.0
    %1169 = vmatmul.mubr.f32.gmra.mxu0 %v1102
    %v1170 = vpop.f32.mrf.mxu0
    %v1171 = vadd.f32 0.0, %v1170
    %v1172 = vpop.f32.mrf.mxu0
    %1173 = vdwg.mxu0
    %1175 = vrot.lane.b32.xlu0 %v1171, 32
    %v1176 = vpop.permute.xlu0 %1175
    %v1178 = vadd.f32 %v757, %v1176
    %v1179 = vadd.f32 %v1178, %v833
    %v1180 = vmul.f32 %v1179, 0.5
    %v1181 = vtanh.pop %v1180
    %v1182 = vadd.f32 %v1181, 1.0
    %v1183 = vmul.f32 %v1182, 0.5
    %1185 = vrot.lane.b32.xlu0 %v833, 64
    %v1186 = vpop.permute.xlu0 %1185
    %v1188 = vmul.f32 %v1183, %v1186
    %1190 = vrot.lane.b32.xlu0 %v1188, 64
    %v1191 = vpop.permute.xlu0 %1190
    %v1193 = vadd.f32 %v1178, %v1191
    %v1194 = vtanh.pop %v1193
    %v1195 = vsub.f32 1.0, %v1183
    %1197 = vrot.lane.b32.xlu0 %v1194, 96
    %v1198 = vpop.permute.xlu0 %1197
    %v1200 = vmul.f32 %v1195, %v1198
    %v1201 = vmul.f32 %v1183, 0.0
    %v1202 = vadd.f32 %v1200, %v1201
    %s1203 = scalar_lea.vmem %s5, 8
    %v1204 = vld [vmem:[%s1203] sm:$0xff]
    %s1205 = scalar_lea.vmem [#allocation2], 8
    %v1206 = vld [vmem:[%s1205] sm:$0xff]
    %1208 = vrot.lane.b32.xlu0 %v1202, 64
    %v1209 = vpop.permute.xlu0 %1208
    %s1211 = scalar_lea.vmem [#allocation3], 8
    %1212 = vst.msk [vmem:[%s1211] sm:$0xff] %vm449, %v1209
    %v1213 = vld [vmem:[%s33] sm:$0xff]
    %v1214 = vld [vmem:[%s33 + $0x8] sm:$0xff]
    %v1215 = vld [vmem:[%s33 + $0x10] sm:$0xff]
    %v1216 = vld [vmem:[%s33 + $0x18] sm:$0xff]
    %v1217 = vsel %vm449, %v1209, 0
    %1219 = vmatprep.subr.mxu0 0.0
    %1220 = vmatpush1.msra.mxu0 0.0
    %1221 = vmatprep.subr.mxu0 0.0
    %1222 = vmatpush1.msra.mxu0 0.0
    %1223 = vmatprep.subr.mxu0 0.0
    %1224 = vmatpush1.msra.mxu0 0.0
    %1225 = vmatprep.subr.mxu0 0.0
    %1226 = vmatpush1.msra.mxu0 0.0
    %1227 = vmatprep.subr.mxu0 0.0
    %1228 = vmatpush1.msra.mxu0 0.0
    %1229 = vmatprep.subr.mxu0 0.0
    %1230 = vmatpush1.msra.mxu0 0.0
    %1231 = vmatprep.subr.mxu0 0.0
    %1232 = vmatpush1.msra.mxu0 0.0
    %1233 = vmatprep.subr.mxu0 0.0
    %1234 = vmatpush1.msra.mxu0 0.0
    %1235 = vmatprep.subr.mxu0 0.0
    %1236 = vmatpush1.msra.mxu0 0.0
    %1237 = vmatprep.subr.mxu0 0.0
    %1238 = vmatpush1.msra.mxu0 0.0
    %1239 = vmatprep.subr.mxu0 0.0
    %1240 = vmatpush1.msra.mxu0 0.0
    %1241 = vmatprep.subr.mxu0 0.0
    %1242 = vmatpush1.msra.mxu0 0.0
    %1243 = vmatprep.subr.mxu0 0.0
    %1244 = vmatpush1.msra.mxu0 %v1216
    %1245 = vmatprep.subr.mxu0 0.0
    %1246 = vmatpush1.msra.mxu0 %v1215
    %1247 = vmatprep.subr.mxu0 0.0
    %1248 = vmatpush1.msra.mxu0 %v1214
    %1249 = vmatprep.subr.mxu0 0.0
    %1250 = vmatpush1.msra.mxu0 %v1213
    %1251 = vmatprep.subr.mxu0 0.0
    %1252 = vmatpush2.msra.mxu0 0.0
    %1253 = vmatprep.subr.mxu0 0.0
    %1254 = vmatpush2.msra.mxu0 0.0
    %1255 = vmatprep.subr.mxu0 0.0
    %1256 = vmatpush2.msra.mxu0 0.0
    %1257 = vmatprep.subr.mxu0 0.0
    %1258 = vmatpush2.msra.mxu0 0.0
    %1259 = vmatprep.subr.mxu0 0.0
    %1260 = vmatpush2.msra.mxu0 0.0
    %1261 = vmatprep.subr.mxu0 0.0
    %1262 = vmatpush2.msra.mxu0 0.0
    %1263 = vmatprep.subr.mxu0 0.0
    %1264 = vmatpush2.msra.mxu0 0.0
    %1265 = vmatprep.subr.mxu0 0.0
    %1266 = vmatpush2.msra.mxu0 0.0
    %1267 = vmatprep.subr.mxu0 0.0
    %1268 = vmatpush2.msra.mxu0 0.0
    %1269 = vmatprep.subr.mxu0 0.0
    %1270 = vmatpush2.msra.mxu0 0.0
    %1271 = vmatprep.subr.mxu0 0.0
    %1272 = vmatpush2.msra.mxu0 0.0
    %1273 = vmatprep.subr.mxu0 0.0
    %1274 = vmatpush2.msra.mxu0 0.0
    %1275 = vmatprep.subr.mxu0 0.0
    %1276 = vmatpush2.msra.mxu0 0.0
    %1277 = vmatprep.subr.mxu0 0.0
    %1278 = vmatpush2.msra.mxu0 0.0
    %1279 = vmatprep.subr.mxu0 0.0
    %1280 = vmatpush2.msra.mxu0 0.0
    %1281 = vmatprep.subr.mxu0 0.0
    %1282 = vmatpush2.msra.mxu0 0.0
    %1283 = vmatprep.mubr.f32.mxu0 0.0
    %1284 = vmatmul.mubr.f32.gmra.mxu0 %v1217
    %v1285 = vpop.f32.mrf.mxu0
    %v1286 = vadd.f32 0.0, %v1285
    %v1287 = vpop.f32.mrf.mxu0
    %1288 = vdwg.mxu0
    %v1289 = vadd.f32 %v1206, %v1286
    %v1290 = vadd.f32 %v1289, %v733
    %v1291 = vmax.f32 %v1290, 0.0
    %v1292 = vld [vmem:[%s19] sm:$0xff]
    %v1293 = vld [vmem:[%s19 + $0x8] sm:$0xff]
    %v1294 = vld [vmem:[%s19 + $0x10] sm:$0xff]
    %v1295 = vld [vmem:[%s19 + $0x18] sm:$0xff]
    %v1297 = vsel %vm449, %v1291, 0
    %1299 = vmatprep.subr.mxu0 0.0
    %1300 = vmatpush1.msra.mxu0 0.0
    %1301 = vmatprep.subr.mxu0 0.0
    %1302 = vmatpush1.msra.mxu0 0.0
    %1303 = vmatprep.subr.mxu0 0.0
    %1304 = vmatpush1.msra.mxu0 0.0
    %1305 = vmatprep.subr.mxu0 0.0
    %1306 = vmatpush1.msra.mxu0 0.0
    %1307 = vmatprep.subr.mxu0 0.0
    %1308 = vmatpush1.msra.mxu0 0.0
    %1309 = vmatprep.subr.mxu0 0.0
    %1310 = vmatpush1.msra.mxu0 0.0
    %1311 = vmatprep.subr.mxu0 0.0
    %1312 = vmatpush1.msra.mxu0 0.0
    %1313 = vmatprep.subr.mxu0 0.0
    %1314 = vmatpush1.msra.mxu0 0.0
    %1315 = vmatprep.subr.mxu0 0.0
    %1316 = vmatpush1.msra.mxu0 0.0
    %1317 = vmatprep.subr.mxu0 0.0
    %1318 = vmatpush1.msra.mxu0 0.0
    %1319 = vmatprep.subr.mxu0 0.0
    %1320 = vmatpush1.msra.mxu0 0.0
    %1321 = vmatprep.subr.mxu0 0.0
    %1322 = vmatpush1.msra.mxu0 0.0
    %1323 = vmatprep.subr.mxu0 0.0
    %1324 = vmatpush1.msra.mxu0 %v1295
    %1325 = vmatprep.subr.mxu0 0.0
    %1326 = vmatpush1.msra.mxu0 %v1294
    %1327 = vmatprep.subr.mxu0 0.0
    %1328 = vmatpush1.msra.mxu0 %v1293
    %1329 = vmatprep.subr.mxu0 0.0
    %1330 = vmatpush1.msra.mxu0 %v1292
    %1331 = vmatprep.subr.mxu0 0.0
    %1332 = vmatpush2.msra.mxu0 0.0
    %1333 = vmatprep.subr.mxu0 0.0
    %1334 = vmatpush2.msra.mxu0 0.0
    %1335 = vmatprep.subr.mxu0 0.0
    %1336 = vmatpush2.msra.mxu0 0.0
    %1337 = vmatprep.subr.mxu0 0.0
    %1338 = vmatpush2.msra.mxu0 0.0
    %1339 = vmatprep.subr.mxu0 0.0
    %1340 = vmatpush2.msra.mxu0 0.0
    %1341 = vmatprep.subr.mxu0 0.0
    %1342 = vmatpush2.msra.mxu0 0.0
    %1343 = vmatprep.subr.mxu0 0.0
    %1344 = vmatpush2.msra.mxu0 0.0
    %1345 = vmatprep.subr.mxu0 0.0
    %1346 = vmatpush2.msra.mxu0 0.0
    %1347 = vmatprep.subr.mxu0 0.0
    %1348 = vmatpush2.msra.mxu0 0.0
    %1349 = vmatprep.subr.mxu0 0.0
    %1350 = vmatpush2.msra.mxu0 0.0
    %1351 = vmatprep.subr.mxu0 0.0
    %1352 = vmatpush2.msra.mxu0 0.0
    %1353 = vmatprep.subr.mxu0 0.0
    %1354 = vmatpush2.msra.mxu0 0.0
    %1355 = vmatprep.subr.mxu0 0.0
    %1356 = vmatpush2.msra.mxu0 0.0
    %1357 = vmatprep.subr.mxu0 0.0
    %1358 = vmatpush2.msra.mxu0 0.0
    %1359 = vmatprep.subr.mxu0 0.0
    %1360 = vmatpush2.msra.mxu0 0.0
    %1361 = vmatprep.subr.mxu0 0.0
    %1362 = vmatpush2.msra.mxu0 0.0
    %1363 = vmatprep.mubr.f32.mxu0 0.0
    %1364 = vmatmul.mubr.f32.gmra.mxu0 %v1297
    %v1365 = vpop.f32.mrf.mxu0
    %v1366 = vadd.f32 %v740, %v1365
    %v1367 = vpop.f32.mrf.mxu0
    %1368 = vdwg.mxu0
    %v1369 = vmax.f32 %v1366, 0.0
    %v1370 = vld [vmem:[%s23] sm:$0xff]
    %v1371 = vld [vmem:[%s23 + $0x8] sm:$0xff]
    %v1372 = vld [vmem:[%s23 + $0x10] sm:$0xff]
    %v1373 = vld [vmem:[%s23 + $0x18] sm:$0xff]
    %v1375 = vsel %vm449, %v1369, 0
    %1377 = vmatprep.subr.mxu0 0.0
    %1378 = vmatpush1.msra.mxu0 0.0
    %1379 = vmatprep.subr.mxu0 0.0
    %1380 = vmatpush1.msra.mxu0 0.0
    %1381 = vmatprep.subr.mxu0 0.0
    %1382 = vmatpush1.msra.mxu0 0.0
    %1383 = vmatprep.subr.mxu0 0.0
    %1384 = vmatpush1.msra.mxu0 0.0
    %1385 = vmatprep.subr.mxu0 0.0
    %1386 = vmatpush1.msra.mxu0 0.0
    %1387 = vmatprep.subr.mxu0 0.0
    %1388 = vmatpush1.msra.mxu0 0.0
    %1389 = vmatprep.subr.mxu0 0.0
    %1390 = vmatpush1.msra.mxu0 0.0
    %1391 = vmatprep.subr.mxu0 0.0
    %1392 = vmatpush1.msra.mxu0 0.0
    %1393 = vmatprep.subr.mxu0 0.0
    %1394 = vmatpush1.msra.mxu0 0.0
    %1395 = vmatprep.subr.mxu0 0.0
    %1396 = vmatpush1.msra.mxu0 0.0
    %1397 = vmatprep.subr.mxu0 0.0
    %1398 = vmatpush1.msra.mxu0 0.0
    %1399 = vmatprep.subr.mxu0 0.0
    %1400 = vmatpush1.msra.mxu0 0.0
    %1401 = vmatprep.subr.mxu0 0.0
    %1402 = vmatpush1.msra.mxu0 %v1373
    %1403 = vmatprep.subr.mxu0 0.0
    %1404 = vmatpush1.msra.mxu0 %v1372
    %1405 = vmatprep.subr.mxu0 0.0
    %1406 = vmatpush1.msra.mxu0 %v1371
    %1407 = vmatprep.subr.mxu0 0.0
    %1408 = vmatpush1.msra.mxu0 %v1370
    %1409 = vmatprep.subr.mxu0 0.0
    %1410 = vmatpush2.msra.mxu0 0.0
    %1411 = vmatprep.subr.mxu0 0.0
    %1412 = vmatpush2.msra.mxu0 0.0
    %1413 = vmatprep.subr.mxu0 0.0
    %1414 = vmatpush2.msra.mxu0 0.0
    %1415 = vmatprep.subr.mxu0 0.0
    %1416 = vmatpush2.msra.mxu0 0.0
    %1417 = vmatprep.subr.mxu0 0.0
    %1418 = vmatpush2.msra.mxu0 0.0
    %1419 = vmatprep.subr.mxu0 0.0
    %1420 = vmatpush2.msra.mxu0 0.0
    %1421 = vmatprep.subr.mxu0 0.0
    %1422 = vmatpush2.msra.mxu0 0.0
    %1423 = vmatprep.subr.mxu0 0.0
    %1424 = vmatpush2.msra.mxu0 0.0
    %1425 = vmatprep.subr.mxu0 0.0
    %1426 = vmatpush2.msra.mxu0 0.0
    %1427 = vmatprep.subr.mxu0 0.0
    %1428 = vmatpush2.msra.mxu0 0.0
    %1429 = vmatprep.subr.mxu0 0.0
    %1430 = vmatpush2.msra.mxu0 0.0
    %1431 = vmatprep.subr.mxu0 0.0
    %1432 = vmatpush2.msra.mxu0 0.0
    %1433 = vmatprep.subr.mxu0 0.0
    %1434 = vmatpush2.msra.mxu0 0.0
    %1435 = vmatprep.subr.mxu0 0.0
    %1436 = vmatpush2.msra.mxu0 0.0
    %1437 = vmatprep.subr.mxu0 0.0
    %1438 = vmatpush2.msra.mxu0 0.0
    %1439 = vmatprep.subr.mxu0 0.0
    %1440 = vmatpush2.msra.mxu0 0.0
    %1441 = vmatprep.mubr.f32.mxu0 0.0
    %1442 = vmatmul.mubr.f32.gmra.mxu0 %v1375
    %v1443 = vpop.f32.mrf.mxu0
    %v1444 = vadd.f32 %v747, %v1443
    %v1445 = vpop.f32.mrf.mxu0
    %1446 = vdwg.mxu0
    %s1447 = scalar_lea.vmem [#allocation5], 8
    %1448 = vst.msk [vmem:[%s1447] sm:$0xff] %vm449, %v1444
    %v1449 = vmax.f32 %v1444, 0.0
    %v1450 = vand.u32 2147483647, %v1444
    %v1451 = vsub.f32 0.0, %v1450
    %v1452 = vmul.f32 %v1451, 1.442695
    %v1453 = vpow.pop %v1452
    %v1454 = vadd.f32 %v1453, 1.0
    %v1455 = vlog2.pop %v1454
    %v1456 = vmul.f32 %v1455, 0.6931472
    %v1457 = vmul.f32 -0.5, %v1453
    %v1458 = vadd.f32 %v1457, 1.0
    %v1459 = vmul.f32 %v1458, %v1453
    %v1460 = vand.u32 2147483647, %v1453
    %vm1461 = vcmp.lt.f32.partialorder %v1460, 0.0004427343
    %v1462 = vsel %vm1461, %v1459, %v1456
    %v1463 = vadd.f32 %v1449, %v1462
    %1465 = vrot.lane.b32.xlu0 %v1204, 16
    %v1466 = vpop.permute.xlu0 %1465
    %v1468 = vmul.f32 %v1463, %v1466
    %1470 = vrot.lane.b32.xlu0 %v1468, 112
    %v1471 = vpop.permute.xlu0 %1470
    %v1473 = vadd.f32 %v1444, %v1471
    %v1474 = vld [vmem:[#allocation19] sm:$0xff]
    %v1475 = vld [vmem:[#allocation19 + $0x8] sm:$0xff]
    %v1477 = vsel %vm300, %v1473, 0
    %1479 = vmatprep.subr.mxu0 0.0
    %1480 = vmatpush1.msra.mxu0 0.0
    %1481 = vmatprep.subr.mxu0 0.0
    %1482 = vmatpush1.msra.mxu0 0.0
    %1483 = vmatprep.subr.mxu0 0.0
    %1484 = vmatpush1.msra.mxu0 0.0
    %1485 = vmatprep.subr.mxu0 0.0
    %1486 = vmatpush1.msra.mxu0 0.0
    %1487 = vmatprep.subr.mxu0 0.0
    %1488 = vmatpush1.msra.mxu0 0.0
    %1489 = vmatprep.subr.mxu0 0.0
    %1490 = vmatpush1.msra.mxu0 0.0
    %1491 = vmatprep.subr.mxu0 0.0
    %1492 = vmatpush1.msra.mxu0 0.0
    %1493 = vmatprep.subr.mxu0 0.0
    %1494 = vmatpush1.msra.mxu0 0.0
    %1495 = vmatprep.subr.mxu0 0.0
    %1496 = vmatpush1.msra.mxu0 0.0
    %1497 = vmatprep.subr.mxu0 0.0
    %1498 = vmatpush1.msra.mxu0 0.0
    %1499 = vmatprep.subr.mxu0 0.0
    %1500 = vmatpush1.msra.mxu0 0.0
    %1501 = vmatprep.subr.mxu0 0.0
    %1502 = vmatpush1.msra.mxu0 0.0
    %1503 = vmatprep.subr.mxu0 0.0
    %1504 = vmatpush1.msra.mxu0 0.0
    %1505 = vmatprep.subr.mxu0 0.0
    %1506 = vmatpush1.msra.mxu0 0.0
    %1507 = vmatprep.subr.mxu0 0.0
    %1508 = vmatpush1.msra.mxu0 %v1475
    %1509 = vmatprep.subr.mxu0 0.0
    %1510 = vmatpush1.msra.mxu0 %v1474
    %1511 = vmatprep.subr.mxu0 0.0
    %1512 = vmatpush2.msra.mxu0 0.0
    %1513 = vmatprep.subr.mxu0 0.0
    %1514 = vmatpush2.msra.mxu0 0.0
    %1515 = vmatprep.subr.mxu0 0.0
    %1516 = vmatpush2.msra.mxu0 0.0
    %1517 = vmatprep.subr.mxu0 0.0
    %1518 = vmatpush2.msra.mxu0 0.0
    %1519 = vmatprep.subr.mxu0 0.0
    %1520 = vmatpush2.msra.mxu0 0.0
    %1521 = vmatprep.subr.mxu0 0.0
    %1522 = vmatpush2.msra.mxu0 0.0
    %1523 = vmatprep.subr.mxu0 0.0
    %1524 = vmatpush2.msra.mxu0 0.0
    %1525 = vmatprep.subr.mxu0 0.0
    %1526 = vmatpush2.msra.mxu0 0.0
    %1527 = vmatprep.subr.mxu0 0.0
    %1528 = vmatpush2.msra.mxu0 0.0
    %1529 = vmatprep.subr.mxu0 0.0
    %1530 = vmatpush2.msra.mxu0 0.0
    %1531 = vmatprep.subr.mxu0 0.0
    %1532 = vmatpush2.msra.mxu0 0.0
    %1533 = vmatprep.subr.mxu0 0.0
    %1534 = vmatpush2.msra.mxu0 0.0
    %1535 = vmatprep.subr.mxu0 0.0
    %1536 = vmatpush2.msra.mxu0 0.0
    %1537 = vmatprep.subr.mxu0 0.0
    %1538 = vmatpush2.msra.mxu0 0.0
    %1539 = vmatprep.subr.mxu0 0.0
    %1540 = vmatpush2.msra.mxu0 0.0
    %1541 = vmatprep.subr.mxu0 0.0
    %1542 = vmatpush2.msra.mxu0 0.0
    %1543 = vmatprep.mubr.f32.mxu0 0.0
    %1544 = vmatmul.mubr.f32.gmra.mxu0 %v1477
    %v1545 = vpop.f32.mrf.mxu0
    %v1546 = vadd.f32 %v754, %v1545
    %v1547 = vpop.f32.mrf.mxu0
    %1548 = vdwg.mxu0
    %v1549 = vmax.f32 %v1546, 0.0
    %s1550 = scalar_lea.vmem [#allocation4], 8
    %1551 = vst.msk [vmem:[%s1550] sm:$0xff] %vm449, %v1549
    %v1552 = vld [vmem:[%s31] sm:$0xff]
    %v1553 = vld [vmem:[%s31 + $0x8] sm:$0xff]
    %v1554 = vld [vmem:[%s31 + $0x10] sm:$0xff]
    %v1555 = vld [vmem:[%s31 + $0x18] sm:$0xff]
    %v1557 = vsel %vm449, %v1549, 0
    %1559 = vmatprep.subr.mxu0 0.0
    %1560 = vmatpush1.msra.mxu0 0.0
    %1561 = vmatprep.subr.mxu0 0.0
    %1562 = vmatpush1.msra.mxu0 0.0
    %1563 = vmatprep.subr.mxu0 0.0
    %1564 = vmatpush1.msra.mxu0 0.0
    %1565 = vmatprep.subr.mxu0 0.0
    %1566 = vmatpush1.msra.mxu0 0.0
    %1567 = vmatprep.subr.mxu0 0.0
    %1568 = vmatpush1.msra.mxu0 0.0
    %1569 = vmatprep.subr.mxu0 0.0
    %1570 = vmatpush1.msra.mxu0 0.0
    %1571 = vmatprep.subr.mxu0 0.0
    %1572 = vmatpush1.msra.mxu0 0.0
    %1573 = vmatprep.subr.mxu0 0.0
    %1574 = vmatpush1.msra.mxu0 0.0
    %1575 = vmatprep.subr.mxu0 0.0
    %1576 = vmatpush1.msra.mxu0 0.0
    %1577 = vmatprep.subr.mxu0 0.0
    %1578 = vmatpush1.msra.mxu0 0.0
    %1579 = vmatprep.subr.mxu0 0.0
    %1580 = vmatpush1.msra.mxu0 0.0
    %1581 = vmatprep.subr.mxu0 0.0
    %1582 = vmatpush1.msra.mxu0 0.0
    %1583 = vmatprep.subr.mxu0 0.0
    %1584 = vmatpush1.msra.mxu0 %v1555
    %1585 = vmatprep.subr.mxu0 0.0
    %1586 = vmatpush1.msra.mxu0 %v1554
    %1587 = vmatprep.subr.mxu0 0.0
    %1588 = vmatpush1.msra.mxu0 %v1553
    %1589 = vmatprep.subr.mxu0 0.0
    %1590 = vmatpush1.msra.mxu0 %v1552
    %1591 = vmatprep.subr.mxu0 0.0
    %1592 = vmatpush2.msra.mxu0 0.0
    %1593 = vmatprep.subr.mxu0 0.0
    %1594 = vmatpush2.msra.mxu0 0.0
    %1595 = vmatprep.subr.mxu0 0.0
    %1596 = vmatpush2.msra.mxu0 0.0
    %1597 = vmatprep.subr.mxu0 0.0
    %1598 = vmatpush2.msra.mxu0 0.0
    %1599 = vmatprep.subr.mxu0 0.0
    %1600 = vmatpush2.msra.mxu0 0.0
    %1601 = vmatprep.subr.mxu0 0.0
    %1602 = vmatpush2.msra.mxu0 0.0
    %1603 = vmatprep.subr.mxu0 0.0
    %1604 = vmatpush2.msra.mxu0 0.0
    %1605 = vmatprep.subr.mxu0 0.0
    %1606 = vmatpush2.msra.mxu0 0.0
    %1607 = vmatprep.subr.mxu0 0.0
    %1608 = vmatpush2.msra.mxu0 0.0
    %1609 = vmatprep.subr.mxu0 0.0
    %1610 = vmatpush2.msra.mxu0 0.0
    %1611 = vmatprep.subr.mxu0 0.0
    %1612 = vmatpush2.msra.mxu0 0.0
    %1613 = vmatprep.subr.mxu0 0.0
    %1614 = vmatpush2.msra.mxu0 0.0
    %1615 = vmatprep.subr.mxu0 0.0
    %1616 = vmatpush2.msra.mxu0 0.0
    %1617 = vmatprep.subr.mxu0 0.0
    %1618 = vmatpush2.msra.mxu0 0.0
    %1619 = vmatprep.subr.mxu0 0.0
    %1620 = vmatpush2.msra.mxu0 0.0
    %1621 = vmatprep.subr.mxu0 0.0
    %1622 = vmatpush2.msra.mxu0 0.0
    %1623 = vmatprep.mubr.f32.mxu0 0.0
    %1624 = vmatmul.mubr.f32.gmra.mxu0 %v1557
    %v1625 = vpop.f32.mrf.mxu0
    %v1626 = vadd.f32 0.0, %v1625
    %v1627 = vpop.f32.mrf.mxu0
    %1628 = vdwg.mxu0
    %1630 = vrot.lane.b32.xlu0 %v1626, 32
    %v1631 = vpop.permute.xlu0 %1630
    %v1633 = vadd.f32 %v1206, %v1631
    %v1634 = vadd.f32 %v1633, %v1286
    %v1635 = vmul.f32 %v1634, 0.5
    %v1636 = vtanh.pop %v1635
    %v1637 = vadd.f32 %v1636, 1.0
    %v1638 = vmul.f32 %v1637, 0.5
    %1640 = vrot.lane.b32.xlu0 %v1286, 64
    %v1641 = vpop.permute.xlu0 %1640
    %v1643 = vmul.f32 %v1638, %v1641
    %1645 = vrot.lane.b32.xlu0 %v1643, 64
    %v1646 = vpop.permute.xlu0 %1645
    %v1648 = vadd.f32 %v1633, %v1646
    %v1649 = vtanh.pop %v1648
    %v1650 = vsub.f32 1.0, %v1638
    %1652 = vrot.lane.b32.xlu0 %v1649, 96
    %v1653 = vpop.permute.xlu0 %1652
    %v1655 = vmul.f32 %v1650, %v1653
    %v1656 = vmul.f32 %v1638, %v1202
    %v1657 = vadd.f32 %v1655, %v1656
    %s1658 = scalar_lea.vmem %s5, 16
    %v1659 = vld [vmem:[%s1658] sm:$0xff]
    %s1660 = scalar_lea.vmem [#allocation2], 16
    %v1661 = vld [vmem:[%s1660] sm:$0xff]
    %1663 = vrot.lane.b32.xlu0 %v1657, 64
    %v1664 = vpop.permute.xlu0 %1663
    %s1666 = scalar_lea.vmem [#allocation3], 16
    %1667 = vst.msk [vmem:[%s1666] sm:$0xff] %vm449, %v1664
    %v1668 = vld [vmem:[%s33] sm:$0xff]
    %v1669 = vld [vmem:[%s33 + $0x8] sm:$0xff]
    %v1670 = vld [vmem:[%s33 + $0x10] sm:$0xff]
    %v1671 = vld [vmem:[%s33 + $0x18] sm:$0xff]
    %v1672 = vsel %vm449, %v1664, 0
    %1674 = vmatprep.subr.mxu0 0.0
    %1675 = vmatpush1.msra.mxu0 0.0
    %1676 = vmatprep.subr.mxu0 0.0
    %1677 = vmatpush1.msra.mxu0 0.0
    %1678 = vmatprep.subr.mxu0 0.0
    %1679 = vmatpush1.msra.mxu0 0.0
    %1680 = vmatprep.subr.mxu0 0.0
    %1681 = vmatpush1.msra.mxu0 0.0
    %1682 = vmatprep.subr.mxu0 0.0
    %1683 = vmatpush1.msra.mxu0 0.0
    %1684 = vmatprep.subr.mxu0 0.0
    %1685 = vmatpush1.msra.mxu0 0.0
    %1686 = vmatprep.subr.mxu0 0.0
    %1687 = vmatpush1.msra.mxu0 0.0
    %1688 = vmatprep.subr.mxu0 0.0
    %1689 = vmatpush1.msra.mxu0 0.0
    %1690 = vmatprep.subr.mxu0 0.0
    %1691 = vmatpush1.msra.mxu0 0.0
    %1692 = vmatprep.subr.mxu0 0.0
    %1693 = vmatpush1.msra.mxu0 0.0
    %1694 = vmatprep.subr.mxu0 0.0
    %1695 = vmatpush1.msra.mxu0 0.0
    %1696 = vmatprep.subr.mxu0 0.0
    %1697 = vmatpush1.msra.mxu0 0.0
    %1698 = vmatprep.subr.mxu0 0.0
    %1699 = vmatpush1.msra.mxu0 %v1671
    %1700 = vmatprep.subr.mxu0 0.0
    %1701 = vmatpush1.msra.mxu0 %v1670
    %1702 = vmatprep.subr.mxu0 0.0
    %1703 = vmatpush1.msra.mxu0 %v1669
    %1704 = vmatprep.subr.mxu0 0.0
    %1705 = vmatpush1.msra.mxu0 %v1668
    %1706 = vmatprep.subr.mxu0 0.0
    %1707 = vmatpush2.msra.mxu0 0.0
    %1708 = vmatprep.subr.mxu0 0.0
    %1709 = vmatpush2.msra.mxu0 0.0
    %1710 = vmatprep.subr.mxu0 0.0
    %1711 = vmatpush2.msra.mxu0 0.0
    %1712 = vmatprep.subr.mxu0 0.0
    %1713 = vmatpush2.msra.mxu0 0.0
    %1714 = vmatprep.subr.mxu0 0.0
    %1715 = vmatpush2.msra.mxu0 0.0
    %1716 = vmatprep.subr.mxu0 0.0
    %1717 = vmatpush2.msra.mxu0 0.0
    %1718 = vmatprep.subr.mxu0 0.0
    %1719 = vmatpush2.msra.mxu0 0.0
    %1720 = vmatprep.subr.mxu0 0.0
    %1721 = vmatpush2.msra.mxu0 0.0
    %1722 = vmatprep.subr.mxu0 0.0
    %1723 = vmatpush2.msra.mxu0 0.0
    %1724 = vmatprep.subr.mxu0 0.0
    %1725 = vmatpush2.msra.mxu0 0.0
    %1726 = vmatprep.subr.mxu0 0.0
    %1727 = vmatpush2.msra.mxu0 0.0
    %1728 = vmatprep.subr.mxu0 0.0
    %1729 = vmatpush2.msra.mxu0 0.0
    %1730 = vmatprep.subr.mxu0 0.0
    %1731 = vmatpush2.msra.mxu0 0.0
    %1732 = vmatprep.subr.mxu0 0.0
    %1733 = vmatpush2.msra.mxu0 0.0
    %1734 = vmatprep.subr.mxu0 0.0
    %1735 = vmatpush2.msra.mxu0 0.0
    %1736 = vmatprep.subr.mxu0 0.0
    %1737 = vmatpush2.msra.mxu0 0.0
    %1738 = vmatprep.mubr.f32.mxu0 0.0
    %1739 = vmatmul.mubr.f32.gmra.mxu0 %v1672
    %v1740 = vpop.f32.mrf.mxu0
    %v1741 = vadd.f32 0.0, %v1740
    %v1742 = vpop.f32.mrf.mxu0
    %1743 = vdwg.mxu0
    %v1744 = vadd.f32 %v1661, %v1741
    %v1745 = vadd.f32 %v1744, %v733
    %v1746 = vmax.f32 %v1745, 0.0
    %v1747 = vld [vmem:[%s19] sm:$0xff]
    %v1748 = vld [vmem:[%s19 + $0x8] sm:$0xff]
    %v1749 = vld [vmem:[%s19 + $0x10] sm:$0xff]
    %v1750 = vld [vmem:[%s19 + $0x18] sm:$0xff]
    %v1752 = vsel %vm449, %v1746, 0
    %1754 = vmatprep.subr.mxu0 0.0
    %1755 = vmatpush1.msra.mxu0 0.0
    %1756 = vmatprep.subr.mxu0 0.0
    %1757 = vmatpush1.msra.mxu0 0.0
    %1758 = vmatprep.subr.mxu0 0.0
    %1759 = vmatpush1.msra.mxu0 0.0
    %1760 = vmatprep.subr.mxu0 0.0
    %1761 = vmatpush1.msra.mxu0 0.0
    %1762 = vmatprep.subr.mxu0 0.0
    %1763 = vmatpush1.msra.mxu0 0.0
    %1764 = vmatprep.subr.mxu0 0.0
    %1765 = vmatpush1.msra.mxu0 0.0
    %1766 = vmatprep.subr.mxu0 0.0
    %1767 = vmatpush1.msra.mxu0 0.0
    %1768 = vmatprep.subr.mxu0 0.0
    %1769 = vmatpush1.msra.mxu0 0.0
    %1770 = vmatprep.subr.mxu0 0.0
    %1771 = vmatpush1.msra.mxu0 0.0
    %1772 = vmatprep.subr.mxu0 0.0
    %1773 = vmatpush1.msra.mxu0 0.0
    %1774 = vmatprep.subr.mxu0 0.0
    %1775 = vmatpush1.msra.mxu0 0.0
    %1776 = vmatprep.subr.mxu0 0.0
    %1777 = vmatpush1.msra.mxu0 0.0
    %1778 = vmatprep.subr.mxu0 0.0
    %1779 = vmatpush1.msra.mxu0 %v1750
    %1780 = vmatprep.subr.mxu0 0.0
    %1781 = vmatpush1.msra.mxu0 %v1749
    %1782 = vmatprep.subr.mxu0 0.0
    %1783 = vmatpush1.msra.mxu0 %v1748
    %1784 = vmatprep.subr.mxu0 0.0
    %1785 = vmatpush1.msra.mxu0 %v1747
    %1786 = vmatprep.subr.mxu0 0.0
    %1787 = vmatpush2.msra.mxu0 0.0
    %1788 = vmatprep.subr.mxu0 0.0
    %1789 = vmatpush2.msra.mxu0 0.0
    %1790 = vmatprep.subr.mxu0 0.0
    %1791 = vmatpush2.msra.mxu0 0.0
    %1792 = vmatprep.subr.mxu0 0.0
    %1793 = vmatpush2.msra.mxu0 0.0
    %1794 = vmatprep.subr.mxu0 0.0
    %1795 = vmatpush2.msra.mxu0 0.0
    %1796 = vmatprep.subr.mxu0 0.0
    %1797 = vmatpush2.msra.mxu0 0.0
    %1798 = vmatprep.subr.mxu0 0.0
    %1799 = vmatpush2.msra.mxu0 0.0
    %1800 = vmatprep.subr.mxu0 0.0
    %1801 = vmatpush2.msra.mxu0 0.0
    %1802 = vmatprep.subr.mxu0 0.0
    %1803 = vmatpush2.msra.mxu0 0.0
    %1804 = vmatprep.subr.mxu0 0.0
    %1805 = vmatpush2.msra.mxu0 0.0
    %1806 = vmatprep.subr.mxu0 0.0
    %1807 = vmatpush2.msra.mxu0 0.0
    %1808 = vmatprep.subr.mxu0 0.0
    %1809 = vmatpush2.msra.mxu0 0.0
    %1810 = vmatprep.subr.mxu0 0.0
    %1811 = vmatpush2.msra.mxu0 0.0
    %1812 = vmatprep.subr.mxu0 0.0
    %1813 = vmatpush2.msra.mxu0 0.0
    %1814 = vmatprep.subr.mxu0 0.0
    %1815 = vmatpush2.msra.mxu0 0.0
    %1816 = vmatprep.subr.mxu0 0.0
    %1817 = vmatpush2.msra.mxu0 0.0
    %1818 = vmatprep.mubr.f32.mxu0 0.0
    %1819 = vmatmul.mubr.f32.gmra.mxu0 %v1752
    %v1820 = vpop.f32.mrf.mxu0
    %v1821 = vadd.f32 %v740, %v1820
    %v1822 = vpop.f32.mrf.mxu0
    %1823 = vdwg.mxu0
    %v1824 = vmax.f32 %v1821, 0.0
    %v1825 = vld [vmem:[%s23] sm:$0xff]
    %v1826 = vld [vmem:[%s23 + $0x8] sm:$0xff]
    %v1827 = vld [vmem:[%s23 + $0x10] sm:$0xff]
    %v1828 = vld [vmem:[%s23 + $0x18] sm:$0xff]
    %v1830 = vsel %vm449, %v1824, 0
    %1832 = vmatprep.subr.mxu0 0.0
    %1833 = vmatpush1.msra.mxu0 0.0
    %1834 = vmatprep.subr.mxu0 0.0
    %1835 = vmatpush1.msra.mxu0 0.0
    %1836 = vmatprep.subr.mxu0 0.0
    %1837 = vmatpush1.msra.mxu0 0.0
    %1838 = vmatprep.subr.mxu0 0.0
    %1839 = vmatpush1.msra.mxu0 0.0
    %1840 = vmatprep.subr.mxu0 0.0
    %1841 = vmatpush1.msra.mxu0 0.0
    %1842 = vmatprep.subr.mxu0 0.0
    %1843 = vmatpush1.msra.mxu0 0.0
    %1844 = vmatprep.subr.mxu0 0.0
    %1845 = vmatpush1.msra.mxu0 0.0
    %1846 = vmatprep.subr.mxu0 0.0
    %1847 = vmatpush1.msra.mxu0 0.0
    %1848 = vmatprep.subr.mxu0 0.0
    %1849 = vmatpush1.msra.mxu0 0.0
    %1850 = vmatprep.subr.mxu0 0.0
    %1851 = vmatpush1.msra.mxu0 0.0
    %1852 = vmatprep.subr.mxu0 0.0
    %1853 = vmatpush1.msra.mxu0 0.0
    %1854 = vmatprep.subr.mxu0 0.0
    %1855 = vmatpush1.msra.mxu0 0.0
    %1856 = vmatprep.subr.mxu0 0.0
    %1857 = vmatpush1.msra.mxu0 %v1828
    %1858 = vmatprep.subr.mxu0 0.0
    %1859 = vmatpush1.msra.mxu0 %v1827
    %1860 = vmatprep.subr.mxu0 0.0
    %1861 = vmatpush1.msra.mxu0 %v1826
    %1862 = vmatprep.subr.mxu0 0.0
    %1863 = vmatpush1.msra.mxu0 %v1825
    %1864 = vmatprep.subr.mxu0 0.0
    %1865 = vmatpush2.msra.mxu0 0.0
    %1866 = vmatprep.subr.mxu0 0.0
    %1867 = vmatpush2.msra.mxu0 0.0
    %1868 = vmatprep.subr.mxu0 0.0
    %1869 = vmatpush2.msra.mxu0 0.0
    %1870 = vmatprep.subr.mxu0 0.0
    %1871 = vmatpush2.msra.mxu0 0.0
    %1872 = vmatprep.subr.mxu0 0.0
    %1873 = vmatpush2.msra.mxu0 0.0
    %1874 = vmatprep.subr.mxu0 0.0
    %1875 = vmatpush2.msra.mxu0 0.0
    %1876 = vmatprep.subr.mxu0 0.0
    %1877 = vmatpush2.msra.mxu0 0.0
    %1878 = vmatprep.subr.mxu0 0.0
    %1879 = vmatpush2.msra.mxu0 0.0
    %1880 = vmatprep.subr.mxu0 0.0
    %1881 = vmatpush2.msra.mxu0 0.0
    %1882 = vmatprep.subr.mxu0 0.0
    %1883 = vmatpush2.msra.mxu0 0.0
    %1884 = vmatprep.subr.mxu0 0.0
    %1885 = vmatpush2.msra.mxu0 0.0
    %1886 = vmatprep.subr.mxu0 0.0
    %1887 = vmatpush2.msra.mxu0 0.0
    %1888 = vmatprep.subr.mxu0 0.0
    %1889 = vmatpush2.msra.mxu0 0.0
    %1890 = vmatprep.subr.mxu0 0.0
    %1891 = vmatpush2.msra.mxu0 0.0
    %1892 = vmatprep.subr.mxu0 0.0
    %1893 = vmatpush2.msra.mxu0 0.0
    %1894 = vmatprep.subr.mxu0 0.0
    %1895 = vmatpush2.msra.mxu0 0.0
    %1896 = vmatprep.mubr.f32.mxu0 0.0
    %1897 = vmatmul.mubr.f32.gmra.mxu0 %v1830
    %v1898 = vpop.f32.mrf.mxu0
    %v1899 = vadd.f32 %v747, %v1898
    %v1900 = vpop.f32.mrf.mxu0
    %1901 = vdwg.mxu0
    %s1902 = scalar_lea.vmem [#allocation5], 16
    %1903 = vst.msk [vmem:[%s1902] sm:$0xff] %vm449, %v1899
    %v1904 = vmax.f32 %v1899, 0.0
    %v1905 = vand.u32 2147483647, %v1899
    %v1906 = vsub.f32 0.0, %v1905
    %v1907 = vmul.f32 %v1906, 1.442695
    %v1908 = vpow.pop %v1907
    %v1909 = vadd.f32 %v1908, 1.0
    %v1910 = vlog2.pop %v1909
    %v1911 = vmul.f32 %v1910, 0.6931472
    %v1912 = vmul.f32 -0.5, %v1908
    %v1913 = vadd.f32 %v1912, 1.0
    %v1914 = vmul.f32 %v1913, %v1908
    %v1915 = vand.u32 2147483647, %v1908
    %vm1916 = vcmp.lt.f32.partialorder %v1915, 0.0004427343
    %v1917 = vsel %vm1916, %v1914, %v1911
    %v1918 = vadd.f32 %v1904, %v1917
    %1920 = vrot.lane.b32.xlu0 %v1659, 16
    %v1921 = vpop.permute.xlu0 %1920
    %v1923 = vmul.f32 %v1918, %v1921
    %1925 = vrot.lane.b32.xlu0 %v1923, 112
    %v1926 = vpop.permute.xlu0 %1925
    %v1928 = vadd.f32 %v1899, %v1926
    %v1929 = vld [vmem:[#allocation19] sm:$0xff]
    %v1930 = vld [vmem:[#allocation19 + $0x8] sm:$0xff]
    %v1932 = vsel %vm300, %v1928, 0
    %1934 = vmatprep.subr.mxu0 0.0
    %1935 = vmatpush1.msra.mxu0 0.0
    %1936 = vmatprep.subr.mxu0 0.0
    %1937 = vmatpush1.msra.mxu0 0.0
    %1938 = vmatprep.subr.mxu0 0.0
    %1939 = vmatpush1.msra.mxu0 0.0
    %1940 = vmatprep.subr.mxu0 0.0
    %1941 = vmatpush1.msra.mxu0 0.0
    %1942 = vmatprep.subr.mxu0 0.0
    %1943 = vmatpush1.msra.mxu0 0.0
    %1944 = vmatprep.subr.mxu0 0.0
    %1945 = vmatpush1.msra.mxu0 0.0
    %1946 = vmatprep.subr.mxu0 0.0
    %1947 = vmatpush1.msra.mxu0 0.0
    %1948 = vmatprep.subr.mxu0 0.0
    %1949 = vmatpush1.msra.mxu0 0.0
    %1950 = vmatprep.subr.mxu0 0.0
    %1951 = vmatpush1.msra.mxu0 0.0
    %1952 = vmatprep.subr.mxu0 0.0
    %1953 = vmatpush1.msra.mxu0 0.0
    %1954 = vmatprep.subr.mxu0 0.0
    %1955 = vmatpush1.msra.mxu0 0.0
    %1956 = vmatprep.subr.mxu0 0.0
    %1957 = vmatpush1.msra.mxu0 0.0
    %1958 = vmatprep.subr.mxu0 0.0
    %1959 = vmatpush1.msra.mxu0 0.0
    %1960 = vmatprep.subr.mxu0 0.0
    %1961 = vmatpush1.msra.mxu0 0.0
    %1962 = vmatprep.subr.mxu0 0.0
    %1963 = vmatpush1.msra.mxu0 %v1930
    %1964 = vmatprep.subr.mxu0 0.0
    %1965 = vmatpush1.msra.mxu0 %v1929
    %1966 = vmatprep.subr.mxu0 0.0
    %1967 = vmatpush2.msra.mxu0 0.0
    %1968 = vmatprep.subr.mxu0 0.0
    %1969 = vmatpush2.msra.mxu0 0.0
    %1970 = vmatprep.subr.mxu0 0.0
    %1971 = vmatpush2.msra.mxu0 0.0
    %1972 = vmatprep.subr.mxu0 0.0
    %1973 = vmatpush2.msra.mxu0 0.0
    %1974 = vmatprep.subr.mxu0 0.0
    %1975 = vmatpush2.msra.mxu0 0.0
    %1976 = vmatprep.subr.mxu0 0.0
    %1977 = vmatpush2.msra.mxu0 0.0
    %1978 = vmatprep.subr.mxu0 0.0
    %1979 = vmatpush2.msra.mxu0 0.0
    %1980 = vmatprep.subr.mxu0 0.0
    %1981 = vmatpush2.msra.mxu0 0.0
    %1982 = vmatprep.subr.mxu0 0.0
    %1983 = vmatpush2.msra.mxu0 0.0
    %1984 = vmatprep.subr.mxu0 0.0
    %1985 = vmatpush2.msra.mxu0 0.0
    %1986 = vmatprep.subr.mxu0 0.0
    %1987 = vmatpush2.msra.mxu0 0.0
    %1988 = vmatprep.subr.mxu0 0.0
    %1989 = vmatpush2.msra.mxu0 0.0
    %1990 = vmatprep.subr.mxu0 0.0
    %1991 = vmatpush2.msra.mxu0 0.0
    %1992 = vmatprep.subr.mxu0 0.0
    %1993 = vmatpush2.msra.mxu0 0.0
    %1994 = vmatprep.subr.mxu0 0.0
    %1995 = vmatpush2.msra.mxu0 0.0
    %1996 = vmatprep.subr.mxu0 0.0
    %1997 = vmatpush2.msra.mxu0 0.0
    %1998 = vmatprep.mubr.f32.mxu0 0.0
    %1999 = vmatmul.mubr.f32.gmra.mxu0 %v1932
    %v2000 = vpop.f32.mrf.mxu0
    %v2001 = vadd.f32 %v754, %v2000
    %v2002 = vpop.f32.mrf.mxu0
    %2003 = vdwg.mxu0
    %v2004 = vmax.f32 %v2001, 0.0
    %s2005 = scalar_lea.vmem [#allocation4], 16
    %2006 = vst.msk [vmem:[%s2005] sm:$0xff] %vm449, %v2004
    %v2007 = vld [vmem:[%s31] sm:$0xff]
    %v2008 = vld [vmem:[%s31 + $0x8] sm:$0xff]
    %v2009 = vld [vmem:[%s31 + $0x10] sm:$0xff]
    %v2010 = vld [vmem:[%s31 + $0x18] sm:$0xff]
    %v2012 = vsel %vm449, %v2004, 0
    %2014 = vmatprep.subr.mxu0 0.0
    %2015 = vmatpush1.msra.mxu0 0.0
    %2016 = vmatprep.subr.mxu0 0.0
    %2017 = vmatpush1.msra.mxu0 0.0
    %2018 = vmatprep.subr.mxu0 0.0
    %2019 = vmatpush1.msra.mxu0 0.0
    %2020 = vmatprep.subr.mxu0 0.0
    %2021 = vmatpush1.msra.mxu0 0.0
    %2022 = vmatprep.subr.mxu0 0.0
    %2023 = vmatpush1.msra.mxu0 0.0
    %2024 = vmatprep.subr.mxu0 0.0
    %2025 = vmatpush1.msra.mxu0 0.0
    %2026 = vmatprep.subr.mxu0 0.0
    %2027 = vmatpush1.msra.mxu0 0.0
    %2028 = vmatprep.subr.mxu0 0.0
    %2029 = vmatpush1.msra.mxu0 0.0
    %2030 = vmatprep.subr.mxu0 0.0
    %2031 = vmatpush1.msra.mxu0 0.0
    %2032 = vmatprep.subr.mxu0 0.0
    %2033 = vmatpush1.msra.mxu0 0.0
    %2034 = vmatprep.subr.mxu0 0.0
    %2035 = vmatpush1.msra.mxu0 0.0
    %2036 = vmatprep.subr.mxu0 0.0
    %2037 = vmatpush1.msra.mxu0 0.0
    %2038 = vmatprep.subr.mxu0 0.0
    %2039 = vmatpush1.msra.mxu0 %v2010
    %2040 = vmatprep.subr.mxu0 0.0
    %2041 = vmatpush1.msra.mxu0 %v2009
    %2042 = vmatprep.subr.mxu0 0.0
    %2043 = vmatpush1.msra.mxu0 %v2008
    %2044 = vmatprep.subr.mxu0 0.0
    %2045 = vmatpush1.msra.mxu0 %v2007
    %2046 = vmatprep.subr.mxu0 0.0
    %2047 = vmatpush2.msra.mxu0 0.0
    %2048 = vmatprep.subr.mxu0 0.0
    %2049 = vmatpush2.msra.mxu0 0.0
    %2050 = vmatprep.subr.mxu0 0.0
    %2051 = vmatpush2.msra.mxu0 0.0
    %2052 = vmatprep.subr.mxu0 0.0
    %2053 = vmatpush2.msra.mxu0 0.0
    %2054 = vmatprep.subr.mxu0 0.0
    %2055 = vmatpush2.msra.mxu0 0.0
    %2056 = vmatprep.subr.mxu0 0.0
    %2057 = vmatpush2.msra.mxu0 0.0
    %2058 = vmatprep.subr.mxu0 0.0
    %2059 = vmatpush2.msra.mxu0 0.0
    %2060 = vmatprep.subr.mxu0 0.0
    %2061 = vmatpush2.msra.mxu0 0.0
    %2062 = vmatprep.subr.mxu0 0.0
    %2063 = vmatpush2.msra.mxu0 0.0
    %2064 = vmatprep.subr.mxu0 0.0
    %2065 = vmatpush2.msra.mxu0 0.0
    %2066 = vmatprep.subr.mxu0 0.0
    %2067 = vmatpush2.msra.mxu0 0.0
    %2068 = vmatprep.subr.mxu0 0.0
    %2069 = vmatpush2.msra.mxu0 0.0
    %2070 = vmatprep.subr.mxu0 0.0
    %2071 = vmatpush2.msra.mxu0 0.0
    %2072 = vmatprep.subr.mxu0 0.0
    %2073 = vmatpush2.msra.mxu0 0.0
    %2074 = vmatprep.subr.mxu0 0.0
    %2075 = vmatpush2.msra.mxu0 0.0
    %2076 = vmatprep.subr.mxu0 0.0
    %2077 = vmatpush2.msra.mxu0 0.0
    %2078 = vmatprep.mubr.f32.mxu0 0.0
    %2079 = vmatmul.mubr.f32.gmra.mxu0 %v2012
    %v2080 = vpop.f32.mrf.mxu0
    %v2081 = vadd.f32 0.0, %v2080
    %v2082 = vpop.f32.mrf.mxu0
    %2083 = vdwg.mxu0
    %2085 = vrot.lane.b32.xlu0 %v2081, 32
    %v2086 = vpop.permute.xlu0 %2085
    %v2088 = vadd.f32 %v1661, %v2086
    %v2089 = vadd.f32 %v2088, %v1741
    %v2090 = vmul.f32 %v2089, 0.5
    %v2091 = vtanh.pop %v2090
    %v2092 = vadd.f32 %v2091, 1.0
    %v2093 = vmul.f32 %v2092, 0.5
    %2095 = vrot.lane.b32.xlu0 %v1741, 64
    %v2096 = vpop.permute.xlu0 %2095
    %v2098 = vmul.f32 %v2093, %v2096
    %2100 = vrot.lane.b32.xlu0 %v2098, 64
    %v2101 = vpop.permute.xlu0 %2100
    %v2103 = vadd.f32 %v2088, %v2101
    %v2104 = vtanh.pop %v2103
    %v2105 = vsub.f32 1.0, %v2093
    %2107 = vrot.lane.b32.xlu0 %v2104, 96
    %v2108 = vpop.permute.xlu0 %2107
    %v2110 = vmul.f32 %v2105, %v2108
    %v2111 = vmul.f32 %v2093, %v1657
    %v2112 = vadd.f32 %v2110, %v2111
    %s2113 = scalar_lea.vmem %s5, 24
    %v2114 = vld [vmem:[%s2113] sm:$0xff]
    %s2115 = scalar_lea.vmem [#allocation2], 24
    %v2116 = vld [vmem:[%s2115] sm:$0xff]
    %2118 = vrot.lane.b32.xlu0 %v2112, 64
    %v2119 = vpop.permute.xlu0 %2118
    %s2121 = scalar_lea.vmem [#allocation3], 24
    %2122 = vst.msk [vmem:[%s2121] sm:$0xff] %vm449, %v2119
    %v2123 = vld [vmem:[%s33] sm:$0xff]
    %v2124 = vld [vmem:[%s33 + $0x8] sm:$0xff]
    %v2125 = vld [vmem:[%s33 + $0x10] sm:$0xff]
    %v2126 = vld [vmem:[%s33 + $0x18] sm:$0xff]
    %v2127 = vsel %vm449, %v2119, 0
    %2129 = vmatprep.subr.mxu0 0.0
    %2130 = vmatpush1.msra.mxu0 0.0
    %2131 = vmatprep.subr.mxu0 0.0
    %2132 = vmatpush1.msra.mxu0 0.0
    %2133 = vmatprep.subr.mxu0 0.0
    %2134 = vmatpush1.msra.mxu0 0.0
    %2135 = vmatprep.subr.mxu0 0.0
    %2136 = vmatpush1.msra.mxu0 0.0
    %2137 = vmatprep.subr.mxu0 0.0
    %2138 = vmatpush1.msra.mxu0 0.0
    %2139 = vmatprep.subr.mxu0 0.0
    %2140 = vmatpush1.msra.mxu0 0.0
    %2141 = vmatprep.subr.mxu0 0.0
    %2142 = vmatpush1.msra.mxu0 0.0
    %2143 = vmatprep.subr.mxu0 0.0
    %2144 = vmatpush1.msra.mxu0 0.0
    %2145 = vmatprep.subr.mxu0 0.0
    %2146 = vmatpush1.msra.mxu0 0.0
    %2147 = vmatprep.subr.mxu0 0.0
    %2148 = vmatpush1.msra.mxu0 0.0
    %2149 = vmatprep.subr.mxu0 0.0
    %2150 = vmatpush1.msra.mxu0 0.0
    %2151 = vmatprep.subr.mxu0 0.0
    %2152 = vmatpush1.msra.mxu0 0.0
    %2153 = vmatprep.subr.mxu0 0.0
    %2154 = vmatpush1.msra.mxu0 %v2126
    %2155 = vmatprep.subr.mxu0 0.0
    %2156 = vmatpush1.msra.mxu0 %v2125
    %2157 = vmatprep.subr.mxu0 0.0
    %2158 = vmatpush1.msra.mxu0 %v2124
    %2159 = vmatprep.subr.mxu0 0.0
    %2160 = vmatpush1.msra.mxu0 %v2123
    %2161 = vmatprep.subr.mxu0 0.0
    %2162 = vmatpush2.msra.mxu0 0.0
    %2163 = vmatprep.subr.mxu0 0.0
    %2164 = vmatpush2.msra.mxu0 0.0
    %2165 = vmatprep.subr.mxu0 0.0
    %2166 = vmatpush2.msra.mxu0 0.0
    %2167 = vmatprep.subr.mxu0 0.0
    %2168 = vmatpush2.msra.mxu0 0.0
    %2169 = vmatprep.subr.mxu0 0.0
    %2170 = vmatpush2.msra.mxu0 0.0
    %2171 = vmatprep.subr.mxu0 0.0
    %2172 = vmatpush2.msra.mxu0 0.0
    %2173 = vmatprep.subr.mxu0 0.0
    %2174 = vmatpush2.msra.mxu0 0.0
    %2175 = vmatprep.subr.mxu0 0.0
    %2176 = vmatpush2.msra.mxu0 0.0
    %2177 = vmatprep.subr.mxu0 0.0
    %2178 = vmatpush2.msra.mxu0 0.0
    %2179 = vmatprep.subr.mxu0 0.0
    %2180 = vmatpush2.msra.mxu0 0.0
    %2181 = vmatprep.subr.mxu0 0.0
    %2182 = vmatpush2.msra.mxu0 0.0
    %2183 = vmatprep.subr.mxu0 0.0
    %2184 = vmatpush2.msra.mxu0 0.0
    %2185 = vmatprep.subr.mxu0 0.0
    %2186 = vmatpush2.msra.mxu0 0.0
    %2187 = vmatprep.subr.mxu0 0.0
    %2188 = vmatpush2.msra.mxu0 0.0
    %2189 = vmatprep.subr.mxu0 0.0
    %2190 = vmatpush2.msra.mxu0 0.0
    %2191 = vmatprep.subr.mxu0 0.0
    %2192 = vmatpush2.msra.mxu0 0.0
    %2193 = vmatprep.mubr.f32.mxu0 0.0
    %2194 = vmatmul.mubr.f32.gmra.mxu0 %v2127
    %v2195 = vpop.f32.mrf.mxu0
    %v2196 = vadd.f32 0.0, %v2195
    %v2197 = vpop.f32.mrf.mxu0
    %2198 = vdwg.mxu0
    %v2199 = vadd.f32 %v2116, %v2196
    %v2200 = vadd.f32 %v2199, %v733
    %v2201 = vmax.f32 %v2200, 0.0
    %v2202 = vld [vmem:[%s19] sm:$0xff]
    %v2203 = vld [vmem:[%s19 + $0x8] sm:$0xff]
    %v2204 = vld [vmem:[%s19 + $0x10] sm:$0xff]
    %v2205 = vld [vmem:[%s19 + $0x18] sm:$0xff]
    %v2207 = vsel %vm449, %v2201, 0
    %2209 = vmatprep.subr.mxu0 0.0
    %2210 = vmatpush1.msra.mxu0 0.0
    %2211 = vmatprep.subr.mxu0 0.0
    %2212 = vmatpush1.msra.mxu0 0.0
    %2213 = vmatprep.subr.mxu0 0.0
    %2214 = vmatpush1.msra.mxu0 0.0
    %2215 = vmatprep.subr.mxu0 0.0
    %2216 = vmatpush1.msra.mxu0 0.0
    %2217 = vmatprep.subr.mxu0 0.0
    %2218 = vmatpush1.msra.mxu0 0.0
    %2219 = vmatprep.subr.mxu0 0.0
    %2220 = vmatpush1.msra.mxu0 0.0
    %2221 = vmatprep.subr.mxu0 0.0
    %2222 = vmatpush1.msra.mxu0 0.0
    %2223 = vmatprep.subr.mxu0 0.0
    %2224 = vmatpush1.msra.mxu0 0.0
    %2225 = vmatprep.subr.mxu0 0.0
    %2226 = vmatpush1.msra.mxu0 0.0
    %2227 = vmatprep.subr.mxu0 0.0
    %2228 = vmatpush1.msra.mxu0 0.0
    %2229 = vmatprep.subr.mxu0 0.0
    %2230 = vmatpush1.msra.mxu0 0.0
    %2231 = vmatprep.subr.mxu0 0.0
    %2232 = vmatpush1.msra.mxu0 0.0
    %2233 = vmatprep.subr.mxu0 0.0
    %2234 = vmatpush1.msra.mxu0 %v2205
    %2235 = vmatprep.subr.mxu0 0.0
    %2236 = vmatpush1.msra.mxu0 %v2204
    %2237 = vmatprep.subr.mxu0 0.0
    %2238 = vmatpush1.msra.mxu0 %v2203
    %2239 = vmatprep.subr.mxu0 0.0
    %2240 = vmatpush1.msra.mxu0 %v2202
    %2241 = vmatprep.subr.mxu0 0.0
    %2242 = vmatpush2.msra.mxu0 0.0
    %2243 = vmatprep.subr.mxu0 0.0
    %2244 = vmatpush2.msra.mxu0 0.0
    %2245 = vmatprep.subr.mxu0 0.0
    %2246 = vmatpush2.msra.mxu0 0.0
    %2247 = vmatprep.subr.mxu0 0.0
    %2248 = vmatpush2.msra.mxu0 0.0
    %2249 = vmatprep.subr.mxu0 0.0
    %2250 = vmatpush2.msra.mxu0 0.0
    %2251 = vmatprep.subr.mxu0 0.0
    %2252 = vmatpush2.msra.mxu0 0.0
    %2253 = vmatprep.subr.mxu0 0.0
    %2254 = vmatpush2.msra.mxu0 0.0
    %2255 = vmatprep.subr.mxu0 0.0
    %2256 = vmatpush2.msra.mxu0 0.0
    %2257 = vmatprep.subr.mxu0 0.0
    %2258 = vmatpush2.msra.mxu0 0.0
    %2259 = vmatprep.subr.mxu0 0.0
    %2260 = vmatpush2.msra.mxu0 0.0
    %2261 = vmatprep.subr.mxu0 0.0
    %2262 = vmatpush2.msra.mxu0 0.0
    %2263 = vmatprep.subr.mxu0 0.0
    %2264 = vmatpush2.msra.mxu0 0.0
    %2265 = vmatprep.subr.mxu0 0.0
    %2266 = vmatpush2.msra.mxu0 0.0
    %2267 = vmatprep.subr.mxu0 0.0
    %2268 = vmatpush2.msra.mxu0 0.0
    %2269 = vmatprep.subr.mxu0 0.0
    %2270 = vmatpush2.msra.mxu0 0.0
    %2271 = vmatprep.subr.mxu0 0.0
    %2272 = vmatpush2.msra.mxu0 0.0
    %2273 = vmatprep.mubr.f32.mxu0 0.0
    %2274 = vmatmul.mubr.f32.gmra.mxu0 %v2207
    %v2275 = vpop.f32.mrf.mxu0
    %v2276 = vadd.f32 %v740, %v2275
    %v2277 = vpop.f32.mrf.mxu0
    %2278 = vdwg.mxu0
    %v2279 = vmax.f32 %v2276, 0.0
    %v2280 = vld [vmem:[%s23] sm:$0xff]
    %v2281 = vld [vmem:[%s23 + $0x8] sm:$0xff]
    %v2282 = vld [vmem:[%s23 + $0x10] sm:$0xff]
    %v2283 = vld [vmem:[%s23 + $0x18] sm:$0xff]
    %v2285 = vsel %vm449, %v2279, 0
    %2287 = vmatprep.subr.mxu0 0.0
    %2288 = vmatpush1.msra.mxu0 0.0
    %2289 = vmatprep.subr.mxu0 0.0
    %2290 = vmatpush1.msra.mxu0 0.0
    %2291 = vmatprep.subr.mxu0 0.0
    %2292 = vmatpush1.msra.mxu0 0.0
    %2293 = vmatprep.subr.mxu0 0.0
    %2294 = vmatpush1.msra.mxu0 0.0
    %2295 = vmatprep.subr.mxu0 0.0
    %2296 = vmatpush1.msra.mxu0 0.0
    %2297 = vmatprep.subr.mxu0 0.0
    %2298 = vmatpush1.msra.mxu0 0.0
    %2299 = vmatprep.subr.mxu0 0.0
    %2300 = vmatpush1.msra.mxu0 0.0
    %2301 = vmatprep.subr.mxu0 0.0
    %2302 = vmatpush1.msra.mxu0 0.0
    %2303 = vmatprep.subr.mxu0 0.0
    %2304 = vmatpush1.msra.mxu0 0.0
    %2305 = vmatprep.subr.mxu0 0.0
    %2306 = vmatpush1.msra.mxu0 0.0
    %2307 = vmatprep.subr.mxu0 0.0
    %2308 = vmatpush1.msra.mxu0 0.0
    %2309 = vmatprep.subr.mxu0 0.0
    %2310 = vmatpush1.msra.mxu0 0.0
    %2311 = vmatprep.subr.mxu0 0.0
    %2312 = vmatpush1.msra.mxu0 %v2283
    %2313 = vmatprep.subr.mxu0 0.0
    %2314 = vmatpush1.msra.mxu0 %v2282
    %2315 = vmatprep.subr.mxu0 0.0
    %2316 = vmatpush1.msra.mxu0 %v2281
    %2317 = vmatprep.subr.mxu0 0.0
    %2318 = vmatpush1.msra.mxu0 %v2280
    %2319 = vmatprep.subr.mxu0 0.0
    %2320 = vmatpush2.msra.mxu0 0.0
    %2321 = vmatprep.subr.mxu0 0.0
    %2322 = vmatpush2.msra.mxu0 0.0
    %2323 = vmatprep.subr.mxu0 0.0
    %2324 = vmatpush2.msra.mxu0 0.0
    %2325 = vmatprep.subr.mxu0 0.0
    %2326 = vmatpush2.msra.mxu0 0.0
    %2327 = vmatprep.subr.mxu0 0.0
    %2328 = vmatpush2.msra.mxu0 0.0
    %2329 = vmatprep.subr.mxu0 0.0
    %2330 = vmatpush2.msra.mxu0 0.0
    %2331 = vmatprep.subr.mxu0 0.0
    %2332 = vmatpush2.msra.mxu0 0.0
    %2333 = vmatprep.subr.mxu0 0.0
    %2334 = vmatpush2.msra.mxu0 0.0
    %2335 = vmatprep.subr.mxu0 0.0
    %2336 = vmatpush2.msra.mxu0 0.0
    %2337 = vmatprep.subr.mxu0 0.0
    %2338 = vmatpush2.msra.mxu0 0.0
    %2339 = vmatprep.subr.mxu0 0.0
    %2340 = vmatpush2.msra.mxu0 0.0
    %2341 = vmatprep.subr.mxu0 0.0
    %2342 = vmatpush2.msra.mxu0 0.0
    %2343 = vmatprep.subr.mxu0 0.0
    %2344 = vmatpush2.msra.mxu0 0.0
    %2345 = vmatprep.subr.mxu0 0.0
    %2346 = vmatpush2.msra.mxu0 0.0
    %2347 = vmatprep.subr.mxu0 0.0
    %2348 = vmatpush2.msra.mxu0 0.0
    %2349 = vmatprep.subr.mxu0 0.0
    %2350 = vmatpush2.msra.mxu0 0.0
    %2351 = vmatprep.mubr.f32.mxu0 0.0
    %2352 = vmatmul.mubr.f32.gmra.mxu0 %v2285
    %v2353 = vpop.f32.mrf.mxu0
    %v2354 = vadd.f32 %v747, %v2353
    %v2355 = vpop.f32.mrf.mxu0
    %2356 = vdwg.mxu0
    %s2357 = scalar_lea.vmem [#allocation5], 24
    %2358 = vst.msk [vmem:[%s2357] sm:$0xff] %vm449, %v2354
    %v2359 = vmax.f32 %v2354, 0.0
    %v2360 = vand.u32 2147483647, %v2354
    %v2361 = vsub.f32 0.0, %v2360
    %v2362 = vmul.f32 %v2361, 1.442695
    %v2363 = vpow.pop %v2362
    %v2364 = vadd.f32 %v2363, 1.0
    %v2365 = vlog2.pop %v2364
    %v2366 = vmul.f32 %v2365, 0.6931472
    %v2367 = vmul.f32 -0.5, %v2363
    %v2368 = vadd.f32 %v2367, 1.0
    %v2369 = vmul.f32 %v2368, %v2363
    %v2370 = vand.u32 2147483647, %v2363
    %vm2371 = vcmp.lt.f32.partialorder %v2370, 0.0004427343
    %v2372 = vsel %vm2371, %v2369, %v2366
    %v2373 = vadd.f32 %v2359, %v2372
    %2375 = vrot.lane.b32.xlu0 %v2114, 16
    %v2376 = vpop.permute.xlu0 %2375
    %v2378 = vmul.f32 %v2373, %v2376
    %2380 = vrot.lane.b32.xlu0 %v2378, 112
    %v2381 = vpop.permute.xlu0 %2380
    %v2383 = vadd.f32 %v2354, %v2381
    %v2384 = vld [vmem:[#allocation19] sm:$0xff]
    %v2385 = vld [vmem:[#allocation19 + $0x8] sm:$0xff]
    %v2387 = vsel %vm300, %v2383, 0
    %2389 = vmatprep.subr.mxu0 0.0
    %2390 = vmatpush1.msra.mxu0 0.0
    %2391 = vmatprep.subr.mxu0 0.0
    %2392 = vmatpush1.msra.mxu0 0.0
    %2393 = vmatprep.subr.mxu0 0.0
    %2394 = vmatpush1.msra.mxu0 0.0
    %2395 = vmatprep.subr.mxu0 0.0
    %2396 = vmatpush1.msra.mxu0 0.0
    %2397 = vmatprep.subr.mxu0 0.0
    %2398 = vmatpush1.msra.mxu0 0.0
    %2399 = vmatprep.subr.mxu0 0.0
    %2400 = vmatpush1.msra.mxu0 0.0
    %2401 = vmatprep.subr.mxu0 0.0
    %2402 = vmatpush1.msra.mxu0 0.0
    %2403 = vmatprep.subr.mxu0 0.0
    %2404 = vmatpush1.msra.mxu0 0.0
    %2405 = vmatprep.subr.mxu0 0.0
    %2406 = vmatpush1.msra.mxu0 0.0
    %2407 = vmatprep.subr.mxu0 0.0
    %2408 = vmatpush1.msra.mxu0 0.0
    %2409 = vmatprep.subr.mxu0 0.0
    %2410 = vmatpush1.msra.mxu0 0.0
    %2411 = vmatprep.subr.mxu0 0.0
    %2412 = vmatpush1.msra.mxu0 0.0
    %2413 = vmatprep.subr.mxu0 0.0
    %2414 = vmatpush1.msra.mxu0 0.0
    %2415 = vmatprep.subr.mxu0 0.0
    %2416 = vmatpush1.msra.mxu0 0.0
    %2417 = vmatprep.subr.mxu0 0.0
    %2418 = vmatpush1.msra.mxu0 %v2385
    %2419 = vmatprep.subr.mxu0 0.0
    %2420 = vmatpush1.msra.mxu0 %v2384
    %2421 = vmatprep.subr.mxu0 0.0
    %2422 = vmatpush2.msra.mxu0 0.0
    %2423 = vmatprep.subr.mxu0 0.0
    %2424 = vmatpush2.msra.mxu0 0.0
    %2425 = vmatprep.subr.mxu0 0.0
    %2426 = vmatpush2.msra.mxu0 0.0
    %2427 = vmatprep.subr.mxu0 0.0
    %2428 = vmatpush2.msra.mxu0 0.0
    %2429 = vmatprep.subr.mxu0 0.0
    %2430 = vmatpush2.msra.mxu0 0.0
    %2431 = vmatprep.subr.mxu0 0.0
    %2432 = vmatpush2.msra.mxu0 0.0
    %2433 = vmatprep.subr.mxu0 0.0
    %2434 = vmatpush2.msra.mxu0 0.0
    %2435 = vmatprep.subr.mxu0 0.0
    %2436 = vmatpush2.msra.mxu0 0.0
    %2437 = vmatprep.subr.mxu0 0.0
    %2438 = vmatpush2.msra.mxu0 0.0
    %2439 = vmatprep.subr.mxu0 0.0
    %2440 = vmatpush2.msra.mxu0 0.0
    %2441 = vmatprep.subr.mxu0 0.0
    %2442 = vmatpush2.msra.mxu0 0.0
    %2443 = vmatprep.subr.mxu0 0.0
    %2444 = vmatpush2.msra.mxu0 0.0
    %2445 = vmatprep.subr.mxu0 0.0
    %2446 = vmatpush2.msra.mxu0 0.0
    %2447 = vmatprep.subr.mxu0 0.0
    %2448 = vmatpush2.msra.mxu0 0.0
    %2449 = vmatprep.subr.mxu0 0.0
    %2450 = vmatpush2.msra.mxu0 0.0
    %2451 = vmatprep.subr.mxu0 0.0
    %2452 = vmatpush2.msra.mxu0 0.0
    %2453 = vmatprep.mubr.f32.mxu0 0.0
    %2454 = vmatmul.mubr.f32.gmra.mxu0 %v2387
    %v2455 = vpop.f32.mrf.mxu0
    %v2456 = vadd.f32 %v754, %v2455
    %v2457 = vpop.f32.mrf.mxu0
    %2458 = vdwg.mxu0
    %v2459 = vmax.f32 %v2456, 0.0
    %s2460 = scalar_lea.vmem [#allocation4], 24
    %2461 = vst.msk [vmem:[%s2460] sm:$0xff] %vm449, %v2459
    %v2462 = vld [vmem:[%s31] sm:$0xff]
    %v2463 = vld [vmem:[%s31 + $0x8] sm:$0xff]
    %v2464 = vld [vmem:[%s31 + $0x10] sm:$0xff]
    %v2465 = vld [vmem:[%s31 + $0x18] sm:$0xff]
    %v2467 = vsel %vm449, %v2459, 0
    %2469 = vmatprep.subr.mxu0 0.0
    %2470 = vmatpush1.msra.mxu0 0.0
    %2471 = vmatprep.subr.mxu0 0.0
    %2472 = vmatpush1.msra.mxu0 0.0
    %2473 = vmatprep.subr.mxu0 0.0
    %2474 = vmatpush1.msra.mxu0 0.0
    %2475 = vmatprep.subr.mxu0 0.0
    %2476 = vmatpush1.msra.mxu0 0.0
    %2477 = vmatprep.subr.mxu0 0.0
    %2478 = vmatpush1.msra.mxu0 0.0
    %2479 = vmatprep.subr.mxu0 0.0
    %2480 = vmatpush1.msra.mxu0 0.0
    %2481 = vmatprep.subr.mxu0 0.0
    %2482 = vmatpush1.msra.mxu0 0.0
    %2483 = vmatprep.subr.mxu0 0.0
    %2484 = vmatpush1.msra.mxu0 0.0
    %2485 = vmatprep.subr.mxu0 0.0
    %2486 = vmatpush1.msra.mxu0 0.0
    %2487 = vmatprep.subr.mxu0 0.0
    %2488 = vmatpush1.msra.mxu0 0.0
    %2489 = vmatprep.subr.mxu0 0.0
    %2490 = vmatpush1.msra.mxu0 0.0
    %2491 = vmatprep.subr.mxu0 0.0
    %2492 = vmatpush1.msra.mxu0 0.0
    %2493 = vmatprep.subr.mxu0 0.0
    %2494 = vmatpush1.msra.mxu0 %v2465
    %2495 = vmatprep.subr.mxu0 0.0
    %2496 = vmatpush1.msra.mxu0 %v2464
    %2497 = vmatprep.subr.mxu0 0.0
    %2498 = vmatpush1.msra.mxu0 %v2463
    %2499 = vmatprep.subr.mxu0 0.0
    %2500 = vmatpush1.msra.mxu0 %v2462
    %2501 = vmatprep.subr.mxu0 0.0
    %2502 = vmatpush2.msra.mxu0 0.0
    %2503 = vmatprep.subr.mxu0 0.0
    %2504 = vmatpush2.msra.mxu0 0.0
    %2505 = vmatprep.subr.mxu0 0.0
    %2506 = vmatpush2.msra.mxu0 0.0
    %2507 = vmatprep.subr.mxu0 0.0
    %2508 = vmatpush2.msra.mxu0 0.0
    %2509 = vmatprep.subr.mxu0 0.0
    %2510 = vmatpush2.msra.mxu0 0.0
    %2511 = vmatprep.subr.mxu0 0.0
    %2512 = vmatpush2.msra.mxu0 0.0
    %2513 = vmatprep.subr.mxu0 0.0
    %2514 = vmatpush2.msra.mxu0 0.0
    %2515 = vmatprep.subr.mxu0 0.0
    %2516 = vmatpush2.msra.mxu0 0.0
    %2517 = vmatprep.subr.mxu0 0.0
    %2518 = vmatpush2.msra.mxu0 0.0
    %2519 = vmatprep.subr.mxu0 0.0
    %2520 = vmatpush2.msra.mxu0 0.0
    %2521 = vmatprep.subr.mxu0 0.0
    %2522 = vmatpush2.msra.mxu0 0.0
    %2523 = vmatprep.subr.mxu0 0.0
    %2524 = vmatpush2.msra.mxu0 0.0
    %2525 = vmatprep.subr.mxu0 0.0
    %2526 = vmatpush2.msra.mxu0 0.0
    %2527 = vmatprep.subr.mxu0 0.0
    %2528 = vmatpush2.msra.mxu0 0.0
    %2529 = vmatprep.subr.mxu0 0.0
    %2530 = vmatpush2.msra.mxu0 0.0
    %2531 = vmatprep.subr.mxu0 0.0
    %2532 = vmatpush2.msra.mxu0 0.0
    %2533 = vmatprep.mubr.f32.mxu0 0.0
    %2534 = vmatmul.mubr.f32.gmra.mxu0 %v2467
    %v2535 = vpop.f32.mrf.mxu0
    %v2536 = vadd.f32 0.0, %v2535
    %v2537 = vpop.f32.mrf.mxu0
    %2538 = vdwg.mxu0
    %2540 = vrot.lane.b32.xlu0 %v2536, 32
    %v2541 = vpop.permute.xlu0 %2540
    %v2543 = vadd.f32 %v2116, %v2541
    %v2544 = vadd.f32 %v2543, %v2196
    %v2545 = vmul.f32 %v2544, 0.5
    %v2546 = vtanh.pop %v2545
    %v2547 = vadd.f32 %v2546, 1.0
    %v2548 = vmul.f32 %v2547, 0.5
    %2550 = vrot.lane.b32.xlu0 %v2196, 64
    %v2551 = vpop.permute.xlu0 %2550
    %v2553 = vmul.f32 %v2548, %v2551
    %2555 = vrot.lane.b32.xlu0 %v2553, 64
    %v2556 = vpop.permute.xlu0 %2555
    %v2558 = vadd.f32 %v2543, %v2556
    %v2559 = vtanh.pop %v2558
    %v2560 = vsub.f32 1.0, %v2548
    %2562 = vrot.lane.b32.xlu0 %v2559, 96
    %v2563 = vpop.permute.xlu0 %2562
    %v2565 = vmul.f32 %v2560, %v2563
    %v2566 = vmul.f32 %v2548, %v2112
    %v2567 = vadd.f32 %v2565, %v2566
    %s2568 = scalar_lea.vmem %s5, 32
    %v2569 = vld [vmem:[%s2568] sm:$0xff]
    %s2570 = scalar_lea.vmem [#allocation2], 32
    %v2571 = vld [vmem:[%s2570] sm:$0xff]
    %2573 = vrot.lane.b32.xlu0 %v2567, 64
    %v2574 = vpop.permute.xlu0 %2573
    %s2576 = scalar_lea.vmem [#allocation3], 32
    %2577 = vst.msk [vmem:[%s2576] sm:$0xff] %vm449, %v2574
    %v2578 = vld [vmem:[%s33] sm:$0xff]
    %v2579 = vld [vmem:[%s33 + $0x8] sm:$0xff]
    %v2580 = vld [vmem:[%s33 + $0x10] sm:$0xff]
    %v2581 = vld [vmem:[%s33 + $0x18] sm:$0xff]
    %v2582 = vsel %vm449, %v2574, 0
    %2584 = vmatprep.subr.mxu0 0.0
    %2585 = vmatpush1.msra.mxu0 0.0
    %2586 = vmatprep.subr.mxu0 0.0
    %2587 = vmatpush1.msra.mxu0 0.0
    %2588 = vmatprep.subr.mxu0 0.0
    %2589 = vmatpush1.msra.mxu0 0.0
    %2590 = vmatprep.subr.mxu0 0.0
    %2591 = vmatpush1.msra.mxu0 0.0
    %2592 = vmatprep.subr.mxu0 0.0
    %2593 = vmatpush1.msra.mxu0 0.0
    %2594 = vmatprep.subr.mxu0 0.0
    %2595 = vmatpush1.msra.mxu0 0.0
    %2596 = vmatprep.subr.mxu0 0.0
    %2597 = vmatpush1.msra.mxu0 0.0
    %2598 = vmatprep.subr.mxu0 0.0
    %2599 = vmatpush1.msra.mxu0 0.0
    %2600 = vmatprep.subr.mxu0 0.0
    %2601 = vmatpush1.msra.mxu0 0.0
    %2602 = vmatprep.subr.mxu0 0.0
    %2603 = vmatpush1.msra.mxu0 0.0
    %2604 = vmatprep.subr.mxu0 0.0
    %2605 = vmatpush1.msra.mxu0 0.0
    %2606 = vmatprep.subr.mxu0 0.0
    %2607 = vmatpush1.msra.mxu0 0.0
    %2608 = vmatprep.subr.mxu0 0.0
    %2609 = vmatpush1.msra.mxu0 %v2581
    %2610 = vmatprep.subr.mxu0 0.0
    %2611 = vmatpush1.msra.mxu0 %v2580
    %2612 = vmatprep.subr.mxu0 0.0
    %2613 = vmatpush1.msra.mxu0 %v2579
    %2614 = vmatprep.subr.mxu0 0.0
    %2615 = vmatpush1.msra.mxu0 %v2578
    %2616 = vmatprep.subr.mxu0 0.0
    %2617 = vmatpush2.msra.mxu0 0.0
    %2618 = vmatprep.subr.mxu0 0.0
    %2619 = vmatpush2.msra.mxu0 0.0
    %2620 = vmatprep.subr.mxu0 0.0
    %2621 = vmatpush2.msra.mxu0 0.0
    %2622 = vmatprep.subr.mxu0 0.0
    %2623 = vmatpush2.msra.mxu0 0.0
    %2624 = vmatprep.subr.mxu0 0.0
    %2625 = vmatpush2.msra.mxu0 0.0
    %2626 = vmatprep.subr.mxu0 0.0
    %2627 = vmatpush2.msra.mxu0 0.0
    %2628 = vmatprep.subr.mxu0 0.0
    %2629 = vmatpush2.msra.mxu0 0.0
    %2630 = vmatprep.subr.mxu0 0.0
    %2631 = vmatpush2.msra.mxu0 0.0
    %2632 = vmatprep.subr.mxu0 0.0
    %2633 = vmatpush2.msra.mxu0 0.0
    %2634 = vmatprep.subr.mxu0 0.0
    %2635 = vmatpush2.msra.mxu0 0.0
    %2636 = vmatprep.subr.mxu0 0.0
    %2637 = vmatpush2.msra.mxu0 0.0
    %2638 = vmatprep.subr.mxu0 0.0
    %2639 = vmatpush2.msra.mxu0 0.0
    %2640 = vmatprep.subr.mxu0 0.0
    %2641 = vmatpush2.msra.mxu0 0.0
    %2642 = vmatprep.subr.mxu0 0.0
    %2643 = vmatpush2.msra.mxu0 0.0
    %2644 = vmatprep.subr.mxu0 0.0
    %2645 = vmatpush2.msra.mxu0 0.0
    %2646 = vmatprep.subr.mxu0 0.0
    %2647 = vmatpush2.msra.mxu0 0.0
    %2648 = vmatprep.mubr.f32.mxu0 0.0
    %2649 = vmatmul.mubr.f32.gmra.mxu0 %v2582
    %v2650 = vpop.f32.mrf.mxu0
    %v2651 = vadd.f32 0.0, %v2650
    %v2652 = vpop.f32.mrf.mxu0
    %2653 = vdwg.mxu0
    %v2654 = vadd.f32 %v2571, %v2651
    %v2655 = vadd.f32 %v2654, %v733
    %v2656 = vmax.f32 %v2655, 0.0
    %v2657 = vld [vmem:[%s19] sm:$0xff]
    %v2658 = vld [vmem:[%s19 + $0x8] sm:$0xff]
    %v2659 = vld [vmem:[%s19 + $0x10] sm:$0xff]
    %v2660 = vld [vmem:[%s19 + $0x18] sm:$0xff]
    %v2662 = vsel %vm449, %v2656, 0
    %2664 = vmatprep.subr.mxu0 0.0
    %2665 = vmatpush1.msra.mxu0 0.0
    %2666 = vmatprep.subr.mxu0 0.0
    %2667 = vmatpush1.msra.mxu0 0.0
    %2668 = vmatprep.subr.mxu0 0.0
    %2669 = vmatpush1.msra.mxu0 0.0
    %2670 = vmatprep.subr.mxu0 0.0
    %2671 = vmatpush1.msra.mxu0 0.0
    %2672 = vmatprep.subr.mxu0 0.0
    %2673 = vmatpush1.msra.mxu0 0.0
    %2674 = vmatprep.subr.mxu0 0.0
    %2675 = vmatpush1.msra.mxu0 0.0
    %2676 = vmatprep.subr.mxu0 0.0
    %2677 = vmatpush1.msra.mxu0 0.0
    %2678 = vmatprep.subr.mxu0 0.0
    %2679 = vmatpush1.msra.mxu0 0.0
    %2680 = vmatprep.subr.mxu0 0.0
    %2681 = vmatpush1.msra.mxu0 0.0
    %2682 = vmatprep.subr.mxu0 0.0
    %2683 = vmatpush1.msra.mxu0 0.0
    %2684 = vmatprep.subr.mxu0 0.0
    %2685 = vmatpush1.msra.mxu0 0.0
    %2686 = vmatprep.subr.mxu0 0.0
    %2687 = vmatpush1.msra.mxu0 0.0
    %2688 = vmatprep.subr.mxu0 0.0
    %2689 = vmatpush1.msra.mxu0 %v2660
    %2690 = vmatprep.subr.mxu0 0.0
    %2691 = vmatpush1.msra.mxu0 %v2659
    %2692 = vmatprep.subr.mxu0 0.0
    %2693 = vmatpush1.msra.mxu0 %v2658
    %2694 = vmatprep.subr.mxu0 0.0
    %2695 = vmatpush1.msra.mxu0 %v2657
    %2696 = vmatprep.subr.mxu0 0.0
    %2697 = vmatpush2.msra.mxu0 0.0
    %2698 = vmatprep.subr.mxu0 0.0
    %2699 = vmatpush2.msra.mxu0 0.0
    %2700 = vmatprep.subr.mxu0 0.0
    %2701 = vmatpush2.msra.mxu0 0.0
    %2702 = vmatprep.subr.mxu0 0.0
    %2703 = vmatpush2.msra.mxu0 0.0
    %2704 = vmatprep.subr.mxu0 0.0
    %2705 = vmatpush2.msra.mxu0 0.0
    %2706 = vmatprep.subr.mxu0 0.0
    %2707 = vmatpush2.msra.mxu0 0.0
    %2708 = vmatprep.subr.mxu0 0.0
    %2709 = vmatpush2.msra.mxu0 0.0
    %2710 = vmatprep.subr.mxu0 0.0
    %2711 = vmatpush2.msra.mxu0 0.0
    %2712 = vmatprep.subr.mxu0 0.0
    %2713 = vmatpush2.msra.mxu0 0.0
    %2714 = vmatprep.subr.mxu0 0.0
    %2715 = vmatpush2.msra.mxu0 0.0
    %2716 = vmatprep.subr.mxu0 0.0
    %2717 = vmatpush2.msra.mxu0 0.0
    %2718 = vmatprep.subr.mxu0 0.0
    %2719 = vmatpush2.msra.mxu0 0.0
    %2720 = vmatprep.subr.mxu0 0.0
    %2721 = vmatpush2.msra.mxu0 0.0
    %2722 = vmatprep.subr.mxu0 0.0
    %2723 = vmatpush2.msra.mxu0 0.0
    %2724 = vmatprep.subr.mxu0 0.0
    %2725 = vmatpush2.msra.mxu0 0.0
    %2726 = vmatprep.subr.mxu0 0.0
    %2727 = vmatpush2.msra.mxu0 0.0
    %2728 = vmatprep.mubr.f32.mxu0 0.0
    %2729 = vmatmul.mubr.f32.gmra.mxu0 %v2662
    %v2730 = vpop.f32.mrf.mxu0
    %v2731 = vadd.f32 %v740, %v2730
    %v2732 = vpop.f32.mrf.mxu0
    %2733 = vdwg.mxu0
    %v2734 = vmax.f32 %v2731, 0.0
    %v2735 = vld [vmem:[%s23] sm:$0xff]
    %v2736 = vld [vmem:[%s23 + $0x8] sm:$0xff]
    %v2737 = vld [vmem:[%s23 + $0x10] sm:$0xff]
    %v2738 = vld [vmem:[%s23 + $0x18] sm:$0xff]
    %v2740 = vsel %vm449, %v2734, 0
    %2742 = vmatprep.subr.mxu0 0.0
    %2743 = vmatpush1.msra.mxu0 0.0
    %2744 = vmatprep.subr.mxu0 0.0
    %2745 = vmatpush1.msra.mxu0 0.0
    %2746 = vmatprep.subr.mxu0 0.0
    %2747 = vmatpush1.msra.mxu0 0.0
    %2748 = vmatprep.subr.mxu0 0.0
    %2749 = vmatpush1.msra.mxu0 0.0
    %2750 = vmatprep.subr.mxu0 0.0
    %2751 = vmatpush1.msra.mxu0 0.0
    %2752 = vmatprep.subr.mxu0 0.0
    %2753 = vmatpush1.msra.mxu0 0.0
    %2754 = vmatprep.subr.mxu0 0.0
    %2755 = vmatpush1.msra.mxu0 0.0
    %2756 = vmatprep.subr.mxu0 0.0
    %2757 = vmatpush1.msra.mxu0 0.0
    %2758 = vmatprep.subr.mxu0 0.0
    %2759 = vmatpush1.msra.mxu0 0.0
    %2760 = vmatprep.subr.mxu0 0.0
    %2761 = vmatpush1.msra.mxu0 0.0
    %2762 = vmatprep.subr.mxu0 0.0
    %2763 = vmatpush1.msra.mxu0 0.0
    %2764 = vmatprep.subr.mxu0 0.0
    %2765 = vmatpush1.msra.mxu0 0.0
    %2766 = vmatprep.subr.mxu0 0.0
    %2767 = vmatpush1.msra.mxu0 %v2738
    %2768 = vmatprep.subr.mxu0 0.0
    %2769 = vmatpush1.msra.mxu0 %v2737
    %2770 = vmatprep.subr.mxu0 0.0
    %2771 = vmatpush1.msra.mxu0 %v2736
    %2772 = vmatprep.subr.mxu0 0.0
    %2773 = vmatpush1.msra.mxu0 %v2735
    %2774 = vmatprep.subr.mxu0 0.0
    %2775 = vmatpush2.msra.mxu0 0.0
    %2776 = vmatprep.subr.mxu0 0.0
    %2777 = vmatpush2.msra.mxu0 0.0
    %2778 = vmatprep.subr.mxu0 0.0
    %2779 = vmatpush2.msra.mxu0 0.0
    %2780 = vmatprep.subr.mxu0 0.0
    %2781 = vmatpush2.msra.mxu0 0.0
    %2782 = vmatprep.subr.mxu0 0.0
    %2783 = vmatpush2.msra.mxu0 0.0
    %2784 = vmatprep.subr.mxu0 0.0
    %2785 = vmatpush2.msra.mxu0 0.0
    %2786 = vmatprep.subr.mxu0 0.0
    %2787 = vmatpush2.msra.mxu0 0.0
    %2788 = vmatprep.subr.mxu0 0.0
    %2789 = vmatpush2.msra.mxu0 0.0
    %2790 = vmatprep.subr.mxu0 0.0
    %2791 = vmatpush2.msra.mxu0 0.0
    %2792 = vmatprep.subr.mxu0 0.0
    %2793 = vmatpush2.msra.mxu0 0.0
    %2794 = vmatprep.subr.mxu0 0.0
    %2795 = vmatpush2.msra.mxu0 0.0
    %2796 = vmatprep.subr.mxu0 0.0
    %2797 = vmatpush2.msra.mxu0 0.0
    %2798 = vmatprep.subr.mxu0 0.0
    %2799 = vmatpush2.msra.mxu0 0.0
    %2800 = vmatprep.subr.mxu0 0.0
    %2801 = vmatpush2.msra.mxu0 0.0
    %2802 = vmatprep.subr.mxu0 0.0
    %2803 = vmatpush2.msra.mxu0 0.0
    %2804 = vmatprep.subr.mxu0 0.0
    %2805 = vmatpush2.msra.mxu0 0.0
    %2806 = vmatprep.mubr.f32.mxu0 0.0
    %2807 = vmatmul.mubr.f32.gmra.mxu0 %v2740
    %v2808 = vpop.f32.mrf.mxu0
    %v2809 = vadd.f32 %v747, %v2808
    %v2810 = vpop.f32.mrf.mxu0
    %2811 = vdwg.mxu0
    %s2812 = scalar_lea.vmem [#allocation5], 32
    %2813 = vst.msk [vmem:[%s2812] sm:$0xff] %vm449, %v2809
    %v2814 = vmax.f32 %v2809, 0.0
    %v2815 = vand.u32 2147483647, %v2809
    %v2816 = vsub.f32 0.0, %v2815
    %v2817 = vmul.f32 %v2816, 1.442695
    %v2818 = vpow.pop %v2817
    %v2819 = vadd.f32 %v2818, 1.0
    %v2820 = vlog2.pop %v2819
    %v2821 = vmul.f32 %v2820, 0.6931472
    %v2822 = vmul.f32 -0.5, %v2818
    %v2823 = vadd.f32 %v2822, 1.0
    %v2824 = vmul.f32 %v2823, %v2818
    %v2825 = vand.u32 2147483647, %v2818
    %vm2826 = vcmp.lt.f32.partialorder %v2825, 0.0004427343
    %v2827 = vsel %vm2826, %v2824, %v2821
    %v2828 = vadd.f32 %v2814, %v2827
    %2830 = vrot.lane.b32.xlu0 %v2569, 16
    %v2831 = vpop.permute.xlu0 %2830
    %v2833 = vmul.f32 %v2828, %v2831
    %2835 = vrot.lane.b32.xlu0 %v2833, 112
    %v2836 = vpop.permute.xlu0 %2835
    %v2838 = vadd.f32 %v2809, %v2836
    %v2839 = vld [vmem:[#allocation19] sm:$0xff]
    %v2840 = vld [vmem:[#allocation19 + $0x8] sm:$0xff]
    %v2842 = vsel %vm300, %v2838, 0
    %2844 = vmatprep.subr.mxu0 0.0
    %2845 = vmatpush1.msra.mxu0 0.0
    %2846 = vmatprep.subr.mxu0 0.0
    %2847 = vmatpush1.msra.mxu0 0.0
    %2848 = vmatprep.subr.mxu0 0.0
    %2849 = vmatpush1.msra.mxu0 0.0
    %2850 = vmatprep.subr.mxu0 0.0
    %2851 = vmatpush1.msra.mxu0 0.0
    %2852 = vmatprep.subr.mxu0 0.0
    %2853 = vmatpush1.msra.mxu0 0.0
    %2854 = vmatprep.subr.mxu0 0.0
    %2855 = vmatpush1.msra.mxu0 0.0
    %2856 = vmatprep.subr.mxu0 0.0
    %2857 = vmatpush1.msra.mxu0 0.0
    %2858 = vmatprep.subr.mxu0 0.0
    %2859 = vmatpush1.msra.mxu0 0.0
    %2860 = vmatprep.subr.mxu0 0.0
    %2861 = vmatpush1.msra.mxu0 0.0
    %2862 = vmatprep.subr.mxu0 0.0
    %2863 = vmatpush1.msra.mxu0 0.0
    %2864 = vmatprep.subr.mxu0 0.0
    %2865 = vmatpush1.msra.mxu0 0.0
    %2866 = vmatprep.subr.mxu0 0.0
    %2867 = vmatpush1.msra.mxu0 0.0
    %2868 = vmatprep.subr.mxu0 0.0
    %2869 = vmatpush1.msra.mxu0 0.0
    %2870 = vmatprep.subr.mxu0 0.0
    %2871 = vmatpush1.msra.mxu0 0.0
    %2872 = vmatprep.subr.mxu0 0.0
    %2873 = vmatpush1.msra.mxu0 %v2840
    %2874 = vmatprep.subr.mxu0 0.0
    %2875 = vmatpush1.msra.mxu0 %v2839
    %2876 = vmatprep.subr.mxu0 0.0
    %2877 = vmatpush2.msra.mxu0 0.0
    %2878 = vmatprep.subr.mxu0 0.0
    %2879 = vmatpush2.msra.mxu0 0.0
    %2880 = vmatprep.subr.mxu0 0.0
    %2881 = vmatpush2.msra.mxu0 0.0
    %2882 = vmatprep.subr.mxu0 0.0
    %2883 = vmatpush2.msra.mxu0 0.0
    %2884 = vmatprep.subr.mxu0 0.0
    %2885 = vmatpush2.msra.mxu0 0.0
    %2886 = vmatprep.subr.mxu0 0.0
    %2887 = vmatpush2.msra.mxu0 0.0
    %2888 = vmatprep.subr.mxu0 0.0
    %2889 = vmatpush2.msra.mxu0 0.0
    %2890 = vmatprep.subr.mxu0 0.0
    %2891 = vmatpush2.msra.mxu0 0.0
    %2892 = vmatprep.subr.mxu0 0.0
    %2893 = vmatpush2.msra.mxu0 0.0
    %2894 = vmatprep.subr.mxu0 0.0
    %2895 = vmatpush2.msra.mxu0 0.0
    %2896 = vmatprep.subr.mxu0 0.0
    %2897 = vmatpush2.msra.mxu0 0.0
    %2898 = vmatprep.subr.mxu0 0.0
    %2899 = vmatpush2.msra.mxu0 0.0
    %2900 = vmatprep.subr.mxu0 0.0
    %2901 = vmatpush2.msra.mxu0 0.0
    %2902 = vmatprep.subr.mxu0 0.0
    %2903 = vmatpush2.msra.mxu0 0.0
    %2904 = vmatprep.subr.mxu0 0.0
    %2905 = vmatpush2.msra.mxu0 0.0
    %2906 = vmatprep.subr.mxu0 0.0
    %2907 = vmatpush2.msra.mxu0 0.0
    %2908 = vmatprep.mubr.f32.mxu0 0.0
    %2909 = vmatmul.mubr.f32.gmra.mxu0 %v2842
    %v2910 = vpop.f32.mrf.mxu0
    %v2911 = vadd.f32 %v754, %v2910
    %v2912 = vpop.f32.mrf.mxu0
    %2913 = vdwg.mxu0
    %v2914 = vmax.f32 %v2911, 0.0
    %s2915 = scalar_lea.vmem [#allocation4], 32
    %2916 = vst.msk [vmem:[%s2915] sm:$0xff] %vm449, %v2914
    %v2917 = vld [vmem:[%s31] sm:$0xff]
    %v2918 = vld [vmem:[%s31 + $0x8] sm:$0xff]
    %v2919 = vld [vmem:[%s31 + $0x10] sm:$0xff]
    %v2920 = vld [vmem:[%s31 + $0x18] sm:$0xff]
    %v2922 = vsel %vm449, %v2914, 0
    %2924 = vmatprep.subr.mxu0 0.0
    %2925 = vmatpush1.msra.mxu0 0.0
    %2926 = vmatprep.subr.mxu0 0.0
    %2927 = vmatpush1.msra.mxu0 0.0
    %2928 = vmatprep.subr.mxu0 0.0
    %2929 = vmatpush1.msra.mxu0 0.0
    %2930 = vmatprep.subr.mxu0 0.0
    %2931 = vmatpush1.msra.mxu0 0.0
    %2932 = vmatprep.subr.mxu0 0.0
    %2933 = vmatpush1.msra.mxu0 0.0
    %2934 = vmatprep.subr.mxu0 0.0
    %2935 = vmatpush1.msra.mxu0 0.0
    %2936 = vmatprep.subr.mxu0 0.0
    %2937 = vmatpush1.msra.mxu0 0.0
    %2938 = vmatprep.subr.mxu0 0.0
    %2939 = vmatpush1.msra.mxu0 0.0
    %2940 = vmatprep.subr.mxu0 0.0
    %2941 = vmatpush1.msra.mxu0 0.0
    %2942 = vmatprep.subr.mxu0 0.0
    %2943 = vmatpush1.msra.mxu0 0.0
    %2944 = vmatprep.subr.mxu0 0.0
    %2945 = vmatpush1.msra.mxu0 0.0
    %2946 = vmatprep.subr.mxu0 0.0
    %2947 = vmatpush1.msra.mxu0 0.0
    %2948 = vmatprep.subr.mxu0 0.0
    %2949 = vmatpush1.msra.mxu0 %v2920
    %2950 = vmatprep.subr.mxu0 0.0
    %2951 = vmatpush1.msra.mxu0 %v2919
    %2952 = vmatprep.subr.mxu0 0.0
    %2953 = vmatpush1.msra.mxu0 %v2918
    %2954 = vmatprep.subr.mxu0 0.0
    %2955 = vmatpush1.msra.mxu0 %v2917
    %2956 = vmatprep.subr.mxu0 0.0
    %2957 = vmatpush2.msra.mxu0 0.0
    %2958 = vmatprep.subr.mxu0 0.0
    %2959 = vmatpush2.msra.mxu0 0.0
    %2960 = vmatprep.subr.mxu0 0.0
    %2961 = vmatpush2.msra.mxu0 0.0
    %2962 = vmatprep.subr.mxu0 0.0
    %2963 = vmatpush2.msra.mxu0 0.0
    %2964 = vmatprep.subr.mxu0 0.0
    %2965 = vmatpush2.msra.mxu0 0.0
    %2966 = vmatprep.subr.mxu0 0.0
    %2967 = vmatpush2.msra.mxu0 0.0
    %2968 = vmatprep.subr.mxu0 0.0
    %2969 = vmatpush2.msra.mxu0 0.0
    %2970 = vmatprep.subr.mxu0 0.0
    %2971 = vmatpush2.msra.mxu0 0.0
    %2972 = vmatprep.subr.mxu0 0.0
    %2973 = vmatpush2.msra.mxu0 0.0
    %2974 = vmatprep.subr.mxu0 0.0
    %2975 = vmatpush2.msra.mxu0 0.0
    %2976 = vmatprep.subr.mxu0 0.0
    %2977 = vmatpush2.msra.mxu0 0.0
    %2978 = vmatprep.subr.mxu0 0.0
    %2979 = vmatpush2.msra.mxu0 0.0
    %2980 = vmatprep.subr.mxu0 0.0
    %2981 = vmatpush2.msra.mxu0 0.0
    %2982 = vmatprep.subr.mxu0 0.0
    %2983 = vmatpush2.msra.mxu0 0.0
    %2984 = vmatprep.subr.mxu0 0.0
    %2985 = vmatpush2.msra.mxu0 0.0
    %2986 = vmatprep.subr.mxu0 0.0
    %2987 = vmatpush2.msra.mxu0 0.0
    %2988 = vmatprep.mubr.f32.mxu0 0.0
    %2989 = vmatmul.mubr.f32.gmra.mxu0 %v2922
    %v2990 = vpop.f32.mrf.mxu0
    %v2991 = vadd.f32 0.0, %v2990
    %v2992 = vpop.f32.mrf.mxu0
    %2993 = vdwg.mxu0
    %2995 = vrot.lane.b32.xlu0 %v2991, 32
    %v2996 = vpop.permute.xlu0 %2995
    %v2998 = vadd.f32 %v2571, %v2996
    %v2999 = vadd.f32 %v2998, %v2651
    %v3000 = vmul.f32 %v2999, 0.5
    %v3001 = vtanh.pop %v3000
    %v3002 = vadd.f32 %v3001, 1.0
    %v3003 = vmul.f32 %v3002, 0.5
    %3005 = vrot.lane.b32.xlu0 %v2651, 64
    %v3006 = vpop.permute.xlu0 %3005
    %v3008 = vmul.f32 %v3003, %v3006
    %3010 = vrot.lane.b32.xlu0 %v3008, 64
    %v3011 = vpop.permute.xlu0 %3010
    %v3013 = vadd.f32 %v2998, %v3011
    %v3014 = vtanh.pop %v3013
    %v3015 = vsub.f32 1.0, %v3003
    %3017 = vrot.lane.b32.xlu0 %v3014, 96
    %v3018 = vpop.permute.xlu0 %3017
    %v3020 = vmul.f32 %v3015, %v3018
    %v3021 = vmul.f32 %v3003, %v2567
    %v3022 = vadd.f32 %v3020, %v3021
    %s3023 = scalar_lea.vmem %s5, 40
    %v3024 = vld [vmem:[%s3023] sm:$0xff]
    %s3025 = scalar_lea.vmem [#allocation2], 40
    %v3026 = vld [vmem:[%s3025] sm:$0xff]
    %3028 = vrot.lane.b32.xlu0 %v3022, 64
    %v3029 = vpop.permute.xlu0 %3028
    %s3031 = scalar_lea.vmem [#allocation3], 40
    %3032 = vst.msk [vmem:[%s3031] sm:$0xff] %vm449, %v3029
    %v3033 = vld [vmem:[%s33] sm:$0xff]
    %v3034 = vld [vmem:[%s33 + $0x8] sm:$0xff]
    %v3035 = vld [vmem:[%s33 + $0x10] sm:$0xff]
    %v3036 = vld [vmem:[%s33 + $0x18] sm:$0xff]
    %v3037 = vsel %vm449, %v3029, 0
    %3039 = vmatprep.subr.mxu0 0.0
    %3040 = vmatpush1.msra.mxu0 0.0
    %3041 = vmatprep.subr.mxu0 0.0
    %3042 = vmatpush1.msra.mxu0 0.0
    %3043 = vmatprep.subr.mxu0 0.0
    %3044 = vmatpush1.msra.mxu0 0.0
    %3045 = vmatprep.subr.mxu0 0.0
    %3046 = vmatpush1.msra.mxu0 0.0
    %3047 = vmatprep.subr.mxu0 0.0
    %3048 = vmatpush1.msra.mxu0 0.0
    %3049 = vmatprep.subr.mxu0 0.0
    %3050 = vmatpush1.msra.mxu0 0.0
    %3051 = vmatprep.subr.mxu0 0.0
    %3052 = vmatpush1.msra.mxu0 0.0
    %3053 = vmatprep.subr.mxu0 0.0
    %3054 = vmatpush1.msra.mxu0 0.0
    %3055 = vmatprep.subr.mxu0 0.0
    %3056 = vmatpush1.msra.mxu0 0.0
    %3057 = vmatprep.subr.mxu0 0.0
    %3058 = vmatpush1.msra.mxu0 0.0
    %3059 = vmatprep.subr.mxu0 0.0
    %3060 = vmatpush1.msra.mxu0 0.0
    %3061 = vmatprep.subr.mxu0 0.0
    %3062 = vmatpush1.msra.mxu0 0.0
    %3063 = vmatprep.subr.mxu0 0.0
    %3064 = vmatpush1.msra.mxu0 %v3036
    %3065 = vmatprep.subr.mxu0 0.0
    %3066 = vmatpush1.msra.mxu0 %v3035
    %3067 = vmatprep.subr.mxu0 0.0
    %3068 = vmatpush1.msra.mxu0 %v3034
    %3069 = vmatprep.subr.mxu0 0.0
    %3070 = vmatpush1.msra.mxu0 %v3033
    %3071 = vmatprep.subr.mxu0 0.0
    %3072 = vmatpush2.msra.mxu0 0.0
    %3073 = vmatprep.subr.mxu0 0.0
    %3074 = vmatpush2.msra.mxu0 0.0
    %3075 = vmatprep.subr.mxu0 0.0
    %3076 = vmatpush2.msra.mxu0 0.0
    %3077 = vmatprep.subr.mxu0 0.0
    %3078 = vmatpush2.msra.mxu0 0.0
    %3079 = vmatprep.subr.mxu0 0.0
    %3080 = vmatpush2.msra.mxu0 0.0
    %3081 = vmatprep.subr.mxu0 0.0
    %3082 = vmatpush2.msra.mxu0 0.0
    %3083 = vmatprep.subr.mxu0 0.0
    %3084 = vmatpush2.msra.mxu0 0.0
    %3085 = vmatprep.subr.mxu0 0.0
    %3086 = vmatpush2.msra.mxu0 0.0
    %3087 = vmatprep.subr.mxu0 0.0
    %3088 = vmatpush2.msra.mxu0 0.0
    %3089 = vmatprep.subr.mxu0 0.0
    %3090 = vmatpush2.msra.mxu0 0.0
    %3091 = vmatprep.subr.mxu0 0.0
    %3092 = vmatpush2.msra.mxu0 0.0
    %3093 = vmatprep.subr.mxu0 0.0
    %3094 = vmatpush2.msra.mxu0 0.0
    %3095 = vmatprep.subr.mxu0 0.0
    %3096 = vmatpush2.msra.mxu0 0.0
    %3097 = vmatprep.subr.mxu0 0.0
    %3098 = vmatpush2.msra.mxu0 0.0
    %3099 = vmatprep.subr.mxu0 0.0
    %3100 = vmatpush2.msra.mxu0 0.0
    %3101 = vmatprep.subr.mxu0 0.0
    %3102 = vmatpush2.msra.mxu0 0.0
    %3103 = vmatprep.mubr.f32.mxu0 0.0
    %3104 = vmatmul.mubr.f32.gmra.mxu0 %v3037
    %v3105 = vpop.f32.mrf.mxu0
    %v3106 = vadd.f32 0.0, %v3105
    %v3107 = vpop.f32.mrf.mxu0
    %3108 = vdwg.mxu0
    %v3109 = vadd.f32 %v3026, %v3106
    %v3110 = vadd.f32 %v3109, %v733
    %v3111 = vmax.f32 %v3110, 0.0
    %v3112 = vld [vmem:[%s19] sm:$0xff]
    %v3113 = vld [vmem:[%s19 + $0x8] sm:$0xff]
    %v3114 = vld [vmem:[%s19 + $0x10] sm:$0xff]
    %v3115 = vld [vmem:[%s19 + $0x18] sm:$0xff]
    %v3117 = vsel %vm449, %v3111, 0
    %3119 = vmatprep.subr.mxu0 0.0
    %3120 = vmatpush1.msra.mxu0 0.0
    %3121 = vmatprep.subr.mxu0 0.0
    %3122 = vmatpush1.msra.mxu0 0.0
    %3123 = vmatprep.subr.mxu0 0.0
    %3124 = vmatpush1.msra.mxu0 0.0
    %3125 = vmatprep.subr.mxu0 0.0
    %3126 = vmatpush1.msra.mxu0 0.0
    %3127 = vmatprep.subr.mxu0 0.0
    %3128 = vmatpush1.msra.mxu0 0.0
    %3129 = vmatprep.subr.mxu0 0.0
    %3130 = vmatpush1.msra.mxu0 0.0
    %3131 = vmatprep.subr.mxu0 0.0
    %3132 = vmatpush1.msra.mxu0 0.0
    %3133 = vmatprep.subr.mxu0 0.0
    %3134 = vmatpush1.msra.mxu0 0.0
    %3135 = vmatprep.subr.mxu0 0.0
    %3136 = vmatpush1.msra.mxu0 0.0
    %3137 = vmatprep.subr.mxu0 0.0
    %3138 = vmatpush1.msra.mxu0 0.0
    %3139 = vmatprep.subr.mxu0 0.0
    %3140 = vmatpush1.msra.mxu0 0.0
    %3141 = vmatprep.subr.mxu0 0.0
    %3142 = vmatpush1.msra.mxu0 0.0
    %3143 = vmatprep.subr.mxu0 0.0
    %3144 = vmatpush1.msra.mxu0 %v3115
    %3145 = vmatprep.subr.mxu0 0.0
    %3146 = vmatpush1.msra.mxu0 %v3114
    %3147 = vmatprep.subr.mxu0 0.0
    %3148 = vmatpush1.msra.mxu0 %v3113
    %3149 = vmatprep.subr.mxu0 0.0
    %3150 = vmatpush1.msra.mxu0 %v3112
    %3151 = vmatprep.subr.mxu0 0.0
    %3152 = vmatpush2.msra.mxu0 0.0
    %3153 = vmatprep.subr.mxu0 0.0
    %3154 = vmatpush2.msra.mxu0 0.0
    %3155 = vmatprep.subr.mxu0 0.0
    %3156 = vmatpush2.msra.mxu0 0.0
    %3157 = vmatprep.subr.mxu0 0.0
    %3158 = vmatpush2.msra.mxu0 0.0
    %3159 = vmatprep.subr.mxu0 0.0
    %3160 = vmatpush2.msra.mxu0 0.0
    %3161 = vmatprep.subr.mxu0 0.0
    %3162 = vmatpush2.msra.mxu0 0.0
    %3163 = vmatprep.subr.mxu0 0.0
    %3164 = vmatpush2.msra.mxu0 0.0
    %3165 = vmatprep.subr.mxu0 0.0
    %3166 = vmatpush2.msra.mxu0 0.0
    %3167 = vmatprep.subr.mxu0 0.0
    %3168 = vmatpush2.msra.mxu0 0.0
    %3169 = vmatprep.subr.mxu0 0.0
    %3170 = vmatpush2.msra.mxu0 0.0
    %3171 = vmatprep.subr.mxu0 0.0
    %3172 = vmatpush2.msra.mxu0 0.0
    %3173 = vmatprep.subr.mxu0 0.0
    %3174 = vmatpush2.msra.mxu0 0.0
    %3175 = vmatprep.subr.mxu0 0.0
    %3176 = vmatpush2.msra.mxu0 0.0
    %3177 = vmatprep.subr.mxu0 0.0
    %3178 = vmatpush2.msra.mxu0 0.0
    %3179 = vmatprep.subr.mxu0 0.0
    %3180 = vmatpush2.msra.mxu0 0.0
    %3181 = vmatprep.subr.mxu0 0.0
    %3182 = vmatpush2.msra.mxu0 0.0
    %3183 = vmatprep.mubr.f32.mxu0 0.0
    %3184 = vmatmul.mubr.f32.gmra.mxu0 %v3117
    %v3185 = vpop.f32.mrf.mxu0
    %v3186 = vadd.f32 %v740, %v3185
    %v3187 = vpop.f32.mrf.mxu0
    %3188 = vdwg.mxu0
    %v3189 = vmax.f32 %v3186, 0.0
    %v3190 = vld [vmem:[%s23] sm:$0xff]
    %v3191 = vld [vmem:[%s23 + $0x8] sm:$0xff]
    %v3192 = vld [vmem:[%s23 + $0x10] sm:$0xff]
    %v3193 = vld [vmem:[%s23 + $0x18] sm:$0xff]
    %v3195 = vsel %vm449, %v3189, 0
    %3197 = vmatprep.subr.mxu0 0.0
    %3198 = vmatpush1.msra.mxu0 0.0
    %3199 = vmatprep.subr.mxu0 0.0
    %3200 = vmatpush1.msra.mxu0 0.0
    %3201 = vmatprep.subr.mxu0 0.0
    %3202 = vmatpush1.msra.mxu0 0.0
    %3203 = vmatprep.subr.mxu0 0.0
    %3204 = vmatpush1.msra.mxu0 0.0
    %3205 = vmatprep.subr.mxu0 0.0
    %3206 = vmatpush1.msra.mxu0 0.0
    %3207 = vmatprep.subr.mxu0 0.0
    %3208 = vmatpush1.msra.mxu0 0.0
    %3209 = vmatprep.subr.mxu0 0.0
    %3210 = vmatpush1.msra.mxu0 0.0
    %3211 = vmatprep.subr.mxu0 0.0
    %3212 = vmatpush1.msra.mxu0 0.0
    %3213 = vmatprep.subr.mxu0 0.0
    %3214 = vmatpush1.msra.mxu0 0.0
    %3215 = vmatprep.subr.mxu0 0.0
    %3216 = vmatpush1.msra.mxu0 0.0
    %3217 = vmatprep.subr.mxu0 0.0
    %3218 = vmatpush1.msra.mxu0 0.0
    %3219 = vmatprep.subr.mxu0 0.0
    %3220 = vmatpush1.msra.mxu0 0.0
    %3221 = vmatprep.subr.mxu0 0.0
    %3222 = vmatpush1.msra.mxu0 %v3193
    %3223 = vmatprep.subr.mxu0 0.0
    %3224 = vmatpush1.msra.mxu0 %v3192
    %3225 = vmatprep.subr.mxu0 0.0
    %3226 = vmatpush1.msra.mxu0 %v3191
    %3227 = vmatprep.subr.mxu0 0.0
    %3228 = vmatpush1.msra.mxu0 %v3190
    %3229 = vmatprep.subr.mxu0 0.0
    %3230 = vmatpush2.msra.mxu0 0.0
    %3231 = vmatprep.subr.mxu0 0.0
    %3232 = vmatpush2.msra.mxu0 0.0
    %3233 = vmatprep.subr.mxu0 0.0
    %3234 = vmatpush2.msra.mxu0 0.0
    %3235 = vmatprep.subr.mxu0 0.0
    %3236 = vmatpush2.msra.mxu0 0.0
    %3237 = vmatprep.subr.mxu0 0.0
    %3238 = vmatpush2.msra.mxu0 0.0
    %3239 = vmatprep.subr.mxu0 0.0
    %3240 = vmatpush2.msra.mxu0 0.0
    %3241 = vmatprep.subr.mxu0 0.0
    %3242 = vmatpush2.msra.mxu0 0.0
    %3243 = vmatprep.subr.mxu0 0.0
    %3244 = vmatpush2.msra.mxu0 0.0
    %3245 = vmatprep.subr.mxu0 0.0
    %3246 = vmatpush2.msra.mxu0 0.0
    %3247 = vmatprep.subr.mxu0 0.0
    %3248 = vmatpush2.msra.mxu0 0.0
    %3249 = vmatprep.subr.mxu0 0.0
    %3250 = vmatpush2.msra.mxu0 0.0
    %3251 = vmatprep.subr.mxu0 0.0
    %3252 = vmatpush2.msra.mxu0 0.0
    %3253 = vmatprep.subr.mxu0 0.0
    %3254 = vmatpush2.msra.mxu0 0.0
    %3255 = vmatprep.subr.mxu0 0.0
    %3256 = vmatpush2.msra.mxu0 0.0
    %3257 = vmatprep.subr.mxu0 0.0
    %3258 = vmatpush2.msra.mxu0 0.0
    %3259 = vmatprep.subr.mxu0 0.0
    %3260 = vmatpush2.msra.mxu0 0.0
    %3261 = vmatprep.mubr.f32.mxu0 0.0
    %3262 = vmatmul.mubr.f32.gmra.mxu0 %v3195
    %v3263 = vpop.f32.mrf.mxu0
    %v3264 = vadd.f32 %v747, %v3263
    %v3265 = vpop.f32.mrf.mxu0
    %3266 = vdwg.mxu0
    %s3267 = scalar_lea.vmem [#allocation5], 40
    %3268 = vst.msk [vmem:[%s3267] sm:$0xff] %vm449, %v3264
    %v3269 = vmax.f32 %v3264, 0.0
    %v3270 = vand.u32 2147483647, %v3264
    %v3271 = vsub.f32 0.0, %v3270
    %v3272 = vmul.f32 %v3271, 1.442695
    %v3273 = vpow.pop %v3272
    %v3274 = vadd.f32 %v3273, 1.0
    %v3275 = vlog2.pop %v3274
    %v3276 = vmul.f32 %v3275, 0.6931472
    %v3277 = vmul.f32 -0.5, %v3273
    %v3278 = vadd.f32 %v3277, 1.0
    %v3279 = vmul.f32 %v3278, %v3273
    %v3280 = vand.u32 2147483647, %v3273
    %vm3281 = vcmp.lt.f32.partialorder %v3280, 0.0004427343
    %v3282 = vsel %vm3281, %v3279, %v3276
    %v3283 = vadd.f32 %v3269, %v3282
    %3285 = vrot.lane.b32.xlu0 %v3024, 16
    %v3286 = vpop.permute.xlu0 %3285
    %v3288 = vmul.f32 %v3283, %v3286
    %3290 = vrot.lane.b32.xlu0 %v3288, 112
    %v3291 = vpop.permute.xlu0 %3290
    %v3293 = vadd.f32 %v3264, %v3291
    %v3294 = vld [vmem:[#allocation19] sm:$0xff]
    %v3295 = vld [vmem:[#allocation19 + $0x8] sm:$0xff]
    %v3297 = vsel %vm300, %v3293, 0
    %3299 = vmatprep.subr.mxu0 0.0
    %3300 = vmatpush1.msra.mxu0 0.0
    %3301 = vmatprep.subr.mxu0 0.0
    %3302 = vmatpush1.msra.mxu0 0.0
    %3303 = vmatprep.subr.mxu0 0.0
    %3304 = vmatpush1.msra.mxu0 0.0
    %3305 = vmatprep.subr.mxu0 0.0
    %3306 = vmatpush1.msra.mxu0 0.0
    %3307 = vmatprep.subr.mxu0 0.0
    %3308 = vmatpush1.msra.mxu0 0.0
    %3309 = vmatprep.subr.mxu0 0.0
    %3310 = vmatpush1.msra.mxu0 0.0
    %3311 = vmatprep.subr.mxu0 0.0
    %3312 = vmatpush1.msra.mxu0 0.0
    %3313 = vmatprep.subr.mxu0 0.0
    %3314 = vmatpush1.msra.mxu0 0.0
    %3315 = vmatprep.subr.mxu0 0.0
    %3316 = vmatpush1.msra.mxu0 0.0
    %3317 = vmatprep.subr.mxu0 0.0
    %3318 = vmatpush1.msra.mxu0 0.0
    %3319 = vmatprep.subr.mxu0 0.0
    %3320 = vmatpush1.msra.mxu0 0.0
    %3321 = vmatprep.subr.mxu0 0.0
    %3322 = vmatpush1.msra.mxu0 0.0
    %3323 = vmatprep.subr.mxu0 0.0
    %3324 = vmatpush1.msra.mxu0 0.0
    %3325 = vmatprep.subr.mxu0 0.0
    %3326 = vmatpush1.msra.mxu0 0.0
    %3327 = vmatprep.subr.mxu0 0.0
    %3328 = vmatpush1.msra.mxu0 %v3295
    %3329 = vmatprep.subr.mxu0 0.0
    %3330 = vmatpush1.msra.mxu0 %v3294
    %3331 = vmatprep.subr.mxu0 0.0
    %3332 = vmatpush2.msra.mxu0 0.0
    %3333 = vmatprep.subr.mxu0 0.0
    %3334 = vmatpush2.msra.mxu0 0.0
    %3335 = vmatprep.subr.mxu0 0.0
    %3336 = vmatpush2.msra.mxu0 0.0
    %3337 = vmatprep.subr.mxu0 0.0
    %3338 = vmatpush2.msra.mxu0 0.0
    %3339 = vmatprep.subr.mxu0 0.0
    %3340 = vmatpush2.msra.mxu0 0.0
    %3341 = vmatprep.subr.mxu0 0.0
    %3342 = vmatpush2.msra.mxu0 0.0
    %3343 = vmatprep.subr.mxu0 0.0
    %3344 = vmatpush2.msra.mxu0 0.0
    %3345 = vmatprep.subr.mxu0 0.0
    %3346 = vmatpush2.msra.mxu0 0.0
    %3347 = vmatprep.subr.mxu0 0.0
    %3348 = vmatpush2.msra.mxu0 0.0
    %3349 = vmatprep.subr.mxu0 0.0
    %3350 = vmatpush2.msra.mxu0 0.0
    %3351 = vmatprep.subr.mxu0 0.0
    %3352 = vmatpush2.msra.mxu0 0.0
    %3353 = vmatprep.subr.mxu0 0.0
    %3354 = vmatpush2.msra.mxu0 0.0
    %3355 = vmatprep.subr.mxu0 0.0
    %3356 = vmatpush2.msra.mxu0 0.0
    %3357 = vmatprep.subr.mxu0 0.0
    %3358 = vmatpush2.msra.mxu0 0.0
    %3359 = vmatprep.subr.mxu0 0.0
    %3360 = vmatpush2.msra.mxu0 0.0
    %3361 = vmatprep.subr.mxu0 0.0
    %3362 = vmatpush2.msra.mxu0 0.0
    %3363 = vmatprep.mubr.f32.mxu0 0.0
    %3364 = vmatmul.mubr.f32.gmra.mxu0 %v3297
    %v3365 = vpop.f32.mrf.mxu0
    %v3366 = vadd.f32 %v754, %v3365
    %v3367 = vpop.f32.mrf.mxu0
    %3368 = vdwg.mxu0
    %v3369 = vmax.f32 %v3366, 0.0
    %s3370 = scalar_lea.vmem [#allocation4], 40
    %3371 = vst.msk [vmem:[%s3370] sm:$0xff] %vm449, %v3369
    %v3372 = vld [vmem:[%s31] sm:$0xff]
    %v3373 = vld [vmem:[%s31 + $0x8] sm:$0xff]
    %v3374 = vld [vmem:[%s31 + $0x10] sm:$0xff]
    %v3375 = vld [vmem:[%s31 + $0x18] sm:$0xff]
    %v3377 = vsel %vm449, %v3369, 0
    %3379 = vmatprep.subr.mxu0 0.0
    %3380 = vmatpush1.msra.mxu0 0.0
    %3381 = vmatprep.subr.mxu0 0.0
    %3382 = vmatpush1.msra.mxu0 0.0
    %3383 = vmatprep.subr.mxu0 0.0
    %3384 = vmatpush1.msra.mxu0 0.0
    %3385 = vmatprep.subr.mxu0 0.0
    %3386 = vmatpush1.msra.mxu0 0.0
    %3387 = vmatprep.subr.mxu0 0.0
    %3388 = vmatpush1.msra.mxu0 0.0
    %3389 = vmatprep.subr.mxu0 0.0
    %3390 = vmatpush1.msra.mxu0 0.0
    %3391 = vmatprep.subr.mxu0 0.0
    %3392 = vmatpush1.msra.mxu0 0.0
    %3393 = vmatprep.subr.mxu0 0.0
    %3394 = vmatpush1.msra.mxu0 0.0
    %3395 = vmatprep.subr.mxu0 0.0
    %3396 = vmatpush1.msra.mxu0 0.0
    %3397 = vmatprep.subr.mxu0 0.0
    %3398 = vmatpush1.msra.mxu0 0.0
    %3399 = vmatprep.subr.mxu0 0.0
    %3400 = vmatpush1.msra.mxu0 0.0
    %3401 = vmatprep.subr.mxu0 0.0
    %3402 = vmatpush1.msra.mxu0 0.0
    %3403 = vmatprep.subr.mxu0 0.0
    %3404 = vmatpush1.msra.mxu0 %v3375
    %3405 = vmatprep.subr.mxu0 0.0
    %3406 = vmatpush1.msra.mxu0 %v3374
    %3407 = vmatprep.subr.mxu0 0.0
    %3408 = vmatpush1.msra.mxu0 %v3373
    %3409 = vmatprep.subr.mxu0 0.0
    %3410 = vmatpush1.msra.mxu0 %v3372
    %3411 = vmatprep.subr.mxu0 0.0
    %3412 = vmatpush2.msra.mxu0 0.0
    %3413 = vmatprep.subr.mxu0 0.0
    %3414 = vmatpush2.msra.mxu0 0.0
    %3415 = vmatprep.subr.mxu0 0.0
    %3416 = vmatpush2.msra.mxu0 0.0
    %3417 = vmatprep.subr.mxu0 0.0
    %3418 = vmatpush2.msra.mxu0 0.0
    %3419 = vmatprep.subr.mxu0 0.0
    %3420 = vmatpush2.msra.mxu0 0.0
    %3421 = vmatprep.subr.mxu0 0.0
    %3422 = vmatpush2.msra.mxu0 0.0
    %3423 = vmatprep.subr.mxu0 0.0
    %3424 = vmatpush2.msra.mxu0 0.0
    %3425 = vmatprep.subr.mxu0 0.0
    %3426 = vmatpush2.msra.mxu0 0.0
    %3427 = vmatprep.subr.mxu0 0.0
    %3428 = vmatpush2.msra.mxu0 0.0
    %3429 = vmatprep.subr.mxu0 0.0
    %3430 = vmatpush2.msra.mxu0 0.0
    %3431 = vmatprep.subr.mxu0 0.0
    %3432 = vmatpush2.msra.mxu0 0.0
    %3433 = vmatprep.subr.mxu0 0.0
    %3434 = vmatpush2.msra.mxu0 0.0
    %3435 = vmatprep.subr.mxu0 0.0
    %3436 = vmatpush2.msra.mxu0 0.0
    %3437 = vmatprep.subr.mxu0 0.0
    %3438 = vmatpush2.msra.mxu0 0.0
    %3439 = vmatprep.subr.mxu0 0.0
    %3440 = vmatpush2.msra.mxu0 0.0
    %3441 = vmatprep.subr.mxu0 0.0
    %3442 = vmatpush2.msra.mxu0 0.0
    %3443 = vmatprep.mubr.f32.mxu0 0.0
    %3444 = vmatmul.mubr.f32.gmra.mxu0 %v3377
    %v3445 = vpop.f32.mrf.mxu0
    %v3446 = vadd.f32 0.0, %v3445
    %v3447 = vpop.f32.mrf.mxu0
    %3448 = vdwg.mxu0
    %3450 = vrot.lane.b32.xlu0 %v3446, 32
    %v3451 = vpop.permute.xlu0 %3450
    %v3453 = vadd.f32 %v3026, %v3451
    %v3454 = vadd.f32 %v3453, %v3106
    %v3455 = vmul.f32 %v3454, 0.5
    %v3456 = vtanh.pop %v3455
    %v3457 = vadd.f32 %v3456, 1.0
    %v3458 = vmul.f32 %v3457, 0.5
    %3460 = vrot.lane.b32.xlu0 %v3106, 64
    %v3461 = vpop.permute.xlu0 %3460
    %v3463 = vmul.f32 %v3458, %v3461
    %3465 = vrot.lane.b32.xlu0 %v3463, 64
    %v3466 = vpop.permute.xlu0 %3465
    %v3468 = vadd.f32 %v3453, %v3466
    %v3469 = vtanh.pop %v3468
    %v3470 = vsub.f32 1.0, %v3458
    %3472 = vrot.lane.b32.xlu0 %v3469, 96
    %v3473 = vpop.permute.xlu0 %3472
    %v3475 = vmul.f32 %v3470, %v3473
    %v3476 = vmul.f32 %v3458, %v3022
    %v3477 = vadd.f32 %v3475, %v3476
    %s3478 = scalar_lea.vmem %s5, 48
    %v3479 = vld [vmem:[%s3478] sm:$0xff]
    %s3480 = scalar_lea.vmem [#allocation2], 48
    %v3481 = vld [vmem:[%s3480] sm:$0xff]
    %3483 = vrot.lane.b32.xlu0 %v3477, 64
    %v3484 = vpop.permute.xlu0 %3483
    %s3486 = scalar_lea.vmem [#allocation3], 48
    %3487 = vst.msk [vmem:[%s3486] sm:$0xff] %vm449, %v3484
    %v3488 = vld [vmem:[%s33] sm:$0xff]
    %v3489 = vld [vmem:[%s33 + $0x8] sm:$0xff]
    %v3490 = vld [vmem:[%s33 + $0x10] sm:$0xff]
    %v3491 = vld [vmem:[%s33 + $0x18] sm:$0xff]
    %v3492 = vsel %vm449, %v3484, 0
    %3494 = vmatprep.subr.mxu0 0.0
    %3495 = vmatpush1.msra.mxu0 0.0
    %3496 = vmatprep.subr.mxu0 0.0
    %3497 = vmatpush1.msra.mxu0 0.0
    %3498 = vmatprep.subr.mxu0 0.0
    %3499 = vmatpush1.msra.mxu0 0.0
    %3500 = vmatprep.subr.mxu0 0.0
    %3501 = vmatpush1.msra.mxu0 0.0
    %3502 = vmatprep.subr.mxu0 0.0
    %3503 = vmatpush1.msra.mxu0 0.0
    %3504 = vmatprep.subr.mxu0 0.0
    %3505 = vmatpush1.msra.mxu0 0.0
    %3506 = vmatprep.subr.mxu0 0.0
    %3507 = vmatpush1.msra.mxu0 0.0
    %3508 = vmatprep.subr.mxu0 0.0
    %3509 = vmatpush1.msra.mxu0 0.0
    %3510 = vmatprep.subr.mxu0 0.0
    %3511 = vmatpush1.msra.mxu0 0.0
    %3512 = vmatprep.subr.mxu0 0.0
    %3513 = vmatpush1.msra.mxu0 0.0
    %3514 = vmatprep.subr.mxu0 0.0
    %3515 = vmatpush1.msra.mxu0 0.0
    %3516 = vmatprep.subr.mxu0 0.0
    %3517 = vmatpush1.msra.mxu0 0.0
    %3518 = vmatprep.subr.mxu0 0.0
    %3519 = vmatpush1.msra.mxu0 %v3491
    %3520 = vmatprep.subr.mxu0 0.0
    %3521 = vmatpush1.msra.mxu0 %v3490
    %3522 = vmatprep.subr.mxu0 0.0
    %3523 = vmatpush1.msra.mxu0 %v3489
    %3524 = vmatprep.subr.mxu0 0.0
    %3525 = vmatpush1.msra.mxu0 %v3488
    %3526 = vmatprep.subr.mxu0 0.0
    %3527 = vmatpush2.msra.mxu0 0.0
    %3528 = vmatprep.subr.mxu0 0.0
    %3529 = vmatpush2.msra.mxu0 0.0
    %3530 = vmatprep.subr.mxu0 0.0
    %3531 = vmatpush2.msra.mxu0 0.0
    %3532 = vmatprep.subr.mxu0 0.0
    %3533 = vmatpush2.msra.mxu0 0.0
    %3534 = vmatprep.subr.mxu0 0.0
    %3535 = vmatpush2.msra.mxu0 0.0
    %3536 = vmatprep.subr.mxu0 0.0
    %3537 = vmatpush2.msra.mxu0 0.0
    %3538 = vmatprep.subr.mxu0 0.0
    %3539 = vmatpush2.msra.mxu0 0.0
    %3540 = vmatprep.subr.mxu0 0.0
    %3541 = vmatpush2.msra.mxu0 0.0
    %3542 = vmatprep.subr.mxu0 0.0
    %3543 = vmatpush2.msra.mxu0 0.0
    %3544 = vmatprep.subr.mxu0 0.0
    %3545 = vmatpush2.msra.mxu0 0.0
    %3546 = vmatprep.subr.mxu0 0.0
    %3547 = vmatpush2.msra.mxu0 0.0
    %3548 = vmatprep.subr.mxu0 0.0
    %3549 = vmatpush2.msra.mxu0 0.0
    %3550 = vmatprep.subr.mxu0 0.0
    %3551 = vmatpush2.msra.mxu0 0.0
    %3552 = vmatprep.subr.mxu0 0.0
    %3553 = vmatpush2.msra.mxu0 0.0
    %3554 = vmatprep.subr.mxu0 0.0
    %3555 = vmatpush2.msra.mxu0 0.0
    %3556 = vmatprep.subr.mxu0 0.0
    %3557 = vmatpush2.msra.mxu0 0.0
    %3558 = vmatprep.mubr.f32.mxu0 0.0
    %3559 = vmatmul.mubr.f32.gmra.mxu0 %v3492
    %v3560 = vpop.f32.mrf.mxu0
    %v3561 = vadd.f32 0.0, %v3560
    %v3562 = vpop.f32.mrf.mxu0
    %3563 = vdwg.mxu0
    %v3564 = vadd.f32 %v3481, %v3561
    %v3565 = vadd.f32 %v3564, %v733
    %v3566 = vmax.f32 %v3565, 0.0
    %v3567 = vld [vmem:[%s19] sm:$0xff]
    %v3568 = vld [vmem:[%s19 + $0x8] sm:$0xff]
    %v3569 = vld [vmem:[%s19 + $0x10] sm:$0xff]
    %v3570 = vld [vmem:[%s19 + $0x18] sm:$0xff]
    %v3572 = vsel %vm449, %v3566, 0
    %3574 = vmatprep.subr.mxu0 0.0
    %3575 = vmatpush1.msra.mxu0 0.0
    %3576 = vmatprep.subr.mxu0 0.0
    %3577 = vmatpush1.msra.mxu0 0.0
    %3578 = vmatprep.subr.mxu0 0.0
    %3579 = vmatpush1.msra.mxu0 0.0
    %3580 = vmatprep.subr.mxu0 0.0
    %3581 = vmatpush1.msra.mxu0 0.0
    %3582 = vmatprep.subr.mxu0 0.0
    %3583 = vmatpush1.msra.mxu0 0.0
    %3584 = vmatprep.subr.mxu0 0.0
    %3585 = vmatpush1.msra.mxu0 0.0
    %3586 = vmatprep.subr.mxu0 0.0
    %3587 = vmatpush1.msra.mxu0 0.0
    %3588 = vmatprep.subr.mxu0 0.0
    %3589 = vmatpush1.msra.mxu0 0.0
    %3590 = vmatprep.subr.mxu0 0.0
    %3591 = vmatpush1.msra.mxu0 0.0
    %3592 = vmatprep.subr.mxu0 0.0
    %3593 = vmatpush1.msra.mxu0 0.0
    %3594 = vmatprep.subr.mxu0 0.0
    %3595 = vmatpush1.msra.mxu0 0.0
    %3596 = vmatprep.subr.mxu0 0.0
    %3597 = vmatpush1.msra.mxu0 0.0
    %3598 = vmatprep.subr.mxu0 0.0
    %3599 = vmatpush1.msra.mxu0 %v3570
    %3600 = vmatprep.subr.mxu0 0.0
    %3601 = vmatpush1.msra.mxu0 %v3569
    %3602 = vmatprep.subr.mxu0 0.0
    %3603 = vmatpush1.msra.mxu0 %v3568
    %3604 = vmatprep.subr.mxu0 0.0
    %3605 = vmatpush1.msra.mxu0 %v3567
    %3606 = vmatprep.subr.mxu0 0.0
    %3607 = vmatpush2.msra.mxu0 0.0
    %3608 = vmatprep.subr.mxu0 0.0
    %3609 = vmatpush2.msra.mxu0 0.0
    %3610 = vmatprep.subr.mxu0 0.0
    %3611 = vmatpush2.msra.mxu0 0.0
    %3612 = vmatprep.subr.mxu0 0.0
    %3613 = vmatpush2.msra.mxu0 0.0
    %3614 = vmatprep.subr.mxu0 0.0
    %3615 = vmatpush2.msra.mxu0 0.0
    %3616 = vmatprep.subr.mxu0 0.0
    %3617 = vmatpush2.msra.mxu0 0.0
    %3618 = vmatprep.subr.mxu0 0.0
    %3619 = vmatpush2.msra.mxu0 0.0
    %3620 = vmatprep.subr.mxu0 0.0
    %3621 = vmatpush2.msra.mxu0 0.0
    %3622 = vmatprep.subr.mxu0 0.0
    %3623 = vmatpush2.msra.mxu0 0.0
    %3624 = vmatprep.subr.mxu0 0.0
    %3625 = vmatpush2.msra.mxu0 0.0
    %3626 = vmatprep.subr.mxu0 0.0
    %3627 = vmatpush2.msra.mxu0 0.0
    %3628 = vmatprep.subr.mxu0 0.0
    %3629 = vmatpush2.msra.mxu0 0.0
    %3630 = vmatprep.subr.mxu0 0.0
    %3631 = vmatpush2.msra.mxu0 0.0
    %3632 = vmatprep.subr.mxu0 0.0
    %3633 = vmatpush2.msra.mxu0 0.0
    %3634 = vmatprep.subr.mxu0 0.0
    %3635 = vmatpush2.msra.mxu0 0.0
    %3636 = vmatprep.subr.mxu0 0.0
    %3637 = vmatpush2.msra.mxu0 0.0
    %3638 = vmatprep.mubr.f32.mxu0 0.0
    %3639 = vmatmul.mubr.f32.gmra.mxu0 %v3572
    %v3640 = vpop.f32.mrf.mxu0
    %v3641 = vadd.f32 %v740, %v3640
    %v3642 = vpop.f32.mrf.mxu0
    %3643 = vdwg.mxu0
    %v3644 = vmax.f32 %v3641, 0.0
    %v3645 = vld [vmem:[%s23] sm:$0xff]
    %v3646 = vld [vmem:[%s23 + $0x8] sm:$0xff]
    %v3647 = vld [vmem:[%s23 + $0x10] sm:$0xff]
    %v3648 = vld [vmem:[%s23 + $0x18] sm:$0xff]
    %v3650 = vsel %vm449, %v3644, 0
    %3652 = vmatprep.subr.mxu0 0.0
    %3653 = vmatpush1.msra.mxu0 0.0
    %3654 = vmatprep.subr.mxu0 0.0
    %3655 = vmatpush1.msra.mxu0 0.0
    %3656 = vmatprep.subr.mxu0 0.0
    %3657 = vmatpush1.msra.mxu0 0.0
    %3658 = vmatprep.subr.mxu0 0.0
    %3659 = vmatpush1.msra.mxu0 0.0
    %3660 = vmatprep.subr.mxu0 0.0
    %3661 = vmatpush1.msra.mxu0 0.0
    %3662 = vmatprep.subr.mxu0 0.0
    %3663 = vmatpush1.msra.mxu0 0.0
    %3664 = vmatprep.subr.mxu0 0.0
    %3665 = vmatpush1.msra.mxu0 0.0
    %3666 = vmatprep.subr.mxu0 0.0
    %3667 = vmatpush1.msra.mxu0 0.0
    %3668 = vmatprep.subr.mxu0 0.0
    %3669 = vmatpush1.msra.mxu0 0.0
    %3670 = vmatprep.subr.mxu0 0.0
    %3671 = vmatpush1.msra.mxu0 0.0
    %3672 = vmatprep.subr.mxu0 0.0
    %3673 = vmatpush1.msra.mxu0 0.0
    %3674 = vmatprep.subr.mxu0 0.0
    %3675 = vmatpush1.msra.mxu0 0.0
    %3676 = vmatprep.subr.mxu0 0.0
    %3677 = vmatpush1.msra.mxu0 %v3648
    %3678 = vmatprep.subr.mxu0 0.0
    %3679 = vmatpush1.msra.mxu0 %v3647
    %3680 = vmatprep.subr.mxu0 0.0
    %3681 = vmatpush1.msra.mxu0 %v3646
    %3682 = vmatprep.subr.mxu0 0.0
    %3683 = vmatpush1.msra.mxu0 %v3645
    %3684 = vmatprep.subr.mxu0 0.0
    %3685 = vmatpush2.msra.mxu0 0.0
    %3686 = vmatprep.subr.mxu0 0.0
    %3687 = vmatpush2.msra.mxu0 0.0
    %3688 = vmatprep.subr.mxu0 0.0
    %3689 = vmatpush2.msra.mxu0 0.0
    %3690 = vmatprep.subr.mxu0 0.0
    %3691 = vmatpush2.msra.mxu0 0.0
    %3692 = vmatprep.subr.mxu0 0.0
    %3693 = vmatpush2.msra.mxu0 0.0
    %3694 = vmatprep.subr.mxu0 0.0
    %3695 = vmatpush2.msra.mxu0 0.0
    %3696 = vmatprep.subr.mxu0 0.0
    %3697 = vmatpush2.msra.mxu0 0.0
    %3698 = vmatprep.subr.mxu0 0.0
    %3699 = vmatpush2.msra.mxu0 0.0
    %3700 = vmatprep.subr.mxu0 0.0
    %3701 = vmatpush2.msra.mxu0 0.0
    %3702 = vmatprep.subr.mxu0 0.0
    %3703 = vmatpush2.msra.mxu0 0.0
    %3704 = vmatprep.subr.mxu0 0.0
    %3705 = vmatpush2.msra.mxu0 0.0
    %3706 = vmatprep.subr.mxu0 0.0
    %3707 = vmatpush2.msra.mxu0 0.0
    %3708 = vmatprep.subr.mxu0 0.0
    %3709 = vmatpush2.msra.mxu0 0.0
    %3710 = vmatprep.subr.mxu0 0.0
    %3711 = vmatpush2.msra.mxu0 0.0
    %3712 = vmatprep.subr.mxu0 0.0
    %3713 = vmatpush2.msra.mxu0 0.0
    %3714 = vmatprep.subr.mxu0 0.0
    %3715 = vmatpush2.msra.mxu0 0.0
    %3716 = vmatprep.mubr.f32.mxu0 0.0
    %3717 = vmatmul.mubr.f32.gmra.mxu0 %v3650
    %v3718 = vpop.f32.mrf.mxu0
    %v3719 = vadd.f32 %v747, %v3718
    %v3720 = vpop.f32.mrf.mxu0
    %3721 = vdwg.mxu0
    %s3722 = scalar_lea.vmem [#allocation5], 48
    %3723 = vst.msk [vmem:[%s3722] sm:$0xff] %vm449, %v3719
    %v3724 = vmax.f32 %v3719, 0.0
    %v3725 = vand.u32 2147483647, %v3719
    %v3726 = vsub.f32 0.0, %v3725
    %v3727 = vmul.f32 %v3726, 1.442695
    %v3728 = vpow.pop %v3727
    %v3729 = vadd.f32 %v3728, 1.0
    %v3730 = vlog2.pop %v3729
    %v3731 = vmul.f32 %v3730, 0.6931472
    %v3732 = vmul.f32 -0.5, %v3728
    %v3733 = vadd.f32 %v3732, 1.0
    %v3734 = vmul.f32 %v3733, %v3728
    %v3735 = vand.u32 2147483647, %v3728
    %vm3736 = vcmp.lt.f32.partialorder %v3735, 0.0004427343
    %v3737 = vsel %vm3736, %v3734, %v3731
    %v3738 = vadd.f32 %v3724, %v3737
    %3740 = vrot.lane.b32.xlu0 %v3479, 16
    %v3741 = vpop.permute.xlu0 %3740
    %v3743 = vmul.f32 %v3738, %v3741
    %3745 = vrot.lane.b32.xlu0 %v3743, 112
    %v3746 = vpop.permute.xlu0 %3745
    %v3748 = vadd.f32 %v3719, %v3746
    %v3749 = vld [vmem:[#allocation19] sm:$0xff]
    %v3750 = vld [vmem:[#allocation19 + $0x8] sm:$0xff]
    %v3752 = vsel %vm300, %v3748, 0
    %3754 = vmatprep.subr.mxu0 0.0
    %3755 = vmatpush1.msra.mxu0 0.0
    %3756 = vmatprep.subr.mxu0 0.0
    %3757 = vmatpush1.msra.mxu0 0.0
    %3758 = vmatprep.subr.mxu0 0.0
    %3759 = vmatpush1.msra.mxu0 0.0
    %3760 = vmatprep.subr.mxu0 0.0
    %3761 = vmatpush1.msra.mxu0 0.0
    %3762 = vmatprep.subr.mxu0 0.0
    %3763 = vmatpush1.msra.mxu0 0.0
    %3764 = vmatprep.subr.mxu0 0.0
    %3765 = vmatpush1.msra.mxu0 0.0
    %3766 = vmatprep.subr.mxu0 0.0
    %3767 = vmatpush1.msra.mxu0 0.0
    %3768 = vmatprep.subr.mxu0 0.0
    %3769 = vmatpush1.msra.mxu0 0.0
    %3770 = vmatprep.subr.mxu0 0.0
    %3771 = vmatpush1.msra.mxu0 0.0
    %3772 = vmatprep.subr.mxu0 0.0
    %3773 = vmatpush1.msra.mxu0 0.0
    %3774 = vmatprep.subr.mxu0 0.0
    %3775 = vmatpush1.msra.mxu0 0.0
    %3776 = vmatprep.subr.mxu0 0.0
    %3777 = vmatpush1.msra.mxu0 0.0
    %3778 = vmatprep.subr.mxu0 0.0
    %3779 = vmatpush1.msra.mxu0 0.0
    %3780 = vmatprep.subr.mxu0 0.0
    %3781 = vmatpush1.msra.mxu0 0.0
    %3782 = vmatprep.subr.mxu0 0.0
    %3783 = vmatpush1.msra.mxu0 %v3750
    %3784 = vmatprep.subr.mxu0 0.0
    %3785 = vmatpush1.msra.mxu0 %v3749
    %3786 = vmatprep.subr.mxu0 0.0
    %3787 = vmatpush2.msra.mxu0 0.0
    %3788 = vmatprep.subr.mxu0 0.0
    %3789 = vmatpush2.msra.mxu0 0.0
    %3790 = vmatprep.subr.mxu0 0.0
    %3791 = vmatpush2.msra.mxu0 0.0
    %3792 = vmatprep.subr.mxu0 0.0
    %3793 = vmatpush2.msra.mxu0 0.0
    %3794 = vmatprep.subr.mxu0 0.0
    %3795 = vmatpush2.msra.mxu0 0.0
    %3796 = vmatprep.subr.mxu0 0.0
    %3797 = vmatpush2.msra.mxu0 0.0
    %3798 = vmatprep.subr.mxu0 0.0
    %3799 = vmatpush2.msra.mxu0 0.0
    %3800 = vmatprep.subr.mxu0 0.0
    %3801 = vmatpush2.msra.mxu0 0.0
    %3802 = vmatprep.subr.mxu0 0.0
    %3803 = vmatpush2.msra.mxu0 0.0
    %3804 = vmatprep.subr.mxu0 0.0
    %3805 = vmatpush2.msra.mxu0 0.0
    %3806 = vmatprep.subr.mxu0 0.0
    %3807 = vmatpush2.msra.mxu0 0.0
    %3808 = vmatprep.subr.mxu0 0.0
    %3809 = vmatpush2.msra.mxu0 0.0
    %3810 = vmatprep.subr.mxu0 0.0
    %3811 = vmatpush2.msra.mxu0 0.0
    %3812 = vmatprep.subr.mxu0 0.0
    %3813 = vmatpush2.msra.mxu0 0.0
    %3814 = vmatprep.subr.mxu0 0.0
    %3815 = vmatpush2.msra.mxu0 0.0
    %3816 = vmatprep.subr.mxu0 0.0
    %3817 = vmatpush2.msra.mxu0 0.0
    %3818 = vmatprep.mubr.f32.mxu0 0.0
    %3819 = vmatmul.mubr.f32.gmra.mxu0 %v3752
    %v3820 = vpop.f32.mrf.mxu0
    %v3821 = vadd.f32 %v754, %v3820
    %v3822 = vpop.f32.mrf.mxu0
    %3823 = vdwg.mxu0
    %v3824 = vmax.f32 %v3821, 0.0
    %s3825 = scalar_lea.vmem [#allocation4], 48
    %3826 = vst.msk [vmem:[%s3825] sm:$0xff] %vm449, %v3824
    %v3827 = vld [vmem:[%s31] sm:$0xff]
    %v3828 = vld [vmem:[%s31 + $0x8] sm:$0xff]
    %v3829 = vld [vmem:[%s31 + $0x10] sm:$0xff]
    %v3830 = vld [vmem:[%s31 + $0x18] sm:$0xff]
    %v3832 = vsel %vm449, %v3824, 0
    %3834 = vmatprep.subr.mxu0 0.0
    %3835 = vmatpush1.msra.mxu0 0.0
    %3836 = vmatprep.subr.mxu0 0.0
    %3837 = vmatpush1.msra.mxu0 0.0
    %3838 = vmatprep.subr.mxu0 0.0
    %3839 = vmatpush1.msra.mxu0 0.0
    %3840 = vmatprep.subr.mxu0 0.0
    %3841 = vmatpush1.msra.mxu0 0.0
    %3842 = vmatprep.subr.mxu0 0.0
    %3843 = vmatpush1.msra.mxu0 0.0
    %3844 = vmatprep.subr.mxu0 0.0
    %3845 = vmatpush1.msra.mxu0 0.0
    %3846 = vmatprep.subr.mxu0 0.0
    %3847 = vmatpush1.msra.mxu0 0.0
    %3848 = vmatprep.subr.mxu0 0.0
    %3849 = vmatpush1.msra.mxu0 0.0
    %3850 = vmatprep.subr.mxu0 0.0
    %3851 = vmatpush1.msra.mxu0 0.0
    %3852 = vmatprep.subr.mxu0 0.0
    %3853 = vmatpush1.msra.mxu0 0.0
    %3854 = vmatprep.subr.mxu0 0.0
    %3855 = vmatpush1.msra.mxu0 0.0
    %3856 = vmatprep.subr.mxu0 0.0
    %3857 = vmatpush1.msra.mxu0 0.0
    %3858 = vmatprep.subr.mxu0 0.0
    %3859 = vmatpush1.msra.mxu0 %v3830
    %3860 = vmatprep.subr.mxu0 0.0
    %3861 = vmatpush1.msra.mxu0 %v3829
    %3862 = vmatprep.subr.mxu0 0.0
    %3863 = vmatpush1.msra.mxu0 %v3828
    %3864 = vmatprep.subr.mxu0 0.0
    %3865 = vmatpush1.msra.mxu0 %v3827
    %3866 = vmatprep.subr.mxu0 0.0
    %3867 = vmatpush2.msra.mxu0 0.0
    %3868 = vmatprep.subr.mxu0 0.0
    %3869 = vmatpush2.msra.mxu0 0.0
    %3870 = vmatprep.subr.mxu0 0.0
    %3871 = vmatpush2.msra.mxu0 0.0
    %3872 = vmatprep.subr.mxu0 0.0
    %3873 = vmatpush2.msra.mxu0 0.0
    %3874 = vmatprep.subr.mxu0 0.0
    %3875 = vmatpush2.msra.mxu0 0.0
    %3876 = vmatprep.subr.mxu0 0.0
    %3877 = vmatpush2.msra.mxu0 0.0
    %3878 = vmatprep.subr.mxu0 0.0
    %3879 = vmatpush2.msra.mxu0 0.0
    %3880 = vmatprep.subr.mxu0 0.0
    %3881 = vmatpush2.msra.mxu0 0.0
    %3882 = vmatprep.subr.mxu0 0.0
    %3883 = vmatpush2.msra.mxu0 0.0
    %3884 = vmatprep.subr.mxu0 0.0
    %3885 = vmatpush2.msra.mxu0 0.0
    %3886 = vmatprep.subr.mxu0 0.0
    %3887 = vmatpush2.msra.mxu0 0.0
    %3888 = vmatprep.subr.mxu0 0.0
    %3889 = vmatpush2.msra.mxu0 0.0
    %3890 = vmatprep.subr.mxu0 0.0
    %3891 = vmatpush2.msra.mxu0 0.0
    %3892 = vmatprep.subr.mxu0 0.0
    %3893 = vmatpush2.msra.mxu0 0.0
    %3894 = vmatprep.subr.mxu0 0.0
    %3895 = vmatpush2.msra.mxu0 0.0
    %3896 = vmatprep.subr.mxu0 0.0
    %3897 = vmatpush2.msra.mxu0 0.0
    %3898 = vmatprep.mubr.f32.mxu0 0.0
    %3899 = vmatmul.mubr.f32.gmra.mxu0 %v3832
    %v3900 = vpop.f32.mrf.mxu0
    %v3901 = vadd.f32 0.0, %v3900
    %v3902 = vpop.f32.mrf.mxu0
    %3903 = vdwg.mxu0
    %3905 = vrot.lane.b32.xlu0 %v3901, 32
    %v3906 = vpop.permute.xlu0 %3905
    %v3908 = vadd.f32 %v3481, %v3906
    %v3909 = vadd.f32 %v3908, %v3561
    %v3910 = vmul.f32 %v3909, 0.5
    %v3911 = vtanh.pop %v3910
    %v3912 = vadd.f32 %v3911, 1.0
    %v3913 = vmul.f32 %v3912, 0.5
    %3915 = vrot.lane.b32.xlu0 %v3561, 64
    %v3916 = vpop.permute.xlu0 %3915
    %v3918 = vmul.f32 %v3913, %v3916
    %3920 = vrot.lane.b32.xlu0 %v3918, 64
    %v3921 = vpop.permute.xlu0 %3920
    %v3923 = vadd.f32 %v3908, %v3921
    %v3924 = vtanh.pop %v3923
    %v3925 = vsub.f32 1.0, %v3913
    %3927 = vrot.lane.b32.xlu0 %v3924, 96
    %v3928 = vpop.permute.xlu0 %3927
    %v3930 = vmul.f32 %v3925, %v3928
    %v3931 = vmul.f32 %v3913, %v3477
    %v3932 = vadd.f32 %v3930, %v3931
    %s3933 = scalar_lea.vmem %s5, 56
    %v3934 = vld [vmem:[%s3933] sm:$0xff]
    %s3935 = scalar_lea.vmem [#allocation2], 56
    %v3936 = vld [vmem:[%s3935] sm:$0xff]
    %3938 = vrot.lane.b32.xlu0 %v3932, 64
    %v3939 = vpop.permute.xlu0 %3938
    %s3941 = scalar_lea.vmem [#allocation3], 56
    %3942 = vst.msk [vmem:[%s3941] sm:$0xff] %vm449, %v3939
    %v3943 = vld [vmem:[%s33] sm:$0xff]
    %v3944 = vld [vmem:[%s33 + $0x8] sm:$0xff]
    %v3945 = vld [vmem:[%s33 + $0x10] sm:$0xff]
    %v3946 = vld [vmem:[%s33 + $0x18] sm:$0xff]
    %v3947 = vsel %vm449, %v3939, 0
    %3949 = vmatprep.subr.mxu0 0.0
    %3950 = vmatpush1.msra.mxu0 0.0
    %3951 = vmatprep.subr.mxu0 0.0
    %3952 = vmatpush1.msra.mxu0 0.0
    %3953 = vmatprep.subr.mxu0 0.0
    %3954 = vmatpush1.msra.mxu0 0.0
    %3955 = vmatprep.subr.mxu0 0.0
    %3956 = vmatpush1.msra.mxu0 0.0
    %3957 = vmatprep.subr.mxu0 0.0
    %3958 = vmatpush1.msra.mxu0 0.0
    %3959 = vmatprep.subr.mxu0 0.0
    %3960 = vmatpush1.msra.mxu0 0.0
    %3961 = vmatprep.subr.mxu0 0.0
    %3962 = vmatpush1.msra.mxu0 0.0
    %3963 = vmatprep.subr.mxu0 0.0
    %3964 = vmatpush1.msra.mxu0 0.0
    %3965 = vmatprep.subr.mxu0 0.0
    %3966 = vmatpush1.msra.mxu0 0.0
    %3967 = vmatprep.subr.mxu0 0.0
    %3968 = vmatpush1.msra.mxu0 0.0
    %3969 = vmatprep.subr.mxu0 0.0
    %3970 = vmatpush1.msra.mxu0 0.0
    %3971 = vmatprep.subr.mxu0 0.0
    %3972 = vmatpush1.msra.mxu0 0.0
    %3973 = vmatprep.subr.mxu0 0.0
    %3974 = vmatpush1.msra.mxu0 %v3946
    %3975 = vmatprep.subr.mxu0 0.0
    %3976 = vmatpush1.msra.mxu0 %v3945
    %3977 = vmatprep.subr.mxu0 0.0
    %3978 = vmatpush1.msra.mxu0 %v3944
    %3979 = vmatprep.subr.mxu0 0.0
    %3980 = vmatpush1.msra.mxu0 %v3943
    %3981 = vmatprep.subr.mxu0 0.0
    %3982 = vmatpush2.msra.mxu0 0.0
    %3983 = vmatprep.subr.mxu0 0.0
    %3984 = vmatpush2.msra.mxu0 0.0
    %3985 = vmatprep.subr.mxu0 0.0
    %3986 = vmatpush2.msra.mxu0 0.0
    %3987 = vmatprep.subr.mxu0 0.0
    %3988 = vmatpush2.msra.mxu0 0.0
    %3989 = vmatprep.subr.mxu0 0.0
    %3990 = vmatpush2.msra.mxu0 0.0
    %3991 = vmatprep.subr.mxu0 0.0
    %3992 = vmatpush2.msra.mxu0 0.0
    %3993 = vmatprep.subr.mxu0 0.0
    %3994 = vmatpush2.msra.mxu0 0.0
    %3995 = vmatprep.subr.mxu0 0.0
    %3996 = vmatpush2.msra.mxu0 0.0
    %3997 = vmatprep.subr.mxu0 0.0
    %3998 = vmatpush2.msra.mxu0 0.0
    %3999 = vmatprep.subr.mxu0 0.0
    %4000 = vmatpush2.msra.mxu0 0.0
    %4001 = vmatprep.subr.mxu0 0.0
    %4002 = vmatpush2.msra.mxu0 0.0
    %4003 = vmatprep.subr.mxu0 0.0
    %4004 = vmatpush2.msra.mxu0 0.0
    %4005 = vmatprep.subr.mxu0 0.0
    %4006 = vmatpush2.msra.mxu0 0.0
    %4007 = vmatprep.subr.mxu0 0.0
    %4008 = vmatpush2.msra.mxu0 0.0
    %4009 = vmatprep.subr.mxu0 0.0
    %4010 = vmatpush2.msra.mxu0 0.0
    %4011 = vmatprep.subr.mxu0 0.0
    %4012 = vmatpush2.msra.mxu0 0.0
    %4013 = vmatprep.mubr.f32.mxu0 0.0
    %4014 = vmatmul.mubr.f32.gmra.mxu0 %v3947
    %v4015 = vpop.f32.mrf.mxu0
    %v4016 = vadd.f32 0.0, %v4015
    %v4017 = vpop.f32.mrf.mxu0
    %4018 = vdwg.mxu0
    %v4019 = vadd.f32 %v3936, %v4016
    %v4020 = vadd.f32 %v4019, %v733
    %v4021 = vmax.f32 %v4020, 0.0
    %v4022 = vld [vmem:[%s19] sm:$0xff]
    %v4023 = vld [vmem:[%s19 + $0x8] sm:$0xff]
    %v4024 = vld [vmem:[%s19 + $0x10] sm:$0xff]
    %v4025 = vld [vmem:[%s19 + $0x18] sm:$0xff]
    %v4027 = vsel %vm449, %v4021, 0
    %4029 = vmatprep.subr.mxu0 0.0
    %4030 = vmatpush1.msra.mxu0 0.0
    %4031 = vmatprep.subr.mxu0 0.0
    %4032 = vmatpush1.msra.mxu0 0.0
    %4033 = vmatprep.subr.mxu0 0.0
    %4034 = vmatpush1.msra.mxu0 0.0
    %4035 = vmatprep.subr.mxu0 0.0
    %4036 = vmatpush1.msra.mxu0 0.0
    %4037 = vmatprep.subr.mxu0 0.0
    %4038 = vmatpush1.msra.mxu0 0.0
    %4039 = vmatprep.subr.mxu0 0.0
    %4040 = vmatpush1.msra.mxu0 0.0
    %4041 = vmatprep.subr.mxu0 0.0
    %4042 = vmatpush1.msra.mxu0 0.0
    %4043 = vmatprep.subr.mxu0 0.0
    %4044 = vmatpush1.msra.mxu0 0.0
    %4045 = vmatprep.subr.mxu0 0.0
    %4046 = vmatpush1.msra.mxu0 0.0
    %4047 = vmatprep.subr.mxu0 0.0
    %4048 = vmatpush1.msra.mxu0 0.0
    %4049 = vmatprep.subr.mxu0 0.0
    %4050 = vmatpush1.msra.mxu0 0.0
    %4051 = vmatprep.subr.mxu0 0.0
    %4052 = vmatpush1.msra.mxu0 0.0
    %4053 = vmatprep.subr.mxu0 0.0
    %4054 = vmatpush1.msra.mxu0 %v4025
    %4055 = vmatprep.subr.mxu0 0.0
    %4056 = vmatpush1.msra.mxu0 %v4024
    %4057 = vmatprep.subr.mxu0 0.0
    %4058 = vmatpush1.msra.mxu0 %v4023
    %4059 = vmatprep.subr.mxu0 0.0
    %4060 = vmatpush1.msra.mxu0 %v4022
    %4061 = vmatprep.subr.mxu0 0.0
    %4062 = vmatpush2.msra.mxu0 0.0
    %4063 = vmatprep.subr.mxu0 0.0
    %4064 = vmatpush2.msra.mxu0 0.0
    %4065 = vmatprep.subr.mxu0 0.0
    %4066 = vmatpush2.msra.mxu0 0.0
    %4067 = vmatprep.subr.mxu0 0.0
    %4068 = vmatpush2.msra.mxu0 0.0
    %4069 = vmatprep.subr.mxu0 0.0
    %4070 = vmatpush2.msra.mxu0 0.0
    %4071 = vmatprep.subr.mxu0 0.0
    %4072 = vmatpush2.msra.mxu0 0.0
    %4073 = vmatprep.subr.mxu0 0.0
    %4074 = vmatpush2.msra.mxu0 0.0
    %4075 = vmatprep.subr.mxu0 0.0
    %4076 = vmatpush2.msra.mxu0 0.0
    %4077 = vmatprep.subr.mxu0 0.0
    %4078 = vmatpush2.msra.mxu0 0.0
    %4079 = vmatprep.subr.mxu0 0.0
    %4080 = vmatpush2.msra.mxu0 0.0
    %4081 = vmatprep.subr.mxu0 0.0
    %4082 = vmatpush2.msra.mxu0 0.0
    %4083 = vmatprep.subr.mxu0 0.0
    %4084 = vmatpush2.msra.mxu0 0.0
    %4085 = vmatprep.subr.mxu0 0.0
    %4086 = vmatpush2.msra.mxu0 0.0
    %4087 = vmatprep.subr.mxu0 0.0
    %4088 = vmatpush2.msra.mxu0 0.0
    %4089 = vmatprep.subr.mxu0 0.0
    %4090 = vmatpush2.msra.mxu0 0.0
    %4091 = vmatprep.subr.mxu0 0.0
    %4092 = vmatpush2.msra.mxu0 0.0
    %4093 = vmatprep.mubr.f32.mxu0 0.0
    %4094 = vmatmul.mubr.f32.gmra.mxu0 %v4027
    %v4095 = vpop.f32.mrf.mxu0
    %v4096 = vadd.f32 %v740, %v4095
    %v4097 = vpop.f32.mrf.mxu0
    %4098 = vdwg.mxu0
    %v4099 = vmax.f32 %v4096, 0.0
    %v4100 = vld [vmem:[%s23] sm:$0xff]
    %v4101 = vld [vmem:[%s23 + $0x8] sm:$0xff]
    %v4102 = vld [vmem:[%s23 + $0x10] sm:$0xff]
    %v4103 = vld [vmem:[%s23 + $0x18] sm:$0xff]
    %v4105 = vsel %vm449, %v4099, 0
    %4107 = vmatprep.subr.mxu0 0.0
    %4108 = vmatpush1.msra.mxu0 0.0
    %4109 = vmatprep.subr.mxu0 0.0
    %4110 = vmatpush1.msra.mxu0 0.0
    %4111 = vmatprep.subr.mxu0 0.0
    %4112 = vmatpush1.msra.mxu0 0.0
    %4113 = vmatprep.subr.mxu0 0.0
    %4114 = vmatpush1.msra.mxu0 0.0
    %4115 = vmatprep.subr.mxu0 0.0
    %4116 = vmatpush1.msra.mxu0 0.0
    %4117 = vmatprep.subr.mxu0 0.0
    %4118 = vmatpush1.msra.mxu0 0.0
    %4119 = vmatprep.subr.mxu0 0.0
    %4120 = vmatpush1.msra.mxu0 0.0
    %4121 = vmatprep.subr.mxu0 0.0
    %4122 = vmatpush1.msra.mxu0 0.0
    %4123 = vmatprep.subr.mxu0 0.0
    %4124 = vmatpush1.msra.mxu0 0.0
    %4125 = vmatprep.subr.mxu0 0.0
    %4126 = vmatpush1.msra.mxu0 0.0
    %4127 = vmatprep.subr.mxu0 0.0
    %4128 = vmatpush1.msra.mxu0 0.0
    %4129 = vmatprep.subr.mxu0 0.0
    %4130 = vmatpush1.msra.mxu0 0.0
    %4131 = vmatprep.subr.mxu0 0.0
    %4132 = vmatpush1.msra.mxu0 %v4103
    %4133 = vmatprep.subr.mxu0 0.0
    %4134 = vmatpush1.msra.mxu0 %v4102
    %4135 = vmatprep.subr.mxu0 0.0
    %4136 = vmatpush1.msra.mxu0 %v4101
    %4137 = vmatprep.subr.mxu0 0.0
    %4138 = vmatpush1.msra.mxu0 %v4100
    %4139 = vmatprep.subr.mxu0 0.0
    %4140 = vmatpush2.msra.mxu0 0.0
    %4141 = vmatprep.subr.mxu0 0.0
    %4142 = vmatpush2.msra.mxu0 0.0
    %4143 = vmatprep.subr.mxu0 0.0
    %4144 = vmatpush2.msra.mxu0 0.0
    %4145 = vmatprep.subr.mxu0 0.0
    %4146 = vmatpush2.msra.mxu0 0.0
    %4147 = vmatprep.subr.mxu0 0.0
    %4148 = vmatpush2.msra.mxu0 0.0
    %4149 = vmatprep.subr.mxu0 0.0
    %4150 = vmatpush2.msra.mxu0 0.0
    %4151 = vmatprep.subr.mxu0 0.0
    %4152 = vmatpush2.msra.mxu0 0.0
    %4153 = vmatprep.subr.mxu0 0.0
    %4154 = vmatpush2.msra.mxu0 0.0
    %4155 = vmatprep.subr.mxu0 0.0
    %4156 = vmatpush2.msra.mxu0 0.0
    %4157 = vmatprep.subr.mxu0 0.0
    %4158 = vmatpush2.msra.mxu0 0.0
    %4159 = vmatprep.subr.mxu0 0.0
    %4160 = vmatpush2.msra.mxu0 0.0
    %4161 = vmatprep.subr.mxu0 0.0
    %4162 = vmatpush2.msra.mxu0 0.0
    %4163 = vmatprep.subr.mxu0 0.0
    %4164 = vmatpush2.msra.mxu0 0.0
    %4165 = vmatprep.subr.mxu0 0.0
    %4166 = vmatpush2.msra.mxu0 0.0
    %4167 = vmatprep.subr.mxu0 0.0
    %4168 = vmatpush2.msra.mxu0 0.0
    %4169 = vmatprep.subr.mxu0 0.0
    %4170 = vmatpush2.msra.mxu0 0.0
    %4171 = vmatprep.mubr.f32.mxu0 0.0
    %4172 = vmatmul.mubr.f32.gmra.mxu0 %v4105
    %v4173 = vpop.f32.mrf.mxu0
    %v4174 = vadd.f32 %v747, %v4173
    %v4175 = vpop.f32.mrf.mxu0
    %4176 = vdwg.mxu0
    %s4177 = scalar_lea.vmem [#allocation5], 56
    %4178 = vst.msk [vmem:[%s4177] sm:$0xff] %vm449, %v4174
    %v4179 = vmax.f32 %v4174, 0.0
    %v4180 = vand.u32 2147483647, %v4174
    %v4181 = vsub.f32 0.0, %v4180
    %v4182 = vmul.f32 %v4181, 1.442695
    %v4183 = vpow.pop %v4182
    %v4184 = vadd.f32 %v4183, 1.0
    %v4185 = vlog2.pop %v4184
    %v4186 = vmul.f32 %v4185, 0.6931472
    %v4187 = vmul.f32 -0.5, %v4183
    %v4188 = vadd.f32 %v4187, 1.0
    %v4189 = vmul.f32 %v4188, %v4183
    %v4190 = vand.u32 2147483647, %v4183
    %vm4191 = vcmp.lt.f32.partialorder %v4190, 0.0004427343
    %v4192 = vsel %vm4191, %v4189, %v4186
    %v4193 = vadd.f32 %v4179, %v4192
    %4195 = vrot.lane.b32.xlu0 %v3934, 16
    %v4196 = vpop.permute.xlu0 %4195
    %v4198 = vmul.f32 %v4193, %v4196
    %4200 = vrot.lane.b32.xlu0 %v4198, 112
    %v4201 = vpop.permute.xlu0 %4200
    %v4203 = vadd.f32 %v4174, %v4201
    %v4204 = vld [vmem:[#allocation19] sm:$0xff]
    %v4205 = vld [vmem:[#allocation19 + $0x8] sm:$0xff]
    %v4207 = vsel %vm300, %v4203, 0
    %4209 = vmatprep.subr.mxu0 0.0
    %4210 = vmatpush1.msra.mxu0 0.0
    %4211 = vmatprep.subr.mxu0 0.0
    %4212 = vmatpush1.msra.mxu0 0.0
    %4213 = vmatprep.subr.mxu0 0.0
    %4214 = vmatpush1.msra.mxu0 0.0
    %4215 = vmatprep.subr.mxu0 0.0
    %4216 = vmatpush1.msra.mxu0 0.0
    %4217 = vmatprep.subr.mxu0 0.0
    %4218 = vmatpush1.msra.mxu0 0.0
    %4219 = vmatprep.subr.mxu0 0.0
    %4220 = vmatpush1.msra.mxu0 0.0
    %4221 = vmatprep.subr.mxu0 0.0
    %4222 = vmatpush1.msra.mxu0 0.0
    %4223 = vmatprep.subr.mxu0 0.0
    %4224 = vmatpush1.msra.mxu0 0.0
    %4225 = vmatprep.subr.mxu0 0.0
    %4226 = vmatpush1.msra.mxu0 0.0
    %4227 = vmatprep.subr.mxu0 0.0
    %4228 = vmatpush1.msra.mxu0 0.0
    %4229 = vmatprep.subr.mxu0 0.0
    %4230 = vmatpush1.msra.mxu0 0.0
    %4231 = vmatprep.subr.mxu0 0.0
    %4232 = vmatpush1.msra.mxu0 0.0
    %4233 = vmatprep.subr.mxu0 0.0
    %4234 = vmatpush1.msra.mxu0 0.0
    %4235 = vmatprep.subr.mxu0 0.0
    %4236 = vmatpush1.msra.mxu0 0.0
    %4237 = vmatprep.subr.mxu0 0.0
    %4238 = vmatpush1.msra.mxu0 %v4205
    %4239 = vmatprep.subr.mxu0 0.0
    %4240 = vmatpush1.msra.mxu0 %v4204
    %4241 = vmatprep.subr.mxu0 0.0
    %4242 = vmatpush2.msra.mxu0 0.0
    %4243 = vmatprep.subr.mxu0 0.0
    %4244 = vmatpush2.msra.mxu0 0.0
    %4245 = vmatprep.subr.mxu0 0.0
    %4246 = vmatpush2.msra.mxu0 0.0
    %4247 = vmatprep.subr.mxu0 0.0
    %4248 = vmatpush2.msra.mxu0 0.0
    %4249 = vmatprep.subr.mxu0 0.0
    %4250 = vmatpush2.msra.mxu0 0.0
    %4251 = vmatprep.subr.mxu0 0.0
    %4252 = vmatpush2.msra.mxu0 0.0
    %4253 = vmatprep.subr.mxu0 0.0
    %4254 = vmatpush2.msra.mxu0 0.0
    %4255 = vmatprep.subr.mxu0 0.0
    %4256 = vmatpush2.msra.mxu0 0.0
    %4257 = vmatprep.subr.mxu0 0.0
    %4258 = vmatpush2.msra.mxu0 0.0
    %4259 = vmatprep.subr.mxu0 0.0
    %4260 = vmatpush2.msra.mxu0 0.0
    %4261 = vmatprep.subr.mxu0 0.0
    %4262 = vmatpush2.msra.mxu0 0.0
    %4263 = vmatprep.subr.mxu0 0.0
    %4264 = vmatpush2.msra.mxu0 0.0
    %4265 = vmatprep.subr.mxu0 0.0
    %4266 = vmatpush2.msra.mxu0 0.0
    %4267 = vmatprep.subr.mxu0 0.0
    %4268 = vmatpush2.msra.mxu0 0.0
    %4269 = vmatprep.subr.mxu0 0.0
    %4270 = vmatpush2.msra.mxu0 0.0
    %4271 = vmatprep.subr.mxu0 0.0
    %4272 = vmatpush2.msra.mxu0 0.0
    %4273 = vmatprep.mubr.f32.mxu0 0.0
    %4274 = vmatmul.mubr.f32.gmra.mxu0 %v4207
    %v4275 = vpop.f32.mrf.mxu0
    %v4276 = vadd.f32 %v754, %v4275
    %v4277 = vpop.f32.mrf.mxu0
    %4278 = vdwg.mxu0
    %v4279 = vmax.f32 %v4276, 0.0
    %s4280 = scalar_lea.vmem [#allocation4], 56
    %4281 = vst.msk [vmem:[%s4280] sm:$0xff] %vm449, %v4279
    %v4282 = vld [vmem:[%s31] sm:$0xff]
    %v4283 = vld [vmem:[%s31 + $0x8] sm:$0xff]
    %v4284 = vld [vmem:[%s31 + $0x10] sm:$0xff]
    %v4285 = vld [vmem:[%s31 + $0x18] sm:$0xff]
    %v4287 = vsel %vm449, %v4279, 0
    %4289 = vmatprep.subr.mxu0 0.0
    %4290 = vmatpush1.msra.mxu0 0.0
    %4291 = vmatprep.subr.mxu0 0.0
    %4292 = vmatpush1.msra.mxu0 0.0
    %4293 = vmatprep.subr.mxu0 0.0
    %4294 = vmatpush1.msra.mxu0 0.0
    %4295 = vmatprep.subr.mxu0 0.0
    %4296 = vmatpush1.msra.mxu0 0.0
    %4297 = vmatprep.subr.mxu0 0.0
    %4298 = vmatpush1.msra.mxu0 0.0
    %4299 = vmatprep.subr.mxu0 0.0
    %4300 = vmatpush1.msra.mxu0 0.0
    %4301 = vmatprep.subr.mxu0 0.0
    %4302 = vmatpush1.msra.mxu0 0.0
    %4303 = vmatprep.subr.mxu0 0.0
    %4304 = vmatpush1.msra.mxu0 0.0
    %4305 = vmatprep.subr.mxu0 0.0
    %4306 = vmatpush1.msra.mxu0 0.0
    %4307 = vmatprep.subr.mxu0 0.0
    %4308 = vmatpush1.msra.mxu0 0.0
    %4309 = vmatprep.subr.mxu0 0.0
    %4310 = vmatpush1.msra.mxu0 0.0
    %4311 = vmatprep.subr.mxu0 0.0
    %4312 = vmatpush1.msra.mxu0 0.0
    %4313 = vmatprep.subr.mxu0 0.0
    %4314 = vmatpush1.msra.mxu0 %v4285
    %4315 = vmatprep.subr.mxu0 0.0
    %4316 = vmatpush1.msra.mxu0 %v4284
    %4317 = vmatprep.subr.mxu0 0.0
    %4318 = vmatpush1.msra.mxu0 %v4283
    %4319 = vmatprep.subr.mxu0 0.0
    %4320 = vmatpush1.msra.mxu0 %v4282
    %4321 = vmatprep.subr.mxu0 0.0
    %4322 = vmatpush2.msra.mxu0 0.0
    %4323 = vmatprep.subr.mxu0 0.0
    %4324 = vmatpush2.msra.mxu0 0.0
    %4325 = vmatprep.subr.mxu0 0.0
    %4326 = vmatpush2.msra.mxu0 0.0
    %4327 = vmatprep.subr.mxu0 0.0
    %4328 = vmatpush2.msra.mxu0 0.0
    %4329 = vmatprep.subr.mxu0 0.0
    %4330 = vmatpush2.msra.mxu0 0.0
    %4331 = vmatprep.subr.mxu0 0.0
    %4332 = vmatpush2.msra.mxu0 0.0
    %4333 = vmatprep.subr.mxu0 0.0
    %4334 = vmatpush2.msra.mxu0 0.0
    %4335 = vmatprep.subr.mxu0 0.0
    %4336 = vmatpush2.msra.mxu0 0.0
    %4337 = vmatprep.subr.mxu0 0.0
    %4338 = vmatpush2.msra.mxu0 0.0
    %4339 = vmatprep.subr.mxu0 0.0
    %4340 = vmatpush2.msra.mxu0 0.0
    %4341 = vmatprep.subr.mxu0 0.0
    %4342 = vmatpush2.msra.mxu0 0.0
    %4343 = vmatprep.subr.mxu0 0.0
    %4344 = vmatpush2.msra.mxu0 0.0
    %4345 = vmatprep.subr.mxu0 0.0
    %4346 = vmatpush2.msra.mxu0 0.0
    %4347 = vmatprep.subr.mxu0 0.0
    %4348 = vmatpush2.msra.mxu0 0.0
    %4349 = vmatprep.subr.mxu0 0.0
    %4350 = vmatpush2.msra.mxu0 0.0
    %4351 = vmatprep.subr.mxu0 0.0
    %4352 = vmatpush2.msra.mxu0 0.0
    %4353 = vmatprep.mubr.f32.mxu0 0.0
    %4354 = vmatmul.mubr.f32.gmra.mxu0 %v4287
    %v4355 = vpop.f32.mrf.mxu0
    %v4356 = vadd.f32 0.0, %v4355
    %v4357 = vpop.f32.mrf.mxu0
    %4358 = vdwg.mxu0
    %4360 = vrot.lane.b32.xlu0 %v4356, 32
    %v4361 = vpop.permute.xlu0 %4360
    %v4363 = vadd.f32 %v3936, %v4361
    %v4364 = vadd.f32 %v4363, %v4016
    %v4365 = vmul.f32 %v4364, 0.5
    %v4366 = vtanh.pop %v4365
    %v4367 = vadd.f32 %v4366, 1.0
    %v4368 = vmul.f32 %v4367, 0.5
    %4370 = vrot.lane.b32.xlu0 %v4016, 64
    %v4371 = vpop.permute.xlu0 %4370
    %v4373 = vmul.f32 %v4368, %v4371
    %4375 = vrot.lane.b32.xlu0 %v4373, 64
    %v4376 = vpop.permute.xlu0 %4375
    %v4378 = vadd.f32 %v4363, %v4376
    %v4379 = vtanh.pop %v4378
    %v4380 = vsub.f32 1.0, %v4368
    %4382 = vrot.lane.b32.xlu0 %v4379, 96
    %v4383 = vpop.permute.xlu0 %4382
    %v4385 = vmul.f32 %v4380, %v4383
    %v4386 = vmul.f32 %v4368, %v3932
    %v4387 = vadd.f32 %v4385, %v4386
    %4388 = vst.msk [vmem:[#allocation29] sm:$0xff] %vm300, %v4203
    %4390 = vrot.lane.b32.xlu0 %v4387, 64
    %v4391 = vpop.permute.xlu0 %4390
    %4393 = vst.msk [vmem:[#allocation31] sm:$0xff] %vm449, %v4391
    %v4394 = vld [vmem:[#allocation3] sm:$0xff]
    %v4395 = vld [vmem:[#allocation3 + $0x8] sm:$0xff]
    %v4396 = vld [vmem:[#allocation3 + $0x10] sm:$0xff]
    %v4397 = vld [vmem:[#allocation3 + $0x18] sm:$0xff]
    %v4398 = vld [vmem:[#allocation3 + $0x20] sm:$0xff]
    %v4399 = vld [vmem:[#allocation3 + $0x28] sm:$0xff]
    %v4400 = vld [vmem:[#allocation3 + $0x30] sm:$0xff]
    %v4401 = vld [vmem:[#allocation3 + $0x38] sm:$0xff]
    %v4402 = vld [vmem:[%s35] sm:$0xff]
    %v4403 = vld [vmem:[%s35 + $0x8] sm:$0xff]
    %v4404 = vld [vmem:[%s35 + $0x10] sm:$0xff]
    %v4405 = vld [vmem:[%s35 + $0x18] sm:$0xff]
    %v4407 = vsel %vm449, %v4394, 0
    %v4410 = vsel %vm449, %v4395, 0
    %v4413 = vsel %vm449, %v4396, 0
    %v4416 = vsel %vm449, %v4397, 0
    %v4419 = vsel %vm449, %v4398, 0
    %v4422 = vsel %vm449, %v4399, 0
    %v4425 = vsel %vm449, %v4400, 0
    %v4428 = vsel %vm449, %v4401, 0
    %4430 = vmatprep.subr.mxu0 0.0
    %4431 = vmatpush1.msra.mxu0 0.0
    %4432 = vmatprep.subr.mxu0 0.0
    %4433 = vmatpush1.msra.mxu0 0.0
    %4434 = vmatprep.subr.mxu0 0.0
    %4435 = vmatpush1.msra.mxu0 0.0
    %4436 = vmatprep.subr.mxu0 0.0
    %4437 = vmatpush1.msra.mxu0 0.0
    %4438 = vmatprep.subr.mxu0 0.0
    %4439 = vmatpush1.msra.mxu0 0.0
    %4440 = vmatprep.subr.mxu0 0.0
    %4441 = vmatpush1.msra.mxu0 0.0
    %4442 = vmatprep.subr.mxu0 0.0
    %4443 = vmatpush1.msra.mxu0 0.0
    %4444 = vmatprep.subr.mxu0 0.0
    %4445 = vmatpush1.msra.mxu0 0.0
    %4446 = vmatprep.subr.mxu0 0.0
    %4447 = vmatpush1.msra.mxu0 0.0
    %4448 = vmatprep.subr.mxu0 0.0
    %4449 = vmatpush1.msra.mxu0 0.0
    %4450 = vmatprep.subr.mxu0 0.0
    %4451 = vmatpush1.msra.mxu0 0.0
    %4452 = vmatprep.subr.mxu0 0.0
    %4453 = vmatpush1.msra.mxu0 0.0
    %4454 = vmatprep.subr.mxu0 0.0
    %4455 = vmatpush1.msra.mxu0 %v4405
    %4456 = vmatprep.subr.mxu0 0.0
    %4457 = vmatpush1.msra.mxu0 %v4404
    %4458 = vmatprep.subr.mxu0 0.0
    %4459 = vmatpush1.msra.mxu0 %v4403
    %4460 = vmatprep.subr.mxu0 0.0
    %4461 = vmatpush1.msra.mxu0 %v4402
    %4462 = vmatprep.subr.mxu0 0.0
    %4463 = vmatpush2.msra.mxu0 0.0
    %4464 = vmatprep.subr.mxu0 0.0
    %4465 = vmatpush2.msra.mxu0 0.0
    %4466 = vmatprep.subr.mxu0 0.0
    %4467 = vmatpush2.msra.mxu0 0.0
    %4468 = vmatprep.subr.mxu0 0.0
    %4469 = vmatpush2.msra.mxu0 0.0
    %4470 = vmatprep.subr.mxu0 0.0
    %4471 = vmatpush2.msra.mxu0 0.0
    %4472 = vmatprep.subr.mxu0 0.0
    %4473 = vmatpush2.msra.mxu0 0.0
    %4474 = vmatprep.subr.mxu0 0.0
    %4475 = vmatpush2.msra.mxu0 0.0
    %4476 = vmatprep.subr.mxu0 0.0
    %4477 = vmatpush2.msra.mxu0 0.0
    %4478 = vmatprep.subr.mxu0 0.0
    %4479 = vmatpush2.msra.mxu0 0.0
    %4480 = vmatprep.subr.mxu0 0.0
    %4481 = vmatpush2.msra.mxu0 0.0
    %4482 = vmatprep.subr.mxu0 0.0
    %4483 = vmatpush2.msra.mxu0 0.0
    %4484 = vmatprep.subr.mxu0 0.0
    %4485 = vmatpush2.msra.mxu0 0.0
    %4486 = vmatprep.subr.mxu0 0.0
    %4487 = vmatpush2.msra.mxu0 0.0
    %4488 = vmatprep.subr.mxu0 0.0
    %4489 = vmatpush2.msra.mxu0 0.0
    %4490 = vmatprep.subr.mxu0 0.0
    %4491 = vmatpush2.msra.mxu0 0.0
    %4492 = vmatprep.subr.mxu0 0.0
    %4493 = vmatpush2.msra.mxu0 0.0
    %4494 = vmatprep.mubr.f32.mxu0 0.0
    %4495 = vmatmul.mubr.f32.gmra.mxu0 %v4407
    %v4496 = vpop.f32.mrf.mxu0
    %v4497 = vadd.f32 0.0, %v4496
    %v4498 = vpop.f32.mrf.mxu0
    %4499 = vmatprep.mubr.f32.mxu0 0.0
    %4500 = vmatmul.mubr.f32.gmra.mxu0 %v4410
    %v4501 = vpop.f32.mrf.mxu0
    %v4502 = vadd.f32 0.0, %v4501
    %v4503 = vpop.f32.mrf.mxu0
    %4504 = vmatprep.mubr.f32.mxu0 0.0
    %4505 = vmatmul.mubr.f32.gmra.mxu0 %v4413
    %v4506 = vpop.f32.mrf.mxu0
    %v4507 = vadd.f32 0.0, %v4506
    %v4508 = vpop.f32.mrf.mxu0
    %4509 = vmatprep.mubr.f32.mxu0 0.0
    %4510 = vmatmul.mubr.f32.gmra.mxu0 %v4416
    %v4511 = vpop.f32.mrf.mxu0
    %v4512 = vadd.f32 0.0, %v4511
    %v4513 = vpop.f32.mrf.mxu0
    %4514 = vmatprep.mubr.f32.mxu0 0.0
    %4515 = vmatmul.mubr.f32.gmra.mxu0 %v4419
    %v4516 = vpop.f32.mrf.mxu0
    %v4517 = vadd.f32 0.0, %v4516
    %v4518 = vpop.f32.mrf.mxu0
    %4519 = vmatprep.mubr.f32.mxu0 0.0
    %4520 = vmatmul.mubr.f32.gmra.mxu0 %v4422
    %v4521 = vpop.f32.mrf.mxu0
    %v4522 = vadd.f32 0.0, %v4521
    %v4523 = vpop.f32.mrf.mxu0
    %4524 = vmatprep.mubr.f32.mxu0 0.0
    %4525 = vmatmul.mubr.f32.gmra.mxu0 %v4425
    %v4526 = vpop.f32.mrf.mxu0
    %v4527 = vadd.f32 0.0, %v4526
    %v4528 = vpop.f32.mrf.mxu0
    %4529 = vmatprep.mubr.f32.mxu0 0.0
    %4530 = vmatmul.mubr.f32.gmra.mxu0 %v4428
    %v4531 = vpop.f32.mrf.mxu0
    %v4532 = vadd.f32 0.0, %v4531
    %v4533 = vpop.f32.mrf.mxu0
    %4534 = vdwg.mxu0
    %v4535 = vld [vmem:[#allocation22] sm:$0x1]
    %v4537 = vlaneseq
    %v4538 = vshrl.u32 %v4537, 7
    %v4539 = vsub.s32 0, %v4538
    %v4540 = vrot.slane %v4535, %v4539
    %v4542 = vadd.f32 %v4497, %v4540
    %v4543 = vadd.f32 %v4502, %v4540
    %v4544 = vadd.f32 %v4507, %v4540
    %v4545 = vadd.f32 %v4512, %v4540
    %v4546 = vadd.f32 %v4517, %v4540
    %v4547 = vadd.f32 %v4522, %v4540
    %v4548 = vadd.f32 %v4527, %v4540
    %v4549 = vadd.f32 %v4532, %v4540
    %v4550 = vmax.f32 %v4542, 0.0
    %v4551 = vmax.f32 %v4543, 0.0
    %v4552 = vmax.f32 %v4544, 0.0
    %v4553 = vmax.f32 %v4545, 0.0
    %v4554 = vmax.f32 %v4546, 0.0
    %v4555 = vmax.f32 %v4547, 0.0
    %v4556 = vmax.f32 %v4548, 0.0
    %v4557 = vmax.f32 %v4549, 0.0
    %v4558 = vld [vmem:[#allocation23] sm:$0xff]
    %v4559 = vld [vmem:[#allocation23 + $0x8] sm:$0xff]
    %v4560 = vld [vmem:[#allocation23 + $0x10] sm:$0xff]
    %v4561 = vld [vmem:[#allocation23 + $0x18] sm:$0xff]
    %v4562 = vld [vmem:[%s41] sm:$0x1]
    %v4564 = vlaneseq
    %v4565 = vshrl.u32 %v4564, 7
    %v4566 = vsub.s32 0, %v4565
    %v4567 = vrot.slane %v4562, %v4566
    %v4570 = vsel %vm449, %v4550, 0
    %v4573 = vsel %vm449, %v4551, 0
    %v4576 = vsel %vm449, %v4552, 0
    %v4579 = vsel %vm449, %v4553, 0
    %v4582 = vsel %vm449, %v4554, 0
    %v4585 = vsel %vm449, %v4555, 0
    %v4588 = vsel %vm449, %v4556, 0
    %v4591 = vsel %vm449, %v4557, 0
    %4593 = vmatprep.subr.mxu0 0.0
    %4594 = vmatpush1.msra.mxu0 0.0
    %4595 = vmatprep.subr.mxu0 0.0
    %4596 = vmatpush1.msra.mxu0 0.0
    %4597 = vmatprep.subr.mxu0 0.0
    %4598 = vmatpush1.msra.mxu0 0.0
    %4599 = vmatprep.subr.mxu0 0.0
    %4600 = vmatpush1.msra.mxu0 0.0
    %4601 = vmatprep.subr.mxu0 0.0
    %4602 = vmatpush1.msra.mxu0 0.0
    %4603 = vmatprep.subr.mxu0 0.0
    %4604 = vmatpush1.msra.mxu0 0.0
    %4605 = vmatprep.subr.mxu0 0.0
    %4606 = vmatpush1.msra.mxu0 0.0
    %4607 = vmatprep.subr.mxu0 0.0
    %4608 = vmatpush1.msra.mxu0 0.0
    %4609 = vmatprep.subr.mxu0 0.0
    %4610 = vmatpush1.msra.mxu0 0.0
    %4611 = vmatprep.subr.mxu0 0.0
    %4612 = vmatpush1.msra.mxu0 0.0
    %4613 = vmatprep.subr.mxu0 0.0
    %4614 = vmatpush1.msra.mxu0 0.0
    %4615 = vmatprep.subr.mxu0 0.0
    %4616 = vmatpush1.msra.mxu0 0.0
    %4617 = vmatprep.subr.mxu0 0.0
    %4618 = vmatpush1.msra.mxu0 %v4561
    %4619 = vmatprep.subr.mxu0 0.0
    %4620 = vmatpush1.msra.mxu0 %v4560
    %4621 = vmatprep.subr.mxu0 0.0
    %4622 = vmatpush1.msra.mxu0 %v4559
    %4623 = vmatprep.subr.mxu0 0.0
    %4624 = vmatpush1.msra.mxu0 %v4558
    %4625 = vmatprep.subr.mxu0 0.0
    %4626 = vmatpush2.msra.mxu0 0.0
    %4627 = vmatprep.subr.mxu0 0.0
    %4628 = vmatpush2.msra.mxu0 0.0
    %4629 = vmatprep.subr.mxu0 0.0
    %4630 = vmatpush2.msra.mxu0 0.0
    %4631 = vmatprep.subr.mxu0 0.0
    %4632 = vmatpush2.msra.mxu0 0.0
    %4633 = vmatprep.subr.mxu0 0.0
    %4634 = vmatpush2.msra.mxu0 0.0
    %4635 = vmatprep.subr.mxu0 0.0
    %4636 = vmatpush2.msra.mxu0 0.0
    %4637 = vmatprep.subr.mxu0 0.0
    %4638 = vmatpush2.msra.mxu0 0.0
    %4639 = vmatprep.subr.mxu0 0.0
    %4640 = vmatpush2.msra.mxu0 0.0
    %4641 = vmatprep.subr.mxu0 0.0
    %4642 = vmatpush2.msra.mxu0 0.0
    %4643 = vmatprep.subr.mxu0 0.0
    %4644 = vmatpush2.msra.mxu0 0.0
    %4645 = vmatprep.subr.mxu0 0.0
    %4646 = vmatpush2.msra.mxu0 0.0
    %4647 = vmatprep.subr.mxu0 0.0
    %4648 = vmatpush2.msra.mxu0 0.0
    %4649 = vmatprep.subr.mxu0 0.0
    %4650 = vmatpush2.msra.mxu0 0.0
    %4651 = vmatprep.subr.mxu0 0.0
    %4652 = vmatpush2.msra.mxu0 0.0
    %4653 = vmatprep.subr.mxu0 0.0
    %4654 = vmatpush2.msra.mxu0 0.0
    %4655 = vmatprep.subr.mxu0 0.0
    %4656 = vmatpush2.msra.mxu0 0.0
    %4657 = vmatprep.mubr.f32.mxu0 0.0
    %4658 = vmatmul.mubr.f32.gmra.mxu0 %v4570
    %v4659 = vpop.f32.mrf.mxu0
    %v4660 = vadd.f32 %v4567, %v4659
    %v4661 = vpop.f32.mrf.mxu0
    %4662 = vmatprep.mubr.f32.mxu0 0.0
    %4663 = vmatmul.mubr.f32.gmra.mxu0 %v4573
    %v4664 = vpop.f32.mrf.mxu0
    %v4665 = vadd.f32 %v4567, %v4664
    %v4666 = vpop.f32.mrf.mxu0
    %4667 = vmatprep.mubr.f32.mxu0 0.0
    %4668 = vmatmul.mubr.f32.gmra.mxu0 %v4576
    %v4669 = vpop.f32.mrf.mxu0
    %v4670 = vadd.f32 %v4567, %v4669
    %v4671 = vpop.f32.mrf.mxu0
    %4672 = vmatprep.mubr.f32.mxu0 0.0
    %4673 = vmatmul.mubr.f32.gmra.mxu0 %v4579
    %v4674 = vpop.f32.mrf.mxu0
    %v4675 = vadd.f32 %v4567, %v4674
    %v4676 = vpop.f32.mrf.mxu0
    %4677 = vmatprep.mubr.f32.mxu0 0.0
    %4678 = vmatmul.mubr.f32.gmra.mxu0 %v4582
    %v4679 = vpop.f32.mrf.mxu0
    %v4680 = vadd.f32 %v4567, %v4679
    %v4681 = vpop.f32.mrf.mxu0
    %4682 = vmatprep.mubr.f32.mxu0 0.0
    %4683 = vmatmul.mubr.f32.gmra.mxu0 %v4585
    %v4684 = vpop.f32.mrf.mxu0
    %v4685 = vadd.f32 %v4567, %v4684
    %v4686 = vpop.f32.mrf.mxu0
    %4687 = vmatprep.mubr.f32.mxu0 0.0
    %4688 = vmatmul.mubr.f32.gmra.mxu0 %v4588
    %v4689 = vpop.f32.mrf.mxu0
    %v4690 = vadd.f32 %v4567, %v4689
    %v4691 = vpop.f32.mrf.mxu0
    %4692 = vmatprep.mubr.f32.mxu0 0.0
    %4693 = vmatmul.mubr.f32.gmra.mxu0 %v4591
    %v4694 = vpop.f32.mrf.mxu0
    %v4695 = vadd.f32 %v4567, %v4694
    %v4696 = vpop.f32.mrf.mxu0
    %4697 = vdwg.mxu0
    %v4698 = vmax.f32 %v4660, 0.0
    %v4699 = vmax.f32 %v4665, 0.0
    %v4700 = vmax.f32 %v4670, 0.0
    %v4701 = vmax.f32 %v4675, 0.0
    %v4702 = vmax.f32 %v4680, 0.0
    %v4703 = vmax.f32 %v4685, 0.0
    %v4704 = vmax.f32 %v4690, 0.0
    %v4705 = vmax.f32 %v4695, 0.0
    %v4706 = vand.u32 2147483647, %v4660
    %v4707 = vand.u32 2147483647, %v4665
    %v4708 = vand.u32 2147483647, %v4670
    %v4709 = vand.u32 2147483647, %v4675
    %v4710 = vand.u32 2147483647, %v4680
    %v4711 = vand.u32 2147483647, %v4685
    %v4712 = vand.u32 2147483647, %v4690
    %v4713 = vand.u32 2147483647, %v4695
    %v4714 = vsub.f32 0.0, %v4706
    %v4715 = vsub.f32 0.0, %v4707
    %v4716 = vsub.f32 0.0, %v4708
    %v4717 = vsub.f32 0.0, %v4709
    %v4718 = vsub.f32 0.0, %v4710
    %v4719 = vsub.f32 0.0, %v4711
    %v4720 = vsub.f32 0.0, %v4712
    %v4721 = vsub.f32 0.0, %v4713
    %v4722 = vmul.f32 %v4714, 1.442695
    %v4723 = vpow.pop %v4722
    %v4724 = vmul.f32 %v4715, 1.442695
    %v4725 = vpow.pop %v4724
    %v4726 = vmul.f32 %v4716, 1.442695
    %v4727 = vpow.pop %v4726
    %v4728 = vmul.f32 %v4717, 1.442695
    %v4729 = vpow.pop %v4728
    %v4730 = vmul.f32 %v4718, 1.442695
    %v4731 = vpow.pop %v4730
    %v4732 = vmul.f32 %v4719, 1.442695
    %v4733 = vpow.pop %v4732
    %v4734 = vmul.f32 %v4720, 1.442695
    %v4735 = vpow.pop %v4734
    %v4736 = vmul.f32 %v4721, 1.442695
    %v4737 = vpow.pop %v4736
    %v4738 = vadd.f32 %v4723, 1.0
    %v4739 = vlog2.pop %v4738
    %v4740 = vmul.f32 %v4739, 0.6931472
    %v4741 = vmul.f32 -0.5, %v4723
    %v4742 = vadd.f32 %v4741, 1.0
    %v4743 = vmul.f32 %v4742, %v4723
    %v4744 = vand.u32 2147483647, %v4723
    %vm4745 = vcmp.lt.f32.partialorder %v4744, 0.0004427343
    %v4746 = vsel %vm4745, %v4743, %v4740
    %v4747 = vadd.f32 %v4725, 1.0
    %v4748 = vlog2.pop %v4747
    %v4749 = vmul.f32 %v4748, 0.6931472
    %v4750 = vmul.f32 -0.5, %v4725
    %v4751 = vadd.f32 %v4750, 1.0
    %v4752 = vmul.f32 %v4751, %v4725
    %v4753 = vand.u32 2147483647, %v4725
    %vm4754 = vcmp.lt.f32.partialorder %v4753, 0.0004427343
    %v4755 = vsel %vm4754, %v4752, %v4749
    %v4756 = vadd.f32 %v4727, 1.0
    %v4757 = vlog2.pop %v4756
    %v4758 = vmul.f32 %v4757, 0.6931472
    %v4759 = vmul.f32 -0.5, %v4727
    %v4760 = vadd.f32 %v4759, 1.0
    %v4761 = vmul.f32 %v4760, %v4727
    %v4762 = vand.u32 2147483647, %v4727
    %vm4763 = vcmp.lt.f32.partialorder %v4762, 0.0004427343
    %v4764 = vsel %vm4763, %v4761, %v4758
    %v4765 = vadd.f32 %v4729, 1.0
    %v4766 = vlog2.pop %v4765
    %v4767 = vmul.f32 %v4766, 0.6931472
    %v4768 = vmul.f32 -0.5, %v4729
    %v4769 = vadd.f32 %v4768, 1.0
    %v4770 = vmul.f32 %v4769, %v4729
    %v4771 = vand.u32 2147483647, %v4729
    %vm4772 = vcmp.lt.f32.partialorder %v4771, 0.0004427343
    %v4773 = vsel %vm4772, %v4770, %v4767
    %v4774 = vadd.f32 %v4731, 1.0
    %v4775 = vlog2.pop %v4774
    %v4776 = vmul.f32 %v4775, 0.6931472
    %v4777 = vmul.f32 -0.5, %v4731
    %v4778 = vadd.f32 %v4777, 1.0
    %v4779 = vmul.f32 %v4778, %v4731
    %v4780 = vand.u32 2147483647, %v4731
    %vm4781 = vcmp.lt.f32.partialorder %v4780, 0.0004427343
    %v4782 = vsel %vm4781, %v4779, %v4776
    %v4783 = vadd.f32 %v4733, 1.0
    %v4784 = vlog2.pop %v4783
    %v4785 = vmul.f32 %v4784, 0.6931472
    %v4786 = vmul.f32 -0.5, %v4733
    %v4787 = vadd.f32 %v4786, 1.0
    %v4788 = vmul.f32 %v4787, %v4733
    %v4789 = vand.u32 2147483647, %v4733
    %vm4790 = vcmp.lt.f32.partialorder %v4789, 0.0004427343
    %v4791 = vsel %vm4790, %v4788, %v4785
    %v4792 = vadd.f32 %v4735, 1.0
    %v4793 = vlog2.pop %v4792
    %v4794 = vmul.f32 %v4793, 0.6931472
    %v4795 = vmul.f32 -0.5, %v4735
    %v4796 = vadd.f32 %v4795, 1.0
    %v4797 = vmul.f32 %v4796, %v4735
    %v4798 = vand.u32 2147483647, %v4735
    %vm4799 = vcmp.lt.f32.partialorder %v4798, 0.0004427343
    %v4800 = vsel %vm4799, %v4797, %v4794
    %v4801 = vadd.f32 %v4737, 1.0
    %v4802 = vlog2.pop %v4801
    %v4803 = vmul.f32 %v4802, 0.6931472
    %v4804 = vmul.f32 -0.5, %v4737
    %v4805 = vadd.f32 %v4804, 1.0
    %v4806 = vmul.f32 %v4805, %v4737
    %v4807 = vand.u32 2147483647, %v4737
    %vm4808 = vcmp.lt.f32.partialorder %v4807, 0.0004427343
    %v4809 = vsel %vm4808, %v4806, %v4803
    %v4810 = vadd.f32 %v4698, %v4746
    %v4811 = vadd.f32 %v4699, %v4755
    %v4812 = vadd.f32 %v4700, %v4764
    %v4813 = vadd.f32 %v4701, %v4773
    %v4814 = vadd.f32 %v4702, %v4782
    %v4815 = vadd.f32 %v4703, %v4791
    %v4816 = vadd.f32 %v4704, %v4800
    %v4817 = vadd.f32 %v4705, %v4809
    %v4818 = vld [vmem:[#allocation4] sm:$0xff]
    %v4819 = vld [vmem:[#allocation4 + $0x8] sm:$0xff]
    %v4820 = vld [vmem:[#allocation4 + $0x10] sm:$0xff]
    %v4821 = vld [vmem:[#allocation4 + $0x18] sm:$0xff]
    %v4822 = vld [vmem:[#allocation4 + $0x20] sm:$0xff]
    %v4823 = vld [vmem:[#allocation4 + $0x28] sm:$0xff]
    %v4824 = vld [vmem:[#allocation4 + $0x30] sm:$0xff]
    %v4825 = vld [vmem:[#allocation4 + $0x38] sm:$0xff]
    %v4826 = vld [vmem:[#allocation25] sm:$0xff]
    %v4827 = vld [vmem:[#allocation25 + $0x8] sm:$0xff]
    %v4828 = vld [vmem:[#allocation25 + $0x10] sm:$0xff]
    %v4829 = vld [vmem:[#allocation25 + $0x18] sm:$0xff]
    %4838 = vrot.lane.b32.xlu0 %v4497, 96
    %v4839 = vpop.permute.xlu0 %4838
    %4840 = vrot.lane.b32.xlu0 %v4502, 96
    %v4841 = vpop.permute.xlu0 %4840
    %4842 = vrot.lane.b32.xlu0 %v4507, 96
    %v4843 = vpop.permute.xlu0 %4842
    %4844 = vrot.lane.b32.xlu0 %v4512, 96
    %v4845 = vpop.permute.xlu0 %4844
    %4846 = vrot.lane.b32.xlu0 %v4517, 96
    %v4847 = vpop.permute.xlu0 %4846
    %4848 = vrot.lane.b32.xlu0 %v4522, 96
    %v4849 = vpop.permute.xlu0 %4848
    %4850 = vrot.lane.b32.xlu0 %v4527, 96
    %v4851 = vpop.permute.xlu0 %4850
    %4852 = vrot.lane.b32.xlu0 %v4532, 96
    %v4853 = vpop.permute.xlu0 %4852
    %v4863 = vsel %vm449, %v4818, 0
    %v4866 = vsel %vm449, %v4819, 0
    %v4869 = vsel %vm449, %v4820, 0
    %v4872 = vsel %vm449, %v4821, 0
    %v4875 = vsel %vm449, %v4822, 0
    %v4878 = vsel %vm449, %v4823, 0
    %v4881 = vsel %vm449, %v4824, 0
    %v4884 = vsel %vm449, %v4825, 0
    %4886 = vmatprep.subr.mxu0 0.0
    %4887 = vmatpush1.msra.mxu0 0.0
    %4888 = vmatprep.subr.mxu0 0.0
    %4889 = vmatpush1.msra.mxu0 0.0
    %4890 = vmatprep.subr.mxu0 0.0
    %4891 = vmatpush1.msra.mxu0 0.0
    %4892 = vmatprep.subr.mxu0 0.0
    %4893 = vmatpush1.msra.mxu0 0.0
    %4894 = vmatprep.subr.mxu0 0.0
    %4895 = vmatpush1.msra.mxu0 0.0
    %4896 = vmatprep.subr.mxu0 0.0
    %4897 = vmatpush1.msra.mxu0 0.0
    %4898 = vmatprep.subr.mxu0 0.0
    %4899 = vmatpush1.msra.mxu0 0.0
    %4900 = vmatprep.subr.mxu0 0.0
    %4901 = vmatpush1.msra.mxu0 0.0
    %4902 = vmatprep.subr.mxu0 0.0
    %4903 = vmatpush1.msra.mxu0 0.0
    %4904 = vmatprep.subr.mxu0 0.0
    %4905 = vmatpush1.msra.mxu0 0.0
    %4906 = vmatprep.subr.mxu0 0.0
    %4907 = vmatpush1.msra.mxu0 0.0
    %4908 = vmatprep.subr.mxu0 0.0
    %4909 = vmatpush1.msra.mxu0 0.0
    %4910 = vmatprep.subr.mxu0 0.0
    %4911 = vmatpush1.msra.mxu0 %v4829
    %4912 = vmatprep.subr.mxu0 0.0
    %4913 = vmatpush1.msra.mxu0 %v4828
    %4914 = vmatprep.subr.mxu0 0.0
    %4915 = vmatpush1.msra.mxu0 %v4827
    %4916 = vmatprep.subr.mxu0 0.0
    %4917 = vmatpush1.msra.mxu0 %v4826
    %4918 = vmatprep.subr.mxu0 0.0
    %4919 = vmatpush2.msra.mxu0 0.0
    %4920 = vmatprep.subr.mxu0 0.0
    %4921 = vmatpush2.msra.mxu0 0.0
    %4922 = vmatprep.subr.mxu0 0.0
    %4923 = vmatpush2.msra.mxu0 0.0
    %4924 = vmatprep.subr.mxu0 0.0
    %4925 = vmatpush2.msra.mxu0 0.0
    %4926 = vmatprep.subr.mxu0 0.0
    %4927 = vmatpush2.msra.mxu0 0.0
    %4928 = vmatprep.subr.mxu0 0.0
    %4929 = vmatpush2.msra.mxu0 0.0
    %4930 = vmatprep.subr.mxu0 0.0
    %4931 = vmatpush2.msra.mxu0 0.0
    %4932 = vmatprep.subr.mxu0 0.0
    %4933 = vmatpush2.msra.mxu0 0.0
    %4934 = vmatprep.subr.mxu0 0.0
    %4935 = vmatpush2.msra.mxu0 0.0
    %4936 = vmatprep.subr.mxu0 0.0
    %4937 = vmatpush2.msra.mxu0 0.0
    %4938 = vmatprep.subr.mxu0 0.0
    %4939 = vmatpush2.msra.mxu0 0.0
    %4940 = vmatprep.subr.mxu0 0.0
    %4941 = vmatpush2.msra.mxu0 0.0
    %4942 = vmatprep.subr.mxu0 0.0
    %4943 = vmatpush2.msra.mxu0 0.0
    %4944 = vmatprep.subr.mxu0 0.0
    %4945 = vmatpush2.msra.mxu0 0.0
    %4946 = vmatprep.subr.mxu0 0.0
    %4947 = vmatpush2.msra.mxu0 0.0
    %4948 = vmatprep.subr.mxu0 0.0
    %4949 = vmatpush2.msra.mxu0 0.0
    %4950 = vmatprep.mubr.f32.mxu0 0.0
    %4951 = vmatmul.mubr.f32.gmra.mxu0 %v4863
    %v4952 = vpop.f32.mrf.mxu0
    %v4953 = vadd.f32 %v4839, %v4952
    %v4954 = vpop.f32.mrf.mxu0
    %4955 = vmatprep.mubr.f32.mxu0 0.0
    %4956 = vmatmul.mubr.f32.gmra.mxu0 %v4866
    %v4957 = vpop.f32.mrf.mxu0
    %v4958 = vadd.f32 %v4841, %v4957
    %v4959 = vpop.f32.mrf.mxu0
    %4960 = vmatprep.mubr.f32.mxu0 0.0
    %4961 = vmatmul.mubr.f32.gmra.mxu0 %v4869
    %v4962 = vpop.f32.mrf.mxu0
    %v4963 = vadd.f32 %v4843, %v4962
    %v4964 = vpop.f32.mrf.mxu0
    %4965 = vmatprep.mubr.f32.mxu0 0.0
    %4966 = vmatmul.mubr.f32.gmra.mxu0 %v4872
    %v4967 = vpop.f32.mrf.mxu0
    %v4968 = vadd.f32 %v4845, %v4967
    %v4969 = vpop.f32.mrf.mxu0
    %4970 = vmatprep.mubr.f32.mxu0 0.0
    %4971 = vmatmul.mubr.f32.gmra.mxu0 %v4875
    %v4972 = vpop.f32.mrf.mxu0
    %v4973 = vadd.f32 %v4847, %v4972
    %v4974 = vpop.f32.mrf.mxu0
    %4975 = vmatprep.mubr.f32.mxu0 0.0
    %4976 = vmatmul.mubr.f32.gmra.mxu0 %v4878
    %v4977 = vpop.f32.mrf.mxu0
    %v4978 = vadd.f32 %v4849, %v4977
    %v4979 = vpop.f32.mrf.mxu0
    %4980 = vmatprep.mubr.f32.mxu0 0.0
    %4981 = vmatmul.mubr.f32.gmra.mxu0 %v4881
    %v4982 = vpop.f32.mrf.mxu0
    %v4983 = vadd.f32 %v4851, %v4982
    %v4984 = vpop.f32.mrf.mxu0
    %4985 = vmatprep.mubr.f32.mxu0 0.0
    %4986 = vmatmul.mubr.f32.gmra.mxu0 %v4884
    %v4987 = vpop.f32.mrf.mxu0
    %v4988 = vadd.f32 %v4853, %v4987
    %v4989 = vpop.f32.mrf.mxu0
    %4990 = vdwg.mxu0
    %v4991 = vld [vmem:[%s45] sm:$0x1]
    %v4993 = vlaneseq
    %v4994 = vshrl.u32 %v4993, 7
    %v4995 = vsub.s32 0, %v4994
    %v4996 = vrot.slane %v4991, %v4995
    %v4998 = vadd.f32 %v4953, %v4996
    %v4999 = vadd.f32 %v4958, %v4996
    %v5000 = vadd.f32 %v4963, %v4996
    %v5001 = vadd.f32 %v4968, %v4996
    %v5002 = vadd.f32 %v4973, %v4996
    %v5003 = vadd.f32 %v4978, %v4996
    %v5004 = vadd.f32 %v4983, %v4996
    %v5005 = vadd.f32 %v4988, %v4996
    %v5006 = vmax.f32 %v4998, 0.0
    %v5007 = vmax.f32 %v4999, 0.0
    %v5008 = vmax.f32 %v5000, 0.0
    %v5009 = vmax.f32 %v5001, 0.0
    %v5010 = vmax.f32 %v5002, 0.0
    %v5011 = vmax.f32 %v5003, 0.0
    %v5012 = vmax.f32 %v5004, 0.0
    %v5013 = vmax.f32 %v5005, 0.0
    %v5014 = vld [vmem:[#allocation26] sm:$0xff]
    %v5015 = vld [vmem:[#allocation26 + $0x8] sm:$0xff]
    %v5016 = vld [vmem:[#allocation26 + $0x10] sm:$0xff]
    %v5017 = vld [vmem:[#allocation26 + $0x18] sm:$0xff]
    %v5018 = vld [vmem:[%s49] sm:$0x1]
    %v5020 = vlaneseq
    %v5021 = vshrl.u32 %v5020, 7
    %v5022 = vsub.s32 0, %v5021
    %v5023 = vrot.slane %v5018, %v5022
    %v5026 = vsel %vm449, %v5006, 0
    %v5029 = vsel %vm449, %v5007, 0
    %v5032 = vsel %vm449, %v5008, 0
    %v5035 = vsel %vm449, %v5009, 0
    %v5038 = vsel %vm449, %v5010, 0
    %v5041 = vsel %vm449, %v5011, 0
    %v5044 = vsel %vm449, %v5012, 0
    %v5047 = vsel %vm449, %v5013, 0
    %5049 = vmatprep.subr.mxu0 0.0
    %5050 = vmatpush1.msra.mxu0 0.0
    %5051 = vmatprep.subr.mxu0 0.0
    %5052 = vmatpush1.msra.mxu0 0.0
    %5053 = vmatprep.subr.mxu0 0.0
    %5054 = vmatpush1.msra.mxu0 0.0
    %5055 = vmatprep.subr.mxu0 0.0
    %5056 = vmatpush1.msra.mxu0 0.0
    %5057 = vmatprep.subr.mxu0 0.0
    %5058 = vmatpush1.msra.mxu0 0.0
    %5059 = vmatprep.subr.mxu0 0.0
    %5060 = vmatpush1.msra.mxu0 0.0
    %5061 = vmatprep.subr.mxu0 0.0
    %5062 = vmatpush1.msra.mxu0 0.0
    %5063 = vmatprep.subr.mxu0 0.0
    %5064 = vmatpush1.msra.mxu0 0.0
    %5065 = vmatprep.subr.mxu0 0.0
    %5066 = vmatpush1.msra.mxu0 0.0
    %5067 = vmatprep.subr.mxu0 0.0
    %5068 = vmatpush1.msra.mxu0 0.0
    %5069 = vmatprep.subr.mxu0 0.0
    %5070 = vmatpush1.msra.mxu0 0.0
    %5071 = vmatprep.subr.mxu0 0.0
    %5072 = vmatpush1.msra.mxu0 0.0
    %5073 = vmatprep.subr.mxu0 0.0
    %5074 = vmatpush1.msra.mxu0 %v5017
    %5075 = vmatprep.subr.mxu0 0.0
    %5076 = vmatpush1.msra.mxu0 %v5016
    %5077 = vmatprep.subr.mxu0 0.0
    %5078 = vmatpush1.msra.mxu0 %v5015
    %5079 = vmatprep.subr.mxu0 0.0
    %5080 = vmatpush1.msra.mxu0 %v5014
    %5081 = vmatprep.subr.mxu0 0.0
    %5082 = vmatpush2.msra.mxu0 0.0
    %5083 = vmatprep.subr.mxu0 0.0
    %5084 = vmatpush2.msra.mxu0 0.0
    %5085 = vmatprep.subr.mxu0 0.0
    %5086 = vmatpush2.msra.mxu0 0.0
    %5087 = vmatprep.subr.mxu0 0.0
    %5088 = vmatpush2.msra.mxu0 0.0
    %5089 = vmatprep.subr.mxu0 0.0
    %5090 = vmatpush2.msra.mxu0 0.0
    %5091 = vmatprep.subr.mxu0 0.0
    %5092 = vmatpush2.msra.mxu0 0.0
    %5093 = vmatprep.subr.mxu0 0.0
    %5094 = vmatpush2.msra.mxu0 0.0
    %5095 = vmatprep.subr.mxu0 0.0
    %5096 = vmatpush2.msra.mxu0 0.0
    %5097 = vmatprep.subr.mxu0 0.0
    %5098 = vmatpush2.msra.mxu0 0.0
    %5099 = vmatprep.subr.mxu0 0.0
    %5100 = vmatpush2.msra.mxu0 0.0
    %5101 = vmatprep.subr.mxu0 0.0
    %5102 = vmatpush2.msra.mxu0 0.0
    %5103 = vmatprep.subr.mxu0 0.0
    %5104 = vmatpush2.msra.mxu0 0.0
    %5105 = vmatprep.subr.mxu0 0.0
    %5106 = vmatpush2.msra.mxu0 0.0
    %5107 = vmatprep.subr.mxu0 0.0
    %5108 = vmatpush2.msra.mxu0 0.0
    %5109 = vmatprep.subr.mxu0 0.0
    %5110 = vmatpush2.msra.mxu0 0.0
    %5111 = vmatprep.subr.mxu0 0.0
    %5112 = vmatpush2.msra.mxu0 0.0
    %5113 = vmatprep.mubr.f32.mxu0 0.0
    %5114 = vmatmul.mubr.f32.gmra.mxu0 %v5026
    %v5115 = vpop.f32.mrf.mxu0
    %v5116 = vadd.f32 %v5023, %v5115
    %v5117 = vpop.f32.mrf.mxu0
    %5118 = vmatprep.mubr.f32.mxu0 0.0
    %5119 = vmatmul.mubr.f32.gmra.mxu0 %v5029
    %v5120 = vpop.f32.mrf.mxu0
    %v5121 = vadd.f32 %v5023, %v5120
    %v5122 = vpop.f32.mrf.mxu0
    %5123 = vmatprep.mubr.f32.mxu0 0.0
    %5124 = vmatmul.mubr.f32.gmra.mxu0 %v5032
    %v5125 = vpop.f32.mrf.mxu0
    %v5126 = vadd.f32 %v5023, %v5125
    %v5127 = vpop.f32.mrf.mxu0
    %5128 = vmatprep.mubr.f32.mxu0 0.0
    %5129 = vmatmul.mubr.f32.gmra.mxu0 %v5035
    %v5130 = vpop.f32.mrf.mxu0
    %v5131 = vadd.f32 %v5023, %v5130
    %v5132 = vpop.f32.mrf.mxu0
    %5133 = vmatprep.mubr.f32.mxu0 0.0
    %5134 = vmatmul.mubr.f32.gmra.mxu0 %v5038
    %v5135 = vpop.f32.mrf.mxu0
    %v5136 = vadd.f32 %v5023, %v5135
    %v5137 = vpop.f32.mrf.mxu0
    %5138 = vmatprep.mubr.f32.mxu0 0.0
    %5139 = vmatmul.mubr.f32.gmra.mxu0 %v5041
    %v5140 = vpop.f32.mrf.mxu0
    %v5141 = vadd.f32 %v5023, %v5140
    %v5142 = vpop.f32.mrf.mxu0
    %5143 = vmatprep.mubr.f32.mxu0 0.0
    %5144 = vmatmul.mubr.f32.gmra.mxu0 %v5044
    %v5145 = vpop.f32.mrf.mxu0
    %v5146 = vadd.f32 %v5023, %v5145
    %v5147 = vpop.f32.mrf.mxu0
    %5148 = vmatprep.mubr.f32.mxu0 0.0
    %5149 = vmatmul.mubr.f32.gmra.mxu0 %v5047
    %v5150 = vpop.f32.mrf.mxu0
    %v5151 = vadd.f32 %v5023, %v5150
    %v5152 = vpop.f32.mrf.mxu0
    %5153 = vdwg.mxu0
    %v5154 = vmax.f32 %v5116, 0.0
    %v5155 = vmax.f32 %v5121, 0.0
    %v5156 = vmax.f32 %v5126, 0.0
    %v5157 = vmax.f32 %v5131, 0.0
    %v5158 = vmax.f32 %v5136, 0.0
    %v5159 = vmax.f32 %v5141, 0.0
    %v5160 = vmax.f32 %v5146, 0.0
    %v5161 = vmax.f32 %v5151, 0.0
    %v5162 = vld [vmem:[%s51] sm:$0xff]
    %v5163 = vld [vmem:[%s51 + $0x8] sm:$0xff]
    %v5164 = vld [vmem:[%s51 + $0x10] sm:$0xff]
    %v5165 = vld [vmem:[%s51 + $0x18] sm:$0xff]
    %v5166 = vld [vmem:[%s53] sm:$0x1]
    %v5168 = vlaneseq
    %v5169 = vshrl.u32 %v5168, 7
    %v5170 = vsub.s32 0, %v5169
    %v5171 = vrot.slane %v5166, %v5170
    %v5174 = vsel %vm449, %v5154, 0
    %v5177 = vsel %vm449, %v5155, 0
    %v5180 = vsel %vm449, %v5156, 0
    %v5183 = vsel %vm449, %v5157, 0
    %v5186 = vsel %vm449, %v5158, 0
    %v5189 = vsel %vm449, %v5159, 0
    %v5192 = vsel %vm449, %v5160, 0
    %v5195 = vsel %vm449, %v5161, 0
    %5197 = vmatprep.subr.mxu0 0.0
    %5198 = vmatpush1.msra.mxu0 0.0
    %5199 = vmatprep.subr.mxu0 0.0
    %5200 = vmatpush1.msra.mxu0 0.0
    %5201 = vmatprep.subr.mxu0 0.0
    %5202 = vmatpush1.msra.mxu0 0.0
    %5203 = vmatprep.subr.mxu0 0.0
    %5204 = vmatpush1.msra.mxu0 0.0
    %5205 = vmatprep.subr.mxu0 0.0
    %5206 = vmatpush1.msra.mxu0 0.0
    %5207 = vmatprep.subr.mxu0 0.0
    %5208 = vmatpush1.msra.mxu0 0.0
    %5209 = vmatprep.subr.mxu0 0.0
    %5210 = vmatpush1.msra.mxu0 0.0
    %5211 = vmatprep.subr.mxu0 0.0
    %5212 = vmatpush1.msra.mxu0 0.0
    %5213 = vmatprep.subr.mxu0 0.0
    %5214 = vmatpush1.msra.mxu0 0.0
    %5215 = vmatprep.subr.mxu0 0.0
    %5216 = vmatpush1.msra.mxu0 0.0
    %5217 = vmatprep.subr.mxu0 0.0
    %5218 = vmatpush1.msra.mxu0 0.0
    %5219 = vmatprep.subr.mxu0 0.0
    %5220 = vmatpush1.msra.mxu0 0.0
    %5221 = vmatprep.subr.mxu0 0.0
    %5222 = vmatpush1.msra.mxu0 %v5165
    %5223 = vmatprep.subr.mxu0 0.0
    %5224 = vmatpush1.msra.mxu0 %v5164
    %5225 = vmatprep.subr.mxu0 0.0
    %5226 = vmatpush1.msra.mxu0 %v5163
    %5227 = vmatprep.subr.mxu0 0.0
    %5228 = vmatpush1.msra.mxu0 %v5162
    %5229 = vmatprep.subr.mxu0 0.0
    %5230 = vmatpush2.msra.mxu0 0.0
    %5231 = vmatprep.subr.mxu0 0.0
    %5232 = vmatpush2.msra.mxu0 0.0
    %5233 = vmatprep.subr.mxu0 0.0
    %5234 = vmatpush2.msra.mxu0 0.0
    %5235 = vmatprep.subr.mxu0 0.0
    %5236 = vmatpush2.msra.mxu0 0.0
    %5237 = vmatprep.subr.mxu0 0.0
    %5238 = vmatpush2.msra.mxu0 0.0
    %5239 = vmatprep.subr.mxu0 0.0
    %5240 = vmatpush2.msra.mxu0 0.0
    %5241 = vmatprep.subr.mxu0 0.0
    %5242 = vmatpush2.msra.mxu0 0.0
    %5243 = vmatprep.subr.mxu0 0.0
    %5244 = vmatpush2.msra.mxu0 0.0
    %5245 = vmatprep.subr.mxu0 0.0
    %5246 = vmatpush2.msra.mxu0 0.0
    %5247 = vmatprep.subr.mxu0 0.0
    %5248 = vmatpush2.msra.mxu0 0.0
    %5249 = vmatprep.subr.mxu0 0.0
    %5250 = vmatpush2.msra.mxu0 0.0
    %5251 = vmatprep.subr.mxu0 0.0
    %5252 = vmatpush2.msra.mxu0 0.0
    %5253 = vmatprep.subr.mxu0 0.0
    %5254 = vmatpush2.msra.mxu0 0.0
    %5255 = vmatprep.subr.mxu0 0.0
    %5256 = vmatpush2.msra.mxu0 0.0
    %5257 = vmatprep.subr.mxu0 0.0
    %5258 = vmatpush2.msra.mxu0 0.0
    %5259 = vmatprep.subr.mxu0 0.0
    %5260 = vmatpush2.msra.mxu0 0.0
    %5261 = vmatprep.mubr.f32.mxu0 0.0
    %5262 = vmatmul.mubr.f32.gmra.mxu0 %v5174
    %v5263 = vpop.f32.mrf.mxu0
    %v5264 = vadd.f32 %v5171, %v5263
    %v5265 = vpop.f32.mrf.mxu0
    %5266 = vmatprep.mubr.f32.mxu0 0.0
    %5267 = vmatmul.mubr.f32.gmra.mxu0 %v5177
    %v5268 = vpop.f32.mrf.mxu0
    %v5269 = vadd.f32 %v5171, %v5268
    %v5270 = vpop.f32.mrf.mxu0
    %5271 = vmatprep.mubr.f32.mxu0 0.0
    %5272 = vmatmul.mubr.f32.gmra.mxu0 %v5180
    %v5273 = vpop.f32.mrf.mxu0
    %v5274 = vadd.f32 %v5171, %v5273
    %v5275 = vpop.f32.mrf.mxu0
    %5276 = vmatprep.mubr.f32.mxu0 0.0
    %5277 = vmatmul.mubr.f32.gmra.mxu0 %v5183
    %v5278 = vpop.f32.mrf.mxu0
    %v5279 = vadd.f32 %v5171, %v5278
    %v5280 = vpop.f32.mrf.mxu0
    %5281 = vmatprep.mubr.f32.mxu0 0.0
    %5282 = vmatmul.mubr.f32.gmra.mxu0 %v5186
    %v5283 = vpop.f32.mrf.mxu0
    %v5284 = vadd.f32 %v5171, %v5283
    %v5285 = vpop.f32.mrf.mxu0
    %5286 = vmatprep.mubr.f32.mxu0 0.0
    %5287 = vmatmul.mubr.f32.gmra.mxu0 %v5189
    %v5288 = vpop.f32.mrf.mxu0
    %v5289 = vadd.f32 %v5171, %v5288
    %v5290 = vpop.f32.mrf.mxu0
    %5291 = vmatprep.mubr.f32.mxu0 0.0
    %5292 = vmatmul.mubr.f32.gmra.mxu0 %v5192
    %v5293 = vpop.f32.mrf.mxu0
    %v5294 = vadd.f32 %v5171, %v5293
    %v5295 = vpop.f32.mrf.mxu0
    %5296 = vmatprep.mubr.f32.mxu0 0.0
    %5297 = vmatmul.mubr.f32.gmra.mxu0 %v5195
    %v5298 = vpop.f32.mrf.mxu0
    %v5299 = vadd.f32 %v5171, %v5298
    %v5300 = vpop.f32.mrf.mxu0
    %5301 = vdwg.mxu0
    %v5302 = vmul.f32 %v5264, 0.5
    %v5303 = vmul.f32 %v5269, 0.5
    %v5304 = vmul.f32 %v5274, 0.5
    %v5305 = vmul.f32 %v5279, 0.5
    %v5306 = vmul.f32 %v5284, 0.5
    %v5307 = vmul.f32 %v5289, 0.5
    %v5308 = vmul.f32 %v5294, 0.5
    %v5309 = vmul.f32 %v5299, 0.5
    %v5310 = vtanh.pop %v5302
    %v5311 = vtanh.pop %v5303
    %v5312 = vtanh.pop %v5304
    %v5313 = vtanh.pop %v5305
    %v5314 = vtanh.pop %v5306
    %v5315 = vtanh.pop %v5307
    %v5316 = vtanh.pop %v5308
    %v5317 = vtanh.pop %v5309
    %v5318 = vadd.f32 %v5310, 1.0
    %v5319 = vadd.f32 %v5311, 1.0
    %v5320 = vadd.f32 %v5312, 1.0
    %v5321 = vadd.f32 %v5313, 1.0
    %v5322 = vadd.f32 %v5314, 1.0
    %v5323 = vadd.f32 %v5315, 1.0
    %v5324 = vadd.f32 %v5316, 1.0
    %v5325 = vadd.f32 %v5317, 1.0
    %v5326 = vmul.f32 %v5318, 0.5
    %v5327 = vmul.f32 %v5319, 0.5
    %v5328 = vmul.f32 %v5320, 0.5
    %v5329 = vmul.f32 %v5321, 0.5
    %v5330 = vmul.f32 %v5322, 0.5
    %v5331 = vmul.f32 %v5323, 0.5
    %v5332 = vmul.f32 %v5324, 0.5
    %v5333 = vmul.f32 %v5325, 0.5
    %v5334 = vld [vmem:[#allocation5] sm:$0xff]
    %v5335 = vld [vmem:[#allocation5 + $0x8] sm:$0xff]
    %v5336 = vld [vmem:[#allocation5 + $0x10] sm:$0xff]
    %v5337 = vld [vmem:[#allocation5 + $0x18] sm:$0xff]
    %v5338 = vld [vmem:[#allocation5 + $0x20] sm:$0xff]
    %v5339 = vld [vmem:[#allocation5 + $0x28] sm:$0xff]
    %v5340 = vld [vmem:[#allocation5 + $0x30] sm:$0xff]
    %v5341 = vld [vmem:[#allocation5 + $0x38] sm:$0xff]
    %v5342 = vmax.f32 %v5334, 0.0
    %v5343 = vmax.f32 %v5335, 0.0
    %v5344 = vmax.f32 %v5336, 0.0
    %v5345 = vmax.f32 %v5337, 0.0
    %v5346 = vmax.f32 %v5338, 0.0
    %v5347 = vmax.f32 %v5339, 0.0
    %v5348 = vmax.f32 %v5340, 0.0
    %v5349 = vmax.f32 %v5341, 0.0
    %v5350 = vand.u32 2147483647, %v5334
    %v5351 = vand.u32 2147483647, %v5335
    %v5352 = vand.u32 2147483647, %v5336
    %v5353 = vand.u32 2147483647, %v5337
    %v5354 = vand.u32 2147483647, %v5338
    %v5355 = vand.u32 2147483647, %v5339
    %v5356 = vand.u32 2147483647, %v5340
    %v5357 = vand.u32 2147483647, %v5341
    %v5358 = vsub.f32 0.0, %v5350
    %v5359 = vsub.f32 0.0, %v5351
    %v5360 = vsub.f32 0.0, %v5352
    %v5361 = vsub.f32 0.0, %v5353
    %v5362 = vsub.f32 0.0, %v5354
    %v5363 = vsub.f32 0.0, %v5355
    %v5364 = vsub.f32 0.0, %v5356
    %v5365 = vsub.f32 0.0, %v5357
    %v5366 = vmul.f32 %v5358, 1.442695
    %v5367 = vpow.pop %v5366
    %v5368 = vmul.f32 %v5359, 1.442695
    %v5369 = vpow.pop %v5368
    %v5370 = vmul.f32 %v5360, 1.442695
    %v5371 = vpow.pop %v5370
    %v5372 = vmul.f32 %v5361, 1.442695
    %v5373 = vpow.pop %v5372
    %v5374 = vmul.f32 %v5362, 1.442695
    %v5375 = vpow.pop %v5374
    %v5376 = vmul.f32 %v5363, 1.442695
    %v5377 = vpow.pop %v5376
    %v5378 = vmul.f32 %v5364, 1.442695
    %v5379 = vpow.pop %v5378
    %v5380 = vmul.f32 %v5365, 1.442695
    %v5381 = vpow.pop %v5380
    %v5382 = vadd.f32 %v5367, 1.0
    %v5383 = vlog2.pop %v5382
    %v5384 = vmul.f32 %v5383, 0.6931472
    %v5385 = vmul.f32 -0.5, %v5367
    %v5386 = vadd.f32 %v5385, 1.0
    %v5387 = vmul.f32 %v5386, %v5367
    %v5388 = vand.u32 2147483647, %v5367
    %vm5389 = vcmp.lt.f32.partialorder %v5388, 0.0004427343
    %v5390 = vsel %vm5389, %v5387, %v5384
    %v5391 = vadd.f32 %v5369, 1.0
    %v5392 = vlog2.pop %v5391
    %v5393 = vmul.f32 %v5392, 0.6931472
    %v5394 = vmul.f32 -0.5, %v5369
    %v5395 = vadd.f32 %v5394, 1.0
    %v5396 = vmul.f32 %v5395, %v5369
    %v5397 = vand.u32 2147483647, %v5369
    %vm5398 = vcmp.lt.f32.partialorder %v5397, 0.0004427343
    %v5399 = vsel %vm5398, %v5396, %v5393
    %v5400 = vadd.f32 %v5371, 1.0
    %v5401 = vlog2.pop %v5400
    %v5402 = vmul.f32 %v5401, 0.6931472
    %v5403 = vmul.f32 -0.5, %v5371
    %v5404 = vadd.f32 %v5403, 1.0
    %v5405 = vmul.f32 %v5404, %v5371
    %v5406 = vand.u32 2147483647, %v5371
    %vm5407 = vcmp.lt.f32.partialorder %v5406, 0.0004427343
    %v5408 = vsel %vm5407, %v5405, %v5402
    %v5409 = vadd.f32 %v5373, 1.0
    %v5410 = vlog2.pop %v5409
    %v5411 = vmul.f32 %v5410, 0.6931472
    %v5412 = vmul.f32 -0.5, %v5373
    %v5413 = vadd.f32 %v5412, 1.0
    %v5414 = vmul.f32 %v5413, %v5373
    %v5415 = vand.u32 2147483647, %v5373
    %vm5416 = vcmp.lt.f32.partialorder %v5415, 0.0004427343
    %v5417 = vsel %vm5416, %v5414, %v5411
    %v5418 = vadd.f32 %v5375, 1.0
    %v5419 = vlog2.pop %v5418
    %v5420 = vmul.f32 %v5419, 0.6931472
    %v5421 = vmul.f32 -0.5, %v5375
    %v5422 = vadd.f32 %v5421, 1.0
    %v5423 = vmul.f32 %v5422, %v5375
    %v5424 = vand.u32 2147483647, %v5375
    %vm5425 = vcmp.lt.f32.partialorder %v5424, 0.0004427343
    %v5426 = vsel %vm5425, %v5423, %v5420
    %v5427 = vadd.f32 %v5377, 1.0
    %v5428 = vlog2.pop %v5427
    %v5429 = vmul.f32 %v5428, 0.6931472
    %v5430 = vmul.f32 -0.5, %v5377
    %v5431 = vadd.f32 %v5430, 1.0
    %v5432 = vmul.f32 %v5431, %v5377
    %v5433 = vand.u32 2147483647, %v5377
    %vm5434 = vcmp.lt.f32.partialorder %v5433, 0.0004427343
    %v5435 = vsel %vm5434, %v5432, %v5429
    %v5436 = vadd.f32 %v5379, 1.0
    %v5437 = vlog2.pop %v5436
    %v5438 = vmul.f32 %v5437, 0.6931472
    %v5439 = vmul.f32 -0.5, %v5379
    %v5440 = vadd.f32 %v5439, 1.0
    %v5441 = vmul.f32 %v5440, %v5379
    %v5442 = vand.u32 2147483647, %v5379
    %vm5443 = vcmp.lt.f32.partialorder %v5442, 0.0004427343
    %v5444 = vsel %vm5443, %v5441, %v5438
    %v5445 = vadd.f32 %v5381, 1.0
    %v5446 = vlog2.pop %v5445
    %v5447 = vmul.f32 %v5446, 0.6931472
    %v5448 = vmul.f32 -0.5, %v5381
    %v5449 = vadd.f32 %v5448, 1.0
    %v5450 = vmul.f32 %v5449, %v5381
    %v5451 = vand.u32 2147483647, %v5381
    %vm5452 = vcmp.lt.f32.partialorder %v5451, 0.0004427343
    %v5453 = vsel %vm5452, %v5450, %v5447
    %v5454 = vadd.f32 %v5342, %v5390
    %v5455 = vadd.f32 %v5343, %v5399
    %v5456 = vadd.f32 %v5344, %v5408
    %v5457 = vadd.f32 %v5345, %v5417
    %v5458 = vadd.f32 %v5346, %v5426
    %v5459 = vadd.f32 %v5347, %v5435
    %v5460 = vadd.f32 %v5348, %v5444
    %v5461 = vadd.f32 %v5349, %v5453
    %v5462 = vsub.f32 %v283, %v5326
    %v5463 = vsub.f32 %v284, %v5327
    %v5464 = vsub.f32 %v285, %v5328
    %v5465 = vsub.f32 %v286, %v5329
    %v5466 = vsub.f32 %v287, %v5330
    %v5467 = vsub.f32 %v288, %v5331
    %v5468 = vsub.f32 %v289, %v5332
    %v5469 = vsub.f32 %v290, %v5333
    %v5470 = vmul.f32 %v5462, %v5462
    %v5471 = vmul.f32 %v5463, %v5463
    %v5472 = vmul.f32 %v5464, %v5464
    %v5473 = vmul.f32 %v5465, %v5465
    %v5474 = vmul.f32 %v5466, %v5466
    %v5475 = vmul.f32 %v5467, %v5467
    %v5476 = vmul.f32 %v5468, %v5468
    %v5477 = vmul.f32 %v5469, %v5469
    %v5478 = vsel %vm300, %v5470, 0.0
    %v5479 = vsel %vm300, %v5471, 0.0
    %v5480 = vadd.f32 %v5478, %v5479
    %v5481 = vsel %vm300, %v5472, 0.0
    %v5482 = vadd.f32 %v5480, %v5481
    %v5483 = vsel %vm300, %v5473, 0.0
    %v5484 = vadd.f32 %v5482, %v5483
    %v5485 = vsel %vm300, %v5474, 0.0
    %v5486 = vadd.f32 %v5484, %v5485
    %v5487 = vsel %vm300, %v5475, 0.0
    %v5488 = vadd.f32 %v5486, %v5487
    %v5489 = vsel %vm300, %v5476, 0.0
    %v5490 = vadd.f32 %v5488, %v5489
    %v5491 = vsel %vm300, %v5477, 0.0
    %v5492 = vadd.f32 %v5490, %v5491
    %5493 = vadd.xlane.f32.xlu0 %v5492
    %v5494 = vpop.xlane.xlu0 %5493
    %v5495 = vrot.slane %v5494, 4
    %v5496 = vadd.f32 %v5494, %v5495
    %v5497 = vrot.slane %v5496, 2
    %v5498 = vadd.f32 %v5496, %v5497
    %v5499 = vrot.slane %v5498, 1
    %v5500 = vadd.f32 %v5498, %v5499
    %s5501 = vtos %v5500
    %v5502 = vrcp.pop %v5454
    %v5503 = vmul.f32 %v4810, %v5502
    %v5504 = vrcp.pop %v5455
    %v5505 = vmul.f32 %v4811, %v5504
    %v5506 = vrcp.pop %v5456
    %v5507 = vmul.f32 %v4812, %v5506
    %v5508 = vrcp.pop %v5457
    %v5509 = vmul.f32 %v4813, %v5508
    %v5510 = vrcp.pop %v5458
    %v5511 = vmul.f32 %v4814, %v5510
    %v5512 = vrcp.pop %v5459
    %v5513 = vmul.f32 %v4815, %v5512
    %v5514 = vrcp.pop %v5460
    %v5515 = vmul.f32 %v4816, %v5514
    %v5516 = vrcp.pop %v5461
    %v5517 = vmul.f32 %v4817, %v5516
    %v5518 = vlog2.pop %v5503
    %v5519 = vmul.f32 %v5518, 0.6931472
    %v5520 = vlog2.pop %v5505
    %v5521 = vmul.f32 %v5520, 0.6931472
    %v5522 = vlog2.pop %v5507
    %v5523 = vmul.f32 %v5522, 0.6931472
    %v5524 = vlog2.pop %v5509
    %v5525 = vmul.f32 %v5524, 0.6931472
    %v5526 = vlog2.pop %v5511
    %v5527 = vmul.f32 %v5526, 0.6931472
    %v5528 = vlog2.pop %v5513
    %v5529 = vmul.f32 %v5528, 0.6931472
    %v5530 = vlog2.pop %v5515
    %v5531 = vmul.f32 %v5530, 0.6931472
    %v5532 = vlog2.pop %v5517
    %v5533 = vmul.f32 %v5532, 0.6931472
    %v5534 = vmul.f32 %v5454, %v5454
    %v5535 = vmul.f32 %v5455, %v5455
    %v5536 = vmul.f32 %v5456, %v5456
    %v5537 = vmul.f32 %v5457, %v5457
    %v5538 = vmul.f32 %v5458, %v5458
    %v5539 = vmul.f32 %v5459, %v5459
    %v5540 = vmul.f32 %v5460, %v5460
    %v5541 = vmul.f32 %v5461, %v5461
    %v5542 = vsub.f32 %v5334, %v4660
    %v5543 = vsub.f32 %v5335, %v4665
    %v5544 = vsub.f32 %v5336, %v4670
    %v5545 = vsub.f32 %v5337, %v4675
    %v5546 = vsub.f32 %v5338, %v4680
    %v5547 = vsub.f32 %v5339, %v4685
    %v5548 = vsub.f32 %v5340, %v4690
    %v5549 = vsub.f32 %v5341, %v4695
    %v5550 = vmul.f32 %v5542, %v5542
    %v5551 = vmul.f32 %v5543, %v5543
    %v5552 = vmul.f32 %v5544, %v5544
    %v5553 = vmul.f32 %v5545, %v5545
    %v5554 = vmul.f32 %v5546, %v5546
    %v5555 = vmul.f32 %v5547, %v5547
    %v5556 = vmul.f32 %v5548, %v5548
    %v5557 = vmul.f32 %v5549, %v5549
    %5566 = vrot.lane.b32.xlu0 %v5550, 16
    %v5567 = vpop.permute.xlu0 %5566
    %5568 = vrot.lane.b32.xlu0 %v5551, 16
    %v5569 = vpop.permute.xlu0 %5568
    %5570 = vrot.lane.b32.xlu0 %v5552, 16
    %v5571 = vpop.permute.xlu0 %5570
    %5572 = vrot.lane.b32.xlu0 %v5553, 16
    %v5573 = vpop.permute.xlu0 %5572
    %5574 = vrot.lane.b32.xlu0 %v5554, 16
    %v5575 = vpop.permute.xlu0 %5574
    %5576 = vrot.lane.b32.xlu0 %v5555, 16
    %v5577 = vpop.permute.xlu0 %5576
    %5578 = vrot.lane.b32.xlu0 %v5556, 16
    %v5579 = vpop.permute.xlu0 %5578
    %5580 = vrot.lane.b32.xlu0 %v5557, 16
    %v5581 = vpop.permute.xlu0 %5580
    %v5590 = vadd.f32 %v5534, %v5567
    %v5591 = vadd.f32 %v5535, %v5569
    %v5592 = vadd.f32 %v5536, %v5571
    %v5593 = vadd.f32 %v5537, %v5573
    %v5594 = vadd.f32 %v5538, %v5575
    %v5595 = vadd.f32 %v5539, %v5577
    %v5596 = vadd.f32 %v5540, %v5579
    %v5597 = vadd.f32 %v5541, %v5581
    %v5598 = vmul.f32 %v4810, %v4810
    %v5599 = vmul.f32 %v4811, %v4811
    %v5600 = vmul.f32 %v4812, %v4812
    %v5601 = vmul.f32 %v4813, %v4813
    %v5602 = vmul.f32 %v4814, %v4814
    %v5603 = vmul.f32 %v4815, %v4815
    %v5604 = vmul.f32 %v4816, %v4816
    %v5605 = vmul.f32 %v4817, %v4817
    %v5606 = vmul.f32 %v5598, 2.0
    %v5607 = vmul.f32 %v5599, 2.0
    %v5608 = vmul.f32 %v5600, 2.0
    %v5609 = vmul.f32 %v5601, 2.0
    %v5610 = vmul.f32 %v5602, 2.0
    %v5611 = vmul.f32 %v5603, 2.0
    %v5612 = vmul.f32 %v5604, 2.0
    %v5613 = vmul.f32 %v5605, 2.0
    %v5614 = vrcp.pop %v5606
    %v5615 = vmul.f32 %v5590, %v5614
    %v5616 = vrcp.pop %v5607
    %v5617 = vmul.f32 %v5591, %v5616
    %v5618 = vrcp.pop %v5608
    %v5619 = vmul.f32 %v5592, %v5618
    %v5620 = vrcp.pop %v5609
    %v5621 = vmul.f32 %v5593, %v5620
    %v5622 = vrcp.pop %v5610
    %v5623 = vmul.f32 %v5594, %v5622
    %v5624 = vrcp.pop %v5611
    %v5625 = vmul.f32 %v5595, %v5624
    %v5626 = vrcp.pop %v5612
    %v5627 = vmul.f32 %v5596, %v5626
    %v5628 = vrcp.pop %v5613
    %v5629 = vmul.f32 %v5597, %v5628
    %v5630 = vadd.f32 %v5519, %v5615
    %v5631 = vadd.f32 %v5521, %v5617
    %v5632 = vadd.f32 %v5523, %v5619
    %v5633 = vadd.f32 %v5525, %v5621
    %v5634 = vadd.f32 %v5527, %v5623
    %v5635 = vadd.f32 %v5529, %v5625
    %v5636 = vadd.f32 %v5531, %v5627
    %v5637 = vadd.f32 %v5533, %v5629
    %v5638 = vsub.f32 %v5630, 0.5
    %v5639 = vsub.f32 %v5631, 0.5
    %v5640 = vsub.f32 %v5632, 0.5
    %v5641 = vsub.f32 %v5633, 0.5
    %v5642 = vsub.f32 %v5634, 0.5
    %v5643 = vsub.f32 %v5635, 0.5
    %v5644 = vsub.f32 %v5636, 0.5
    %v5645 = vsub.f32 %v5637, 0.5
    %5654 = vrot.lane.b32.xlu0 %v5638, 112
    %v5655 = vpop.permute.xlu0 %5654
    %5656 = vrot.lane.b32.xlu0 %v5639, 112
    %v5657 = vpop.permute.xlu0 %5656
    %5658 = vrot.lane.b32.xlu0 %v5640, 112
    %v5659 = vpop.permute.xlu0 %5658
    %5660 = vrot.lane.b32.xlu0 %v5641, 112
    %v5661 = vpop.permute.xlu0 %5660
    %5662 = vrot.lane.b32.xlu0 %v5642, 112
    %v5663 = vpop.permute.xlu0 %5662
    %5664 = vrot.lane.b32.xlu0 %v5643, 112
    %v5665 = vpop.permute.xlu0 %5664
    %5666 = vrot.lane.b32.xlu0 %v5644, 112
    %v5667 = vpop.permute.xlu0 %5666
    %5668 = vrot.lane.b32.xlu0 %v5645, 112
    %v5669 = vpop.permute.xlu0 %5668
    %v5678 = vsel %vm300, %v5655, 0.0
    %v5679 = vsel %vm300, %v5657, 0.0
    %v5680 = vadd.f32 %v5678, %v5679
    %v5681 = vsel %vm300, %v5659, 0.0
    %v5682 = vadd.f32 %v5680, %v5681
    %v5683 = vsel %vm300, %v5661, 0.0
    %v5684 = vadd.f32 %v5682, %v5683
    %v5685 = vsel %vm300, %v5663, 0.0
    %v5686 = vadd.f32 %v5684, %v5685
    %v5687 = vsel %vm300, %v5665, 0.0
    %v5688 = vadd.f32 %v5686, %v5687
    %v5689 = vsel %vm300, %v5667, 0.0
    %v5690 = vadd.f32 %v5688, %v5689
    %v5691 = vsel %vm300, %v5669, 0.0
    %v5692 = vadd.f32 %v5690, %v5691
    %5693 = vadd.xlane.f32.xlu0 %v5692
    %v5694 = vpop.xlane.xlu0 %5693
    %v5695 = vrot.slane %v5694, 4
    %v5696 = vadd.f32 %v5694, %v5695
    %v5697 = vrot.slane %v5696, 2
    %v5698 = vadd.f32 %v5696, %v5697
    %v5699 = vrot.slane %v5698, 1
    %v5700 = vadd.f32 %v5698, %v5699
    %s5701 = vtos %v5700
    %s5702 = smul.f32 %s5501, 0.0078125
    %s5703 = smul.f32 %s281, %s5702
    %s5704 = smul.f32 %s282, %s5701
    %s5705 = sadd.f32 %s5703, %s5704
    %s5706 = smul.f32 %s5705, 0.015625
    %v5707 = vstv %s5706
    %vm5708 = vcmask 0
    %5709 = vst.msk [vmem:[#allocation28] sm:$0x1] %vm5708, %v5707
    // Predicated region
    $region162: #{tpu_custom_call.1} parent=1 // pred_check
      _
    $region163: #{tpu_custom_call.1} parent=1 // pred_check_branch
      %5711 = sbr.rel (0) target = $region165
    $region164: #{tpu_custom_call.1} parent=1 // pred_region
      %s5713 = ssub.s32 16, 16
      %5714 = vsyncadd [#allocation8], %s5713
      %s5716 = sshll.u32 [#allocation28], 4
      %s5717 = int_to_ptr.vmem [resolvable:$true] %s5716
      %5719 = dma.vmem_to_hbm [thread:$0]  %s5717, 16, %s55, [#allocation8]
    $region165: #{tpu_custom_call.1} parent=1 // pred_fallthru
      _
    // Predicated region
    $region166: #{tpu_custom_call.1} parent=1 // pred_check
      _
    $region167: #{tpu_custom_call.1} parent=1 // pred_check_branch
      %5721 = sbr.rel (0) target = $region169
    $region168: #{tpu_custom_call.1} parent=1 // pred_region
      %s5723 = ssub.s32 128, 128
      %5724 = vsyncadd [#allocation30], %s5723
      %s5726 = sshll.u32 [#allocation29], 4
      %s5727 = int_to_ptr.vmem [resolvable:$true] %s5726
      %5729 = dma.vmem_to_hbm [thread:$0]  %s5727, 128, %s57, [#allocation30]
    $region169: #{tpu_custom_call.1} parent=1 // pred_fallthru
      _
    // Predicated region
    $region170: #{tpu_custom_call.1} parent=1 // pred_check
      _
    $region171: #{tpu_custom_call.1} parent=1 // pred_check_branch
      %5731 = sbr.rel (0) target = $region173
    $region172: #{tpu_custom_call.1} parent=1 // pred_region
      %s5733 = ssub.s32 128, 128
      %5734 = vsyncadd [#allocation30], %s5733
      %s5736 = sshll.u32 [#allocation31], 4
      %s5737 = int_to_ptr.vmem [resolvable:$true] %s5736
      %5739 = dma.vmem_to_hbm [thread:$0]  %s5737, 128, %s59, [#allocation30]
    $region173: #{tpu_custom_call.1} parent=1 // pred_fallthru
      _
    // Predicated region
    $region174: #{tpu_custom_call.1} parent=1 // pred_check
      _
    $region175: #{tpu_custom_call.1} parent=1 // pred_check_branch
      %5741 = sbr.rel (0) target = $region177
    $region176: #{tpu_custom_call.1} parent=1 // pred_region
      %5742 = dma.done [#allocation8], 16
    $region177: #{tpu_custom_call.1} parent=1 // pred_fallthru
      _
    // Predicated region
    $region178: #{tpu_custom_call.1} parent=1 // pred_check
      _
    $region179: #{tpu_custom_call.1} parent=1 // pred_check_branch
      %5744 = sbr.rel (0) target = $region181
    $region180: #{tpu_custom_call.1} parent=1 // pred_region
      %5745 = dma.done [#allocation30], 128
    $region181: #{tpu_custom_call.1} parent=1 // pred_fallthru
      _
    // Predicated region
    $region182: #{tpu_custom_call.1} parent=1 // pred_check
      _
    $region183: #{tpu_custom_call.1} parent=1 // pred_check_branch
      %5747 = sbr.rel (0) target = $region185
    $region184: #{tpu_custom_call.1} parent=1 // pred_region
      %5748 = dma.done [#allocation30], 128
    $region185: #{tpu_custom_call.1} parent=1 // pred_fallthru
      _
    %5749 = vsyncpa [#allocation7], 1
    %5750 = vsyncpa [#allocation12], 1
    %5751 = vsyncpa [#allocation15], 1
    %5752 = vsyncpa [#allocation18], 1
    %5753 = vsyncpa [#allocation21], 1
    %5754 = vsyncpa [#allocation24], 1
    %5755 = vsyncpa [#allocation27], 1
    %5756 = vsyncpa [#allocation8], 1
    %5757 = vsyncpa [#allocation30], 1
    %5758 = vsyncpa [#allocation9], 1

</llo_original>
